<compile_context>
chip_gen: v5e
topology: v5e:2x2
jax: 0.10.0
libtpu: 0.0.40
codegen_flags: <defaults>
</compile_context>

<pallas_src>
import functools

import jax
import jax.numpy as jnp
from jax.experimental import pallas as pl
from jax.experimental.pallas import tpu as pltpu


# ----------------------------- fractal structure (static schedule) -----------------------------

def build_fractal_structure(n_cols):
    """Which (column, depth) slots hold an MHA module, how many join per depth, and a flat
    module index used to stack all MHA weights into single arrays."""
    max_depth = 2 ** (n_cols - 1)
    count = [0] * max_depth
    has_module = [[False] * max_depth for _ in range(n_cols)]
    dist = max_depth
    for c in range(n_cols):
        for i in range(max_depth):
            if (i + 1) % dist == 0:
                has_module[c][i] = True
                count[i] += 1
        dist //= 2
    module_index = {}
    for i in range(max_depth):
        st = n_cols - count[i]
        for c in range(st, n_cols):
            module_index[(c, i)] = len(module_index)
    return dict(n_cols=n_cols, max_depth=max_depth, count=tuple(count),
                module_index=module_index, n_modules=len(module_index))


# ----------------------------- fused Block kernel -----------------------------

def _block_kernel(x_ref, ln1g_ref, ln1b_ref, ln2g_ref, ln2b_ref,
                  wq_ref, wk_ref, wv_ref, wp_ref, bp_ref,
                  w1_ref, b1_ref, w2_ref, b2_ref,
                  o_ref, *, n_head, structure):
    x0 = x_ref[0]                                         # (T, C) f32
    T, C = x0.shape
    hs = C // n_head
    scale = C ** (-0.5)                                   # reference scales by n_embed, not head_size

    def layernorm(v, g, b):
        mu = jnp.mean(v, axis=-1, keepdims=True)
        vc = v - mu
        var = jnp.mean(vc * vc, axis=-1, keepdims=True)
        return vc * jax.lax.rsqrt(var + 1e-5) * g + b

    # causal mask, built once and reused by every MHA module
    row = jax.lax.broadcasted_iota(jnp.int32, (T, T), 0)
    col = jax.lax.broadcasted_iota(jnp.int32, (T, T), 1)
    causal = row >= col
    neg = jnp.float32(-1e30)

    def mha(xin, m):
        """One MultiHeadAttention module (flat module index m), weights read from VMEM refs."""
        acc = None
        for h in range(n_head):                           # static loop over heads (tiny dots)
            q = jnp.dot(xin, wq_ref[m, h], preferred_element_type=jnp.float32)   # (T, hs)
            k = jnp.dot(xin, wk_ref[m, h], preferred_element_type=jnp.float32)   # (T, hs)
            v = jnp.dot(xin, wv_ref[m, h], preferred_element_type=jnp.float32)   # (T, hs)
            # q @ k^T without materializing a transpose
            s = jax.lax.dot_general(q, k, (((1,), (1,)), ((), ())),
                                    preferred_element_type=jnp.float32) * scale   # (T, T)
            s = jnp.where(causal, s, neg)
            s = s - jnp.max(s, axis=-1, keepdims=True)
            p = jnp.exp(s)
            p = p * pl.reciprocal(jnp.sum(p, axis=-1, keepdims=True), approx=True)
            head_out = jnp.dot(p, v, preferred_element_type=jnp.float32)          # (T, hs)
            # concat(head_outs) @ Wproj  ==  sum_h head_out_h @ Wproj_h   (Wproj stored per-head)
            contrib = jnp.dot(head_out, wp_ref[m, h], preferred_element_type=jnp.float32)
            acc = contrib if acc is None else acc + contrib
        return acc + bp_ref[m]                            # (T, C)

    # ---- LN1 + FractalBlock, entirely in registers/VMEM ----
    h1 = layernorm(x0, ln1g_ref[...], ln1b_ref[...])
    n_cols = structure["n_cols"]
    count = structure["count"]
    module_index = structure["module_index"]
    out_cols = [h1] * n_cols
    for i in range(structure["max_depth"]):               # static fractal schedule
        st = n_cols - count[i]
        cur = [mha(out_cols[c], module_index[(c, i)]) for c in range(st, n_cols)]
        joined = cur[0]
        for t in cur[1:]:
            joined = joined + t
        if len(cur) > 1:
            joined = joined * (1.0 / float(len(cur)))     # mean join (absorbed, no HBM traffic)
        for c in range(st, n_cols):
            out_cols[c] = joined
    sa = out_cols[-1]                                     # dropout p=0 -> identity

    # ---- residual + LN2 + FFN + residual (fused) ----
    x1 = x0 + sa
    h2 = layernorm(x1, ln2g_ref[...], ln2b_ref[...])
    hid = jnp.dot(h2, w1_ref[...], preferred_element_type=jnp.float32) + b1_ref[...]
    hid = jnp.maximum(hid, 0.0)                           # ReLU
    y = x1 + jnp.dot(hid, w2_ref[...], preferred_element_type=jnp.float32) + b2_ref[...]
    o_ref[0] = y


# ----------------------------- pallas_call wrapper -----------------------------

def block_forward(x, params, structure, n_head):
    B, T, C = x.shape
    hs = C // n_head
    H = 4 * C
    n_mod = structure["n_modules"]

    def bcast(shape):
        nd = len(shape)
        return pl.BlockSpec(shape, lambda b, _nd=nd: (0,) * _nd)

    kern = functools.partial(_block_kernel, n_head=n_head, structure=structure)
    return pl.pallas_call(
        kern,
        out_shape=jax.ShapeDtypeStruct((B, T, C), jnp.float32),
        grid=(B,),
        in_specs=[
            pl.BlockSpec((1, T, C), lambda b: (b, 0, 0)),     # x
            bcast((1, C)), bcast((1, C)),                     # ln1 gamma/beta
            bcast((1, C)), bcast((1, C)),                     # ln2 gamma/beta
            bcast((n_mod, n_head, C, hs)),                    # wq (all 7 modules stacked)
            bcast((n_mod, n_head, C, hs)),                    # wk
            bcast((n_mod, n_head, C, hs)),                    # wv
            bcast((n_mod, n_head, hs, C)),                    # wproj, per-head rows
            bcast((n_mod, 1, C)),                             # bproj
            bcast((C, H)), bcast((1, H)),                     # ffn w1/b1
            bcast((H, C)), bcast((1, C)),                     # ffn w2/b2
        ],
        out_specs=pl.BlockSpec((1, T, C), lambda b: (b, 0, 0)),
        compiler_params=pltpu.CompilerParams(
            dimension_semantics=("parallel",)),               # v7x: 2 TCs split the batch
    )(x,
      params["ln1_g"], params["ln1_b"], params["ln2_g"], params["ln2_b"],
      params["wq"], params["wk"], params["wv"], params["wp"], params["bp"],
      params["ffn"]["w1"], params["ffn"]["b1"], params["ffn"]["w2"], params["ffn"]["b2"])


# ----------------------------- deterministic parameter init -----------------------------

def init_block_params(key, n_embed, n_head, structure):
    C = n_embed
    hs = C // n_head
    n_mod = structure["n_modules"]
    ks = jax.random.split(key, 10)
    std = C ** (-0.5)
    return dict(
        ln1_g=jnp.ones((1, C), jnp.float32),
        ln1_b=jnp.zeros((1, C), jnp.float32),
        ln2_g=jnp.ones((1, C), jnp.float32),
        ln2_b=jnp.zeros((1, C), jnp.float32),
        # all fractal MHA modules stacked along a leading module axis
        wq=jax.random.normal(ks[0], (n_mod, n_head, C, hs), jnp.float32) * std,
        wk=jax.random.normal(ks[1], (n_mod, n_head, C, hs), jnp.float32) * std,
        wv=jax.random.normal(ks[2], (n_mod, n_head, C, hs), jnp.float32) * std,
        # projection stored per-head (n_mod, n_head, hs, C): equivalent to a (C, C) proj applied
        # to the concatenated heads, but lets the kernel ref-index [m, h] with no slicing.
        wp=jax.random.normal(ks[3], (n_mod, n_head, hs, C), jnp.float32) * std,
        bp=jax.random.normal(ks[4], (n_mod, 1, C), jnp.float32) * 0.01,
        ffn=dict(
            w1=jax.random.normal(ks[5], (C, 4 * C), jnp.float32) * std,
            b1=jax.random.normal(ks[6], (1, 4 * C), jnp.float32) * 0.01,
            w2=jax.random.normal(ks[7], (4 * C, C), jnp.float32) * ((4 * C) ** -0.5),
            b2=jax.random.normal(ks[8], (1, C), jnp.float32) * 0.01,
        ),
    )


# ----------------------------- main -----------------------------

if __name__ == "__main__":
    B, T, C = 2, 8, 32          # batch, sequence (<= block_size 32), n_embed
    n_head, n_cols = 4, 3

    structure = build_fractal_structure(n_cols)
    key = jax.random.PRNGKey(0)
    kx, kp = jax.random.split(key)
    x = jax.random.normal(kx, (B, T, C), jnp.float32)
    params = init_block_params(kp, C, n_head, structure)

    fwd = jax.jit(functools.partial(block_forward, structure=structure, n_head=n_head))
    out = jax.block_until_ready(fwd(x, params))
    assert out.shape == (B, T, C) and bool(jnp.all(jnp.isfinite(out)))
    print("KERNEL_OK")
</pallas_src>

<mosaic_0001>
module attributes {stable_mosaic.version = 11 : i64} {
  func.func @_block_kernel(%arg0: i32, %arg1: memref<1x8x32xf32, #tpu.memory_space<vmem>>, %arg2: memref<1x32xf32, #tpu.memory_space<vmem>>, %arg3: memref<1x32xf32, #tpu.memory_space<vmem>>, %arg4: memref<1x32xf32, #tpu.memory_space<vmem>>, %arg5: memref<1x32xf32, #tpu.memory_space<vmem>>, %arg6: memref<7x4x32x8xf32, #tpu.memory_space<vmem>>, %arg7: memref<7x4x32x8xf32, #tpu.memory_space<vmem>>, %arg8: memref<7x4x32x8xf32, #tpu.memory_space<vmem>>, %arg9: memref<7x4x8x32xf32, #tpu.memory_space<vmem>>, %arg10: memref<7x1x32xf32, #tpu.memory_space<vmem>>, %arg11: memref<32x128xf32, #tpu.memory_space<vmem>>, %arg12: memref<1x128xf32, #tpu.memory_space<vmem>>, %arg13: memref<128x32xf32, #tpu.memory_space<vmem>>, %arg14: memref<1x32xf32, #tpu.memory_space<vmem>>, %arg15: memref<1x8x32xf32, #tpu.memory_space<vmem>>) attributes {dimension_semantics = [#tpu.dimension_semantics<parallel>], iteration_bounds = array<i64: 2>, scalar_prefetch = 0 : i64, scratch_operands = 0 : i64, tpu.core_type = #tpu.core_type<tc>, window_params = [{transform_indices = @transform_0, window_bounds = array<i64: 1, 8, 32>}, {pipeline_mode = #tpu.pipeline_mode<synchronous>, transform_indices = @transform_1, window_bounds = array<i64: 1, 32>}, {pipeline_mode = #tpu.pipeline_mode<synchronous>, transform_indices = @transform_2, window_bounds = array<i64: 1, 32>}, {pipeline_mode = #tpu.pipeline_mode<synchronous>, transform_indices = @transform_3, window_bounds = array<i64: 1, 32>}, {pipeline_mode = #tpu.pipeline_mode<synchronous>, transform_indices = @transform_4, window_bounds = array<i64: 1, 32>}, {pipeline_mode = #tpu.pipeline_mode<synchronous>, transform_indices = @transform_5, window_bounds = array<i64: 7, 4, 32, 8>}, {pipeline_mode = #tpu.pipeline_mode<synchronous>, transform_indices = @transform_6, window_bounds = array<i64: 7, 4, 32, 8>}, {pipeline_mode = #tpu.pipeline_mode<synchronous>, transform_indices = @transform_7, window_bounds = array<i64: 7, 4, 32, 8>}, {pipeline_mode = #tpu.pipeline_mode<synchronous>, transform_indices = @transform_8, window_bounds = array<i64: 7, 4, 8, 32>}, {pipeline_mode = #tpu.pipeline_mode<synchronous>, transform_indices = @transform_9, window_bounds = array<i64: 7, 1, 32>}, {pipeline_mode = #tpu.pipeline_mode<synchronous>, transform_indices = @transform_10, window_bounds = array<i64: 32, 128>}, {pipeline_mode = #tpu.pipeline_mode<synchronous>, transform_indices = @transform_11, window_bounds = array<i64: 1, 128>}, {pipeline_mode = #tpu.pipeline_mode<synchronous>, transform_indices = @transform_12, window_bounds = array<i64: 128, 32>}, {pipeline_mode = #tpu.pipeline_mode<synchronous>, transform_indices = @transform_13, window_bounds = array<i64: 1, 32>}, {transform_indices = @transform_14, window_bounds = array<i64: 1, 8, 32>}]} {
    %c0 = arith.constant 0 : index
    %c0_0 = arith.constant 0 : index
    %c0_1 = arith.constant 0 : index
    %0 = vector.load %arg1[%c0, %c0_0, %c0_1] : memref<1x8x32xf32, #tpu.memory_space<vmem>>, vector<1x8x32xf32>
    %1 = vector.shape_cast %0 : vector<1x8x32xf32> to vector<8x32xf32>
    %2 = tpu.iota {dimensions = array<i32: 0>} : vector<8x8xi32>
    %3 = tpu.iota {dimensions = array<i32: 1>} : vector<8x8xi32>
    %4 = arith.cmpi sge, %2, %3 : vector<8x8xi32>
    %c0_2 = arith.constant 0 : index
    %c0_3 = arith.constant 0 : index
    %5 = vector.load %arg2[%c0_2, %c0_3] : memref<1x32xf32, #tpu.memory_space<vmem>>, vector<1x32xf32>
    %c0_4 = arith.constant 0 : index
    %c0_5 = arith.constant 0 : index
    %6 = vector.load %arg3[%c0_4, %c0_5] : memref<1x32xf32, #tpu.memory_space<vmem>>, vector<1x32xf32>
    %cst = arith.constant dense<0.000000e+00> : vector<8xf32>
    %7 = vector.multi_reduction <add>, %1, %cst [1] : vector<8x32xf32> to vector<8xf32>
    %8 = vector.shape_cast %7 : vector<8xf32> to vector<8x1xf32>
    %cst_6 = arith.constant 3.200000e+01 : f32
    %9 = vector.broadcast %cst_6 : f32 to vector<8x1xf32>
    %10 = arith.divf %8, %9 : vector<8x1xf32>
    %11 = vector.broadcast %10 : vector<8x1xf32> to vector<8x32xf32>
    %12 = arith.subf %1, %11 : vector<8x32xf32>
    %13 = arith.mulf %12, %12 : vector<8x32xf32>
    %cst_7 = arith.constant dense<0.000000e+00> : vector<8xf32>
    %14 = vector.multi_reduction <add>, %13, %cst_7 [1] : vector<8x32xf32> to vector<8xf32>
    %15 = vector.shape_cast %14 : vector<8xf32> to vector<8x1xf32>
    %cst_8 = arith.constant 3.200000e+01 : f32
    %16 = vector.broadcast %cst_8 : f32 to vector<8x1xf32>
    %17 = arith.divf %15, %16 : vector<8x1xf32>
    %cst_9 = arith.constant 9.99999974E-6 : f32
    %18 = vector.broadcast %cst_9 : f32 to vector<8x1xf32>
    %19 = arith.addf %17, %18 : vector<8x1xf32>
    %20 = math.rsqrt %19 : vector<8x1xf32>
    %21 = vector.broadcast %20 : vector<8x1xf32> to vector<8x32xf32>
    %22 = arith.mulf %12, %21 : vector<8x32xf32>
    %23 = vector.broadcast %5 : vector<1x32xf32> to vector<8x32xf32>
    %24 = arith.mulf %22, %23 : vector<8x32xf32>
    %25 = vector.broadcast %6 : vector<1x32xf32> to vector<8x32xf32>
    %26 = arith.addf %24, %25 : vector<8x32xf32>
    %c0_10 = arith.constant 0 : index
    %c0_11 = arith.constant 0 : index
    %c0_12 = arith.constant 0 : index
    %c0_13 = arith.constant 0 : index
    %27 = vector.load %arg6[%c0_10, %c0_11, %c0_12, %c0_13] : memref<7x4x32x8xf32, #tpu.memory_space<vmem>>, vector<1x1x32x8xf32>
    %28 = vector.shape_cast %27 : vector<1x1x32x8xf32> to vector<32x8xf32>
    %cst_14 = arith.constant dense<0.000000e+00> : vector<8x8xf32>
    %29 = tpu.matmul %26, %28, %cst_14 {dimension_numbers = #tpu.dot_dimension_numbers<[1], [0], [0], [1], [0, 0, 1, 1], [], []>} : vector<8x32xf32>, vector<32x8xf32>, vector<8x8xf32> -> vector<8x8xf32>
    %c0_15 = arith.constant 0 : index
    %c0_16 = arith.constant 0 : index
    %c0_17 = arith.constant 0 : index
    %c0_18 = arith.constant 0 : index
    %30 = vector.load %arg7[%c0_15, %c0_16, %c0_17, %c0_18] : memref<7x4x32x8xf32, #tpu.memory_space<vmem>>, vector<1x1x32x8xf32>
    %31 = vector.shape_cast %30 : vector<1x1x32x8xf32> to vector<32x8xf32>
    %cst_19 = arith.constant dense<0.000000e+00> : vector<8x8xf32>
    %32 = tpu.matmul %26, %31, %cst_19 {dimension_numbers = #tpu.dot_dimension_numbers<[1], [0], [0], [1], [0, 0, 1, 1], [], []>} : vector<8x32xf32>, vector<32x8xf32>, vector<8x8xf32> -> vector<8x8xf32>
    %c0_20 = arith.constant 0 : index
    %c0_21 = arith.constant 0 : index
    %c0_22 = arith.constant 0 : index
    %c0_23 = arith.constant 0 : index
    %33 = vector.load %arg8[%c0_20, %c0_21, %c0_22, %c0_23] : memref<7x4x32x8xf32, #tpu.memory_space<vmem>>, vector<1x1x32x8xf32>
    %34 = vector.shape_cast %33 : vector<1x1x32x8xf32> to vector<32x8xf32>
    %cst_24 = arith.constant dense<0.000000e+00> : vector<8x8xf32>
    %35 = tpu.matmul %26, %34, %cst_24 {dimension_numbers = #tpu.dot_dimension_numbers<[1], [0], [0], [1], [0, 0, 1, 1], [], []>} : vector<8x32xf32>, vector<32x8xf32>, vector<8x8xf32> -> vector<8x8xf32>
    %cst_25 = arith.constant dense<0.000000e+00> : vector<8x8xf32>
    %36 = tpu.matmul %29, %32, %cst_25 {dimension_numbers = #tpu.dot_dimension_numbers<[1], [1], [0], [0], [0, 0, 1, 0], [], []>} : vector<8x8xf32>, vector<8x8xf32>, vector<8x8xf32> -> vector<8x8xf32>
    %cst_26 = arith.constant 0.176776692 : f32
    %37 = vector.broadcast %cst_26 : f32 to vector<8x8xf32>
    %38 = arith.mulf %36, %37 : vector<8x8xf32>
    %cst_27 = arith.constant -1.000000e+30 : f32
    %39 = vector.broadcast %cst_27 : f32 to vector<8x8xf32>
    %40 = arith.select %4, %38, %39 : vector<8x8xi1>, vector<8x8xf32>
    %cst_28 = arith.constant dense<0xFF800000> : vector<8xf32>
    %41 = vector.multi_reduction <maximumf>, %40, %cst_28 [1] : vector<8x8xf32> to vector<8xf32>
    %42 = vector.shape_cast %41 : vector<8xf32> to vector<8x1xf32>
    %43 = vector.broadcast %42 : vector<8x1xf32> to vector<8x8xf32>
    %44 = arith.subf %40, %43 : vector<8x8xf32>
    %45 = math.exp %44 : vector<8x8xf32>
    %cst_29 = arith.constant dense<0.000000e+00> : vector<8xf32>
    %46 = vector.multi_reduction <add>, %45, %cst_29 [1] : vector<8x8xf32> to vector<8xf32>
    %47 = vector.shape_cast %46 : vector<8xf32> to vector<8x1xf32>
    %48 = tpu.reciprocal %47 {approx = true} : vector<8x1xf32> -> vector<8x1xf32>
    %49 = vector.broadcast %48 : vector<8x1xf32> to vector<8x8xf32>
    %50 = arith.mulf %45, %49 : vector<8x8xf32>
    %cst_30 = arith.constant dense<0.000000e+00> : vector<8x8xf32>
    %51 = tpu.matmul %50, %35, %cst_30 {dimension_numbers = #tpu.dot_dimension_numbers<[1], [0], [0], [1], [0, 0, 1, 1], [], []>} : vector<8x8xf32>, vector<8x8xf32>, vector<8x8xf32> -> vector<8x8xf32>
    %c0_31 = arith.constant 0 : index
    %c0_32 = arith.constant 0 : index
    %c0_33 = arith.constant 0 : index
    %c0_34 = arith.constant 0 : index
    %52 = vector.load %arg9[%c0_31, %c0_32, %c0_33, %c0_34] : memref<7x4x8x32xf32, #tpu.memory_space<vmem>>, vector<1x1x8x32xf32>
    %53 = vector.shape_cast %52 : vector<1x1x8x32xf32> to vector<8x32xf32>
    %cst_35 = arith.constant dense<0.000000e+00> : vector<8x32xf32>
    %54 = tpu.matmul %51, %53, %cst_35 {dimension_numbers = #tpu.dot_dimension_numbers<[1], [0], [0], [1], [0, 0, 1, 1], [], []>} : vector<8x8xf32>, vector<8x32xf32>, vector<8x32xf32> -> vector<8x32xf32>
    %c0_36 = arith.constant 0 : index
    %c1 = arith.constant 1 : index
    %c0_37 = arith.constant 0 : index
    %c0_38 = arith.constant 0 : index
    %55 = vector.load %arg6[%c0_36, %c1, %c0_37, %c0_38] : memref<7x4x32x8xf32, #tpu.memory_space<vmem>>, vector<1x1x32x8xf32>
    %56 = vector.shape_cast %55 : vector<1x1x32x8xf32> to vector<32x8xf32>
    %cst_39 = arith.constant dense<0.000000e+00> : vector<8x8xf32>
    %57 = tpu.matmul %26, %56, %cst_39 {dimension_numbers = #tpu.dot_dimension_numbers<[1], [0], [0], [1], [0, 0, 1, 1], [], []>} : vector<8x32xf32>, vector<32x8xf32>, vector<8x8xf32> -> vector<8x8xf32>
    %c0_40 = arith.constant 0 : index
    %c1_41 = arith.constant 1 : index
    %c0_42 = arith.constant 0 : index
    %c0_43 = arith.constant 0 : index
    %58 = vector.load %arg7[%c0_40, %c1_41, %c0_42, %c0_43] : memref<7x4x32x8xf32, #tpu.memory_space<vmem>>, vector<1x1x32x8xf32>
    %59 = vector.shape_cast %58 : vector<1x1x32x8xf32> to vector<32x8xf32>
    %cst_44 = arith.constant dense<0.000000e+00> : vector<8x8xf32>
    %60 = tpu.matmul %26, %59, %cst_44 {dimension_numbers = #tpu.dot_dimension_numbers<[1], [0], [0], [1], [0, 0, 1, 1], [], []>} : vector<8x32xf32>, vector<32x8xf32>, vector<8x8xf32> -> vector<8x8xf32>
    %c0_45 = arith.constant 0 : index
    %c1_46 = arith.constant 1 : index
    %c0_47 = arith.constant 0 : index
    %c0_48 = arith.constant 0 : index
    %61 = vector.load %arg8[%c0_45, %c1_46, %c0_47, %c0_48] : memref<7x4x32x8xf32, #tpu.memory_space<vmem>>, vector<1x1x32x8xf32>
    %62 = vector.shape_cast %61 : vector<1x1x32x8xf32> to vector<32x8xf32>
    %cst_49 = arith.constant dense<0.000000e+00> : vector<8x8xf32>
    %63 = tpu.matmul %26, %62, %cst_49 {dimension_numbers = #tpu.dot_dimension_numbers<[1], [0], [0], [1], [0, 0, 1, 1], [], []>} : vector<8x32xf32>, vector<32x8xf32>, vector<8x8xf32> -> vector<8x8xf32>
    %cst_50 = arith.constant dense<0.000000e+00> : vector<8x8xf32>
    %64 = tpu.matmul %57, %60, %cst_50 {dimension_numbers = #tpu.dot_dimension_numbers<[1], [1], [0], [0], [0, 0, 1, 0], [], []>} : vector<8x8xf32>, vector<8x8xf32>, vector<8x8xf32> -> vector<8x8xf32>
    %cst_51 = arith.constant 0.176776692 : f32
    %65 = vector.broadcast %cst_51 : f32 to vector<8x8xf32>
    %66 = arith.mulf %64, %65 : vector<8x8xf32>
    %cst_52 = arith.constant -1.000000e+30 : f32
    %67 = vector.broadcast %cst_52 : f32 to vector<8x8xf32>
    %68 = arith.select %4, %66, %67 : vector<8x8xi1>, vector<8x8xf32>
    %cst_53 = arith.constant dense<0xFF800000> : vector<8xf32>
    %69 = vector.multi_reduction <maximumf>, %68, %cst_53 [1] : vector<8x8xf32> to vector<8xf32>
    %70 = vector.shape_cast %69 : vector<8xf32> to vector<8x1xf32>
    %71 = vector.broadcast %70 : vector<8x1xf32> to vector<8x8xf32>
    %72 = arith.subf %68, %71 : vector<8x8xf32>
    %73 = math.exp %72 : vector<8x8xf32>
    %cst_54 = arith.constant dense<0.000000e+00> : vector<8xf32>
    %74 = vector.multi_reduction <add>, %73, %cst_54 [1] : vector<8x8xf32> to vector<8xf32>
    %75 = vector.shape_cast %74 : vector<8xf32> to vector<8x1xf32>
    %76 = tpu.reciprocal %75 {approx = true} : vector<8x1xf32> -> vector<8x1xf32>
    %77 = vector.broadcast %76 : vector<8x1xf32> to vector<8x8xf32>
    %78 = arith.mulf %73, %77 : vector<8x8xf32>
    %cst_55 = arith.constant dense<0.000000e+00> : vector<8x8xf32>
    %79 = tpu.matmul %78, %63, %cst_55 {dimension_numbers = #tpu.dot_dimension_numbers<[1], [0], [0], [1], [0, 0, 1, 1], [], []>} : vector<8x8xf32>, vector<8x8xf32>, vector<8x8xf32> -> vector<8x8xf32>
    %c0_56 = arith.constant 0 : index
    %c1_57 = arith.constant 1 : index
    %c0_58 = arith.constant 0 : index
    %c0_59 = arith.constant 0 : index
    %80 = vector.load %arg9[%c0_56, %c1_57, %c0_58, %c0_59] : memref<7x4x8x32xf32, #tpu.memory_space<vmem>>, vector<1x1x8x32xf32>
    %81 = vector.shape_cast %80 : vector<1x1x8x32xf32> to vector<8x32xf32>
    %cst_60 = arith.constant dense<0.000000e+00> : vector<8x32xf32>
    %82 = tpu.matmul %79, %81, %cst_60 {dimension_numbers = #tpu.dot_dimension_numbers<[1], [0], [0], [1], [0, 0, 1, 1], [], []>} : vector<8x8xf32>, vector<8x32xf32>, vector<8x32xf32> -> vector<8x32xf32>
    %83 = arith.addf %54, %82 : vector<8x32xf32>
    %c0_61 = arith.constant 0 : index
    %c2 = arith.constant 2 : index
    %c0_62 = arith.constant 0 : index
    %c0_63 = arith.constant 0 : index
    %84 = vector.load %arg6[%c0_61, %c2, %c0_62, %c0_63] : memref<7x4x32x8xf32, #tpu.memory_space<vmem>>, vector<1x1x32x8xf32>
    %85 = vector.shape_cast %84 : vector<1x1x32x8xf32> to vector<32x8xf32>
    %cst_64 = arith.constant dense<0.000000e+00> : vector<8x8xf32>
    %86 = tpu.matmul %26, %85, %cst_64 {dimension_numbers = #tpu.dot_dimension_numbers<[1], [0], [0], [1], [0, 0, 1, 1], [], []>} : vector<8x32xf32>, vector<32x8xf32>, vector<8x8xf32> -> vector<8x8xf32>
    %c0_65 = arith.constant 0 : index
    %c2_66 = arith.constant 2 : index
    %c0_67 = arith.constant 0 : index
    %c0_68 = arith.constant 0 : index
    %87 = vector.load %arg7[%c0_65, %c2_66, %c0_67, %c0_68] : memref<7x4x32x8xf32, #tpu.memory_space<vmem>>, vector<1x1x32x8xf32>
    %88 = vector.shape_cast %87 : vector<1x1x32x8xf32> to vector<32x8xf32>
    %cst_69 = arith.constant dense<0.000000e+00> : vector<8x8xf32>
    %89 = tpu.matmul %26, %88, %cst_69 {dimension_numbers = #tpu.dot_dimension_numbers<[1], [0], [0], [1], [0, 0, 1, 1], [], []>} : vector<8x32xf32>, vector<32x8xf32>, vector<8x8xf32> -> vector<8x8xf32>
    %c0_70 = arith.constant 0 : index
    %c2_71 = arith.constant 2 : index
    %c0_72 = arith.constant 0 : index
    %c0_73 = arith.constant 0 : index
    %90 = vector.load %arg8[%c0_70, %c2_71, %c0_72, %c0_73] : memref<7x4x32x8xf32, #tpu.memory_space<vmem>>, vector<1x1x32x8xf32>
    %91 = vector.shape_cast %90 : vector<1x1x32x8xf32> to vector<32x8xf32>
    %cst_74 = arith.constant dense<0.000000e+00> : vector<8x8xf32>
    %92 = tpu.matmul %26, %91, %cst_74 {dimension_numbers = #tpu.dot_dimension_numbers<[1], [0], [0], [1], [0, 0, 1, 1], [], []>} : vector<8x32xf32>, vector<32x8xf32>, vector<8x8xf32> -> vector<8x8xf32>
    %cst_75 = arith.constant dense<0.000000e+00> : vector<8x8xf32>
    %93 = tpu.matmul %86, %89, %cst_75 {dimension_numbers = #tpu.dot_dimension_numbers<[1], [1], [0], [0], [0, 0, 1, 0], [], []>} : vector<8x8xf32>, vector<8x8xf32>, vector<8x8xf32> -> vector<8x8xf32>
    %cst_76 = arith.constant 0.176776692 : f32
    %94 = vector.broadcast %cst_76 : f32 to vector<8x8xf32>
    %95 = arith.mulf %93, %94 : vector<8x8xf32>
    %cst_77 = arith.constant -1.000000e+30 : f32
    %96 = vector.broadcast %cst_77 : f32 to vector<8x8xf32>
    %97 = arith.select %4, %95, %96 : vector<8x8xi1>, vector<8x8xf32>
    %cst_78 = arith.constant dense<0xFF800000> : vector<8xf32>
    %98 = vector.multi_reduction <maximumf>, %97, %cst_78 [1] : vector<8x8xf32> to vector<8xf32>
    %99 = vector.shape_cast %98 : vector<8xf32> to vector<8x1xf32>
    %100 = vector.broadcast %99 : vector<8x1xf32> to vector<8x8xf32>
    %101 = arith.subf %97, %100 : vector<8x8xf32>
    %102 = math.exp %101 : vector<8x8xf32>
    %cst_79 = arith.constant dense<0.000000e+00> : vector<8xf32>
    %103 = vector.multi_reduction <add>, %102, %cst_79 [1] : vector<8x8xf32> to vector<8xf32>
    %104 = vector.shape_cast %103 : vector<8xf32> to vector<8x1xf32>
    %105 = tpu.reciprocal %104 {approx = true} : vector<8x1xf32> -> vector<8x1xf32>
    %106 = vector.broadcast %105 : vector<8x1xf32> to vector<8x8xf32>
    %107 = arith.mulf %102, %106 : vector<8x8xf32>
    %cst_80 = arith.constant dense<0.000000e+00> : vector<8x8xf32>
    %108 = tpu.matmul %107, %92, %cst_80 {dimension_numbers = #tpu.dot_dimension_numbers<[1], [0], [0], [1], [0, 0, 1, 1], [], []>} : vector<8x8xf32>, vector<8x8xf32>, vector<8x8xf32> -> vector<8x8xf32>
    %c0_81 = arith.constant 0 : index
    %c2_82 = arith.constant 2 : index
    %c0_83 = arith.constant 0 : index
    %c0_84 = arith.constant 0 : index
    %109 = vector.load %arg9[%c0_81, %c2_82, %c0_83, %c0_84] : memref<7x4x8x32xf32, #tpu.memory_space<vmem>>, vector<1x1x8x32xf32>
    %110 = vector.shape_cast %109 : vector<1x1x8x32xf32> to vector<8x32xf32>
    %cst_85 = arith.constant dense<0.000000e+00> : vector<8x32xf32>
    %111 = tpu.matmul %108, %110, %cst_85 {dimension_numbers = #tpu.dot_dimension_numbers<[1], [0], [0], [1], [0, 0, 1, 1], [], []>} : vector<8x8xf32>, vector<8x32xf32>, vector<8x32xf32> -> vector<8x32xf32>
    %112 = arith.addf %83, %111 : vector<8x32xf32>
    %c0_86 = arith.constant 0 : index
    %c3 = arith.constant 3 : index
    %c0_87 = arith.constant 0 : index
    %c0_88 = arith.constant 0 : index
    %113 = vector.load %arg6[%c0_86, %c3, %c0_87, %c0_88] : memref<7x4x32x8xf32, #tpu.memory_space<vmem>>, vector<1x1x32x8xf32>
    %114 = vector.shape_cast %113 : vector<1x1x32x8xf32> to vector<32x8xf32>
    %cst_89 = arith.constant dense<0.000000e+00> : vector<8x8xf32>
    %115 = tpu.matmul %26, %114, %cst_89 {dimension_numbers = #tpu.dot_dimension_numbers<[1], [0], [0], [1], [0, 0, 1, 1], [], []>} : vector<8x32xf32>, vector<32x8xf32>, vector<8x8xf32> -> vector<8x8xf32>
    %c0_90 = arith.constant 0 : index
    %c3_91 = arith.constant 3 : index
    %c0_92 = arith.constant 0 : index
    %c0_93 = arith.constant 0 : index
    %116 = vector.load %arg7[%c0_90, %c3_91, %c0_92, %c0_93] : memref<7x4x32x8xf32, #tpu.memory_space<vmem>>, vector<1x1x32x8xf32>
    %117 = vector.shape_cast %116 : vector<1x1x32x8xf32> to vector<32x8xf32>
    %cst_94 = arith.constant dense<0.000000e+00> : vector<8x8xf32>
    %118 = tpu.matmul %26, %117, %cst_94 {dimension_numbers = #tpu.dot_dimension_numbers<[1], [0], [0], [1], [0, 0, 1, 1], [], []>} : vector<8x32xf32>, vector<32x8xf32>, vector<8x8xf32> -> vector<8x8xf32>
    %c0_95 = arith.constant 0 : index
    %c3_96 = arith.constant 3 : index
    %c0_97 = arith.constant 0 : index
    %c0_98 = arith.constant 0 : index
    %119 = vector.load %arg8[%c0_95, %c3_96, %c0_97, %c0_98] : memref<7x4x32x8xf32, #tpu.memory_space<vmem>>, vector<1x1x32x8xf32>
    %120 = vector.shape_cast %119 : vector<1x1x32x8xf32> to vector<32x8xf32>
    %cst_99 = arith.constant dense<0.000000e+00> : vector<8x8xf32>
    %121 = tpu.matmul %26, %120, %cst_99 {dimension_numbers = #tpu.dot_dimension_numbers<[1], [0], [0], [1], [0, 0, 1, 1], [], []>} : vector<8x32xf32>, vector<32x8xf32>, vector<8x8xf32> -> vector<8x8xf32>
    %cst_100 = arith.constant dense<0.000000e+00> : vector<8x8xf32>
    %122 = tpu.matmul %115, %118, %cst_100 {dimension_numbers = #tpu.dot_dimension_numbers<[1], [1], [0], [0], [0, 0, 1, 0], [], []>} : vector<8x8xf32>, vector<8x8xf32>, vector<8x8xf32> -> vector<8x8xf32>
    %cst_101 = arith.constant 0.176776692 : f32
    %123 = vector.broadcast %cst_101 : f32 to vector<8x8xf32>
    %124 = arith.mulf %122, %123 : vector<8x8xf32>
    %cst_102 = arith.constant -1.000000e+30 : f32
    %125 = vector.broadcast %cst_102 : f32 to vector<8x8xf32>
    %126 = arith.select %4, %124, %125 : vector<8x8xi1>, vector<8x8xf32>
    %cst_103 = arith.constant dense<0xFF800000> : vector<8xf32>
    %127 = vector.multi_reduction <maximumf>, %126, %cst_103 [1] : vector<8x8xf32> to vector<8xf32>
    %128 = vector.shape_cast %127 : vector<8xf32> to vector<8x1xf32>
    %129 = vector.broadcast %128 : vector<8x1xf32> to vector<8x8xf32>
    %130 = arith.subf %126, %129 : vector<8x8xf32>
    %131 = math.exp %130 : vector<8x8xf32>
    %cst_104 = arith.constant dense<0.000000e+00> : vector<8xf32>
    %132 = vector.multi_reduction <add>, %131, %cst_104 [1] : vector<8x8xf32> to vector<8xf32>
    %133 = vector.shape_cast %132 : vector<8xf32> to vector<8x1xf32>
    %134 = tpu.reciprocal %133 {approx = true} : vector<8x1xf32> -> vector<8x1xf32>
    %135 = vector.broadcast %134 : vector<8x1xf32> to vector<8x8xf32>
    %136 = arith.mulf %131, %135 : vector<8x8xf32>
    %cst_105 = arith.constant dense<0.000000e+00> : vector<8x8xf32>
    %137 = tpu.matmul %136, %121, %cst_105 {dimension_numbers = #tpu.dot_dimension_numbers<[1], [0], [0], [1], [0, 0, 1, 1], [], []>} : vector<8x8xf32>, vector<8x8xf32>, vector<8x8xf32> -> vector<8x8xf32>
    %c0_106 = arith.constant 0 : index
    %c3_107 = arith.constant 3 : index
    %c0_108 = arith.constant 0 : index
    %c0_109 = arith.constant 0 : index
    %138 = vector.load %arg9[%c0_106, %c3_107, %c0_108, %c0_109] : memref<7x4x8x32xf32, #tpu.memory_space<vmem>>, vector<1x1x8x32xf32>
    %139 = vector.shape_cast %138 : vector<1x1x8x32xf32> to vector<8x32xf32>
    %cst_110 = arith.constant dense<0.000000e+00> : vector<8x32xf32>
    %140 = tpu.matmul %137, %139, %cst_110 {dimension_numbers = #tpu.dot_dimension_numbers<[1], [0], [0], [1], [0, 0, 1, 1], [], []>} : vector<8x8xf32>, vector<8x32xf32>, vector<8x32xf32> -> vector<8x32xf32>
    %141 = arith.addf %112, %140 : vector<8x32xf32>
    %c0_111 = arith.constant 0 : index
    %c0_112 = arith.constant 0 : index
    %c0_113 = arith.constant 0 : index
    %142 = vector.load %arg10[%c0_111, %c0_112, %c0_113] : memref<7x1x32xf32, #tpu.memory_space<vmem>>, vector<1x1x32xf32>
    %143 = vector.shape_cast %142 : vector<1x1x32xf32> to vector<1x32xf32>
    %144 = vector.broadcast %143 : vector<1x32xf32> to vector<8x32xf32>
    %145 = arith.addf %141, %144 : vector<8x32xf32>
    %c1_114 = arith.constant 1 : index
    %c0_115 = arith.constant 0 : index
    %c0_116 = arith.constant 0 : index
    %c0_117 = arith.constant 0 : index
    %146 = vector.load %arg6[%c1_114, %c0_115, %c0_116, %c0_117] : memref<7x4x32x8xf32, #tpu.memory_space<vmem>>, vector<1x1x32x8xf32>
    %147 = vector.shape_cast %146 : vector<1x1x32x8xf32> to vector<32x8xf32>
    %cst_118 = arith.constant dense<0.000000e+00> : vector<8x8xf32>
    %148 = tpu.matmul %26, %147, %cst_118 {dimension_numbers = #tpu.dot_dimension_numbers<[1], [0], [0], [1], [0, 0, 1, 1], [], []>} : vector<8x32xf32>, vector<32x8xf32>, vector<8x8xf32> -> vector<8x8xf32>
    %c1_119 = arith.constant 1 : index
    %c0_120 = arith.constant 0 : index
    %c0_121 = arith.constant 0 : index
    %c0_122 = arith.constant 0 : index
    %149 = vector.load %arg7[%c1_119, %c0_120, %c0_121, %c0_122] : memref<7x4x32x8xf32, #tpu.memory_space<vmem>>, vector<1x1x32x8xf32>
    %150 = vector.shape_cast %149 : vector<1x1x32x8xf32> to vector<32x8xf32>
    %cst_123 = arith.constant dense<0.000000e+00> : vector<8x8xf32>
    %151 = tpu.matmul %26, %150, %cst_123 {dimension_numbers = #tpu.dot_dimension_numbers<[1], [0], [0], [1], [0, 0, 1, 1], [], []>} : vector<8x32xf32>, vector<32x8xf32>, vector<8x8xf32> -> vector<8x8xf32>
    %c1_124 = arith.constant 1 : index
    %c0_125 = arith.constant 0 : index
    %c0_126 = arith.constant 0 : index
    %c0_127 = arith.constant 0 : index
    %152 = vector.load %arg8[%c1_124, %c0_125, %c0_126, %c0_127] : memref<7x4x32x8xf32, #tpu.memory_space<vmem>>, vector<1x1x32x8xf32>
    %153 = vector.shape_cast %152 : vector<1x1x32x8xf32> to vector<32x8xf32>
    %cst_128 = arith.constant dense<0.000000e+00> : vector<8x8xf32>
    %154 = tpu.matmul %26, %153, %cst_128 {dimension_numbers = #tpu.dot_dimension_numbers<[1], [0], [0], [1], [0, 0, 1, 1], [], []>} : vector<8x32xf32>, vector<32x8xf32>, vector<8x8xf32> -> vector<8x8xf32>
    %cst_129 = arith.constant dense<0.000000e+00> : vector<8x8xf32>
    %155 = tpu.matmul %148, %151, %cst_129 {dimension_numbers = #tpu.dot_dimension_numbers<[1], [1], [0], [0], [0, 0, 1, 0], [], []>} : vector<8x8xf32>, vector<8x8xf32>, vector<8x8xf32> -> vector<8x8xf32>
    %cst_130 = arith.constant 0.176776692 : f32
    %156 = vector.broadcast %cst_130 : f32 to vector<8x8xf32>
    %157 = arith.mulf %155, %156 : vector<8x8xf32>
    %cst_131 = arith.constant -1.000000e+30 : f32
    %158 = vector.broadcast %cst_131 : f32 to vector<8x8xf32>
    %159 = arith.select %4, %157, %158 : vector<8x8xi1>, vector<8x8xf32>
    %cst_132 = arith.constant dense<0xFF800000> : vector<8xf32>
    %160 = vector.multi_reduction <maximumf>, %159, %cst_132 [1] : vector<8x8xf32> to vector<8xf32>
    %161 = vector.shape_cast %160 : vector<8xf32> to vector<8x1xf32>
    %162 = vector.broadcast %161 : vector<8x1xf32> to vector<8x8xf32>
    %163 = arith.subf %159, %162 : vector<8x8xf32>
    %164 = math.exp %163 : vector<8x8xf32>
    %cst_133 = arith.constant dense<0.000000e+00> : vector<8xf32>
    %165 = vector.multi_reduction <add>, %164, %cst_133 [1] : vector<8x8xf32> to vector<8xf32>
    %166 = vector.shape_cast %165 : vector<8xf32> to vector<8x1xf32>
    %167 = tpu.reciprocal %166 {approx = true} : vector<8x1xf32> -> vector<8x1xf32>
    %168 = vector.broadcast %167 : vector<8x1xf32> to vector<8x8xf32>
    %169 = arith.mulf %164, %168 : vector<8x8xf32>
    %cst_134 = arith.constant dense<0.000000e+00> : vector<8x8xf32>
    %170 = tpu.matmul %169, %154, %cst_134 {dimension_numbers = #tpu.dot_dimension_numbers<[1], [0], [0], [1], [0, 0, 1, 1], [], []>} : vector<8x8xf32>, vector<8x8xf32>, vector<8x8xf32> -> vector<8x8xf32>
    %c1_135 = arith.constant 1 : index
    %c0_136 = arith.constant 0 : index
    %c0_137 = arith.constant 0 : index
    %c0_138 = arith.constant 0 : index
    %171 = vector.load %arg9[%c1_135, %c0_136, %c0_137, %c0_138] : memref<7x4x8x32xf32, #tpu.memory_space<vmem>>, vector<1x1x8x32xf32>
    %172 = vector.shape_cast %171 : vector<1x1x8x32xf32> to vector<8x32xf32>
    %cst_139 = arith.constant dense<0.000000e+00> : vector<8x32xf32>
    %173 = tpu.matmul %170, %172, %cst_139 {dimension_numbers = #tpu.dot_dimension_numbers<[1], [0], [0], [1], [0, 0, 1, 1], [], []>} : vector<8x8xf32>, vector<8x32xf32>, vector<8x32xf32> -> vector<8x32xf32>
    %c1_140 = arith.constant 1 : index
    %c1_141 = arith.constant 1 : index
    %c0_142 = arith.constant 0 : index
    %c0_143 = arith.constant 0 : index
    %174 = vector.load %arg6[%c1_140, %c1_141, %c0_142, %c0_143] : memref<7x4x32x8xf32, #tpu.memory_space<vmem>>, vector<1x1x32x8xf32>
    %175 = vector.shape_cast %174 : vector<1x1x32x8xf32> to vector<32x8xf32>
    %cst_144 = arith.constant dense<0.000000e+00> : vector<8x8xf32>
    %176 = tpu.matmul %26, %175, %cst_144 {dimension_numbers = #tpu.dot_dimension_numbers<[1], [0], [0], [1], [0, 0, 1, 1], [], []>} : vector<8x32xf32>, vector<32x8xf32>, vector<8x8xf32> -> vector<8x8xf32>
    %c1_145 = arith.constant 1 : index
    %c1_146 = arith.constant 1 : index
    %c0_147 = arith.constant 0 : index
    %c0_148 = arith.constant 0 : index
    %177 = vector.load %arg7[%c1_145, %c1_146, %c0_147, %c0_148] : memref<7x4x32x8xf32, #tpu.memory_space<vmem>>, vector<1x1x32x8xf32>
    %178 = vector.shape_cast %177 : vector<1x1x32x8xf32> to vector<32x8xf32>
    %cst_149 = arith.constant dense<0.000000e+00> : vector<8x8xf32>
    %179 = tpu.matmul %26, %178, %cst_149 {dimension_numbers = #tpu.dot_dimension_numbers<[1], [0], [0], [1], [0, 0, 1, 1], [], []>} : vector<8x32xf32>, vector<32x8xf32>, vector<8x8xf32> -> vector<8x8xf32>
    %c1_150 = arith.constant 1 : index
    %c1_151 = arith.constant 1 : index
    %c0_152 = arith.constant 0 : index
    %c0_153 = arith.constant 0 : index
    %180 = vector.load %arg8[%c1_150, %c1_151, %c0_152, %c0_153] : memref<7x4x32x8xf32, #tpu.memory_space<vmem>>, vector<1x1x32x8xf32>
    %181 = vector.shape_cast %180 : vector<1x1x32x8xf32> to vector<32x8xf32>
    %cst_154 = arith.constant dense<0.000000e+00> : vector<8x8xf32>
    %182 = tpu.matmul %26, %181, %cst_154 {dimension_numbers = #tpu.dot_dimension_numbers<[1], [0], [0], [1], [0, 0, 1, 1], [], []>} : vector<8x32xf32>, vector<32x8xf32>, vector<8x8xf32> -> vector<8x8xf32>
    %cst_155 = arith.constant dense<0.000000e+00> : vector<8x8xf32>
    %183 = tpu.matmul %176, %179, %cst_155 {dimension_numbers = #tpu.dot_dimension_numbers<[1], [1], [0], [0], [0, 0, 1, 0], [], []>} : vector<8x8xf32>, vector<8x8xf32>, vector<8x8xf32> -> vector<8x8xf32>
    %cst_156 = arith.constant 0.176776692 : f32
    %184 = vector.broadcast %cst_156 : f32 to vector<8x8xf32>
    %185 = arith.mulf %183, %184 : vector<8x8xf32>
    %cst_157 = arith.constant -1.000000e+30 : f32
    %186 = vector.broadcast %cst_157 : f32 to vector<8x8xf32>
    %187 = arith.select %4, %185, %186 : vector<8x8xi1>, vector<8x8xf32>
    %cst_158 = arith.constant dense<0xFF800000> : vector<8xf32>
    %188 = vector.multi_reduction <maximumf>, %187, %cst_158 [1] : vector<8x8xf32> to vector<8xf32>
    %189 = vector.shape_cast %188 : vector<8xf32> to vector<8x1xf32>
    %190 = vector.broadcast %189 : vector<8x1xf32> to vector<8x8xf32>
    %191 = arith.subf %187, %190 : vector<8x8xf32>
    %192 = math.exp %191 : vector<8x8xf32>
    %cst_159 = arith.constant dense<0.000000e+00> : vector<8xf32>
    %193 = vector.multi_reduction <add>, %192, %cst_159 [1] : vector<8x8xf32> to vector<8xf32>
    %194 = vector.shape_cast %193 : vector<8xf32> to vector<8x1xf32>
    %195 = tpu.reciprocal %194 {approx = true} : vector<8x1xf32> -> vector<8x1xf32>
    %196 = vector.broadcast %195 : vector<8x1xf32> to vector<8x8xf32>
    %197 = arith.mulf %192, %196 : vector<8x8xf32>
    %cst_160 = arith.constant dense<0.000000e+00> : vector<8x8xf32>
    %198 = tpu.matmul %197, %182, %cst_160 {dimension_numbers = #tpu.dot_dimension_numbers<[1], [0], [0], [1], [0, 0, 1, 1], [], []>} : vector<8x8xf32>, vector<8x8xf32>, vector<8x8xf32> -> vector<8x8xf32>
    %c1_161 = arith.constant 1 : index
    %c1_162 = arith.constant 1 : index
    %c0_163 = arith.constant 0 : index
    %c0_164 = arith.constant 0 : index
    %199 = vector.load %arg9[%c1_161, %c1_162, %c0_163, %c0_164] : memref<7x4x8x32xf32, #tpu.memory_space<vmem>>, vector<1x1x8x32xf32>
    %200 = vector.shape_cast %199 : vector<1x1x8x32xf32> to vector<8x32xf32>
    %cst_165 = arith.constant dense<0.000000e+00> : vector<8x32xf32>
    %201 = tpu.matmul %198, %200, %cst_165 {dimension_numbers = #tpu.dot_dimension_numbers<[1], [0], [0], [1], [0, 0, 1, 1], [], []>} : vector<8x8xf32>, vector<8x32xf32>, vector<8x32xf32> -> vector<8x32xf32>
    %202 = arith.addf %173, %201 : vector<8x32xf32>
    %c1_166 = arith.constant 1 : index
    %c2_167 = arith.constant 2 : index
    %c0_168 = arith.constant 0 : index
    %c0_169 = arith.constant 0 : index
    %203 = vector.load %arg6[%c1_166, %c2_167, %c0_168, %c0_169] : memref<7x4x32x8xf32, #tpu.memory_space<vmem>>, vector<1x1x32x8xf32>
    %204 = vector.shape_cast %203 : vector<1x1x32x8xf32> to vector<32x8xf32>
    %cst_170 = arith.constant dense<0.000000e+00> : vector<8x8xf32>
    %205 = tpu.matmul %26, %204, %cst_170 {dimension_numbers = #tpu.dot_dimension_numbers<[1], [0], [0], [1], [0, 0, 1, 1], [], []>} : vector<8x32xf32>, vector<32x8xf32>, vector<8x8xf32> -> vector<8x8xf32>
    %c1_171 = arith.constant 1 : index
    %c2_172 = arith.constant 2 : index
    %c0_173 = arith.constant 0 : index
    %c0_174 = arith.constant 0 : index
    %206 = vector.load %arg7[%c1_171, %c2_172, %c0_173, %c0_174] : memref<7x4x32x8xf32, #tpu.memory_space<vmem>>, vector<1x1x32x8xf32>
    %207 = vector.shape_cast %206 : vector<1x1x32x8xf32> to vector<32x8xf32>
    %cst_175 = arith.constant dense<0.000000e+00> : vector<8x8xf32>
    %208 = tpu.matmul %26, %207, %cst_175 {dimension_numbers = #tpu.dot_dimension_numbers<[1], [0], [0], [1], [0, 0, 1, 1], [], []>} : vector<8x32xf32>, vector<32x8xf32>, vector<8x8xf32> -> vector<8x8xf32>
    %c1_176 = arith.constant 1 : index
    %c2_177 = arith.constant 2 : index
    %c0_178 = arith.constant 0 : index
    %c0_179 = arith.constant 0 : index
    %209 = vector.load %arg8[%c1_176, %c2_177, %c0_178, %c0_179] : memref<7x4x32x8xf32, #tpu.memory_space<vmem>>, vector<1x1x32x8xf32>
    %210 = vector.shape_cast %209 : vector<1x1x32x8xf32> to vector<32x8xf32>
    %cst_180 = arith.constant dense<0.000000e+00> : vector<8x8xf32>
    %211 = tpu.matmul %26, %210, %cst_180 {dimension_numbers = #tpu.dot_dimension_numbers<[1], [0], [0], [1], [0, 0, 1, 1], [], []>} : vector<8x32xf32>, vector<32x8xf32>, vector<8x8xf32> -> vector<8x8xf32>
    %cst_181 = arith.constant dense<0.000000e+00> : vector<8x8xf32>
    %212 = tpu.matmul %205, %208, %cst_181 {dimension_numbers = #tpu.dot_dimension_numbers<[1], [1], [0], [0], [0, 0, 1, 0], [], []>} : vector<8x8xf32>, vector<8x8xf32>, vector<8x8xf32> -> vector<8x8xf32>
    %cst_182 = arith.constant 0.176776692 : f32
    %213 = vector.broadcast %cst_182 : f32 to vector<8x8xf32>
    %214 = arith.mulf %212, %213 : vector<8x8xf32>
    %cst_183 = arith.constant -1.000000e+30 : f32
    %215 = vector.broadcast %cst_183 : f32 to vector<8x8xf32>
    %216 = arith.select %4, %214, %215 : vector<8x8xi1>, vector<8x8xf32>
    %cst_184 = arith.constant dense<0xFF800000> : vector<8xf32>
    %217 = vector.multi_reduction <maximumf>, %216, %cst_184 [1] : vector<8x8xf32> to vector<8xf32>
    %218 = vector.shape_cast %217 : vector<8xf32> to vector<8x1xf32>
    %219 = vector.broadcast %218 : vector<8x1xf32> to vector<8x8xf32>
    %220 = arith.subf %216, %219 : vector<8x8xf32>
    %221 = math.exp %220 : vector<8x8xf32>
    %cst_185 = arith.constant dense<0.000000e+00> : vector<8xf32>
    %222 = vector.multi_reduction <add>, %221, %cst_185 [1] : vector<8x8xf32> to vector<8xf32>
    %223 = vector.shape_cast %222 : vector<8xf32> to vector<8x1xf32>
    %224 = tpu.reciprocal %223 {approx = true} : vector<8x1xf32> -> vector<8x1xf32>
    %225 = vector.broadcast %224 : vector<8x1xf32> to vector<8x8xf32>
    %226 = arith.mulf %221, %225 : vector<8x8xf32>
    %cst_186 = arith.constant dense<0.000000e+00> : vector<8x8xf32>
    %227 = tpu.matmul %226, %211, %cst_186 {dimension_numbers = #tpu.dot_dimension_numbers<[1], [0], [0], [1], [0, 0, 1, 1], [], []>} : vector<8x8xf32>, vector<8x8xf32>, vector<8x8xf32> -> vector<8x8xf32>
    %c1_187 = arith.constant 1 : index
    %c2_188 = arith.constant 2 : index
    %c0_189 = arith.constant 0 : index
    %c0_190 = arith.constant 0 : index
    %228 = vector.load %arg9[%c1_187, %c2_188, %c0_189, %c0_190] : memref<7x4x8x32xf32, #tpu.memory_space<vmem>>, vector<1x1x8x32xf32>
    %229 = vector.shape_cast %228 : vector<1x1x8x32xf32> to vector<8x32xf32>
    %cst_191 = arith.constant dense<0.000000e+00> : vector<8x32xf32>
    %230 = tpu.matmul %227, %229, %cst_191 {dimension_numbers = #tpu.dot_dimension_numbers<[1], [0], [0], [1], [0, 0, 1, 1], [], []>} : vector<8x8xf32>, vector<8x32xf32>, vector<8x32xf32> -> vector<8x32xf32>
    %231 = arith.addf %202, %230 : vector<8x32xf32>
    %c1_192 = arith.constant 1 : index
    %c3_193 = arith.constant 3 : index
    %c0_194 = arith.constant 0 : index
    %c0_195 = arith.constant 0 : index
    %232 = vector.load %arg6[%c1_192, %c3_193, %c0_194, %c0_195] : memref<7x4x32x8xf32, #tpu.memory_space<vmem>>, vector<1x1x32x8xf32>
    %233 = vector.shape_cast %232 : vector<1x1x32x8xf32> to vector<32x8xf32>
    %cst_196 = arith.constant dense<0.000000e+00> : vector<8x8xf32>
    %234 = tpu.matmul %26, %233, %cst_196 {dimension_numbers = #tpu.dot_dimension_numbers<[1], [0], [0], [1], [0, 0, 1, 1], [], []>} : vector<8x32xf32>, vector<32x8xf32>, vector<8x8xf32> -> vector<8x8xf32>
    %c1_197 = arith.constant 1 : index
    %c3_198 = arith.constant 3 : index
    %c0_199 = arith.constant 0 : index
    %c0_200 = arith.constant 0 : index
    %235 = vector.load %arg7[%c1_197, %c3_198, %c0_199, %c0_200] : memref<7x4x32x8xf32, #tpu.memory_space<vmem>>, vector<1x1x32x8xf32>
    %236 = vector.shape_cast %235 : vector<1x1x32x8xf32> to vector<32x8xf32>
    %cst_201 = arith.constant dense<0.000000e+00> : vector<8x8xf32>
    %237 = tpu.matmul %26, %236, %cst_201 {dimension_numbers = #tpu.dot_dimension_numbers<[1], [0], [0], [1], [0, 0, 1, 1], [], []>} : vector<8x32xf32>, vector<32x8xf32>, vector<8x8xf32> -> vector<8x8xf32>
    %c1_202 = arith.constant 1 : index
    %c3_203 = arith.constant 3 : index
    %c0_204 = arith.constant 0 : index
    %c0_205 = arith.constant 0 : index
    %238 = vector.load %arg8[%c1_202, %c3_203, %c0_204, %c0_205] : memref<7x4x32x8xf32, #tpu.memory_space<vmem>>, vector<1x1x32x8xf32>
    %239 = vector.shape_cast %238 : vector<1x1x32x8xf32> to vector<32x8xf32>
    %cst_206 = arith.constant dense<0.000000e+00> : vector<8x8xf32>
    %240 = tpu.matmul %26, %239, %cst_206 {dimension_numbers = #tpu.dot_dimension_numbers<[1], [0], [0], [1], [0, 0, 1, 1], [], []>} : vector<8x32xf32>, vector<32x8xf32>, vector<8x8xf32> -> vector<8x8xf32>
    %cst_207 = arith.constant dense<0.000000e+00> : vector<8x8xf32>
    %241 = tpu.matmul %234, %237, %cst_207 {dimension_numbers = #tpu.dot_dimension_numbers<[1], [1], [0], [0], [0, 0, 1, 0], [], []>} : vector<8x8xf32>, vector<8x8xf32>, vector<8x8xf32> -> vector<8x8xf32>
    %cst_208 = arith.constant 0.176776692 : f32
    %242 = vector.broadcast %cst_208 : f32 to vector<8x8xf32>
    %243 = arith.mulf %241, %242 : vector<8x8xf32>
    %cst_209 = arith.constant -1.000000e+30 : f32
    %244 = vector.broadcast %cst_209 : f32 to vector<8x8xf32>
    %245 = arith.select %4, %243, %244 : vector<8x8xi1>, vector<8x8xf32>
    %cst_210 = arith.constant dense<0xFF800000> : vector<8xf32>
    %246 = vector.multi_reduction <maximumf>, %245, %cst_210 [1] : vector<8x8xf32> to vector<8xf32>
    %247 = vector.shape_cast %246 : vector<8xf32> to vector<8x1xf32>
    %248 = vector.broadcast %247 : vector<8x1xf32> to vector<8x8xf32>
    %249 = arith.subf %245, %248 : vector<8x8xf32>
    %250 = math.exp %249 : vector<8x8xf32>
    %cst_211 = arith.constant dense<0.000000e+00> : vector<8xf32>
    %251 = vector.multi_reduction <add>, %250, %cst_211 [1] : vector<8x8xf32> to vector<8xf32>
    %252 = vector.shape_cast %251 : vector<8xf32> to vector<8x1xf32>
    %253 = tpu.reciprocal %252 {approx = true} : vector<8x1xf32> -> vector<8x1xf32>
    %254 = vector.broadcast %253 : vector<8x1xf32> to vector<8x8xf32>
    %255 = arith.mulf %250, %254 : vector<8x8xf32>
    %cst_212 = arith.constant dense<0.000000e+00> : vector<8x8xf32>
    %256 = tpu.matmul %255, %240, %cst_212 {dimension_numbers = #tpu.dot_dimension_numbers<[1], [0], [0], [1], [0, 0, 1, 1], [], []>} : vector<8x8xf32>, vector<8x8xf32>, vector<8x8xf32> -> vector<8x8xf32>
    %c1_213 = arith.constant 1 : index
    %c3_214 = arith.constant 3 : index
    %c0_215 = arith.constant 0 : index
    %c0_216 = arith.constant 0 : index
    %257 = vector.load %arg9[%c1_213, %c3_214, %c0_215, %c0_216] : memref<7x4x8x32xf32, #tpu.memory_space<vmem>>, vector<1x1x8x32xf32>
    %258 = vector.shape_cast %257 : vector<1x1x8x32xf32> to vector<8x32xf32>
    %cst_217 = arith.constant dense<0.000000e+00> : vector<8x32xf32>
    %259 = tpu.matmul %256, %258, %cst_217 {dimension_numbers = #tpu.dot_dimension_numbers<[1], [0], [0], [1], [0, 0, 1, 1], [], []>} : vector<8x8xf32>, vector<8x32xf32>, vector<8x32xf32> -> vector<8x32xf32>
    %260 = arith.addf %231, %259 : vector<8x32xf32>
    %c1_218 = arith.constant 1 : index
    %c0_219 = arith.constant 0 : index
    %c0_220 = arith.constant 0 : index
    %261 = vector.load %arg10[%c1_218, %c0_219, %c0_220] : memref<7x1x32xf32, #tpu.memory_space<vmem>>, vector<1x1x32xf32>
    %262 = vector.shape_cast %261 : vector<1x1x32xf32> to vector<1x32xf32>
    %263 = vector.broadcast %262 : vector<1x32xf32> to vector<8x32xf32>
    %264 = arith.addf %260, %263 : vector<8x32xf32>
    %c2_221 = arith.constant 2 : index
    %c0_222 = arith.constant 0 : index
    %c0_223 = arith.constant 0 : index
    %c0_224 = arith.constant 0 : index
    %265 = vector.load %arg6[%c2_221, %c0_222, %c0_223, %c0_224] : memref<7x4x32x8xf32, #tpu.memory_space<vmem>>, vector<1x1x32x8xf32>
    %266 = vector.shape_cast %265 : vector<1x1x32x8xf32> to vector<32x8xf32>
    %cst_225 = arith.constant dense<0.000000e+00> : vector<8x8xf32>
    %267 = tpu.matmul %145, %266, %cst_225 {dimension_numbers = #tpu.dot_dimension_numbers<[1], [0], [0], [1], [0, 0, 1, 1], [], []>} : vector<8x32xf32>, vector<32x8xf32>, vector<8x8xf32> -> vector<8x8xf32>
    %c2_226 = arith.constant 2 : index
    %c0_227 = arith.constant 0 : index
    %c0_228 = arith.constant 0 : index
    %c0_229 = arith.constant 0 : index
    %268 = vector.load %arg7[%c2_226, %c0_227, %c0_228, %c0_229] : memref<7x4x32x8xf32, #tpu.memory_space<vmem>>, vector<1x1x32x8xf32>
    %269 = vector.shape_cast %268 : vector<1x1x32x8xf32> to vector<32x8xf32>
    %cst_230 = arith.constant dense<0.000000e+00> : vector<8x8xf32>
    %270 = tpu.matmul %145, %269, %cst_230 {dimension_numbers = #tpu.dot_dimension_numbers<[1], [0], [0], [1], [0, 0, 1, 1], [], []>} : vector<8x32xf32>, vector<32x8xf32>, vector<8x8xf32> -> vector<8x8xf32>
    %c2_231 = arith.constant 2 : index
    %c0_232 = arith.constant 0 : index
    %c0_233 = arith.constant 0 : index
    %c0_234 = arith.constant 0 : index
    %271 = vector.load %arg8[%c2_231, %c0_232, %c0_233, %c0_234] : memref<7x4x32x8xf32, #tpu.memory_space<vmem>>, vector<1x1x32x8xf32>
    %272 = vector.shape_cast %271 : vector<1x1x32x8xf32> to vector<32x8xf32>
    %cst_235 = arith.constant dense<0.000000e+00> : vector<8x8xf32>
    %273 = tpu.matmul %145, %272, %cst_235 {dimension_numbers = #tpu.dot_dimension_numbers<[1], [0], [0], [1], [0, 0, 1, 1], [], []>} : vector<8x32xf32>, vector<32x8xf32>, vector<8x8xf32> -> vector<8x8xf32>
    %cst_236 = arith.constant dense<0.000000e+00> : vector<8x8xf32>
    %274 = tpu.matmul %267, %270, %cst_236 {dimension_numbers = #tpu.dot_dimension_numbers<[1], [1], [0], [0], [0, 0, 1, 0], [], []>} : vector<8x8xf32>, vector<8x8xf32>, vector<8x8xf32> -> vector<8x8xf32>
    %cst_237 = arith.constant 0.176776692 : f32
    %275 = vector.broadcast %cst_237 : f32 to vector<8x8xf32>
    %276 = arith.mulf %274, %275 : vector<8x8xf32>
    %cst_238 = arith.constant -1.000000e+30 : f32
    %277 = vector.broadcast %cst_238 : f32 to vector<8x8xf32>
    %278 = arith.select %4, %276, %277 : vector<8x8xi1>, vector<8x8xf32>
    %cst_239 = arith.constant dense<0xFF800000> : vector<8xf32>
    %279 = vector.multi_reduction <maximumf>, %278, %cst_239 [1] : vector<8x8xf32> to vector<8xf32>
    %280 = vector.shape_cast %279 : vector<8xf32> to vector<8x1xf32>
    %281 = vector.broadcast %280 : vector<8x1xf32> to vector<8x8xf32>
    %282 = arith.subf %278, %281 : vector<8x8xf32>
    %283 = math.exp %282 : vector<8x8xf32>
    %cst_240 = arith.constant dense<0.000000e+00> : vector<8xf32>
    %284 = vector.multi_reduction <add>, %283, %cst_240 [1] : vector<8x8xf32> to vector<8xf32>
    %285 = vector.shape_cast %284 : vector<8xf32> to vector<8x1xf32>
    %286 = tpu.reciprocal %285 {approx = true} : vector<8x1xf32> -> vector<8x1xf32>
    %287 = vector.broadcast %286 : vector<8x1xf32> to vector<8x8xf32>
    %288 = arith.mulf %283, %287 : vector<8x8xf32>
    %cst_241 = arith.constant dense<0.000000e+00> : vector<8x8xf32>
    %289 = tpu.matmul %288, %273, %cst_241 {dimension_numbers = #tpu.dot_dimension_numbers<[1], [0], [0], [1], [0, 0, 1, 1], [], []>} : vector<8x8xf32>, vector<8x8xf32>, vector<8x8xf32> -> vector<8x8xf32>
    %c2_242 = arith.constant 2 : index
    %c0_243 = arith.constant 0 : index
    %c0_244 = arith.constant 0 : index
    %c0_245 = arith.constant 0 : index
    %290 = vector.load %arg9[%c2_242, %c0_243, %c0_244, %c0_245] : memref<7x4x8x32xf32, #tpu.memory_space<vmem>>, vector<1x1x8x32xf32>
    %291 = vector.shape_cast %290 : vector<1x1x8x32xf32> to vector<8x32xf32>
    %cst_246 = arith.constant dense<0.000000e+00> : vector<8x32xf32>
    %292 = tpu.matmul %289, %291, %cst_246 {dimension_numbers = #tpu.dot_dimension_numbers<[1], [0], [0], [1], [0, 0, 1, 1], [], []>} : vector<8x8xf32>, vector<8x32xf32>, vector<8x32xf32> -> vector<8x32xf32>
    %c2_247 = arith.constant 2 : index
    %c1_248 = arith.constant 1 : index
    %c0_249 = arith.constant 0 : index
    %c0_250 = arith.constant 0 : index
    %293 = vector.load %arg6[%c2_247, %c1_248, %c0_249, %c0_250] : memref<7x4x32x8xf32, #tpu.memory_space<vmem>>, vector<1x1x32x8xf32>
    %294 = vector.shape_cast %293 : vector<1x1x32x8xf32> to vector<32x8xf32>
    %cst_251 = arith.constant dense<0.000000e+00> : vector<8x8xf32>
    %295 = tpu.matmul %145, %294, %cst_251 {dimension_numbers = #tpu.dot_dimension_numbers<[1], [0], [0], [1], [0, 0, 1, 1], [], []>} : vector<8x32xf32>, vector<32x8xf32>, vector<8x8xf32> -> vector<8x8xf32>
    %c2_252 = arith.constant 2 : index
    %c1_253 = arith.constant 1 : index
    %c0_254 = arith.constant 0 : index
    %c0_255 = arith.constant 0 : index
    %296 = vector.load %arg7[%c2_252, %c1_253, %c0_254, %c0_255] : memref<7x4x32x8xf32, #tpu.memory_space<vmem>>, vector<1x1x32x8xf32>
    %297 = vector.shape_cast %296 : vector<1x1x32x8xf32> to vector<32x8xf32>
    %cst_256 = arith.constant dense<0.000000e+00> : vector<8x8xf32>
    %298 = tpu.matmul %145, %297, %cst_256 {dimension_numbers = #tpu.dot_dimension_numbers<[1], [0], [0], [1], [0, 0, 1, 1], [], []>} : vector<8x32xf32>, vector<32x8xf32>, vector<8x8xf32> -> vector<8x8xf32>
    %c2_257 = arith.constant 2 : index
    %c1_258 = arith.constant 1 : index
    %c0_259 = arith.constant 0 : index
    %c0_260 = arith.constant 0 : index
    %299 = vector.load %arg8[%c2_257, %c1_258, %c0_259, %c0_260] : memref<7x4x32x8xf32, #tpu.memory_space<vmem>>, vector<1x1x32x8xf32>
    %300 = vector.shape_cast %299 : vector<1x1x32x8xf32> to vector<32x8xf32>
    %cst_261 = arith.constant dense<0.000000e+00> : vector<8x8xf32>
    %301 = tpu.matmul %145, %300, %cst_261 {dimension_numbers = #tpu.dot_dimension_numbers<[1], [0], [0], [1], [0, 0, 1, 1], [], []>} : vector<8x32xf32>, vector<32x8xf32>, vector<8x8xf32> -> vector<8x8xf32>
    %cst_262 = arith.constant dense<0.000000e+00> : vector<8x8xf32>
    %302 = tpu.matmul %295, %298, %cst_262 {dimension_numbers = #tpu.dot_dimension_numbers<[1], [1], [0], [0], [0, 0, 1, 0], [], []>} : vector<8x8xf32>, vector<8x8xf32>, vector<8x8xf32> -> vector<8x8xf32>
    %cst_263 = arith.constant 0.176776692 : f32
    %303 = vector.broadcast %cst_263 : f32 to vector<8x8xf32>
    %304 = arith.mulf %302, %303 : vector<8x8xf32>
    %cst_264 = arith.constant -1.000000e+30 : f32
    %305 = vector.broadcast %cst_264 : f32 to vector<8x8xf32>
    %306 = arith.select %4, %304, %305 : vector<8x8xi1>, vector<8x8xf32>
    %cst_265 = arith.constant dense<0xFF800000> : vector<8xf32>
    %307 = vector.multi_reduction <maximumf>, %306, %cst_265 [1] : vector<8x8xf32> to vector<8xf32>
    %308 = vector.shape_cast %307 : vector<8xf32> to vector<8x1xf32>
    %309 = vector.broadcast %308 : vector<8x1xf32> to vector<8x8xf32>
    %310 = arith.subf %306, %309 : vector<8x8xf32>
    %311 = math.exp %310 : vector<8x8xf32>
    %cst_266 = arith.constant dense<0.000000e+00> : vector<8xf32>
    %312 = vector.multi_reduction <add>, %311, %cst_266 [1] : vector<8x8xf32> to vector<8xf32>
    %313 = vector.shape_cast %312 : vector<8xf32> to vector<8x1xf32>
    %314 = tpu.reciprocal %313 {approx = true} : vector<8x1xf32> -> vector<8x1xf32>
    %315 = vector.broadcast %314 : vector<8x1xf32> to vector<8x8xf32>
    %316 = arith.mulf %311, %315 : vector<8x8xf32>
    %cst_267 = arith.constant dense<0.000000e+00> : vector<8x8xf32>
    %317 = tpu.matmul %316, %301, %cst_267 {dimension_numbers = #tpu.dot_dimension_numbers<[1], [0], [0], [1], [0, 0, 1, 1], [], []>} : vector<8x8xf32>, vector<8x8xf32>, vector<8x8xf32> -> vector<8x8xf32>
    %c2_268 = arith.constant 2 : index
    %c1_269 = arith.constant 1 : index
    %c0_270 = arith.constant 0 : index
    %c0_271 = arith.constant 0 : index
    %318 = vector.load %arg9[%c2_268, %c1_269, %c0_270, %c0_271] : memref<7x4x8x32xf32, #tpu.memory_space<vmem>>, vector<1x1x8x32xf32>
    %319 = vector.shape_cast %318 : vector<1x1x8x32xf32> to vector<8x32xf32>
    %cst_272 = arith.constant dense<0.000000e+00> : vector<8x32xf32>
    %320 = tpu.matmul %317, %319, %cst_272 {dimension_numbers = #tpu.dot_dimension_numbers<[1], [0], [0], [1], [0, 0, 1, 1], [], []>} : vector<8x8xf32>, vector<8x32xf32>, vector<8x32xf32> -> vector<8x32xf32>
    %321 = arith.addf %292, %320 : vector<8x32xf32>
    %c2_273 = arith.constant 2 : index
    %c2_274 = arith.constant 2 : index
    %c0_275 = arith.constant 0 : index
    %c0_276 = arith.constant 0 : index
    %322 = vector.load %arg6[%c2_273, %c2_274, %c0_275, %c0_276] : memref<7x4x32x8xf32, #tpu.memory_space<vmem>>, vector<1x1x32x8xf32>
    %323 = vector.shape_cast %322 : vector<1x1x32x8xf32> to vector<32x8xf32>
    %cst_277 = arith.constant dense<0.000000e+00> : vector<8x8xf32>
    %324 = tpu.matmul %145, %323, %cst_277 {dimension_numbers = #tpu.dot_dimension_numbers<[1], [0], [0], [1], [0, 0, 1, 1], [], []>} : vector<8x32xf32>, vector<32x8xf32>, vector<8x8xf32> -> vector<8x8xf32>
    %c2_278 = arith.constant 2 : index
    %c2_279 = arith.constant 2 : index
    %c0_280 = arith.constant 0 : index
    %c0_281 = arith.constant 0 : index
    %325 = vector.load %arg7[%c2_278, %c2_279, %c0_280, %c0_281] : memref<7x4x32x8xf32, #tpu.memory_space<vmem>>, vector<1x1x32x8xf32>
    %326 = vector.shape_cast %325 : vector<1x1x32x8xf32> to vector<32x8xf32>
    %cst_282 = arith.constant dense<0.000000e+00> : vector<8x8xf32>
    %327 = tpu.matmul %145, %326, %cst_282 {dimension_numbers = #tpu.dot_dimension_numbers<[1], [0], [0], [1], [0, 0, 1, 1], [], []>} : vector<8x32xf32>, vector<32x8xf32>, vector<8x8xf32> -> vector<8x8xf32>
    %c2_283 = arith.constant 2 : index
    %c2_284 = arith.constant 2 : index
    %c0_285 = arith.constant 0 : index
    %c0_286 = arith.constant 0 : index
    %328 = vector.load %arg8[%c2_283, %c2_284, %c0_285, %c0_286] : memref<7x4x32x8xf32, #tpu.memory_space<vmem>>, vector<1x1x32x8xf32>
    %329 = vector.shape_cast %328 : vector<1x1x32x8xf32> to vector<32x8xf32>
    %cst_287 = arith.constant dense<0.000000e+00> : vector<8x8xf32>
    %330 = tpu.matmul %145, %329, %cst_287 {dimension_numbers = #tpu.dot_dimension_numbers<[1], [0], [0], [1], [0, 0, 1, 1], [], []>} : vector<8x32xf32>, vector<32x8xf32>, vector<8x8xf32> -> vector<8x8xf32>
    %cst_288 = arith.constant dense<0.000000e+00> : vector<8x8xf32>
    %331 = tpu.matmul %324, %327, %cst_288 {dimension_numbers = #tpu.dot_dimension_numbers<[1], [1], [0], [0], [0, 0, 1, 0], [], []>} : vector<8x8xf32>, vector<8x8xf32>, vector<8x8xf32> -> vector<8x8xf32>
    %cst_289 = arith.constant 0.176776692 : f32
    %332 = vector.broadcast %cst_289 : f32 to vector<8x8xf32>
    %333 = arith.mulf %331, %332 : vector<8x8xf32>
    %cst_290 = arith.constant -1.000000e+30 : f32
    %334 = vector.broadcast %cst_290 : f32 to vector<8x8xf32>
    %335 = arith.select %4, %333, %334 : vector<8x8xi1>, vector<8x8xf32>
    %cst_291 = arith.constant dense<0xFF800000> : vector<8xf32>
    %336 = vector.multi_reduction <maximumf>, %335, %cst_291 [1] : vector<8x8xf32> to vector<8xf32>
    %337 = vector.shape_cast %336 : vector<8xf32> to vector<8x1xf32>
    %338 = vector.broadcast %337 : vector<8x1xf32> to vector<8x8xf32>
    %339 = arith.subf %335, %338 : vector<8x8xf32>
    %340 = math.exp %339 : vector<8x8xf32>
    %cst_292 = arith.constant dense<0.000000e+00> : vector<8xf32>
    %341 = vector.multi_reduction <add>, %340, %cst_292 [1] : vector<8x8xf32> to vector<8xf32>
    %342 = vector.shape_cast %341 : vector<8xf32> to vector<8x1xf32>
    %343 = tpu.reciprocal %342 {approx = true} : vector<8x1xf32> -> vector<8x1xf32>
    %344 = vector.broadcast %343 : vector<8x1xf32> to vector<8x8xf32>
    %345 = arith.mulf %340, %344 : vector<8x8xf32>
    %cst_293 = arith.constant dense<0.000000e+00> : vector<8x8xf32>
    %346 = tpu.matmul %345, %330, %cst_293 {dimension_numbers = #tpu.dot_dimension_numbers<[1], [0], [0], [1], [0, 0, 1, 1], [], []>} : vector<8x8xf32>, vector<8x8xf32>, vector<8x8xf32> -> vector<8x8xf32>
    %c2_294 = arith.constant 2 : index
    %c2_295 = arith.constant 2 : index
    %c0_296 = arith.constant 0 : index
    %c0_297 = arith.constant 0 : index
    %347 = vector.load %arg9[%c2_294, %c2_295, %c0_296, %c0_297] : memref<7x4x8x32xf32, #tpu.memory_space<vmem>>, vector<1x1x8x32xf32>
    %348 = vector.shape_cast %347 : vector<1x1x8x32xf32> to vector<8x32xf32>
    %cst_298 = arith.constant dense<0.000000e+00> : vector<8x32xf32>
    %349 = tpu.matmul %346, %348, %cst_298 {dimension_numbers = #tpu.dot_dimension_numbers<[1], [0], [0], [1], [0, 0, 1, 1], [], []>} : vector<8x8xf32>, vector<8x32xf32>, vector<8x32xf32> -> vector<8x32xf32>
    %350 = arith.addf %321, %349 : vector<8x32xf32>
    %c2_299 = arith.constant 2 : index
    %c3_300 = arith.constant 3 : index
    %c0_301 = arith.constant 0 : index
    %c0_302 = arith.constant 0 : index
    %351 = vector.load %arg6[%c2_299, %c3_300, %c0_301, %c0_302] : memref<7x4x32x8xf32, #tpu.memory_space<vmem>>, vector<1x1x32x8xf32>
    %352 = vector.shape_cast %351 : vector<1x1x32x8xf32> to vector<32x8xf32>
    %cst_303 = arith.constant dense<0.000000e+00> : vector<8x8xf32>
    %353 = tpu.matmul %145, %352, %cst_303 {dimension_numbers = #tpu.dot_dimension_numbers<[1], [0], [0], [1], [0, 0, 1, 1], [], []>} : vector<8x32xf32>, vector<32x8xf32>, vector<8x8xf32> -> vector<8x8xf32>
    %c2_304 = arith.constant 2 : index
    %c3_305 = arith.constant 3 : index
    %c0_306 = arith.constant 0 : index
    %c0_307 = arith.constant 0 : index
    %354 = vector.load %arg7[%c2_304, %c3_305, %c0_306, %c0_307] : memref<7x4x32x8xf32, #tpu.memory_space<vmem>>, vector<1x1x32x8xf32>
    %355 = vector.shape_cast %354 : vector<1x1x32x8xf32> to vector<32x8xf32>
    %cst_308 = arith.constant dense<0.000000e+00> : vector<8x8xf32>
    %356 = tpu.matmul %145, %355, %cst_308 {dimension_numbers = #tpu.dot_dimension_numbers<[1], [0], [0], [1], [0, 0, 1, 1], [], []>} : vector<8x32xf32>, vector<32x8xf32>, vector<8x8xf32> -> vector<8x8xf32>
    %c2_309 = arith.constant 2 : index
    %c3_310 = arith.constant 3 : index
    %c0_311 = arith.constant 0 : index
    %c0_312 = arith.constant 0 : index
    %357 = vector.load %arg8[%c2_309, %c3_310, %c0_311, %c0_312] : memref<7x4x32x8xf32, #tpu.memory_space<vmem>>, vector<1x1x32x8xf32>
    %358 = vector.shape_cast %357 : vector<1x1x32x8xf32> to vector<32x8xf32>
    %cst_313 = arith.constant dense<0.000000e+00> : vector<8x8xf32>
    %359 = tpu.matmul %145, %358, %cst_313 {dimension_numbers = #tpu.dot_dimension_numbers<[1], [0], [0], [1], [0, 0, 1, 1], [], []>} : vector<8x32xf32>, vector<32x8xf32>, vector<8x8xf32> -> vector<8x8xf32>
    %cst_314 = arith.constant dense<0.000000e+00> : vector<8x8xf32>
    %360 = tpu.matmul %353, %356, %cst_314 {dimension_numbers = #tpu.dot_dimension_numbers<[1], [1], [0], [0], [0, 0, 1, 0], [], []>} : vector<8x8xf32>, vector<8x8xf32>, vector<8x8xf32> -> vector<8x8xf32>
    %cst_315 = arith.constant 0.176776692 : f32
    %361 = vector.broadcast %cst_315 : f32 to vector<8x8xf32>
    %362 = arith.mulf %360, %361 : vector<8x8xf32>
    %cst_316 = arith.constant -1.000000e+30 : f32
    %363 = vector.broadcast %cst_316 : f32 to vector<8x8xf32>
    %364 = arith.select %4, %362, %363 : vector<8x8xi1>, vector<8x8xf32>
    %cst_317 = arith.constant dense<0xFF800000> : vector<8xf32>
    %365 = vector.multi_reduction <maximumf>, %364, %cst_317 [1] : vector<8x8xf32> to vector<8xf32>
    %366 = vector.shape_cast %365 : vector<8xf32> to vector<8x1xf32>
    %367 = vector.broadcast %366 : vector<8x1xf32> to vector<8x8xf32>
    %368 = arith.subf %364, %367 : vector<8x8xf32>
    %369 = math.exp %368 : vector<8x8xf32>
    %cst_318 = arith.constant dense<0.000000e+00> : vector<8xf32>
    %370 = vector.multi_reduction <add>, %369, %cst_318 [1] : vector<8x8xf32> to vector<8xf32>
    %371 = vector.shape_cast %370 : vector<8xf32> to vector<8x1xf32>
    %372 = tpu.reciprocal %371 {approx = true} : vector<8x1xf32> -> vector<8x1xf32>
    %373 = vector.broadcast %372 : vector<8x1xf32> to vector<8x8xf32>
    %374 = arith.mulf %369, %373 : vector<8x8xf32>
    %cst_319 = arith.constant dense<0.000000e+00> : vector<8x8xf32>
    %375 = tpu.matmul %374, %359, %cst_319 {dimension_numbers = #tpu.dot_dimension_numbers<[1], [0], [0], [1], [0, 0, 1, 1], [], []>} : vector<8x8xf32>, vector<8x8xf32>, vector<8x8xf32> -> vector<8x8xf32>
    %c2_320 = arith.constant 2 : index
    %c3_321 = arith.constant 3 : index
    %c0_322 = arith.constant 0 : index
    %c0_323 = arith.constant 0 : index
    %376 = vector.load %arg9[%c2_320, %c3_321, %c0_322, %c0_323] : memref<7x4x8x32xf32, #tpu.memory_space<vmem>>, vector<1x1x8x32xf32>
    %377 = vector.shape_cast %376 : vector<1x1x8x32xf32> to vector<8x32xf32>
    %cst_324 = arith.constant dense<0.000000e+00> : vector<8x32xf32>
    %378 = tpu.matmul %375, %377, %cst_324 {dimension_numbers = #tpu.dot_dimension_numbers<[1], [0], [0], [1], [0, 0, 1, 1], [], []>} : vector<8x8xf32>, vector<8x32xf32>, vector<8x32xf32> -> vector<8x32xf32>
    %379 = arith.addf %350, %378 : vector<8x32xf32>
    %c2_325 = arith.constant 2 : index
    %c0_326 = arith.constant 0 : index
    %c0_327 = arith.constant 0 : index
    %380 = vector.load %arg10[%c2_325, %c0_326, %c0_327] : memref<7x1x32xf32, #tpu.memory_space<vmem>>, vector<1x1x32xf32>
    %381 = vector.shape_cast %380 : vector<1x1x32xf32> to vector<1x32xf32>
    %382 = vector.broadcast %381 : vector<1x32xf32> to vector<8x32xf32>
    %383 = arith.addf %379, %382 : vector<8x32xf32>
    %384 = arith.addf %264, %383 : vector<8x32xf32>
    %cst_328 = arith.constant 5.000000e-01 : f32
    %385 = vector.broadcast %cst_328 : f32 to vector<8x32xf32>
    %386 = arith.mulf %384, %385 : vector<8x32xf32>
    %c3_329 = arith.constant 3 : index
    %c0_330 = arith.constant 0 : index
    %c0_331 = arith.constant 0 : index
    %c0_332 = arith.constant 0 : index
    %387 = vector.load %arg6[%c3_329, %c0_330, %c0_331, %c0_332] : memref<7x4x32x8xf32, #tpu.memory_space<vmem>>, vector<1x1x32x8xf32>
    %388 = vector.shape_cast %387 : vector<1x1x32x8xf32> to vector<32x8xf32>
    %cst_333 = arith.constant dense<0.000000e+00> : vector<8x8xf32>
    %389 = tpu.matmul %386, %388, %cst_333 {dimension_numbers = #tpu.dot_dimension_numbers<[1], [0], [0], [1], [0, 0, 1, 1], [], []>} : vector<8x32xf32>, vector<32x8xf32>, vector<8x8xf32> -> vector<8x8xf32>
    %c3_334 = arith.constant 3 : index
    %c0_335 = arith.constant 0 : index
    %c0_336 = arith.constant 0 : index
    %c0_337 = arith.constant 0 : index
    %390 = vector.load %arg7[%c3_334, %c0_335, %c0_336, %c0_337] : memref<7x4x32x8xf32, #tpu.memory_space<vmem>>, vector<1x1x32x8xf32>
    %391 = vector.shape_cast %390 : vector<1x1x32x8xf32> to vector<32x8xf32>
    %cst_338 = arith.constant dense<0.000000e+00> : vector<8x8xf32>
    %392 = tpu.matmul %386, %391, %cst_338 {dimension_numbers = #tpu.dot_dimension_numbers<[1], [0], [0], [1], [0, 0, 1, 1], [], []>} : vector<8x32xf32>, vector<32x8xf32>, vector<8x8xf32> -> vector<8x8xf32>
    %c3_339 = arith.constant 3 : index
    %c0_340 = arith.constant 0 : index
    %c0_341 = arith.constant 0 : index
    %c0_342 = arith.constant 0 : index
    %393 = vector.load %arg8[%c3_339, %c0_340, %c0_341, %c0_342] : memref<7x4x32x8xf32, #tpu.memory_space<vmem>>, vector<1x1x32x8xf32>
    %394 = vector.shape_cast %393 : vector<1x1x32x8xf32> to vector<32x8xf32>
    %cst_343 = arith.constant dense<0.000000e+00> : vector<8x8xf32>
    %395 = tpu.matmul %386, %394, %cst_343 {dimension_numbers = #tpu.dot_dimension_numbers<[1], [0], [0], [1], [0, 0, 1, 1], [], []>} : vector<8x32xf32>, vector<32x8xf32>, vector<8x8xf32> -> vector<8x8xf32>
    %cst_344 = arith.constant dense<0.000000e+00> : vector<8x8xf32>
    %396 = tpu.matmul %389, %392, %cst_344 {dimension_numbers = #tpu.dot_dimension_numbers<[1], [1], [0], [0], [0, 0, 1, 0], [], []>} : vector<8x8xf32>, vector<8x8xf32>, vector<8x8xf32> -> vector<8x8xf32>
    %cst_345 = arith.constant 0.176776692 : f32
    %397 = vector.broadcast %cst_345 : f32 to vector<8x8xf32>
    %398 = arith.mulf %396, %397 : vector<8x8xf32>
    %cst_346 = arith.constant -1.000000e+30 : f32
    %399 = vector.broadcast %cst_346 : f32 to vector<8x8xf32>
    %400 = arith.select %4, %398, %399 : vector<8x8xi1>, vector<8x8xf32>
    %cst_347 = arith.constant dense<0xFF800000> : vector<8xf32>
    %401 = vector.multi_reduction <maximumf>, %400, %cst_347 [1] : vector<8x8xf32> to vector<8xf32>
    %402 = vector.shape_cast %401 : vector<8xf32> to vector<8x1xf32>
    %403 = vector.broadcast %402 : vector<8x1xf32> to vector<8x8xf32>
    %404 = arith.subf %400, %403 : vector<8x8xf32>
    %405 = math.exp %404 : vector<8x8xf32>
    %cst_348 = arith.constant dense<0.000000e+00> : vector<8xf32>
    %406 = vector.multi_reduction <add>, %405, %cst_348 [1] : vector<8x8xf32> to vector<8xf32>
    %407 = vector.shape_cast %406 : vector<8xf32> to vector<8x1xf32>
    %408 = tpu.reciprocal %407 {approx = true} : vector<8x1xf32> -> vector<8x1xf32>
    %409 = vector.broadcast %408 : vector<8x1xf32> to vector<8x8xf32>
    %410 = arith.mulf %405, %409 : vector<8x8xf32>
    %cst_349 = arith.constant dense<0.000000e+00> : vector<8x8xf32>
    %411 = tpu.matmul %410, %395, %cst_349 {dimension_numbers = #tpu.dot_dimension_numbers<[1], [0], [0], [1], [0, 0, 1, 1], [], []>} : vector<8x8xf32>, vector<8x8xf32>, vector<8x8xf32> -> vector<8x8xf32>
    %c3_350 = arith.constant 3 : index
    %c0_351 = arith.constant 0 : index
    %c0_352 = arith.constant 0 : index
    %c0_353 = arith.constant 0 : index
    %412 = vector.load %arg9[%c3_350, %c0_351, %c0_352, %c0_353] : memref<7x4x8x32xf32, #tpu.memory_space<vmem>>, vector<1x1x8x32xf32>
    %413 = vector.shape_cast %412 : vector<1x1x8x32xf32> to vector<8x32xf32>
    %cst_354 = arith.constant dense<0.000000e+00> : vector<8x32xf32>
    %414 = tpu.matmul %411, %413, %cst_354 {dimension_numbers = #tpu.dot_dimension_numbers<[1], [0], [0], [1], [0, 0, 1, 1], [], []>} : vector<8x8xf32>, vector<8x32xf32>, vector<8x32xf32> -> vector<8x32xf32>
    %c3_355 = arith.constant 3 : index
    %c1_356 = arith.constant 1 : index
    %c0_357 = arith.constant 0 : index
    %c0_358 = arith.constant 0 : index
    %415 = vector.load %arg6[%c3_355, %c1_356, %c0_357, %c0_358] : memref<7x4x32x8xf32, #tpu.memory_space<vmem>>, vector<1x1x32x8xf32>
    %416 = vector.shape_cast %415 : vector<1x1x32x8xf32> to vector<32x8xf32>
    %cst_359 = arith.constant dense<0.000000e+00> : vector<8x8xf32>
    %417 = tpu.matmul %386, %416, %cst_359 {dimension_numbers = #tpu.dot_dimension_numbers<[1], [0], [0], [1], [0, 0, 1, 1], [], []>} : vector<8x32xf32>, vector<32x8xf32>, vector<8x8xf32> -> vector<8x8xf32>
    %c3_360 = arith.constant 3 : index
    %c1_361 = arith.constant 1 : index
    %c0_362 = arith.constant 0 : index
    %c0_363 = arith.constant 0 : index
    %418 = vector.load %arg7[%c3_360, %c1_361, %c0_362, %c0_363] : memref<7x4x32x8xf32, #tpu.memory_space<vmem>>, vector<1x1x32x8xf32>
    %419 = vector.shape_cast %418 : vector<1x1x32x8xf32> to vector<32x8xf32>
    %cst_364 = arith.constant dense<0.000000e+00> : vector<8x8xf32>
    %420 = tpu.matmul %386, %419, %cst_364 {dimension_numbers = #tpu.dot_dimension_numbers<[1], [0], [0], [1], [0, 0, 1, 1], [], []>} : vector<8x32xf32>, vector<32x8xf32>, vector<8x8xf32> -> vector<8x8xf32>
    %c3_365 = arith.constant 3 : index
    %c1_366 = arith.constant 1 : index
    %c0_367 = arith.constant 0 : index
    %c0_368 = arith.constant 0 : index
    %421 = vector.load %arg8[%c3_365, %c1_366, %c0_367, %c0_368] : memref<7x4x32x8xf32, #tpu.memory_space<vmem>>, vector<1x1x32x8xf32>
    %422 = vector.shape_cast %421 : vector<1x1x32x8xf32> to vector<32x8xf32>
    %cst_369 = arith.constant dense<0.000000e+00> : vector<8x8xf32>
    %423 = tpu.matmul %386, %422, %cst_369 {dimension_numbers = #tpu.dot_dimension_numbers<[1], [0], [0], [1], [0, 0, 1, 1], [], []>} : vector<8x32xf32>, vector<32x8xf32>, vector<8x8xf32> -> vector<8x8xf32>
    %cst_370 = arith.constant dense<0.000000e+00> : vector<8x8xf32>
    %424 = tpu.matmul %417, %420, %cst_370 {dimension_numbers = #tpu.dot_dimension_numbers<[1], [1], [0], [0], [0, 0, 1, 0], [], []>} : vector<8x8xf32>, vector<8x8xf32>, vector<8x8xf32> -> vector<8x8xf32>
    %cst_371 = arith.constant 0.176776692 : f32
    %425 = vector.broadcast %cst_371 : f32 to vector<8x8xf32>
    %426 = arith.mulf %424, %425 : vector<8x8xf32>
    %cst_372 = arith.constant -1.000000e+30 : f32
    %427 = vector.broadcast %cst_372 : f32 to vector<8x8xf32>
    %428 = arith.select %4, %426, %427 : vector<8x8xi1>, vector<8x8xf32>
    %cst_373 = arith.constant dense<0xFF800000> : vector<8xf32>
    %429 = vector.multi_reduction <maximumf>, %428, %cst_373 [1] : vector<8x8xf32> to vector<8xf32>
    %430 = vector.shape_cast %429 : vector<8xf32> to vector<8x1xf32>
    %431 = vector.broadcast %430 : vector<8x1xf32> to vector<8x8xf32>
    %432 = arith.subf %428, %431 : vector<8x8xf32>
    %433 = math.exp %432 : vector<8x8xf32>
    %cst_374 = arith.constant dense<0.000000e+00> : vector<8xf32>
    %434 = vector.multi_reduction <add>, %433, %cst_374 [1] : vector<8x8xf32> to vector<8xf32>
    %435 = vector.shape_cast %434 : vector<8xf32> to vector<8x1xf32>
    %436 = tpu.reciprocal %435 {approx = true} : vector<8x1xf32> -> vector<8x1xf32>
    %437 = vector.broadcast %436 : vector<8x1xf32> to vector<8x8xf32>
    %438 = arith.mulf %433, %437 : vector<8x8xf32>
    %cst_375 = arith.constant dense<0.000000e+00> : vector<8x8xf32>
    %439 = tpu.matmul %438, %423, %cst_375 {dimension_numbers = #tpu.dot_dimension_numbers<[1], [0], [0], [1], [0, 0, 1, 1], [], []>} : vector<8x8xf32>, vector<8x8xf32>, vector<8x8xf32> -> vector<8x8xf32>
    %c3_376 = arith.constant 3 : index
    %c1_377 = arith.constant 1 : index
    %c0_378 = arith.constant 0 : index
    %c0_379 = arith.constant 0 : index
    %440 = vector.load %arg9[%c3_376, %c1_377, %c0_378, %c0_379] : memref<7x4x8x32xf32, #tpu.memory_space<vmem>>, vector<1x1x8x32xf32>
    %441 = vector.shape_cast %440 : vector<1x1x8x32xf32> to vector<8x32xf32>
    %cst_380 = arith.constant dense<0.000000e+00> : vector<8x32xf32>
    %442 = tpu.matmul %439, %441, %cst_380 {dimension_numbers = #tpu.dot_dimension_numbers<[1], [0], [0], [1], [0, 0, 1, 1], [], []>} : vector<8x8xf32>, vector<8x32xf32>, vector<8x32xf32> -> vector<8x32xf32>
    %443 = arith.addf %414, %442 : vector<8x32xf32>
    %c3_381 = arith.constant 3 : index
    %c2_382 = arith.constant 2 : index
    %c0_383 = arith.constant 0 : index
    %c0_384 = arith.constant 0 : index
    %444 = vector.load %arg6[%c3_381, %c2_382, %c0_383, %c0_384] : memref<7x4x32x8xf32, #tpu.memory_space<vmem>>, vector<1x1x32x8xf32>
    %445 = vector.shape_cast %444 : vector<1x1x32x8xf32> to vector<32x8xf32>
    %cst_385 = arith.constant dense<0.000000e+00> : vector<8x8xf32>
    %446 = tpu.matmul %386, %445, %cst_385 {dimension_numbers = #tpu.dot_dimension_numbers<[1], [0], [0], [1], [0, 0, 1, 1], [], []>} : vector<8x32xf32>, vector<32x8xf32>, vector<8x8xf32> -> vector<8x8xf32>
    %c3_386 = arith.constant 3 : index
    %c2_387 = arith.constant 2 : index
    %c0_388 = arith.constant 0 : index
    %c0_389 = arith.constant 0 : index
    %447 = vector.load %arg7[%c3_386, %c2_387, %c0_388, %c0_389] : memref<7x4x32x8xf32, #tpu.memory_space<vmem>>, vector<1x1x32x8xf32>
    %448 = vector.shape_cast %447 : vector<1x1x32x8xf32> to vector<32x8xf32>
    %cst_390 = arith.constant dense<0.000000e+00> : vector<8x8xf32>
    %449 = tpu.matmul %386, %448, %cst_390 {dimension_numbers = #tpu.dot_dimension_numbers<[1], [0], [0], [1], [0, 0, 1, 1], [], []>} : vector<8x32xf32>, vector<32x8xf32>, vector<8x8xf32> -> vector<8x8xf32>
    %c3_391 = arith.constant 3 : index
    %c2_392 = arith.constant 2 : index
    %c0_393 = arith.constant 0 : index
    %c0_394 = arith.constant 0 : index
    %450 = vector.load %arg8[%c3_391, %c2_392, %c0_393, %c0_394] : memref<7x4x32x8xf32, #tpu.memory_space<vmem>>, vector<1x1x32x8xf32>
    %451 = vector.shape_cast %450 : vector<1x1x32x8xf32> to vector<32x8xf32>
    %cst_395 = arith.constant dense<0.000000e+00> : vector<8x8xf32>
    %452 = tpu.matmul %386, %451, %cst_395 {dimension_numbers = #tpu.dot_dimension_numbers<[1], [0], [0], [1], [0, 0, 1, 1], [], []>} : vector<8x32xf32>, vector<32x8xf32>, vector<8x8xf32> -> vector<8x8xf32>
    %cst_396 = arith.constant dense<0.000000e+00> : vector<8x8xf32>
    %453 = tpu.matmul %446, %449, %cst_396 {dimension_numbers = #tpu.dot_dimension_numbers<[1], [1], [0], [0], [0, 0, 1, 0], [], []>} : vector<8x8xf32>, vector<8x8xf32>, vector<8x8xf32> -> vector<8x8xf32>
    %cst_397 = arith.constant 0.176776692 : f32
    %454 = vector.broadcast %cst_397 : f32 to vector<8x8xf32>
    %455 = arith.mulf %453, %454 : vector<8x8xf32>
    %cst_398 = arith.constant -1.000000e+30 : f32
    %456 = vector.broadcast %cst_398 : f32 to vector<8x8xf32>
    %457 = arith.select %4, %455, %456 : vector<8x8xi1>, vector<8x8xf32>
    %cst_399 = arith.constant dense<0xFF800000> : vector<8xf32>
    %458 = vector.multi_reduction <maximumf>, %457, %cst_399 [1] : vector<8x8xf32> to vector<8xf32>
    %459 = vector.shape_cast %458 : vector<8xf32> to vector<8x1xf32>
    %460 = vector.broadcast %459 : vector<8x1xf32> to vector<8x8xf32>
    %461 = arith.subf %457, %460 : vector<8x8xf32>
    %462 = math.exp %461 : vector<8x8xf32>
    %cst_400 = arith.constant dense<0.000000e+00> : vector<8xf32>
    %463 = vector.multi_reduction <add>, %462, %cst_400 [1] : vector<8x8xf32> to vector<8xf32>
    %464 = vector.shape_cast %463 : vector<8xf32> to vector<8x1xf32>
    %465 = tpu.reciprocal %464 {approx = true} : vector<8x1xf32> -> vector<8x1xf32>
    %466 = vector.broadcast %465 : vector<8x1xf32> to vector<8x8xf32>
    %467 = arith.mulf %462, %466 : vector<8x8xf32>
    %cst_401 = arith.constant dense<0.000000e+00> : vector<8x8xf32>
    %468 = tpu.matmul %467, %452, %cst_401 {dimension_numbers = #tpu.dot_dimension_numbers<[1], [0], [0], [1], [0, 0, 1, 1], [], []>} : vector<8x8xf32>, vector<8x8xf32>, vector<8x8xf32> -> vector<8x8xf32>
    %c3_402 = arith.constant 3 : index
    %c2_403 = arith.constant 2 : index
    %c0_404 = arith.constant 0 : index
    %c0_405 = arith.constant 0 : index
    %469 = vector.load %arg9[%c3_402, %c2_403, %c0_404, %c0_405] : memref<7x4x8x32xf32, #tpu.memory_space<vmem>>, vector<1x1x8x32xf32>
    %470 = vector.shape_cast %469 : vector<1x1x8x32xf32> to vector<8x32xf32>
    %cst_406 = arith.constant dense<0.000000e+00> : vector<8x32xf32>
    %471 = tpu.matmul %468, %470, %cst_406 {dimension_numbers = #tpu.dot_dimension_numbers<[1], [0], [0], [1], [0, 0, 1, 1], [], []>} : vector<8x8xf32>, vector<8x32xf32>, vector<8x32xf32> -> vector<8x32xf32>
    %472 = arith.addf %443, %471 : vector<8x32xf32>
    %c3_407 = arith.constant 3 : index
    %c3_408 = arith.constant 3 : index
    %c0_409 = arith.constant 0 : index
    %c0_410 = arith.constant 0 : index
    %473 = vector.load %arg6[%c3_407, %c3_408, %c0_409, %c0_410] : memref<7x4x32x8xf32, #tpu.memory_space<vmem>>, vector<1x1x32x8xf32>
    %474 = vector.shape_cast %473 : vector<1x1x32x8xf32> to vector<32x8xf32>
    %cst_411 = arith.constant dense<0.000000e+00> : vector<8x8xf32>
    %475 = tpu.matmul %386, %474, %cst_411 {dimension_numbers = #tpu.dot_dimension_numbers<[1], [0], [0], [1], [0, 0, 1, 1], [], []>} : vector<8x32xf32>, vector<32x8xf32>, vector<8x8xf32> -> vector<8x8xf32>
    %c3_412 = arith.constant 3 : index
    %c3_413 = arith.constant 3 : index
    %c0_414 = arith.constant 0 : index
    %c0_415 = arith.constant 0 : index
    %476 = vector.load %arg7[%c3_412, %c3_413, %c0_414, %c0_415] : memref<7x4x32x8xf32, #tpu.memory_space<vmem>>, vector<1x1x32x8xf32>
    %477 = vector.shape_cast %476 : vector<1x1x32x8xf32> to vector<32x8xf32>
    %cst_416 = arith.constant dense<0.000000e+00> : vector<8x8xf32>
    %478 = tpu.matmul %386, %477, %cst_416 {dimension_numbers = #tpu.dot_dimension_numbers<[1], [0], [0], [1], [0, 0, 1, 1], [], []>} : vector<8x32xf32>, vector<32x8xf32>, vector<8x8xf32> -> vector<8x8xf32>
    %c3_417 = arith.constant 3 : index
    %c3_418 = arith.constant 3 : index
    %c0_419 = arith.constant 0 : index
    %c0_420 = arith.constant 0 : index
    %479 = vector.load %arg8[%c3_417, %c3_418, %c0_419, %c0_420] : memref<7x4x32x8xf32, #tpu.memory_space<vmem>>, vector<1x1x32x8xf32>
    %480 = vector.shape_cast %479 : vector<1x1x32x8xf32> to vector<32x8xf32>
    %cst_421 = arith.constant dense<0.000000e+00> : vector<8x8xf32>
    %481 = tpu.matmul %386, %480, %cst_421 {dimension_numbers = #tpu.dot_dimension_numbers<[1], [0], [0], [1], [0, 0, 1, 1], [], []>} : vector<8x32xf32>, vector<32x8xf32>, vector<8x8xf32> -> vector<8x8xf32>
    %cst_422 = arith.constant dense<0.000000e+00> : vector<8x8xf32>
    %482 = tpu.matmul %475, %478, %cst_422 {dimension_numbers = #tpu.dot_dimension_numbers<[1], [1], [0], [0], [0, 0, 1, 0], [], []>} : vector<8x8xf32>, vector<8x8xf32>, vector<8x8xf32> -> vector<8x8xf32>
    %cst_423 = arith.constant 0.176776692 : f32
    %483 = vector.broadcast %cst_423 : f32 to vector<8x8xf32>
    %484 = arith.mulf %482, %483 : vector<8x8xf32>
    %cst_424 = arith.constant -1.000000e+30 : f32
    %485 = vector.broadcast %cst_424 : f32 to vector<8x8xf32>
    %486 = arith.select %4, %484, %485 : vector<8x8xi1>, vector<8x8xf32>
    %cst_425 = arith.constant dense<0xFF800000> : vector<8xf32>
    %487 = vector.multi_reduction <maximumf>, %486, %cst_425 [1] : vector<8x8xf32> to vector<8xf32>
    %488 = vector.shape_cast %487 : vector<8xf32> to vector<8x1xf32>
    %489 = vector.broadcast %488 : vector<8x1xf32> to vector<8x8xf32>
    %490 = arith.subf %486, %489 : vector<8x8xf32>
    %491 = math.exp %490 : vector<8x8xf32>
    %cst_426 = arith.constant dense<0.000000e+00> : vector<8xf32>
    %492 = vector.multi_reduction <add>, %491, %cst_426 [1] : vector<8x8xf32> to vector<8xf32>
    %493 = vector.shape_cast %492 : vector<8xf32> to vector<8x1xf32>
    %494 = tpu.reciprocal %493 {approx = true} : vector<8x1xf32> -> vector<8x1xf32>
    %495 = vector.broadcast %494 : vector<8x1xf32> to vector<8x8xf32>
    %496 = arith.mulf %491, %495 : vector<8x8xf32>
    %cst_427 = arith.constant dense<0.000000e+00> : vector<8x8xf32>
    %497 = tpu.matmul %496, %481, %cst_427 {dimension_numbers = #tpu.dot_dimension_numbers<[1], [0], [0], [1], [0, 0, 1, 1], [], []>} : vector<8x8xf32>, vector<8x8xf32>, vector<8x8xf32> -> vector<8x8xf32>
    %c3_428 = arith.constant 3 : index
    %c3_429 = arith.constant 3 : index
    %c0_430 = arith.constant 0 : index
    %c0_431 = arith.constant 0 : index
    %498 = vector.load %arg9[%c3_428, %c3_429, %c0_430, %c0_431] : memref<7x4x8x32xf32, #tpu.memory_space<vmem>>, vector<1x1x8x32xf32>
    %499 = vector.shape_cast %498 : vector<1x1x8x32xf32> to vector<8x32xf32>
    %cst_432 = arith.constant dense<0.000000e+00> : vector<8x32xf32>
    %500 = tpu.matmul %497, %499, %cst_432 {dimension_numbers = #tpu.dot_dimension_numbers<[1], [0], [0], [1], [0, 0, 1, 1], [], []>} : vector<8x8xf32>, vector<8x32xf32>, vector<8x32xf32> -> vector<8x32xf32>
    %501 = arith.addf %472, %500 : vector<8x32xf32>
    %c3_433 = arith.constant 3 : index
    %c0_434 = arith.constant 0 : index
    %c0_435 = arith.constant 0 : index
    %502 = vector.load %arg10[%c3_433, %c0_434, %c0_435] : memref<7x1x32xf32, #tpu.memory_space<vmem>>, vector<1x1x32xf32>
    %503 = vector.shape_cast %502 : vector<1x1x32xf32> to vector<1x32xf32>
    %504 = vector.broadcast %503 : vector<1x32xf32> to vector<8x32xf32>
    %505 = arith.addf %501, %504 : vector<8x32xf32>
    %c4 = arith.constant 4 : index
    %c0_436 = arith.constant 0 : index
    %c0_437 = arith.constant 0 : index
    %c0_438 = arith.constant 0 : index
    %506 = vector.load %arg6[%c4, %c0_436, %c0_437, %c0_438] : memref<7x4x32x8xf32, #tpu.memory_space<vmem>>, vector<1x1x32x8xf32>
    %507 = vector.shape_cast %506 : vector<1x1x32x8xf32> to vector<32x8xf32>
    %cst_439 = arith.constant dense<0.000000e+00> : vector<8x8xf32>
    %508 = tpu.matmul %26, %507, %cst_439 {dimension_numbers = #tpu.dot_dimension_numbers<[1], [0], [0], [1], [0, 0, 1, 1], [], []>} : vector<8x32xf32>, vector<32x8xf32>, vector<8x8xf32> -> vector<8x8xf32>
    %c4_440 = arith.constant 4 : index
    %c0_441 = arith.constant 0 : index
    %c0_442 = arith.constant 0 : index
    %c0_443 = arith.constant 0 : index
    %509 = vector.load %arg7[%c4_440, %c0_441, %c0_442, %c0_443] : memref<7x4x32x8xf32, #tpu.memory_space<vmem>>, vector<1x1x32x8xf32>
    %510 = vector.shape_cast %509 : vector<1x1x32x8xf32> to vector<32x8xf32>
    %cst_444 = arith.constant dense<0.000000e+00> : vector<8x8xf32>
    %511 = tpu.matmul %26, %510, %cst_444 {dimension_numbers = #tpu.dot_dimension_numbers<[1], [0], [0], [1], [0, 0, 1, 1], [], []>} : vector<8x32xf32>, vector<32x8xf32>, vector<8x8xf32> -> vector<8x8xf32>
    %c4_445 = arith.constant 4 : index
    %c0_446 = arith.constant 0 : index
    %c0_447 = arith.constant 0 : index
    %c0_448 = arith.constant 0 : index
    %512 = vector.load %arg8[%c4_445, %c0_446, %c0_447, %c0_448] : memref<7x4x32x8xf32, #tpu.memory_space<vmem>>, vector<1x1x32x8xf32>
    %513 = vector.shape_cast %512 : vector<1x1x32x8xf32> to vector<32x8xf32>
    %cst_449 = arith.constant dense<0.000000e+00> : vector<8x8xf32>
    %514 = tpu.matmul %26, %513, %cst_449 {dimension_numbers = #tpu.dot_dimension_numbers<[1], [0], [0], [1], [0, 0, 1, 1], [], []>} : vector<8x32xf32>, vector<32x8xf32>, vector<8x8xf32> -> vector<8x8xf32>
    %cst_450 = arith.constant dense<0.000000e+00> : vector<8x8xf32>
    %515 = tpu.matmul %508, %511, %cst_450 {dimension_numbers = #tpu.dot_dimension_numbers<[1], [1], [0], [0], [0, 0, 1, 0], [], []>} : vector<8x8xf32>, vector<8x8xf32>, vector<8x8xf32> -> vector<8x8xf32>
    %cst_451 = arith.constant 0.176776692 : f32
    %516 = vector.broadcast %cst_451 : f32 to vector<8x8xf32>
    %517 = arith.mulf %515, %516 : vector<8x8xf32>
    %cst_452 = arith.constant -1.000000e+30 : f32
    %518 = vector.broadcast %cst_452 : f32 to vector<8x8xf32>
    %519 = arith.select %4, %517, %518 : vector<8x8xi1>, vector<8x8xf32>
    %cst_453 = arith.constant dense<0xFF800000> : vector<8xf32>
    %520 = vector.multi_reduction <maximumf>, %519, %cst_453 [1] : vector<8x8xf32> to vector<8xf32>
    %521 = vector.shape_cast %520 : vector<8xf32> to vector<8x1xf32>
    %522 = vector.broadcast %521 : vector<8x1xf32> to vector<8x8xf32>
    %523 = arith.subf %519, %522 : vector<8x8xf32>
    %524 = math.exp %523 : vector<8x8xf32>
    %cst_454 = arith.constant dense<0.000000e+00> : vector<8xf32>
    %525 = vector.multi_reduction <add>, %524, %cst_454 [1] : vector<8x8xf32> to vector<8xf32>
    %526 = vector.shape_cast %525 : vector<8xf32> to vector<8x1xf32>
    %527 = tpu.reciprocal %526 {approx = true} : vector<8x1xf32> -> vector<8x1xf32>
    %528 = vector.broadcast %527 : vector<8x1xf32> to vector<8x8xf32>
    %529 = arith.mulf %524, %528 : vector<8x8xf32>
    %cst_455 = arith.constant dense<0.000000e+00> : vector<8x8xf32>
    %530 = tpu.matmul %529, %514, %cst_455 {dimension_numbers = #tpu.dot_dimension_numbers<[1], [0], [0], [1], [0, 0, 1, 1], [], []>} : vector<8x8xf32>, vector<8x8xf32>, vector<8x8xf32> -> vector<8x8xf32>
    %c4_456 = arith.constant 4 : index
    %c0_457 = arith.constant 0 : index
    %c0_458 = arith.constant 0 : index
    %c0_459 = arith.constant 0 : index
    %531 = vector.load %arg9[%c4_456, %c0_457, %c0_458, %c0_459] : memref<7x4x8x32xf32, #tpu.memory_space<vmem>>, vector<1x1x8x32xf32>
    %532 = vector.shape_cast %531 : vector<1x1x8x32xf32> to vector<8x32xf32>
    %cst_460 = arith.constant dense<0.000000e+00> : vector<8x32xf32>
    %533 = tpu.matmul %530, %532, %cst_460 {dimension_numbers = #tpu.dot_dimension_numbers<[1], [0], [0], [1], [0, 0, 1, 1], [], []>} : vector<8x8xf32>, vector<8x32xf32>, vector<8x32xf32> -> vector<8x32xf32>
    %c4_461 = arith.constant 4 : index
    %c1_462 = arith.constant 1 : index
    %c0_463 = arith.constant 0 : index
    %c0_464 = arith.constant 0 : index
    %534 = vector.load %arg6[%c4_461, %c1_462, %c0_463, %c0_464] : memref<7x4x32x8xf32, #tpu.memory_space<vmem>>, vector<1x1x32x8xf32>
    %535 = vector.shape_cast %534 : vector<1x1x32x8xf32> to vector<32x8xf32>
    %cst_465 = arith.constant dense<0.000000e+00> : vector<8x8xf32>
    %536 = tpu.matmul %26, %535, %cst_465 {dimension_numbers = #tpu.dot_dimension_numbers<[1], [0], [0], [1], [0, 0, 1, 1], [], []>} : vector<8x32xf32>, vector<32x8xf32>, vector<8x8xf32> -> vector<8x8xf32>
    %c4_466 = arith.constant 4 : index
    %c1_467 = arith.constant 1 : index
    %c0_468 = arith.constant 0 : index
    %c0_469 = arith.constant 0 : index
    %537 = vector.load %arg7[%c4_466, %c1_467, %c0_468, %c0_469] : memref<7x4x32x8xf32, #tpu.memory_space<vmem>>, vector<1x1x32x8xf32>
    %538 = vector.shape_cast %537 : vector<1x1x32x8xf32> to vector<32x8xf32>
    %cst_470 = arith.constant dense<0.000000e+00> : vector<8x8xf32>
    %539 = tpu.matmul %26, %538, %cst_470 {dimension_numbers = #tpu.dot_dimension_numbers<[1], [0], [0], [1], [0, 0, 1, 1], [], []>} : vector<8x32xf32>, vector<32x8xf32>, vector<8x8xf32> -> vector<8x8xf32>
    %c4_471 = arith.constant 4 : index
    %c1_472 = arith.constant 1 : index
    %c0_473 = arith.constant 0 : index
    %c0_474 = arith.constant 0 : index
    %540 = vector.load %arg8[%c4_471, %c1_472, %c0_473, %c0_474] : memref<7x4x32x8xf32, #tpu.memory_space<vmem>>, vector<1x1x32x8xf32>
    %541 = vector.shape_cast %540 : vector<1x1x32x8xf32> to vector<32x8xf32>
    %cst_475 = arith.constant dense<0.000000e+00> : vector<8x8xf32>
    %542 = tpu.matmul %26, %541, %cst_475 {dimension_numbers = #tpu.dot_dimension_numbers<[1], [0], [0], [1], [0, 0, 1, 1], [], []>} : vector<8x32xf32>, vector<32x8xf32>, vector<8x8xf32> -> vector<8x8xf32>
    %cst_476 = arith.constant dense<0.000000e+00> : vector<8x8xf32>
    %543 = tpu.matmul %536, %539, %cst_476 {dimension_numbers = #tpu.dot_dimension_numbers<[1], [1], [0], [0], [0, 0, 1, 0], [], []>} : vector<8x8xf32>, vector<8x8xf32>, vector<8x8xf32> -> vector<8x8xf32>
    %cst_477 = arith.constant 0.176776692 : f32
    %544 = vector.broadcast %cst_477 : f32 to vector<8x8xf32>
    %545 = arith.mulf %543, %544 : vector<8x8xf32>
    %cst_478 = arith.constant -1.000000e+30 : f32
    %546 = vector.broadcast %cst_478 : f32 to vector<8x8xf32>
    %547 = arith.select %4, %545, %546 : vector<8x8xi1>, vector<8x8xf32>
    %cst_479 = arith.constant dense<0xFF800000> : vector<8xf32>
    %548 = vector.multi_reduction <maximumf>, %547, %cst_479 [1] : vector<8x8xf32> to vector<8xf32>
    %549 = vector.shape_cast %548 : vector<8xf32> to vector<8x1xf32>
    %550 = vector.broadcast %549 : vector<8x1xf32> to vector<8x8xf32>
    %551 = arith.subf %547, %550 : vector<8x8xf32>
    %552 = math.exp %551 : vector<8x8xf32>
    %cst_480 = arith.constant dense<0.000000e+00> : vector<8xf32>
    %553 = vector.multi_reduction <add>, %552, %cst_480 [1] : vector<8x8xf32> to vector<8xf32>
    %554 = vector.shape_cast %553 : vector<8xf32> to vector<8x1xf32>
    %555 = tpu.reciprocal %554 {approx = true} : vector<8x1xf32> -> vector<8x1xf32>
    %556 = vector.broadcast %555 : vector<8x1xf32> to vector<8x8xf32>
    %557 = arith.mulf %552, %556 : vector<8x8xf32>
    %cst_481 = arith.constant dense<0.000000e+00> : vector<8x8xf32>
    %558 = tpu.matmul %557, %542, %cst_481 {dimension_numbers = #tpu.dot_dimension_numbers<[1], [0], [0], [1], [0, 0, 1, 1], [], []>} : vector<8x8xf32>, vector<8x8xf32>, vector<8x8xf32> -> vector<8x8xf32>
    %c4_482 = arith.constant 4 : index
    %c1_483 = arith.constant 1 : index
    %c0_484 = arith.constant 0 : index
    %c0_485 = arith.constant 0 : index
    %559 = vector.load %arg9[%c4_482, %c1_483, %c0_484, %c0_485] : memref<7x4x8x32xf32, #tpu.memory_space<vmem>>, vector<1x1x8x32xf32>
    %560 = vector.shape_cast %559 : vector<1x1x8x32xf32> to vector<8x32xf32>
    %cst_486 = arith.constant dense<0.000000e+00> : vector<8x32xf32>
    %561 = tpu.matmul %558, %560, %cst_486 {dimension_numbers = #tpu.dot_dimension_numbers<[1], [0], [0], [1], [0, 0, 1, 1], [], []>} : vector<8x8xf32>, vector<8x32xf32>, vector<8x32xf32> -> vector<8x32xf32>
    %562 = arith.addf %533, %561 : vector<8x32xf32>
    %c4_487 = arith.constant 4 : index
    %c2_488 = arith.constant 2 : index
    %c0_489 = arith.constant 0 : index
    %c0_490 = arith.constant 0 : index
    %563 = vector.load %arg6[%c4_487, %c2_488, %c0_489, %c0_490] : memref<7x4x32x8xf32, #tpu.memory_space<vmem>>, vector<1x1x32x8xf32>
    %564 = vector.shape_cast %563 : vector<1x1x32x8xf32> to vector<32x8xf32>
    %cst_491 = arith.constant dense<0.000000e+00> : vector<8x8xf32>
    %565 = tpu.matmul %26, %564, %cst_491 {dimension_numbers = #tpu.dot_dimension_numbers<[1], [0], [0], [1], [0, 0, 1, 1], [], []>} : vector<8x32xf32>, vector<32x8xf32>, vector<8x8xf32> -> vector<8x8xf32>
    %c4_492 = arith.constant 4 : index
    %c2_493 = arith.constant 2 : index
    %c0_494 = arith.constant 0 : index
    %c0_495 = arith.constant 0 : index
    %566 = vector.load %arg7[%c4_492, %c2_493, %c0_494, %c0_495] : memref<7x4x32x8xf32, #tpu.memory_space<vmem>>, vector<1x1x32x8xf32>
    %567 = vector.shape_cast %566 : vector<1x1x32x8xf32> to vector<32x8xf32>
    %cst_496 = arith.constant dense<0.000000e+00> : vector<8x8xf32>
    %568 = tpu.matmul %26, %567, %cst_496 {dimension_numbers = #tpu.dot_dimension_numbers<[1], [0], [0], [1], [0, 0, 1, 1], [], []>} : vector<8x32xf32>, vector<32x8xf32>, vector<8x8xf32> -> vector<8x8xf32>
    %c4_497 = arith.constant 4 : index
    %c2_498 = arith.constant 2 : index
    %c0_499 = arith.constant 0 : index
    %c0_500 = arith.constant 0 : index
    %569 = vector.load %arg8[%c4_497, %c2_498, %c0_499, %c0_500] : memref<7x4x32x8xf32, #tpu.memory_space<vmem>>, vector<1x1x32x8xf32>
    %570 = vector.shape_cast %569 : vector<1x1x32x8xf32> to vector<32x8xf32>
    %cst_501 = arith.constant dense<0.000000e+00> : vector<8x8xf32>
    %571 = tpu.matmul %26, %570, %cst_501 {dimension_numbers = #tpu.dot_dimension_numbers<[1], [0], [0], [1], [0, 0, 1, 1], [], []>} : vector<8x32xf32>, vector<32x8xf32>, vector<8x8xf32> -> vector<8x8xf32>
    %cst_502 = arith.constant dense<0.000000e+00> : vector<8x8xf32>
    %572 = tpu.matmul %565, %568, %cst_502 {dimension_numbers = #tpu.dot_dimension_numbers<[1], [1], [0], [0], [0, 0, 1, 0], [], []>} : vector<8x8xf32>, vector<8x8xf32>, vector<8x8xf32> -> vector<8x8xf32>
    %cst_503 = arith.constant 0.176776692 : f32
    %573 = vector.broadcast %cst_503 : f32 to vector<8x8xf32>
    %574 = arith.mulf %572, %573 : vector<8x8xf32>
    %cst_504 = arith.constant -1.000000e+30 : f32
    %575 = vector.broadcast %cst_504 : f32 to vector<8x8xf32>
    %576 = arith.select %4, %574, %575 : vector<8x8xi1>, vector<8x8xf32>
    %cst_505 = arith.constant dense<0xFF800000> : vector<8xf32>
    %577 = vector.multi_reduction <maximumf>, %576, %cst_505 [1] : vector<8x8xf32> to vector<8xf32>
    %578 = vector.shape_cast %577 : vector<8xf32> to vector<8x1xf32>
    %579 = vector.broadcast %578 : vector<8x1xf32> to vector<8x8xf32>
    %580 = arith.subf %576, %579 : vector<8x8xf32>
    %581 = math.exp %580 : vector<8x8xf32>
    %cst_506 = arith.constant dense<0.000000e+00> : vector<8xf32>
    %582 = vector.multi_reduction <add>, %581, %cst_506 [1] : vector<8x8xf32> to vector<8xf32>
    %583 = vector.shape_cast %582 : vector<8xf32> to vector<8x1xf32>
    %584 = tpu.reciprocal %583 {approx = true} : vector<8x1xf32> -> vector<8x1xf32>
    %585 = vector.broadcast %584 : vector<8x1xf32> to vector<8x8xf32>
    %586 = arith.mulf %581, %585 : vector<8x8xf32>
    %cst_507 = arith.constant dense<0.000000e+00> : vector<8x8xf32>
    %587 = tpu.matmul %586, %571, %cst_507 {dimension_numbers = #tpu.dot_dimension_numbers<[1], [0], [0], [1], [0, 0, 1, 1], [], []>} : vector<8x8xf32>, vector<8x8xf32>, vector<8x8xf32> -> vector<8x8xf32>
    %c4_508 = arith.constant 4 : index
    %c2_509 = arith.constant 2 : index
    %c0_510 = arith.constant 0 : index
    %c0_511 = arith.constant 0 : index
    %588 = vector.load %arg9[%c4_508, %c2_509, %c0_510, %c0_511] : memref<7x4x8x32xf32, #tpu.memory_space<vmem>>, vector<1x1x8x32xf32>
    %589 = vector.shape_cast %588 : vector<1x1x8x32xf32> to vector<8x32xf32>
    %cst_512 = arith.constant dense<0.000000e+00> : vector<8x32xf32>
    %590 = tpu.matmul %587, %589, %cst_512 {dimension_numbers = #tpu.dot_dimension_numbers<[1], [0], [0], [1], [0, 0, 1, 1], [], []>} : vector<8x8xf32>, vector<8x32xf32>, vector<8x32xf32> -> vector<8x32xf32>
    %591 = arith.addf %562, %590 : vector<8x32xf32>
    %c4_513 = arith.constant 4 : index
    %c3_514 = arith.constant 3 : index
    %c0_515 = arith.constant 0 : index
    %c0_516 = arith.constant 0 : index
    %592 = vector.load %arg6[%c4_513, %c3_514, %c0_515, %c0_516] : memref<7x4x32x8xf32, #tpu.memory_space<vmem>>, vector<1x1x32x8xf32>
    %593 = vector.shape_cast %592 : vector<1x1x32x8xf32> to vector<32x8xf32>
    %cst_517 = arith.constant dense<0.000000e+00> : vector<8x8xf32>
    %594 = tpu.matmul %26, %593, %cst_517 {dimension_numbers = #tpu.dot_dimension_numbers<[1], [0], [0], [1], [0, 0, 1, 1], [], []>} : vector<8x32xf32>, vector<32x8xf32>, vector<8x8xf32> -> vector<8x8xf32>
    %c4_518 = arith.constant 4 : index
    %c3_519 = arith.constant 3 : index
    %c0_520 = arith.constant 0 : index
    %c0_521 = arith.constant 0 : index
    %595 = vector.load %arg7[%c4_518, %c3_519, %c0_520, %c0_521] : memref<7x4x32x8xf32, #tpu.memory_space<vmem>>, vector<1x1x32x8xf32>
    %596 = vector.shape_cast %595 : vector<1x1x32x8xf32> to vector<32x8xf32>
    %cst_522 = arith.constant dense<0.000000e+00> : vector<8x8xf32>
    %597 = tpu.matmul %26, %596, %cst_522 {dimension_numbers = #tpu.dot_dimension_numbers<[1], [0], [0], [1], [0, 0, 1, 1], [], []>} : vector<8x32xf32>, vector<32x8xf32>, vector<8x8xf32> -> vector<8x8xf32>
    %c4_523 = arith.constant 4 : index
    %c3_524 = arith.constant 3 : index
    %c0_525 = arith.constant 0 : index
    %c0_526 = arith.constant 0 : index
    %598 = vector.load %arg8[%c4_523, %c3_524, %c0_525, %c0_526] : memref<7x4x32x8xf32, #tpu.memory_space<vmem>>, vector<1x1x32x8xf32>
    %599 = vector.shape_cast %598 : vector<1x1x32x8xf32> to vector<32x8xf32>
    %cst_527 = arith.constant dense<0.000000e+00> : vector<8x8xf32>
    %600 = tpu.matmul %26, %599, %cst_527 {dimension_numbers = #tpu.dot_dimension_numbers<[1], [0], [0], [1], [0, 0, 1, 1], [], []>} : vector<8x32xf32>, vector<32x8xf32>, vector<8x8xf32> -> vector<8x8xf32>
    %cst_528 = arith.constant dense<0.000000e+00> : vector<8x8xf32>
    %601 = tpu.matmul %594, %597, %cst_528 {dimension_numbers = #tpu.dot_dimension_numbers<[1], [1], [0], [0], [0, 0, 1, 0], [], []>} : vector<8x8xf32>, vector<8x8xf32>, vector<8x8xf32> -> vector<8x8xf32>
    %cst_529 = arith.constant 0.176776692 : f32
    %602 = vector.broadcast %cst_529 : f32 to vector<8x8xf32>
    %603 = arith.mulf %601, %602 : vector<8x8xf32>
    %cst_530 = arith.constant -1.000000e+30 : f32
    %604 = vector.broadcast %cst_530 : f32 to vector<8x8xf32>
    %605 = arith.select %4, %603, %604 : vector<8x8xi1>, vector<8x8xf32>
    %cst_531 = arith.constant dense<0xFF800000> : vector<8xf32>
    %606 = vector.multi_reduction <maximumf>, %605, %cst_531 [1] : vector<8x8xf32> to vector<8xf32>
    %607 = vector.shape_cast %606 : vector<8xf32> to vector<8x1xf32>
    %608 = vector.broadcast %607 : vector<8x1xf32> to vector<8x8xf32>
    %609 = arith.subf %605, %608 : vector<8x8xf32>
    %610 = math.exp %609 : vector<8x8xf32>
    %cst_532 = arith.constant dense<0.000000e+00> : vector<8xf32>
    %611 = vector.multi_reduction <add>, %610, %cst_532 [1] : vector<8x8xf32> to vector<8xf32>
    %612 = vector.shape_cast %611 : vector<8xf32> to vector<8x1xf32>
    %613 = tpu.reciprocal %612 {approx = true} : vector<8x1xf32> -> vector<8x1xf32>
    %614 = vector.broadcast %613 : vector<8x1xf32> to vector<8x8xf32>
    %615 = arith.mulf %610, %614 : vector<8x8xf32>
    %cst_533 = arith.constant dense<0.000000e+00> : vector<8x8xf32>
    %616 = tpu.matmul %615, %600, %cst_533 {dimension_numbers = #tpu.dot_dimension_numbers<[1], [0], [0], [1], [0, 0, 1, 1], [], []>} : vector<8x8xf32>, vector<8x8xf32>, vector<8x8xf32> -> vector<8x8xf32>
    %c4_534 = arith.constant 4 : index
    %c3_535 = arith.constant 3 : index
    %c0_536 = arith.constant 0 : index
    %c0_537 = arith.constant 0 : index
    %617 = vector.load %arg9[%c4_534, %c3_535, %c0_536, %c0_537] : memref<7x4x8x32xf32, #tpu.memory_space<vmem>>, vector<1x1x8x32xf32>
    %618 = vector.shape_cast %617 : vector<1x1x8x32xf32> to vector<8x32xf32>
    %cst_538 = arith.constant dense<0.000000e+00> : vector<8x32xf32>
    %619 = tpu.matmul %616, %618, %cst_538 {dimension_numbers = #tpu.dot_dimension_numbers<[1], [0], [0], [1], [0, 0, 1, 1], [], []>} : vector<8x8xf32>, vector<8x32xf32>, vector<8x32xf32> -> vector<8x32xf32>
    %620 = arith.addf %591, %619 : vector<8x32xf32>
    %c4_539 = arith.constant 4 : index
    %c0_540 = arith.constant 0 : index
    %c0_541 = arith.constant 0 : index
    %621 = vector.load %arg10[%c4_539, %c0_540, %c0_541] : memref<7x1x32xf32, #tpu.memory_space<vmem>>, vector<1x1x32xf32>
    %622 = vector.shape_cast %621 : vector<1x1x32xf32> to vector<1x32xf32>
    %623 = vector.broadcast %622 : vector<1x32xf32> to vector<8x32xf32>
    %624 = arith.addf %620, %623 : vector<8x32xf32>
    %c5 = arith.constant 5 : index
    %c0_542 = arith.constant 0 : index
    %c0_543 = arith.constant 0 : index
    %c0_544 = arith.constant 0 : index
    %625 = vector.load %arg6[%c5, %c0_542, %c0_543, %c0_544] : memref<7x4x32x8xf32, #tpu.memory_space<vmem>>, vector<1x1x32x8xf32>
    %626 = vector.shape_cast %625 : vector<1x1x32x8xf32> to vector<32x8xf32>
    %cst_545 = arith.constant dense<0.000000e+00> : vector<8x8xf32>
    %627 = tpu.matmul %386, %626, %cst_545 {dimension_numbers = #tpu.dot_dimension_numbers<[1], [0], [0], [1], [0, 0, 1, 1], [], []>} : vector<8x32xf32>, vector<32x8xf32>, vector<8x8xf32> -> vector<8x8xf32>
    %c5_546 = arith.constant 5 : index
    %c0_547 = arith.constant 0 : index
    %c0_548 = arith.constant 0 : index
    %c0_549 = arith.constant 0 : index
    %628 = vector.load %arg7[%c5_546, %c0_547, %c0_548, %c0_549] : memref<7x4x32x8xf32, #tpu.memory_space<vmem>>, vector<1x1x32x8xf32>
    %629 = vector.shape_cast %628 : vector<1x1x32x8xf32> to vector<32x8xf32>
    %cst_550 = arith.constant dense<0.000000e+00> : vector<8x8xf32>
    %630 = tpu.matmul %386, %629, %cst_550 {dimension_numbers = #tpu.dot_dimension_numbers<[1], [0], [0], [1], [0, 0, 1, 1], [], []>} : vector<8x32xf32>, vector<32x8xf32>, vector<8x8xf32> -> vector<8x8xf32>
    %c5_551 = arith.constant 5 : index
    %c0_552 = arith.constant 0 : index
    %c0_553 = arith.constant 0 : index
    %c0_554 = arith.constant 0 : index
    %631 = vector.load %arg8[%c5_551, %c0_552, %c0_553, %c0_554] : memref<7x4x32x8xf32, #tpu.memory_space<vmem>>, vector<1x1x32x8xf32>
    %632 = vector.shape_cast %631 : vector<1x1x32x8xf32> to vector<32x8xf32>
    %cst_555 = arith.constant dense<0.000000e+00> : vector<8x8xf32>
    %633 = tpu.matmul %386, %632, %cst_555 {dimension_numbers = #tpu.dot_dimension_numbers<[1], [0], [0], [1], [0, 0, 1, 1], [], []>} : vector<8x32xf32>, vector<32x8xf32>, vector<8x8xf32> -> vector<8x8xf32>
    %cst_556 = arith.constant dense<0.000000e+00> : vector<8x8xf32>
    %634 = tpu.matmul %627, %630, %cst_556 {dimension_numbers = #tpu.dot_dimension_numbers<[1], [1], [0], [0], [0, 0, 1, 0], [], []>} : vector<8x8xf32>, vector<8x8xf32>, vector<8x8xf32> -> vector<8x8xf32>
    %cst_557 = arith.constant 0.176776692 : f32
    %635 = vector.broadcast %cst_557 : f32 to vector<8x8xf32>
    %636 = arith.mulf %634, %635 : vector<8x8xf32>
    %cst_558 = arith.constant -1.000000e+30 : f32
    %637 = vector.broadcast %cst_558 : f32 to vector<8x8xf32>
    %638 = arith.select %4, %636, %637 : vector<8x8xi1>, vector<8x8xf32>
    %cst_559 = arith.constant dense<0xFF800000> : vector<8xf32>
    %639 = vector.multi_reduction <maximumf>, %638, %cst_559 [1] : vector<8x8xf32> to vector<8xf32>
    %640 = vector.shape_cast %639 : vector<8xf32> to vector<8x1xf32>
    %641 = vector.broadcast %640 : vector<8x1xf32> to vector<8x8xf32>
    %642 = arith.subf %638, %641 : vector<8x8xf32>
    %643 = math.exp %642 : vector<8x8xf32>
    %cst_560 = arith.constant dense<0.000000e+00> : vector<8xf32>
    %644 = vector.multi_reduction <add>, %643, %cst_560 [1] : vector<8x8xf32> to vector<8xf32>
    %645 = vector.shape_cast %644 : vector<8xf32> to vector<8x1xf32>
    %646 = tpu.reciprocal %645 {approx = true} : vector<8x1xf32> -> vector<8x1xf32>
    %647 = vector.broadcast %646 : vector<8x1xf32> to vector<8x8xf32>
    %648 = arith.mulf %643, %647 : vector<8x8xf32>
    %cst_561 = arith.constant dense<0.000000e+00> : vector<8x8xf32>
    %649 = tpu.matmul %648, %633, %cst_561 {dimension_numbers = #tpu.dot_dimension_numbers<[1], [0], [0], [1], [0, 0, 1, 1], [], []>} : vector<8x8xf32>, vector<8x8xf32>, vector<8x8xf32> -> vector<8x8xf32>
    %c5_562 = arith.constant 5 : index
    %c0_563 = arith.constant 0 : index
    %c0_564 = arith.constant 0 : index
    %c0_565 = arith.constant 0 : index
    %650 = vector.load %arg9[%c5_562, %c0_563, %c0_564, %c0_565] : memref<7x4x8x32xf32, #tpu.memory_space<vmem>>, vector<1x1x8x32xf32>
    %651 = vector.shape_cast %650 : vector<1x1x8x32xf32> to vector<8x32xf32>
    %cst_566 = arith.constant dense<0.000000e+00> : vector<8x32xf32>
    %652 = tpu.matmul %649, %651, %cst_566 {dimension_numbers = #tpu.dot_dimension_numbers<[1], [0], [0], [1], [0, 0, 1, 1], [], []>} : vector<8x8xf32>, vector<8x32xf32>, vector<8x32xf32> -> vector<8x32xf32>
    %c5_567 = arith.constant 5 : index
    %c1_568 = arith.constant 1 : index
    %c0_569 = arith.constant 0 : index
    %c0_570 = arith.constant 0 : index
    %653 = vector.load %arg6[%c5_567, %c1_568, %c0_569, %c0_570] : memref<7x4x32x8xf32, #tpu.memory_space<vmem>>, vector<1x1x32x8xf32>
    %654 = vector.shape_cast %653 : vector<1x1x32x8xf32> to vector<32x8xf32>
    %cst_571 = arith.constant dense<0.000000e+00> : vector<8x8xf32>
    %655 = tpu.matmul %386, %654, %cst_571 {dimension_numbers = #tpu.dot_dimension_numbers<[1], [0], [0], [1], [0, 0, 1, 1], [], []>} : vector<8x32xf32>, vector<32x8xf32>, vector<8x8xf32> -> vector<8x8xf32>
    %c5_572 = arith.constant 5 : index
    %c1_573 = arith.constant 1 : index
    %c0_574 = arith.constant 0 : index
    %c0_575 = arith.constant 0 : index
    %656 = vector.load %arg7[%c5_572, %c1_573, %c0_574, %c0_575] : memref<7x4x32x8xf32, #tpu.memory_space<vmem>>, vector<1x1x32x8xf32>
    %657 = vector.shape_cast %656 : vector<1x1x32x8xf32> to vector<32x8xf32>
    %cst_576 = arith.constant dense<0.000000e+00> : vector<8x8xf32>
    %658 = tpu.matmul %386, %657, %cst_576 {dimension_numbers = #tpu.dot_dimension_numbers<[1], [0], [0], [1], [0, 0, 1, 1], [], []>} : vector<8x32xf32>, vector<32x8xf32>, vector<8x8xf32> -> vector<8x8xf32>
    %c5_577 = arith.constant 5 : index
    %c1_578 = arith.constant 1 : index
    %c0_579 = arith.constant 0 : index
    %c0_580 = arith.constant 0 : index
    %659 = vector.load %arg8[%c5_577, %c1_578, %c0_579, %c0_580] : memref<7x4x32x8xf32, #tpu.memory_space<vmem>>, vector<1x1x32x8xf32>
    %660 = vector.shape_cast %659 : vector<1x1x32x8xf32> to vector<32x8xf32>
    %cst_581 = arith.constant dense<0.000000e+00> : vector<8x8xf32>
    %661 = tpu.matmul %386, %660, %cst_581 {dimension_numbers = #tpu.dot_dimension_numbers<[1], [0], [0], [1], [0, 0, 1, 1], [], []>} : vector<8x32xf32>, vector<32x8xf32>, vector<8x8xf32> -> vector<8x8xf32>
    %cst_582 = arith.constant dense<0.000000e+00> : vector<8x8xf32>
    %662 = tpu.matmul %655, %658, %cst_582 {dimension_numbers = #tpu.dot_dimension_numbers<[1], [1], [0], [0], [0, 0, 1, 0], [], []>} : vector<8x8xf32>, vector<8x8xf32>, vector<8x8xf32> -> vector<8x8xf32>
    %cst_583 = arith.constant 0.176776692 : f32
    %663 = vector.broadcast %cst_583 : f32 to vector<8x8xf32>
    %664 = arith.mulf %662, %663 : vector<8x8xf32>
    %cst_584 = arith.constant -1.000000e+30 : f32
    %665 = vector.broadcast %cst_584 : f32 to vector<8x8xf32>
    %666 = arith.select %4, %664, %665 : vector<8x8xi1>, vector<8x8xf32>
    %cst_585 = arith.constant dense<0xFF800000> : vector<8xf32>
    %667 = vector.multi_reduction <maximumf>, %666, %cst_585 [1] : vector<8x8xf32> to vector<8xf32>
    %668 = vector.shape_cast %667 : vector<8xf32> to vector<8x1xf32>
    %669 = vector.broadcast %668 : vector<8x1xf32> to vector<8x8xf32>
    %670 = arith.subf %666, %669 : vector<8x8xf32>
    %671 = math.exp %670 : vector<8x8xf32>
    %cst_586 = arith.constant dense<0.000000e+00> : vector<8xf32>
    %672 = vector.multi_reduction <add>, %671, %cst_586 [1] : vector<8x8xf32> to vector<8xf32>
    %673 = vector.shape_cast %672 : vector<8xf32> to vector<8x1xf32>
    %674 = tpu.reciprocal %673 {approx = true} : vector<8x1xf32> -> vector<8x1xf32>
    %675 = vector.broadcast %674 : vector<8x1xf32> to vector<8x8xf32>
    %676 = arith.mulf %671, %675 : vector<8x8xf32>
    %cst_587 = arith.constant dense<0.000000e+00> : vector<8x8xf32>
    %677 = tpu.matmul %676, %661, %cst_587 {dimension_numbers = #tpu.dot_dimension_numbers<[1], [0], [0], [1], [0, 0, 1, 1], [], []>} : vector<8x8xf32>, vector<8x8xf32>, vector<8x8xf32> -> vector<8x8xf32>
    %c5_588 = arith.constant 5 : index
    %c1_589 = arith.constant 1 : index
    %c0_590 = arith.constant 0 : index
    %c0_591 = arith.constant 0 : index
    %678 = vector.load %arg9[%c5_588, %c1_589, %c0_590, %c0_591] : memref<7x4x8x32xf32, #tpu.memory_space<vmem>>, vector<1x1x8x32xf32>
    %679 = vector.shape_cast %678 : vector<1x1x8x32xf32> to vector<8x32xf32>
    %cst_592 = arith.constant dense<0.000000e+00> : vector<8x32xf32>
    %680 = tpu.matmul %677, %679, %cst_592 {dimension_numbers = #tpu.dot_dimension_numbers<[1], [0], [0], [1], [0, 0, 1, 1], [], []>} : vector<8x8xf32>, vector<8x32xf32>, vector<8x32xf32> -> vector<8x32xf32>
    %681 = arith.addf %652, %680 : vector<8x32xf32>
    %c5_593 = arith.constant 5 : index
    %c2_594 = arith.constant 2 : index
    %c0_595 = arith.constant 0 : index
    %c0_596 = arith.constant 0 : index
    %682 = vector.load %arg6[%c5_593, %c2_594, %c0_595, %c0_596] : memref<7x4x32x8xf32, #tpu.memory_space<vmem>>, vector<1x1x32x8xf32>
    %683 = vector.shape_cast %682 : vector<1x1x32x8xf32> to vector<32x8xf32>
    %cst_597 = arith.constant dense<0.000000e+00> : vector<8x8xf32>
    %684 = tpu.matmul %386, %683, %cst_597 {dimension_numbers = #tpu.dot_dimension_numbers<[1], [0], [0], [1], [0, 0, 1, 1], [], []>} : vector<8x32xf32>, vector<32x8xf32>, vector<8x8xf32> -> vector<8x8xf32>
    %c5_598 = arith.constant 5 : index
    %c2_599 = arith.constant 2 : index
    %c0_600 = arith.constant 0 : index
    %c0_601 = arith.constant 0 : index
    %685 = vector.load %arg7[%c5_598, %c2_599, %c0_600, %c0_601] : memref<7x4x32x8xf32, #tpu.memory_space<vmem>>, vector<1x1x32x8xf32>
    %686 = vector.shape_cast %685 : vector<1x1x32x8xf32> to vector<32x8xf32>
    %cst_602 = arith.constant dense<0.000000e+00> : vector<8x8xf32>
    %687 = tpu.matmul %386, %686, %cst_602 {dimension_numbers = #tpu.dot_dimension_numbers<[1], [0], [0], [1], [0, 0, 1, 1], [], []>} : vector<8x32xf32>, vector<32x8xf32>, vector<8x8xf32> -> vector<8x8xf32>
    %c5_603 = arith.constant 5 : index
    %c2_604 = arith.constant 2 : index
    %c0_605 = arith.constant 0 : index
    %c0_606 = arith.constant 0 : index
    %688 = vector.load %arg8[%c5_603, %c2_604, %c0_605, %c0_606] : memref<7x4x32x8xf32, #tpu.memory_space<vmem>>, vector<1x1x32x8xf32>
    %689 = vector.shape_cast %688 : vector<1x1x32x8xf32> to vector<32x8xf32>
    %cst_607 = arith.constant dense<0.000000e+00> : vector<8x8xf32>
    %690 = tpu.matmul %386, %689, %cst_607 {dimension_numbers = #tpu.dot_dimension_numbers<[1], [0], [0], [1], [0, 0, 1, 1], [], []>} : vector<8x32xf32>, vector<32x8xf32>, vector<8x8xf32> -> vector<8x8xf32>
    %cst_608 = arith.constant dense<0.000000e+00> : vector<8x8xf32>
    %691 = tpu.matmul %684, %687, %cst_608 {dimension_numbers = #tpu.dot_dimension_numbers<[1], [1], [0], [0], [0, 0, 1, 0], [], []>} : vector<8x8xf32>, vector<8x8xf32>, vector<8x8xf32> -> vector<8x8xf32>
    %cst_609 = arith.constant 0.176776692 : f32
    %692 = vector.broadcast %cst_609 : f32 to vector<8x8xf32>
    %693 = arith.mulf %691, %692 : vector<8x8xf32>
    %cst_610 = arith.constant -1.000000e+30 : f32
    %694 = vector.broadcast %cst_610 : f32 to vector<8x8xf32>
    %695 = arith.select %4, %693, %694 : vector<8x8xi1>, vector<8x8xf32>
    %cst_611 = arith.constant dense<0xFF800000> : vector<8xf32>
    %696 = vector.multi_reduction <maximumf>, %695, %cst_611 [1] : vector<8x8xf32> to vector<8xf32>
    %697 = vector.shape_cast %696 : vector<8xf32> to vector<8x1xf32>
    %698 = vector.broadcast %697 : vector<8x1xf32> to vector<8x8xf32>
    %699 = arith.subf %695, %698 : vector<8x8xf32>
    %700 = math.exp %699 : vector<8x8xf32>
    %cst_612 = arith.constant dense<0.000000e+00> : vector<8xf32>
    %701 = vector.multi_reduction <add>, %700, %cst_612 [1] : vector<8x8xf32> to vector<8xf32>
    %702 = vector.shape_cast %701 : vector<8xf32> to vector<8x1xf32>
    %703 = tpu.reciprocal %702 {approx = true} : vector<8x1xf32> -> vector<8x1xf32>
    %704 = vector.broadcast %703 : vector<8x1xf32> to vector<8x8xf32>
    %705 = arith.mulf %700, %704 : vector<8x8xf32>
    %cst_613 = arith.constant dense<0.000000e+00> : vector<8x8xf32>
    %706 = tpu.matmul %705, %690, %cst_613 {dimension_numbers = #tpu.dot_dimension_numbers<[1], [0], [0], [1], [0, 0, 1, 1], [], []>} : vector<8x8xf32>, vector<8x8xf32>, vector<8x8xf32> -> vector<8x8xf32>
    %c5_614 = arith.constant 5 : index
    %c2_615 = arith.constant 2 : index
    %c0_616 = arith.constant 0 : index
    %c0_617 = arith.constant 0 : index
    %707 = vector.load %arg9[%c5_614, %c2_615, %c0_616, %c0_617] : memref<7x4x8x32xf32, #tpu.memory_space<vmem>>, vector<1x1x8x32xf32>
    %708 = vector.shape_cast %707 : vector<1x1x8x32xf32> to vector<8x32xf32>
    %cst_618 = arith.constant dense<0.000000e+00> : vector<8x32xf32>
    %709 = tpu.matmul %706, %708, %cst_618 {dimension_numbers = #tpu.dot_dimension_numbers<[1], [0], [0], [1], [0, 0, 1, 1], [], []>} : vector<8x8xf32>, vector<8x32xf32>, vector<8x32xf32> -> vector<8x32xf32>
    %710 = arith.addf %681, %709 : vector<8x32xf32>
    %c5_619 = arith.constant 5 : index
    %c3_620 = arith.constant 3 : index
    %c0_621 = arith.constant 0 : index
    %c0_622 = arith.constant 0 : index
    %711 = vector.load %arg6[%c5_619, %c3_620, %c0_621, %c0_622] : memref<7x4x32x8xf32, #tpu.memory_space<vmem>>, vector<1x1x32x8xf32>
    %712 = vector.shape_cast %711 : vector<1x1x32x8xf32> to vector<32x8xf32>
    %cst_623 = arith.constant dense<0.000000e+00> : vector<8x8xf32>
    %713 = tpu.matmul %386, %712, %cst_623 {dimension_numbers = #tpu.dot_dimension_numbers<[1], [0], [0], [1], [0, 0, 1, 1], [], []>} : vector<8x32xf32>, vector<32x8xf32>, vector<8x8xf32> -> vector<8x8xf32>
    %c5_624 = arith.constant 5 : index
    %c3_625 = arith.constant 3 : index
    %c0_626 = arith.constant 0 : index
    %c0_627 = arith.constant 0 : index
    %714 = vector.load %arg7[%c5_624, %c3_625, %c0_626, %c0_627] : memref<7x4x32x8xf32, #tpu.memory_space<vmem>>, vector<1x1x32x8xf32>
    %715 = vector.shape_cast %714 : vector<1x1x32x8xf32> to vector<32x8xf32>
    %cst_628 = arith.constant dense<0.000000e+00> : vector<8x8xf32>
    %716 = tpu.matmul %386, %715, %cst_628 {dimension_numbers = #tpu.dot_dimension_numbers<[1], [0], [0], [1], [0, 0, 1, 1], [], []>} : vector<8x32xf32>, vector<32x8xf32>, vector<8x8xf32> -> vector<8x8xf32>
    %c5_629 = arith.constant 5 : index
    %c3_630 = arith.constant 3 : index
    %c0_631 = arith.constant 0 : index
    %c0_632 = arith.constant 0 : index
    %717 = vector.load %arg8[%c5_629, %c3_630, %c0_631, %c0_632] : memref<7x4x32x8xf32, #tpu.memory_space<vmem>>, vector<1x1x32x8xf32>
    %718 = vector.shape_cast %717 : vector<1x1x32x8xf32> to vector<32x8xf32>
    %cst_633 = arith.constant dense<0.000000e+00> : vector<8x8xf32>
    %719 = tpu.matmul %386, %718, %cst_633 {dimension_numbers = #tpu.dot_dimension_numbers<[1], [0], [0], [1], [0, 0, 1, 1], [], []>} : vector<8x32xf32>, vector<32x8xf32>, vector<8x8xf32> -> vector<8x8xf32>
    %cst_634 = arith.constant dense<0.000000e+00> : vector<8x8xf32>
    %720 = tpu.matmul %713, %716, %cst_634 {dimension_numbers = #tpu.dot_dimension_numbers<[1], [1], [0], [0], [0, 0, 1, 0], [], []>} : vector<8x8xf32>, vector<8x8xf32>, vector<8x8xf32> -> vector<8x8xf32>
    %cst_635 = arith.constant 0.176776692 : f32
    %721 = vector.broadcast %cst_635 : f32 to vector<8x8xf32>
    %722 = arith.mulf %720, %721 : vector<8x8xf32>
    %cst_636 = arith.constant -1.000000e+30 : f32
    %723 = vector.broadcast %cst_636 : f32 to vector<8x8xf32>
    %724 = arith.select %4, %722, %723 : vector<8x8xi1>, vector<8x8xf32>
    %cst_637 = arith.constant dense<0xFF800000> : vector<8xf32>
    %725 = vector.multi_reduction <maximumf>, %724, %cst_637 [1] : vector<8x8xf32> to vector<8xf32>
    %726 = vector.shape_cast %725 : vector<8xf32> to vector<8x1xf32>
    %727 = vector.broadcast %726 : vector<8x1xf32> to vector<8x8xf32>
    %728 = arith.subf %724, %727 : vector<8x8xf32>
    %729 = math.exp %728 : vector<8x8xf32>
    %cst_638 = arith.constant dense<0.000000e+00> : vector<8xf32>
    %730 = vector.multi_reduction <add>, %729, %cst_638 [1] : vector<8x8xf32> to vector<8xf32>
    %731 = vector.shape_cast %730 : vector<8xf32> to vector<8x1xf32>
    %732 = tpu.reciprocal %731 {approx = true} : vector<8x1xf32> -> vector<8x1xf32>
    %733 = vector.broadcast %732 : vector<8x1xf32> to vector<8x8xf32>
    %734 = arith.mulf %729, %733 : vector<8x8xf32>
    %cst_639 = arith.constant dense<0.000000e+00> : vector<8x8xf32>
    %735 = tpu.matmul %734, %719, %cst_639 {dimension_numbers = #tpu.dot_dimension_numbers<[1], [0], [0], [1], [0, 0, 1, 1], [], []>} : vector<8x8xf32>, vector<8x8xf32>, vector<8x8xf32> -> vector<8x8xf32>
    %c5_640 = arith.constant 5 : index
    %c3_641 = arith.constant 3 : index
    %c0_642 = arith.constant 0 : index
    %c0_643 = arith.constant 0 : index
    %736 = vector.load %arg9[%c5_640, %c3_641, %c0_642, %c0_643] : memref<7x4x8x32xf32, #tpu.memory_space<vmem>>, vector<1x1x8x32xf32>
    %737 = vector.shape_cast %736 : vector<1x1x8x32xf32> to vector<8x32xf32>
    %cst_644 = arith.constant dense<0.000000e+00> : vector<8x32xf32>
    %738 = tpu.matmul %735, %737, %cst_644 {dimension_numbers = #tpu.dot_dimension_numbers<[1], [0], [0], [1], [0, 0, 1, 1], [], []>} : vector<8x8xf32>, vector<8x32xf32>, vector<8x32xf32> -> vector<8x32xf32>
    %739 = arith.addf %710, %738 : vector<8x32xf32>
    %c5_645 = arith.constant 5 : index
    %c0_646 = arith.constant 0 : index
    %c0_647 = arith.constant 0 : index
    %740 = vector.load %arg10[%c5_645, %c0_646, %c0_647] : memref<7x1x32xf32, #tpu.memory_space<vmem>>, vector<1x1x32xf32>
    %741 = vector.shape_cast %740 : vector<1x1x32xf32> to vector<1x32xf32>
    %742 = vector.broadcast %741 : vector<1x32xf32> to vector<8x32xf32>
    %743 = arith.addf %739, %742 : vector<8x32xf32>
    %c6 = arith.constant 6 : index
    %c0_648 = arith.constant 0 : index
    %c0_649 = arith.constant 0 : index
    %c0_650 = arith.constant 0 : index
    %744 = vector.load %arg6[%c6, %c0_648, %c0_649, %c0_650] : memref<7x4x32x8xf32, #tpu.memory_space<vmem>>, vector<1x1x32x8xf32>
    %745 = vector.shape_cast %744 : vector<1x1x32x8xf32> to vector<32x8xf32>
    %cst_651 = arith.constant dense<0.000000e+00> : vector<8x8xf32>
    %746 = tpu.matmul %505, %745, %cst_651 {dimension_numbers = #tpu.dot_dimension_numbers<[1], [0], [0], [1], [0, 0, 1, 1], [], []>} : vector<8x32xf32>, vector<32x8xf32>, vector<8x8xf32> -> vector<8x8xf32>
    %c6_652 = arith.constant 6 : index
    %c0_653 = arith.constant 0 : index
    %c0_654 = arith.constant 0 : index
    %c0_655 = arith.constant 0 : index
    %747 = vector.load %arg7[%c6_652, %c0_653, %c0_654, %c0_655] : memref<7x4x32x8xf32, #tpu.memory_space<vmem>>, vector<1x1x32x8xf32>
    %748 = vector.shape_cast %747 : vector<1x1x32x8xf32> to vector<32x8xf32>
    %cst_656 = arith.constant dense<0.000000e+00> : vector<8x8xf32>
    %749 = tpu.matmul %505, %748, %cst_656 {dimension_numbers = #tpu.dot_dimension_numbers<[1], [0], [0], [1], [0, 0, 1, 1], [], []>} : vector<8x32xf32>, vector<32x8xf32>, vector<8x8xf32> -> vector<8x8xf32>
    %c6_657 = arith.constant 6 : index
    %c0_658 = arith.constant 0 : index
    %c0_659 = arith.constant 0 : index
    %c0_660 = arith.constant 0 : index
    %750 = vector.load %arg8[%c6_657, %c0_658, %c0_659, %c0_660] : memref<7x4x32x8xf32, #tpu.memory_space<vmem>>, vector<1x1x32x8xf32>
    %751 = vector.shape_cast %750 : vector<1x1x32x8xf32> to vector<32x8xf32>
    %cst_661 = arith.constant dense<0.000000e+00> : vector<8x8xf32>
    %752 = tpu.matmul %505, %751, %cst_661 {dimension_numbers = #tpu.dot_dimension_numbers<[1], [0], [0], [1], [0, 0, 1, 1], [], []>} : vector<8x32xf32>, vector<32x8xf32>, vector<8x8xf32> -> vector<8x8xf32>
    %cst_662 = arith.constant dense<0.000000e+00> : vector<8x8xf32>
    %753 = tpu.matmul %746, %749, %cst_662 {dimension_numbers = #tpu.dot_dimension_numbers<[1], [1], [0], [0], [0, 0, 1, 0], [], []>} : vector<8x8xf32>, vector<8x8xf32>, vector<8x8xf32> -> vector<8x8xf32>
    %cst_663 = arith.constant 0.176776692 : f32
    %754 = vector.broadcast %cst_663 : f32 to vector<8x8xf32>
    %755 = arith.mulf %753, %754 : vector<8x8xf32>
    %cst_664 = arith.constant -1.000000e+30 : f32
    %756 = vector.broadcast %cst_664 : f32 to vector<8x8xf32>
    %757 = arith.select %4, %755, %756 : vector<8x8xi1>, vector<8x8xf32>
    %cst_665 = arith.constant dense<0xFF800000> : vector<8xf32>
    %758 = vector.multi_reduction <maximumf>, %757, %cst_665 [1] : vector<8x8xf32> to vector<8xf32>
    %759 = vector.shape_cast %758 : vector<8xf32> to vector<8x1xf32>
    %760 = vector.broadcast %759 : vector<8x1xf32> to vector<8x8xf32>
    %761 = arith.subf %757, %760 : vector<8x8xf32>
    %762 = math.exp %761 : vector<8x8xf32>
    %cst_666 = arith.constant dense<0.000000e+00> : vector<8xf32>
    %763 = vector.multi_reduction <add>, %762, %cst_666 [1] : vector<8x8xf32> to vector<8xf32>
    %764 = vector.shape_cast %763 : vector<8xf32> to vector<8x1xf32>
    %765 = tpu.reciprocal %764 {approx = true} : vector<8x1xf32> -> vector<8x1xf32>
    %766 = vector.broadcast %765 : vector<8x1xf32> to vector<8x8xf32>
    %767 = arith.mulf %762, %766 : vector<8x8xf32>
    %cst_667 = arith.constant dense<0.000000e+00> : vector<8x8xf32>
    %768 = tpu.matmul %767, %752, %cst_667 {dimension_numbers = #tpu.dot_dimension_numbers<[1], [0], [0], [1], [0, 0, 1, 1], [], []>} : vector<8x8xf32>, vector<8x8xf32>, vector<8x8xf32> -> vector<8x8xf32>
    %c6_668 = arith.constant 6 : index
    %c0_669 = arith.constant 0 : index
    %c0_670 = arith.constant 0 : index
    %c0_671 = arith.constant 0 : index
    %769 = vector.load %arg9[%c6_668, %c0_669, %c0_670, %c0_671] : memref<7x4x8x32xf32, #tpu.memory_space<vmem>>, vector<1x1x8x32xf32>
    %770 = vector.shape_cast %769 : vector<1x1x8x32xf32> to vector<8x32xf32>
    %cst_672 = arith.constant dense<0.000000e+00> : vector<8x32xf32>
    %771 = tpu.matmul %768, %770, %cst_672 {dimension_numbers = #tpu.dot_dimension_numbers<[1], [0], [0], [1], [0, 0, 1, 1], [], []>} : vector<8x8xf32>, vector<8x32xf32>, vector<8x32xf32> -> vector<8x32xf32>
    %c6_673 = arith.constant 6 : index
    %c1_674 = arith.constant 1 : index
    %c0_675 = arith.constant 0 : index
    %c0_676 = arith.constant 0 : index
    %772 = vector.load %arg6[%c6_673, %c1_674, %c0_675, %c0_676] : memref<7x4x32x8xf32, #tpu.memory_space<vmem>>, vector<1x1x32x8xf32>
    %773 = vector.shape_cast %772 : vector<1x1x32x8xf32> to vector<32x8xf32>
    %cst_677 = arith.constant dense<0.000000e+00> : vector<8x8xf32>
    %774 = tpu.matmul %505, %773, %cst_677 {dimension_numbers = #tpu.dot_dimension_numbers<[1], [0], [0], [1], [0, 0, 1, 1], [], []>} : vector<8x32xf32>, vector<32x8xf32>, vector<8x8xf32> -> vector<8x8xf32>
    %c6_678 = arith.constant 6 : index
    %c1_679 = arith.constant 1 : index
    %c0_680 = arith.constant 0 : index
    %c0_681 = arith.constant 0 : index
    %775 = vector.load %arg7[%c6_678, %c1_679, %c0_680, %c0_681] : memref<7x4x32x8xf32, #tpu.memory_space<vmem>>, vector<1x1x32x8xf32>
    %776 = vector.shape_cast %775 : vector<1x1x32x8xf32> to vector<32x8xf32>
    %cst_682 = arith.constant dense<0.000000e+00> : vector<8x8xf32>
    %777 = tpu.matmul %505, %776, %cst_682 {dimension_numbers = #tpu.dot_dimension_numbers<[1], [0], [0], [1], [0, 0, 1, 1], [], []>} : vector<8x32xf32>, vector<32x8xf32>, vector<8x8xf32> -> vector<8x8xf32>
    %c6_683 = arith.constant 6 : index
    %c1_684 = arith.constant 1 : index
    %c0_685 = arith.constant 0 : index
    %c0_686 = arith.constant 0 : index
    %778 = vector.load %arg8[%c6_683, %c1_684, %c0_685, %c0_686] : memref<7x4x32x8xf32, #tpu.memory_space<vmem>>, vector<1x1x32x8xf32>
    %779 = vector.shape_cast %778 : vector<1x1x32x8xf32> to vector<32x8xf32>
    %cst_687 = arith.constant dense<0.000000e+00> : vector<8x8xf32>
    %780 = tpu.matmul %505, %779, %cst_687 {dimension_numbers = #tpu.dot_dimension_numbers<[1], [0], [0], [1], [0, 0, 1, 1], [], []>} : vector<8x32xf32>, vector<32x8xf32>, vector<8x8xf32> -> vector<8x8xf32>
    %cst_688 = arith.constant dense<0.000000e+00> : vector<8x8xf32>
    %781 = tpu.matmul %774, %777, %cst_688 {dimension_numbers = #tpu.dot_dimension_numbers<[1], [1], [0], [0], [0, 0, 1, 0], [], []>} : vector<8x8xf32>, vector<8x8xf32>, vector<8x8xf32> -> vector<8x8xf32>
    %cst_689 = arith.constant 0.176776692 : f32
    %782 = vector.broadcast %cst_689 : f32 to vector<8x8xf32>
    %783 = arith.mulf %781, %782 : vector<8x8xf32>
    %cst_690 = arith.constant -1.000000e+30 : f32
    %784 = vector.broadcast %cst_690 : f32 to vector<8x8xf32>
    %785 = arith.select %4, %783, %784 : vector<8x8xi1>, vector<8x8xf32>
    %cst_691 = arith.constant dense<0xFF800000> : vector<8xf32>
    %786 = vector.multi_reduction <maximumf>, %785, %cst_691 [1] : vector<8x8xf32> to vector<8xf32>
    %787 = vector.shape_cast %786 : vector<8xf32> to vector<8x1xf32>
    %788 = vector.broadcast %787 : vector<8x1xf32> to vector<8x8xf32>
    %789 = arith.subf %785, %788 : vector<8x8xf32>
    %790 = math.exp %789 : vector<8x8xf32>
    %cst_692 = arith.constant dense<0.000000e+00> : vector<8xf32>
    %791 = vector.multi_reduction <add>, %790, %cst_692 [1] : vector<8x8xf32> to vector<8xf32>
    %792 = vector.shape_cast %791 : vector<8xf32> to vector<8x1xf32>
    %793 = tpu.reciprocal %792 {approx = true} : vector<8x1xf32> -> vector<8x1xf32>
    %794 = vector.broadcast %793 : vector<8x1xf32> to vector<8x8xf32>
    %795 = arith.mulf %790, %794 : vector<8x8xf32>
    %cst_693 = arith.constant dense<0.000000e+00> : vector<8x8xf32>
    %796 = tpu.matmul %795, %780, %cst_693 {dimension_numbers = #tpu.dot_dimension_numbers<[1], [0], [0], [1], [0, 0, 1, 1], [], []>} : vector<8x8xf32>, vector<8x8xf32>, vector<8x8xf32> -> vector<8x8xf32>
    %c6_694 = arith.constant 6 : index
    %c1_695 = arith.constant 1 : index
    %c0_696 = arith.constant 0 : index
    %c0_697 = arith.constant 0 : index
    %797 = vector.load %arg9[%c6_694, %c1_695, %c0_696, %c0_697] : memref<7x4x8x32xf32, #tpu.memory_space<vmem>>, vector<1x1x8x32xf32>
    %798 = vector.shape_cast %797 : vector<1x1x8x32xf32> to vector<8x32xf32>
    %cst_698 = arith.constant dense<0.000000e+00> : vector<8x32xf32>
    %799 = tpu.matmul %796, %798, %cst_698 {dimension_numbers = #tpu.dot_dimension_numbers<[1], [0], [0], [1], [0, 0, 1, 1], [], []>} : vector<8x8xf32>, vector<8x32xf32>, vector<8x32xf32> -> vector<8x32xf32>
    %800 = arith.addf %771, %799 : vector<8x32xf32>
    %c6_699 = arith.constant 6 : index
    %c2_700 = arith.constant 2 : index
    %c0_701 = arith.constant 0 : index
    %c0_702 = arith.constant 0 : index
    %801 = vector.load %arg6[%c6_699, %c2_700, %c0_701, %c0_702] : memref<7x4x32x8xf32, #tpu.memory_space<vmem>>, vector<1x1x32x8xf32>
    %802 = vector.shape_cast %801 : vector<1x1x32x8xf32> to vector<32x8xf32>
    %cst_703 = arith.constant dense<0.000000e+00> : vector<8x8xf32>
    %803 = tpu.matmul %505, %802, %cst_703 {dimension_numbers = #tpu.dot_dimension_numbers<[1], [0], [0], [1], [0, 0, 1, 1], [], []>} : vector<8x32xf32>, vector<32x8xf32>, vector<8x8xf32> -> vector<8x8xf32>
    %c6_704 = arith.constant 6 : index
    %c2_705 = arith.constant 2 : index
    %c0_706 = arith.constant 0 : index
    %c0_707 = arith.constant 0 : index
    %804 = vector.load %arg7[%c6_704, %c2_705, %c0_706, %c0_707] : memref<7x4x32x8xf32, #tpu.memory_space<vmem>>, vector<1x1x32x8xf32>
    %805 = vector.shape_cast %804 : vector<1x1x32x8xf32> to vector<32x8xf32>
    %cst_708 = arith.constant dense<0.000000e+00> : vector<8x8xf32>
    %806 = tpu.matmul %505, %805, %cst_708 {dimension_numbers = #tpu.dot_dimension_numbers<[1], [0], [0], [1], [0, 0, 1, 1], [], []>} : vector<8x32xf32>, vector<32x8xf32>, vector<8x8xf32> -> vector<8x8xf32>
    %c6_709 = arith.constant 6 : index
    %c2_710 = arith.constant 2 : index
    %c0_711 = arith.constant 0 : index
    %c0_712 = arith.constant 0 : index
    %807 = vector.load %arg8[%c6_709, %c2_710, %c0_711, %c0_712] : memref<7x4x32x8xf32, #tpu.memory_space<vmem>>, vector<1x1x32x8xf32>
    %808 = vector.shape_cast %807 : vector<1x1x32x8xf32> to vector<32x8xf32>
    %cst_713 = arith.constant dense<0.000000e+00> : vector<8x8xf32>
    %809 = tpu.matmul %505, %808, %cst_713 {dimension_numbers = #tpu.dot_dimension_numbers<[1], [0], [0], [1], [0, 0, 1, 1], [], []>} : vector<8x32xf32>, vector<32x8xf32>, vector<8x8xf32> -> vector<8x8xf32>
    %cst_714 = arith.constant dense<0.000000e+00> : vector<8x8xf32>
    %810 = tpu.matmul %803, %806, %cst_714 {dimension_numbers = #tpu.dot_dimension_numbers<[1], [1], [0], [0], [0, 0, 1, 0], [], []>} : vector<8x8xf32>, vector<8x8xf32>, vector<8x8xf32> -> vector<8x8xf32>
    %cst_715 = arith.constant 0.176776692 : f32
    %811 = vector.broadcast %cst_715 : f32 to vector<8x8xf32>
    %812 = arith.mulf %810, %811 : vector<8x8xf32>
    %cst_716 = arith.constant -1.000000e+30 : f32
    %813 = vector.broadcast %cst_716 : f32 to vector<8x8xf32>
    %814 = arith.select %4, %812, %813 : vector<8x8xi1>, vector<8x8xf32>
    %cst_717 = arith.constant dense<0xFF800000> : vector<8xf32>
    %815 = vector.multi_reduction <maximumf>, %814, %cst_717 [1] : vector<8x8xf32> to vector<8xf32>
    %816 = vector.shape_cast %815 : vector<8xf32> to vector<8x1xf32>
    %817 = vector.broadcast %816 : vector<8x1xf32> to vector<8x8xf32>
    %818 = arith.subf %814, %817 : vector<8x8xf32>
    %819 = math.exp %818 : vector<8x8xf32>
    %cst_718 = arith.constant dense<0.000000e+00> : vector<8xf32>
    %820 = vector.multi_reduction <add>, %819, %cst_718 [1] : vector<8x8xf32> to vector<8xf32>
    %821 = vector.shape_cast %820 : vector<8xf32> to vector<8x1xf32>
    %822 = tpu.reciprocal %821 {approx = true} : vector<8x1xf32> -> vector<8x1xf32>
    %823 = vector.broadcast %822 : vector<8x1xf32> to vector<8x8xf32>
    %824 = arith.mulf %819, %823 : vector<8x8xf32>
    %cst_719 = arith.constant dense<0.000000e+00> : vector<8x8xf32>
    %825 = tpu.matmul %824, %809, %cst_719 {dimension_numbers = #tpu.dot_dimension_numbers<[1], [0], [0], [1], [0, 0, 1, 1], [], []>} : vector<8x8xf32>, vector<8x8xf32>, vector<8x8xf32> -> vector<8x8xf32>
    %c6_720 = arith.constant 6 : index
    %c2_721 = arith.constant 2 : index
    %c0_722 = arith.constant 0 : index
    %c0_723 = arith.constant 0 : index
    %826 = vector.load %arg9[%c6_720, %c2_721, %c0_722, %c0_723] : memref<7x4x8x32xf32, #tpu.memory_space<vmem>>, vector<1x1x8x32xf32>
    %827 = vector.shape_cast %826 : vector<1x1x8x32xf32> to vector<8x32xf32>
    %cst_724 = arith.constant dense<0.000000e+00> : vector<8x32xf32>
    %828 = tpu.matmul %825, %827, %cst_724 {dimension_numbers = #tpu.dot_dimension_numbers<[1], [0], [0], [1], [0, 0, 1, 1], [], []>} : vector<8x8xf32>, vector<8x32xf32>, vector<8x32xf32> -> vector<8x32xf32>
    %829 = arith.addf %800, %828 : vector<8x32xf32>
    %c6_725 = arith.constant 6 : index
    %c3_726 = arith.constant 3 : index
    %c0_727 = arith.constant 0 : index
    %c0_728 = arith.constant 0 : index
    %830 = vector.load %arg6[%c6_725, %c3_726, %c0_727, %c0_728] : memref<7x4x32x8xf32, #tpu.memory_space<vmem>>, vector<1x1x32x8xf32>
    %831 = vector.shape_cast %830 : vector<1x1x32x8xf32> to vector<32x8xf32>
    %cst_729 = arith.constant dense<0.000000e+00> : vector<8x8xf32>
    %832 = tpu.matmul %505, %831, %cst_729 {dimension_numbers = #tpu.dot_dimension_numbers<[1], [0], [0], [1], [0, 0, 1, 1], [], []>} : vector<8x32xf32>, vector<32x8xf32>, vector<8x8xf32> -> vector<8x8xf32>
    %c6_730 = arith.constant 6 : index
    %c3_731 = arith.constant 3 : index
    %c0_732 = arith.constant 0 : index
    %c0_733 = arith.constant 0 : index
    %833 = vector.load %arg7[%c6_730, %c3_731, %c0_732, %c0_733] : memref<7x4x32x8xf32, #tpu.memory_space<vmem>>, vector<1x1x32x8xf32>
    %834 = vector.shape_cast %833 : vector<1x1x32x8xf32> to vector<32x8xf32>
    %cst_734 = arith.constant dense<0.000000e+00> : vector<8x8xf32>
    %835 = tpu.matmul %505, %834, %cst_734 {dimension_numbers = #tpu.dot_dimension_numbers<[1], [0], [0], [1], [0, 0, 1, 1], [], []>} : vector<8x32xf32>, vector<32x8xf32>, vector<8x8xf32> -> vector<8x8xf32>
    %c6_735 = arith.constant 6 : index
    %c3_736 = arith.constant 3 : index
    %c0_737 = arith.constant 0 : index
    %c0_738 = arith.constant 0 : index
    %836 = vector.load %arg8[%c6_735, %c3_736, %c0_737, %c0_738] : memref<7x4x32x8xf32, #tpu.memory_space<vmem>>, vector<1x1x32x8xf32>
    %837 = vector.shape_cast %836 : vector<1x1x32x8xf32> to vector<32x8xf32>
    %cst_739 = arith.constant dense<0.000000e+00> : vector<8x8xf32>
    %838 = tpu.matmul %505, %837, %cst_739 {dimension_numbers = #tpu.dot_dimension_numbers<[1], [0], [0], [1], [0, 0, 1, 1], [], []>} : vector<8x32xf32>, vector<32x8xf32>, vector<8x8xf32> -> vector<8x8xf32>
    %cst_740 = arith.constant dense<0.000000e+00> : vector<8x8xf32>
    %839 = tpu.matmul %832, %835, %cst_740 {dimension_numbers = #tpu.dot_dimension_numbers<[1], [1], [0], [0], [0, 0, 1, 0], [], []>} : vector<8x8xf32>, vector<8x8xf32>, vector<8x8xf32> -> vector<8x8xf32>
    %cst_741 = arith.constant 0.176776692 : f32
    %840 = vector.broadcast %cst_741 : f32 to vector<8x8xf32>
    %841 = arith.mulf %839, %840 : vector<8x8xf32>
    %cst_742 = arith.constant -1.000000e+30 : f32
    %842 = vector.broadcast %cst_742 : f32 to vector<8x8xf32>
    %843 = arith.select %4, %841, %842 : vector<8x8xi1>, vector<8x8xf32>
    %cst_743 = arith.constant dense<0xFF800000> : vector<8xf32>
    %844 = vector.multi_reduction <maximumf>, %843, %cst_743 [1] : vector<8x8xf32> to vector<8xf32>
    %845 = vector.shape_cast %844 : vector<8xf32> to vector<8x1xf32>
    %846 = vector.broadcast %845 : vector<8x1xf32> to vector<8x8xf32>
    %847 = arith.subf %843, %846 : vector<8x8xf32>
    %848 = math.exp %847 : vector<8x8xf32>
    %cst_744 = arith.constant dense<0.000000e+00> : vector<8xf32>
    %849 = vector.multi_reduction <add>, %848, %cst_744 [1] : vector<8x8xf32> to vector<8xf32>
    %850 = vector.shape_cast %849 : vector<8xf32> to vector<8x1xf32>
    %851 = tpu.reciprocal %850 {approx = true} : vector<8x1xf32> -> vector<8x1xf32>
    %852 = vector.broadcast %851 : vector<8x1xf32> to vector<8x8xf32>
    %853 = arith.mulf %848, %852 : vector<8x8xf32>
    %cst_745 = arith.constant dense<0.000000e+00> : vector<8x8xf32>
    %854 = tpu.matmul %853, %838, %cst_745 {dimension_numbers = #tpu.dot_dimension_numbers<[1], [0], [0], [1], [0, 0, 1, 1], [], []>} : vector<8x8xf32>, vector<8x8xf32>, vector<8x8xf32> -> vector<8x8xf32>
    %c6_746 = arith.constant 6 : index
    %c3_747 = arith.constant 3 : index
    %c0_748 = arith.constant 0 : index
    %c0_749 = arith.constant 0 : index
    %855 = vector.load %arg9[%c6_746, %c3_747, %c0_748, %c0_749] : memref<7x4x8x32xf32, #tpu.memory_space<vmem>>, vector<1x1x8x32xf32>
    %856 = vector.shape_cast %855 : vector<1x1x8x32xf32> to vector<8x32xf32>
    %cst_750 = arith.constant dense<0.000000e+00> : vector<8x32xf32>
    %857 = tpu.matmul %854, %856, %cst_750 {dimension_numbers = #tpu.dot_dimension_numbers<[1], [0], [0], [1], [0, 0, 1, 1], [], []>} : vector<8x8xf32>, vector<8x32xf32>, vector<8x32xf32> -> vector<8x32xf32>
    %858 = arith.addf %829, %857 : vector<8x32xf32>
    %c6_751 = arith.constant 6 : index
    %c0_752 = arith.constant 0 : index
    %c0_753 = arith.constant 0 : index
    %859 = vector.load %arg10[%c6_751, %c0_752, %c0_753] : memref<7x1x32xf32, #tpu.memory_space<vmem>>, vector<1x1x32xf32>
    %860 = vector.shape_cast %859 : vector<1x1x32xf32> to vector<1x32xf32>
    %861 = vector.broadcast %860 : vector<1x32xf32> to vector<8x32xf32>
    %862 = arith.addf %858, %861 : vector<8x32xf32>
    %863 = arith.addf %624, %743 : vector<8x32xf32>
    %864 = arith.addf %863, %862 : vector<8x32xf32>
    %cst_754 = arith.constant 0.333333343 : f32
    %865 = vector.broadcast %cst_754 : f32 to vector<8x32xf32>
    %866 = arith.mulf %864, %865 : vector<8x32xf32>
    %867 = arith.addf %1, %866 : vector<8x32xf32>
    %c0_755 = arith.constant 0 : index
    %c0_756 = arith.constant 0 : index
    %868 = vector.load %arg4[%c0_755, %c0_756] : memref<1x32xf32, #tpu.memory_space<vmem>>, vector<1x32xf32>
    %c0_757 = arith.constant 0 : index
    %c0_758 = arith.constant 0 : index
    %869 = vector.load %arg5[%c0_757, %c0_758] : memref<1x32xf32, #tpu.memory_space<vmem>>, vector<1x32xf32>
    %cst_759 = arith.constant dense<0.000000e+00> : vector<8xf32>
    %870 = vector.multi_reduction <add>, %867, %cst_759 [1] : vector<8x32xf32> to vector<8xf32>
    %871 = vector.shape_cast %870 : vector<8xf32> to vector<8x1xf32>
    %cst_760 = arith.constant 3.200000e+01 : f32
    %872 = vector.broadcast %cst_760 : f32 to vector<8x1xf32>
    %873 = arith.divf %871, %872 : vector<8x1xf32>
    %874 = vector.broadcast %873 : vector<8x1xf32> to vector<8x32xf32>
    %875 = arith.subf %867, %874 : vector<8x32xf32>
    %876 = arith.mulf %875, %875 : vector<8x32xf32>
    %cst_761 = arith.constant dense<0.000000e+00> : vector<8xf32>
    %877 = vector.multi_reduction <add>, %876, %cst_761 [1] : vector<8x32xf32> to vector<8xf32>
    %878 = vector.shape_cast %877 : vector<8xf32> to vector<8x1xf32>
    %cst_762 = arith.constant 3.200000e+01 : f32
    %879 = vector.broadcast %cst_762 : f32 to vector<8x1xf32>
    %880 = arith.divf %878, %879 : vector<8x1xf32>
    %cst_763 = arith.constant 9.99999974E-6 : f32
    %881 = vector.broadcast %cst_763 : f32 to vector<8x1xf32>
    %882 = arith.addf %880, %881 : vector<8x1xf32>
    %883 = math.rsqrt %882 : vector<8x1xf32>
    %884 = vector.broadcast %883 : vector<8x1xf32> to vector<8x32xf32>
    %885 = arith.mulf %875, %884 : vector<8x32xf32>
    %886 = vector.broadcast %868 : vector<1x32xf32> to vector<8x32xf32>
    %887 = arith.mulf %885, %886 : vector<8x32xf32>
    %888 = vector.broadcast %869 : vector<1x32xf32> to vector<8x32xf32>
    %889 = arith.addf %887, %888 : vector<8x32xf32>
    %c0_764 = arith.constant 0 : index
    %c0_765 = arith.constant 0 : index
    %890 = vector.load %arg11[%c0_764, %c0_765] : memref<32x128xf32, #tpu.memory_space<vmem>>, vector<32x128xf32>
    %cst_766 = arith.constant dense<0.000000e+00> : vector<8x128xf32>
    %891 = tpu.matmul %889, %890, %cst_766 {dimension_numbers = #tpu.dot_dimension_numbers<[1], [0], [0], [1], [0, 0, 1, 1], [], []>} : vector<8x32xf32>, vector<32x128xf32>, vector<8x128xf32> -> vector<8x128xf32>
    %c0_767 = arith.constant 0 : index
    %c0_768 = arith.constant 0 : index
    %892 = vector.load %arg12[%c0_767, %c0_768] : memref<1x128xf32, #tpu.memory_space<vmem>>, vector<1x128xf32>
    %893 = vector.broadcast %892 : vector<1x128xf32> to vector<8x128xf32>
    %894 = arith.addf %891, %893 : vector<8x128xf32>
    %cst_769 = arith.constant 0.000000e+00 : f32
    %895 = vector.broadcast %cst_769 : f32 to vector<8x128xf32>
    %896 = arith.maximumf %894, %895 : vector<8x128xf32>
    %c0_770 = arith.constant 0 : index
    %c0_771 = arith.constant 0 : index
    %897 = vector.load %arg13[%c0_770, %c0_771] : memref<128x32xf32, #tpu.memory_space<vmem>>, vector<128x32xf32>
    %cst_772 = arith.constant dense<0.000000e+00> : vector<8x32xf32>
    %898 = tpu.matmul %896, %897, %cst_772 {dimension_numbers = #tpu.dot_dimension_numbers<[1], [0], [0], [1], [0, 0, 1, 1], [], []>} : vector<8x128xf32>, vector<128x32xf32>, vector<8x32xf32> -> vector<8x32xf32>
    %899 = arith.addf %867, %898 : vector<8x32xf32>
    %c0_773 = arith.constant 0 : index
    %c0_774 = arith.constant 0 : index
    %900 = vector.load %arg14[%c0_773, %c0_774] : memref<1x32xf32, #tpu.memory_space<vmem>>, vector<1x32xf32>
    %901 = vector.broadcast %900 : vector<1x32xf32> to vector<8x32xf32>
    %902 = arith.addf %899, %901 : vector<8x32xf32>
    %c0_775 = arith.constant 0 : index
    %c0_776 = arith.constant 0 : index
    %c0_777 = arith.constant 0 : index
    %903 = vector.load %arg15[%c0_775, %c0_776, %c0_777] : memref<1x8x32xf32, #tpu.memory_space<vmem>>, vector<1x8x32xf32>
    %904 = vector.shape_cast %903 : vector<1x8x32xf32> to vector<8x32xf32>
    %905 = vector.shape_cast %902 : vector<8x32xf32> to vector<1x8x32xf32>
    tpu.vector_store %arg15[%c0_775, %c0_776, %c0_777], %905 {strides = array<i32>} : memref<1x8x32xf32, #tpu.memory_space<vmem>>, vector<1x8x32xf32>,
    return
  }
  func.func @transform_0(%arg0: i32) -> (i32, i32, i32) {
    %c0_i32 = arith.constant 0 : i32
    %c0_i32_0 = arith.constant 0 : i32
    %c0_i32_1 = arith.constant 0 : i32
    return %arg0, %c0_i32, %c0_i32_0 : i32, i32, i32
  }
  func.func @transform_1(%arg0: i32) -> (i32, i32) {
    %c0_i32 = arith.constant 0 : i32
    %c0_i32_0 = arith.constant 0 : i32
    %c0_i32_1 = arith.constant 0 : i32
    return %c0_i32, %c0_i32_0 : i32, i32
  }
  func.func @transform_2(%arg0: i32) -> (i32, i32) {
    %c0_i32 = arith.constant 0 : i32
    %c0_i32_0 = arith.constant 0 : i32
    %c0_i32_1 = arith.constant 0 : i32
    return %c0_i32, %c0_i32_0 : i32, i32
  }
  func.func @transform_3(%arg0: i32) -> (i32, i32) {
    %c0_i32 = arith.constant 0 : i32
    %c0_i32_0 = arith.constant 0 : i32
    %c0_i32_1 = arith.constant 0 : i32
    return %c0_i32, %c0_i32_0 : i32, i32
  }
  func.func @transform_4(%arg0: i32) -> (i32, i32) {
    %c0_i32 = arith.constant 0 : i32
    %c0_i32_0 = arith.constant 0 : i32
    %c0_i32_1 = arith.constant 0 : i32
    return %c0_i32, %c0_i32_0 : i32, i32
  }
  func.func @transform_5(%arg0: i32) -> (i32, i32, i32, i32) {
    %c0_i32 = arith.constant 0 : i32
    %c0_i32_0 = arith.constant 0 : i32
    %c0_i32_1 = arith.constant 0 : i32
    %c0_i32_2 = arith.constant 0 : i32
    %c0_i32_3 = arith.constant 0 : i32
    return %c0_i32, %c0_i32_0, %c0_i32_1, %c0_i32_2 : i32, i32, i32, i32
  }
  func.func @transform_6(%arg0: i32) -> (i32, i32, i32, i32) {
    %c0_i32 = arith.constant 0 : i32
    %c0_i32_0 = arith.constant 0 : i32
    %c0_i32_1 = arith.constant 0 : i32
    %c0_i32_2 = arith.constant 0 : i32
    %c0_i32_3 = arith.constant 0 : i32
    return %c0_i32, %c0_i32_0, %c0_i32_1, %c0_i32_2 : i32, i32, i32, i32
  }
  func.func @transform_7(%arg0: i32) -> (i32, i32, i32, i32) {
    %c0_i32 = arith.constant 0 : i32
    %c0_i32_0 = arith.constant 0 : i32
    %c0_i32_1 = arith.constant 0 : i32
    %c0_i32_2 = arith.constant 0 : i32
    %c0_i32_3 = arith.constant 0 : i32
    return %c0_i32, %c0_i32_0, %c0_i32_1, %c0_i32_2 : i32, i32, i32, i32
  }
  func.func @transform_8(%arg0: i32) -> (i32, i32, i32, i32) {
    %c0_i32 = arith.constant 0 : i32
    %c0_i32_0 = arith.constant 0 : i32
    %c0_i32_1 = arith.constant 0 : i32
    %c0_i32_2 = arith.constant 0 : i32
    %c0_i32_3 = arith.constant 0 : i32
    return %c0_i32, %c0_i32_0, %c0_i32_1, %c0_i32_2 : i32, i32, i32, i32
  }
  func.func @transform_9(%arg0: i32) -> (i32, i32, i32) {
    %c0_i32 = arith.constant 0 : i32
    %c0_i32_0 = arith.constant 0 : i32
    %c0_i32_1 = arith.constant 0 : i32
    %c0_i32_2 = arith.constant 0 : i32
    return %c0_i32, %c0_i32_0, %c0_i32_1 : i32, i32, i32
  }
  func.func @transform_10(%arg0: i32) -> (i32, i32) {
    %c0_i32 = arith.constant 0 : i32
    %c0_i32_0 = arith.constant 0 : i32
    %c0_i32_1 = arith.constant 0 : i32
    return %c0_i32, %c0_i32_0 : i32, i32
  }
  func.func @transform_11(%arg0: i32) -> (i32, i32) {
    %c0_i32 = arith.constant 0 : i32
    %c0_i32_0 = arith.constant 0 : i32
    %c0_i32_1 = arith.constant 0 : i32
    return %c0_i32, %c0_i32_0 : i32, i32
  }
  func.func @transform_12(%arg0: i32) -> (i32, i32) {
    %c0_i32 = arith.constant 0 : i32
    %c0_i32_0 = arith.constant 0 : i32
    %c0_i32_1 = arith.constant 0 : i32
    return %c0_i32, %c0_i32_0 : i32, i32
  }
  func.func @transform_13(%arg0: i32) -> (i32, i32) {
    %c0_i32 = arith.constant 0 : i32
    %c0_i32_0 = arith.constant 0 : i32
    %c0_i32_1 = arith.constant 0 : i32
    return %c0_i32, %c0_i32_0 : i32, i32
  }
  func.func @transform_14(%arg0: i32) -> (i32, i32, i32) {
    %c0_i32 = arith.constant 0 : i32
    %c0_i32_0 = arith.constant 0 : i32
    %c0_i32_1 = arith.constant 0 : i32
    return %arg0, %c0_i32, %c0_i32_0 : i32, i32, i32
  }
}

</mosaic_0001>

<llo_original>
// kernel: block_forward.1
$region0: #{block_forward.1}
  #allocation0 [shape = 'u32[]', space=smem, size = 0x4, offset = 0x4, fixed_abs, tag = 'smem constant byte address 0x4 - core index']
  #allocation1 [shape = 'u32[72,128]{1,0:T(1,128)}', space=vmem, size = 0x9000, scoped, tag = 'internal scratch']
  %s0 = inlined_call_operand.vmem [shape: f32[2,8,32], index: 0, kind: input, shape index: {}]
  %s1 = inlined_call_operand.vmem [shape: f32[1,32], index: 1, kind: input, shape index: {}]
  %s2 = inlined_call_operand.vmem [shape: f32[1,32], index: 2, kind: input, shape index: {}]
  %s3 = inlined_call_operand.vmem [shape: f32[1,32], index: 3, kind: input, shape index: {}]
  %s4 = inlined_call_operand.vmem [shape: f32[1,32], index: 4, kind: input, shape index: {}]
  %s5 = inlined_call_operand.vmem [shape: f32[7,4,32,8], index: 5, kind: input, shape index: {}]
  %s6 = inlined_call_operand.vmem [shape: f32[7,4,32,8], index: 6, kind: input, shape index: {}]
  %s7 = inlined_call_operand.vmem [shape: f32[7,4,32,8], index: 7, kind: input, shape index: {}]
  %s8 = inlined_call_operand.vmem [shape: f32[7,4,8,32], index: 8, kind: input, shape index: {}]
  %s9 = inlined_call_operand.vmem [shape: f32[7,1,32], index: 9, kind: input, shape index: {}]
  %s10 = inlined_call_operand.vmem [shape: f32[32,128], index: 10, kind: input, shape index: {}]
  %s11 = inlined_call_operand.vmem [shape: f32[1,128], index: 11, kind: input, shape index: {}]
  %s12 = inlined_call_operand.vmem [shape: f32[128,32], index: 12, kind: input, shape index: {}]
  %s13 = inlined_call_operand.vmem [shape: f32[1,32], index: 13, kind: input, shape index: {}]
  %s14 = inlined_call_operand.hbm [shape: f32[2,8,32], index: 14, kind: output, shape index: {}]
  %s15 = sld [smem:[#allocation0]]
  $region89: #{block_forward.1} parent=0
    _
  %s17 = ssub.s32 1, %s15
  %s18 = scalar_select 0, %s17, %s15
  $region1: #{block_forward.1} parent=0
    #allocation2 [shape = 'u8[8192]{0}', space=vmem, size = 0x2000, scoped, tag = 'output window, operand 0']
    #allocation3 [shape = 's32[2]{0}', space=sflag, size = 0x8, scoped, tag = 'scoped memory for block_forward.1']
    %19 = vsyncpa [#allocation3], 0
    %s20 = scalar_lea.sflag [#allocation3], 1
    %21 = vsyncpa %s20, 0
    loop: start=0, step=1, limit=4
    $region2: #{block_forward.1} parent=1 // loop_pre_header
      _
    $region3: #{block_forward.1} parent=1 // loop_header
      %s23 = sphi 0, %s27
      %p24 = scmp.ge.s32.totalorder %s23, 4
      %s33 = sphi 0, %s35
      %s36 = sphi 0, %s33
      %s37 = sphi 0, %s36
      %s53 = sphi 0, %s37
      %s57 = sphi 0, %s57
      %s59 = sphi 0, %s57
      %s60 = sphi 0, %s59
      %s74 = sphi 0, %s60
      %s78 = sphi 0, %s78
      %s80 = sphi 0, %s78
      %s81 = sphi 0, %s80
      %s95 = sphi 0, %s81
      %s99 = sphi 0, %s99
      %s101 = sphi 0, %s99
      %s102 = sphi 0, %s101
      %s116 = sphi 0, %s102
      %s120 = sphi 0, %s120
      %s122 = sphi 0, %s120
      %s123 = sphi 0, %s122
      %s137 = sphi 0, %s123
      %s141 = sphi 0, %s141
      %s143 = sphi 0, %s141
      %s144 = sphi 0, %s143
      %s158 = sphi 0, %s144
      %s162 = sphi 0, %s162
      %s164 = sphi 0, %s162
      %s165 = sphi 0, %s164
      %s179 = sphi 0, %s165
      %s183 = sphi 0, %s183
      %s185 = sphi 0, %s183
      %s186 = sphi 0, %s185
      %s200 = sphi 0, %s186
      %s204 = sphi 0, %s204
      %s206 = sphi 0, %s204
      %s207 = sphi 0, %s206
      %s221 = sphi 0, %s207
      %s225 = sphi 0, %s225
      %s227 = sphi 0, %s225
      %s228 = sphi 0, %s227
      %s242 = sphi 0, %s228
      %s246 = sphi 0, %s246
      %s248 = sphi 0, %s246
      %s249 = sphi 0, %s248
      %s263 = sphi 0, %s249
      %s267 = sphi 0, %s267
      %s269 = sphi 0, %s267
      %s270 = sphi 0, %s269
      %s284 = sphi 0, %s270
      %s288 = sphi 0, %s288
      %s290 = sphi 0, %s288
      %s291 = sphi 0, %s290
      %s305 = sphi 0, %s291
      %s309 = sphi 0, %s309
      %s311 = sphi 0, %s309
      %s312 = sphi 0, %s311
      %s326 = sphi 0, %s312
      %s332 = sphi 0, %s334
      %s335 = sphi 0, %s332
      %s336 = sphi 0, %s335
      %s352 = sphi 0, %s336
    $region4: #{block_forward.1} parent=1 // loop_header_branch
      %26 = sbr.rel (%p24) target = $region8
    $region5: #{block_forward.1} parent=1 // loop_body
      %s28 = ssub.s32 %s23, 1
      %s29 = ssub.s32 %s23, 2
      %s30 = sadd.s32 %s23, 1
      %s31 = ssub.s32 %s23, %s30
      %p32 = scmp.eq.s32.totalorder %s31, 0
      %s34 = sadd.s32 %s33, 1
      %s35 = scalar_select %p32, %s33, %s34
      %p38 = pneg %p32
      %p39 = scmp.eq.s32.totalorder %s23, 1
      %p40 = por %p38, %p39
      %p41 = scmp.ne.s32.totalorder %s33, %s36
      %p42 = scmp.eq.s32.totalorder %s23, 0
      %p43 = por %p41, %p42
      %p44 = scmp.ne.s32.totalorder %s33, %s36
      %p45 = scmp.eq.s32.totalorder %s28, 1
      %p46 = por %p44, %p45
      %p47 = scmp.ne.s32.totalorder %s36, %s37
      %p48 = scmp.eq.s32.totalorder %s28, 0
      %p49 = por %p47, %p48
      %p50 = scmp.ne.s32.totalorder %s36, %s37
      %p51 = scmp.eq.s32.totalorder %s29, 1
      %p52 = por %p50, %p51
      %p54 = scmp.ne.s32.totalorder %s37, %s53
      %p55 = scmp.eq.s32.totalorder %s29, 0
      %p56 = por %p54, %p55
      %s58 = sadd.s32 %s57, 1
      %p61 = scmp.eq.s32.totalorder %s23, 1
      %p62 = scmp.ne.s32.totalorder %s57, %s59
      %p63 = scmp.eq.s32.totalorder %s23, 0
      %p64 = por %p62, %p63
      %p65 = scmp.ne.s32.totalorder %s57, %s59
      %p66 = scmp.eq.s32.totalorder %s28, 1
      %p67 = por %p65, %p66
      %p68 = scmp.ne.s32.totalorder %s59, %s60
      %p69 = scmp.eq.s32.totalorder %s28, 0
      %p70 = por %p68, %p69
      %p71 = scmp.ne.s32.totalorder %s59, %s60
      %p72 = scmp.eq.s32.totalorder %s29, 1
      %p73 = por %p71, %p72
      %p75 = scmp.ne.s32.totalorder %s60, %s74
      %p76 = scmp.eq.s32.totalorder %s29, 0
      %p77 = por %p75, %p76
      %s79 = sadd.s32 %s78, 1
      %p82 = scmp.eq.s32.totalorder %s23, 1
      %p83 = scmp.ne.s32.totalorder %s78, %s80
      %p84 = scmp.eq.s32.totalorder %s23, 0
      %p85 = por %p83, %p84
      %p86 = scmp.ne.s32.totalorder %s78, %s80
      %p87 = scmp.eq.s32.totalorder %s28, 1
      %p88 = por %p86, %p87
      %p89 = scmp.ne.s32.totalorder %s80, %s81
      %p90 = scmp.eq.s32.totalorder %s28, 0
      %p91 = por %p89, %p90
      %p92 = scmp.ne.s32.totalorder %s80, %s81
      %p93 = scmp.eq.s32.totalorder %s29, 1
      %p94 = por %p92, %p93
      %p96 = scmp.ne.s32.totalorder %s81, %s95
      %p97 = scmp.eq.s32.totalorder %s29, 0
      %p98 = por %p96, %p97
      %s100 = sadd.s32 %s99, 1
      %p103 = scmp.eq.s32.totalorder %s23, 1
      %p104 = scmp.ne.s32.totalorder %s99, %s101
      %p105 = scmp.eq.s32.totalorder %s23, 0
      %p106 = por %p104, %p105
      %p107 = scmp.ne.s32.totalorder %s99, %s101
      %p108 = scmp.eq.s32.totalorder %s28, 1
      %p109 = por %p107, %p108
      %p110 = scmp.ne.s32.totalorder %s101, %s102
      %p111 = scmp.eq.s32.totalorder %s28, 0
      %p112 = por %p110, %p111
      %p113 = scmp.ne.s32.totalorder %s101, %s102
      %p114 = scmp.eq.s32.totalorder %s29, 1
      %p115 = por %p113, %p114
      %p117 = scmp.ne.s32.totalorder %s102, %s116
      %p118 = scmp.eq.s32.totalorder %s29, 0
      %p119 = por %p117, %p118
      %s121 = sadd.s32 %s120, 1
      %p124 = scmp.eq.s32.totalorder %s23, 1
      %p125 = scmp.ne.s32.totalorder %s120, %s122
      %p126 = scmp.eq.s32.totalorder %s23, 0
      %p127 = por %p125, %p126
      %p128 = scmp.ne.s32.totalorder %s120, %s122
      %p129 = scmp.eq.s32.totalorder %s28, 1
      %p130 = por %p128, %p129
      %p131 = scmp.ne.s32.totalorder %s122, %s123
      %p132 = scmp.eq.s32.totalorder %s28, 0
      %p133 = por %p131, %p132
      %p134 = scmp.ne.s32.totalorder %s122, %s123
      %p135 = scmp.eq.s32.totalorder %s29, 1
      %p136 = por %p134, %p135
      %p138 = scmp.ne.s32.totalorder %s123, %s137
      %p139 = scmp.eq.s32.totalorder %s29, 0
      %p140 = por %p138, %p139
      %s142 = sadd.s32 %s141, 1
      %p145 = scmp.eq.s32.totalorder %s23, 1
      %p146 = scmp.ne.s32.totalorder %s141, %s143
      %p147 = scmp.eq.s32.totalorder %s23, 0
      %p148 = por %p146, %p147
      %p149 = scmp.ne.s32.totalorder %s141, %s143
      %p150 = scmp.eq.s32.totalorder %s28, 1
      %p151 = por %p149, %p150
      %p152 = scmp.ne.s32.totalorder %s143, %s144
      %p153 = scmp.eq.s32.totalorder %s28, 0
      %p154 = por %p152, %p153
      %p155 = scmp.ne.s32.totalorder %s143, %s144
      %p156 = scmp.eq.s32.totalorder %s29, 1
      %p157 = por %p155, %p156
      %p159 = scmp.ne.s32.totalorder %s144, %s158
      %p160 = scmp.eq.s32.totalorder %s29, 0
      %p161 = por %p159, %p160
      %s163 = sadd.s32 %s162, 1
      %p166 = scmp.eq.s32.totalorder %s23, 1
      %p167 = scmp.ne.s32.totalorder %s162, %s164
      %p168 = scmp.eq.s32.totalorder %s23, 0
      %p169 = por %p167, %p168
      %p170 = scmp.ne.s32.totalorder %s162, %s164
      %p171 = scmp.eq.s32.totalorder %s28, 1
      %p172 = por %p170, %p171
      %p173 = scmp.ne.s32.totalorder %s164, %s165
      %p174 = scmp.eq.s32.totalorder %s28, 0
      %p175 = por %p173, %p174
      %p176 = scmp.ne.s32.totalorder %s164, %s165
      %p177 = scmp.eq.s32.totalorder %s29, 1
      %p178 = por %p176, %p177
      %p180 = scmp.ne.s32.totalorder %s165, %s179
      %p181 = scmp.eq.s32.totalorder %s29, 0
      %p182 = por %p180, %p181
      %s184 = sadd.s32 %s183, 1
      %p187 = scmp.eq.s32.totalorder %s23, 1
      %p188 = scmp.ne.s32.totalorder %s183, %s185
      %p189 = scmp.eq.s32.totalorder %s23, 0
      %p190 = por %p188, %p189
      %p191 = scmp.ne.s32.totalorder %s183, %s185
      %p192 = scmp.eq.s32.totalorder %s28, 1
      %p193 = por %p191, %p192
      %p194 = scmp.ne.s32.totalorder %s185, %s186
      %p195 = scmp.eq.s32.totalorder %s28, 0
      %p196 = por %p194, %p195
      %p197 = scmp.ne.s32.totalorder %s185, %s186
      %p198 = scmp.eq.s32.totalorder %s29, 1
      %p199 = por %p197, %p198
      %p201 = scmp.ne.s32.totalorder %s186, %s200
      %p202 = scmp.eq.s32.totalorder %s29, 0
      %p203 = por %p201, %p202
      %s205 = sadd.s32 %s204, 1
      %p208 = scmp.eq.s32.totalorder %s23, 1
      %p209 = scmp.ne.s32.totalorder %s204, %s206
      %p210 = scmp.eq.s32.totalorder %s23, 0
      %p211 = por %p209, %p210
      %p212 = scmp.ne.s32.totalorder %s204, %s206
      %p213 = scmp.eq.s32.totalorder %s28, 1
      %p214 = por %p212, %p213
      %p215 = scmp.ne.s32.totalorder %s206, %s207
      %p216 = scmp.eq.s32.totalorder %s28, 0
      %p217 = por %p215, %p216
      %p218 = scmp.ne.s32.totalorder %s206, %s207
      %p219 = scmp.eq.s32.totalorder %s29, 1
      %p220 = por %p218, %p219
      %p222 = scmp.ne.s32.totalorder %s207, %s221
      %p223 = scmp.eq.s32.totalorder %s29, 0
      %p224 = por %p222, %p223
      %s226 = sadd.s32 %s225, 1
      %p229 = scmp.eq.s32.totalorder %s23, 1
      %p230 = scmp.ne.s32.totalorder %s225, %s227
      %p231 = scmp.eq.s32.totalorder %s23, 0
      %p232 = por %p230, %p231
      %p233 = scmp.ne.s32.totalorder %s225, %s227
      %p234 = scmp.eq.s32.totalorder %s28, 1
      %p235 = por %p233, %p234
      %p236 = scmp.ne.s32.totalorder %s227, %s228
      %p237 = scmp.eq.s32.totalorder %s28, 0
      %p238 = por %p236, %p237
      %p239 = scmp.ne.s32.totalorder %s227, %s228
      %p240 = scmp.eq.s32.totalorder %s29, 1
      %p241 = por %p239, %p240
      %p243 = scmp.ne.s32.totalorder %s228, %s242
      %p244 = scmp.eq.s32.totalorder %s29, 0
      %p245 = por %p243, %p244
      %s247 = sadd.s32 %s246, 1
      %p250 = scmp.eq.s32.totalorder %s23, 1
      %p251 = scmp.ne.s32.totalorder %s246, %s248
      %p252 = scmp.eq.s32.totalorder %s23, 0
      %p253 = por %p251, %p252
      %p254 = scmp.ne.s32.totalorder %s246, %s248
      %p255 = scmp.eq.s32.totalorder %s28, 1
      %p256 = por %p254, %p255
      %p257 = scmp.ne.s32.totalorder %s248, %s249
      %p258 = scmp.eq.s32.totalorder %s28, 0
      %p259 = por %p257, %p258
      %p260 = scmp.ne.s32.totalorder %s248, %s249
      %p261 = scmp.eq.s32.totalorder %s29, 1
      %p262 = por %p260, %p261
      %p264 = scmp.ne.s32.totalorder %s249, %s263
      %p265 = scmp.eq.s32.totalorder %s29, 0
      %p266 = por %p264, %p265
      %s268 = sadd.s32 %s267, 1
      %p271 = scmp.eq.s32.totalorder %s23, 1
      %p272 = scmp.ne.s32.totalorder %s267, %s269
      %p273 = scmp.eq.s32.totalorder %s23, 0
      %p274 = por %p272, %p273
      %p275 = scmp.ne.s32.totalorder %s267, %s269
      %p276 = scmp.eq.s32.totalorder %s28, 1
      %p277 = por %p275, %p276
      %p278 = scmp.ne.s32.totalorder %s269, %s270
      %p279 = scmp.eq.s32.totalorder %s28, 0
      %p280 = por %p278, %p279
      %p281 = scmp.ne.s32.totalorder %s269, %s270
      %p282 = scmp.eq.s32.totalorder %s29, 1
      %p283 = por %p281, %p282
      %p285 = scmp.ne.s32.totalorder %s270, %s284
      %p286 = scmp.eq.s32.totalorder %s29, 0
      %p287 = por %p285, %p286
      %s289 = sadd.s32 %s288, 1
      %p292 = scmp.eq.s32.totalorder %s23, 1
      %p293 = scmp.ne.s32.totalorder %s288, %s290
      %p294 = scmp.eq.s32.totalorder %s23, 0
      %p295 = por %p293, %p294
      %p296 = scmp.ne.s32.totalorder %s288, %s290
      %p297 = scmp.eq.s32.totalorder %s28, 1
      %p298 = por %p296, %p297
      %p299 = scmp.ne.s32.totalorder %s290, %s291
      %p300 = scmp.eq.s32.totalorder %s28, 0
      %p301 = por %p299, %p300
      %p302 = scmp.ne.s32.totalorder %s290, %s291
      %p303 = scmp.eq.s32.totalorder %s29, 1
      %p304 = por %p302, %p303
      %p306 = scmp.ne.s32.totalorder %s291, %s305
      %p307 = scmp.eq.s32.totalorder %s29, 0
      %p308 = por %p306, %p307
      %s310 = sadd.s32 %s309, 1
      %p313 = scmp.eq.s32.totalorder %s23, 1
      %p314 = scmp.ne.s32.totalorder %s309, %s311
      %p315 = scmp.eq.s32.totalorder %s23, 0
      %p316 = por %p314, %p315
      %p317 = scmp.ne.s32.totalorder %s309, %s311
      %p318 = scmp.eq.s32.totalorder %s28, 1
      %p319 = por %p317, %p318
      %p320 = scmp.ne.s32.totalorder %s311, %s312
      %p321 = scmp.eq.s32.totalorder %s28, 0
      %p322 = por %p320, %p321
      %p323 = scmp.ne.s32.totalorder %s311, %s312
      %p324 = scmp.eq.s32.totalorder %s29, 1
      %p325 = por %p323, %p324
      %p327 = scmp.ne.s32.totalorder %s312, %s326
      %p328 = scmp.eq.s32.totalorder %s29, 0
      %p329 = por %p327, %p328
      %s330 = ssub.s32 %s23, %s30
      %p331 = scmp.eq.s32.totalorder %s330, 0
      %s333 = sadd.s32 %s332, 1
      %s334 = scalar_select %p331, %s332, %s333
      %p337 = pneg %p331
      %p338 = scmp.eq.s32.totalorder %s23, 1
      %p339 = por %p337, %p338
      %p340 = scmp.ne.s32.totalorder %s332, %s335
      %p341 = scmp.eq.s32.totalorder %s23, 0
      %p342 = por %p340, %p341
      %p343 = scmp.ne.s32.totalorder %s332, %s335
      %p344 = scmp.eq.s32.totalorder %s28, 1
      %p345 = por %p343, %p344
      %p346 = scmp.ne.s32.totalorder %s335, %s336
      %p347 = scmp.eq.s32.totalorder %s28, 0
      %p348 = por %p346, %p347
      %p349 = scmp.ne.s32.totalorder %s335, %s336
      %p350 = scmp.eq.s32.totalorder %s29, 1
      %p351 = por %p349, %p350
      %p353 = scmp.ne.s32.totalorder %s336, %s352
      %p354 = scmp.eq.s32.totalorder %s29, 0
      %p355 = por %p353, %p354
      %p356 = scmp.le.s32.totalorder 1, %s23
      %p357 = scmp.lt.s32.totalorder %s23, 3
      %p358 = pnand %p356, %p357
      %p359 = pneg %p358
      // Predicated region
      $region9: #{block_forward.1} parent=5 // pred_check
        _
      $region10: #{block_forward.1} parent=5 // pred_check_branch
        %361 = sbr.rel (%p358) target = $region12
      $region11: #{block_forward.1} parent=5 // pred_region
        %s362 = ssub.s32 %s23, 1
        // Predicated region
        $region13: #{block_forward.1} parent=11 // pred_check
          %p363 = pneg %p70
        $region14: #{block_forward.1} parent=11 // pred_check_branch
          %365 = sbr.rel (%p363) target = $region16
        $region15: #{block_forward.1} parent=11 // pred_region
          _
        $region16: #{block_forward.1} parent=11 // pred_fallthru
          _
        // Predicated region
        $region17: #{block_forward.1} parent=11 // pred_check
          %p366 = pneg %p91
        $region18: #{block_forward.1} parent=11 // pred_check_branch
          %368 = sbr.rel (%p366) target = $region20
        $region19: #{block_forward.1} parent=11 // pred_region
          _
        $region20: #{block_forward.1} parent=11 // pred_fallthru
          _
        // Predicated region
        $region21: #{block_forward.1} parent=11 // pred_check
          %p369 = pneg %p112
        $region22: #{block_forward.1} parent=11 // pred_check_branch
          %371 = sbr.rel (%p369) target = $region24
        $region23: #{block_forward.1} parent=11 // pred_region
          _
        $region24: #{block_forward.1} parent=11 // pred_fallthru
          _
        // Predicated region
        $region25: #{block_forward.1} parent=11 // pred_check
          %p372 = pneg %p133
        $region26: #{block_forward.1} parent=11 // pred_check_branch
          %374 = sbr.rel (%p372) target = $region28
        $region27: #{block_forward.1} parent=11 // pred_region
          _
        $region28: #{block_forward.1} parent=11 // pred_fallthru
          _
        // Predicated region
        $region29: #{block_forward.1} parent=11 // pred_check
          %p375 = pneg %p154
        $region30: #{block_forward.1} parent=11 // pred_check_branch
          %377 = sbr.rel (%p375) target = $region32
        $region31: #{block_forward.1} parent=11 // pred_region
          _
        $region32: #{block_forward.1} parent=11 // pred_fallthru
          _
        // Predicated region
        $region33: #{block_forward.1} parent=11 // pred_check
          %p378 = pneg %p175
        $region34: #{block_forward.1} parent=11 // pred_check_branch
          %380 = sbr.rel (%p378) target = $region36
        $region35: #{block_forward.1} parent=11 // pred_region
          _
        $region36: #{block_forward.1} parent=11 // pred_fallthru
          _
        // Predicated region
        $region37: #{block_forward.1} parent=11 // pred_check
          %p381 = pneg %p196
        $region38: #{block_forward.1} parent=11 // pred_check_branch
          %383 = sbr.rel (%p381) target = $region40
        $region39: #{block_forward.1} parent=11 // pred_region
          _
        $region40: #{block_forward.1} parent=11 // pred_fallthru
          _
        // Predicated region
        $region41: #{block_forward.1} parent=11 // pred_check
          %p384 = pneg %p217
        $region42: #{block_forward.1} parent=11 // pred_check_branch
          %386 = sbr.rel (%p384) target = $region44
        $region43: #{block_forward.1} parent=11 // pred_region
          _
        $region44: #{block_forward.1} parent=11 // pred_fallthru
          _
        // Predicated region
        $region45: #{block_forward.1} parent=11 // pred_check
          %p387 = pneg %p238
        $region46: #{block_forward.1} parent=11 // pred_check_branch
          %389 = sbr.rel (%p387) target = $region48
        $region47: #{block_forward.1} parent=11 // pred_region
          _
        $region48: #{block_forward.1} parent=11 // pred_fallthru
          _
        // Predicated region
        $region49: #{block_forward.1} parent=11 // pred_check
          %p390 = pneg %p259
        $region50: #{block_forward.1} parent=11 // pred_check_branch
          %392 = sbr.rel (%p390) target = $region52
        $region51: #{block_forward.1} parent=11 // pred_region
          _
        $region52: #{block_forward.1} parent=11 // pred_fallthru
          _
        // Predicated region
        $region53: #{block_forward.1} parent=11 // pred_check
          %p393 = pneg %p280
        $region54: #{block_forward.1} parent=11 // pred_check_branch
          %395 = sbr.rel (%p393) target = $region56
        $region55: #{block_forward.1} parent=11 // pred_region
          _
        $region56: #{block_forward.1} parent=11 // pred_fallthru
          _
        // Predicated region
        $region57: #{block_forward.1} parent=11 // pred_check
          %p396 = pneg %p301
        $region58: #{block_forward.1} parent=11 // pred_check_branch
          %398 = sbr.rel (%p396) target = $region60
        $region59: #{block_forward.1} parent=11 // pred_region
          _
        $region60: #{block_forward.1} parent=11 // pred_fallthru
          _
        // Predicated region
        $region61: #{block_forward.1} parent=11 // pred_check
          %p399 = pneg %p322
        $region62: #{block_forward.1} parent=11 // pred_check_branch
          %401 = sbr.rel (%p399) target = $region64
        $region63: #{block_forward.1} parent=11 // pred_region
          _
        $region64: #{block_forward.1} parent=11 // pred_fallthru
          _
      $region12: #{block_forward.1} parent=5 // pred_fallthru
        _
      %p402 = scmp.lt.s32.totalorder %s23, 2
      // Predicated region
      $region65: #{block_forward.1} parent=5 // pred_check
        %p403 = pneg %p402
      $region66: #{block_forward.1} parent=5 // pred_check_branch
        %405 = sbr.rel (%p403) target = $region68
      $region67: #{block_forward.1} parent=5 // pred_region
        // Predicated region
        $region69: #{block_forward.1} parent=67 // pred_check
          %p406 = pneg %p43
        $region70: #{block_forward.1} parent=67 // pred_check_branch
          %408 = sbr.rel (%p406) target = $region72
        $region71: #{block_forward.1} parent=67 // pred_region
          %p409 = scmp.lt.s32.totalorder %s23, 1
          %s410 = scalar_select %p409, %s23, 1
          %s411 = smul.addr %s410, 8
          %s412 = scalar_lea.vmem %s0, %s411
        $region72: #{block_forward.1} parent=67 // pred_fallthru
          _
      $region68: #{block_forward.1} parent=5 // pred_fallthru
        _
      %p413 = scmp.le.s32.totalorder 1, %s23
      %p414 = scmp.lt.s32.totalorder %s23, 3
      %p415 = pnand %p413, %p414
      %p416 = pneg %p415
      // Predicated region
      $region73: #{block_forward.1} parent=5 // pred_check
        _
      $region74: #{block_forward.1} parent=5 // pred_check_branch
        %418 = sbr.rel (%p415) target = $region76
      $region75: #{block_forward.1} parent=5 // pred_region
        %s419 = ssub.s32 %s23, 1
        %p420 = scmp.lt.s32.totalorder %s28, 1
        %s421 = scalar_select %p420, %s28, 1
        %s422 = smul.addr %s421, 8
        %s423 = scalar_lea.vmem %s0, %s422
        %p424 = pneg %p49
        %p425 = pneg %p46
        %p426 = pneg %p70
        %p427 = pneg %p67
        %p428 = pneg %p91
        %p429 = pneg %p88
        %p430 = pneg %p112
        %p431 = pneg %p109
        %p432 = pneg %p133
        %p433 = pneg %p130
        %p434 = pneg %p154
        %p435 = pneg %p151
        %p436 = pneg %p175
        %p437 = pneg %p172
        %p438 = pneg %p196
        %p439 = pneg %p193
        %p440 = pneg %p217
        %p441 = pneg %p214
        %p442 = pneg %p238
        %p443 = pneg %p235
        %p444 = pneg %p259
        %p445 = pneg %p256
        %p446 = pneg %p280
        %p447 = pneg %p277
        %p448 = pneg %p301
        %p449 = pneg %p298
        %p450 = pneg %p322
        %p451 = pneg %p319
        %p452 = pneg %p348
        %p453 = pneg %p345
        %s454 = sand.u32 %s335, 1
        %s455 = scalar_lea.sflag [#allocation3], %s454
        %s456 = sand.u32 %s335, 1
        %s457 = smul.addr %s456, 8
        %s458 = scalar_lea.vmem [#allocation2], %s457
        %p459 = scmp.lt.s32.totalorder %s28, 1
        %s460 = scalar_select %p459, %s28, 1
        %s461 = smul.addr %s460, 8
        %s462 = scalar_lea.vmem %s0, %s461
        %v463 = vld [vmem:[%s462] sm:$0xff]
        %v464 = vlaneseq
        %v465 = vshrl.u32 %v464, 7
        %v466 = vlaneseq
        %v467 = vand.u32 %v466, 127
        %vm468 = vcmp.ge.s32.totalorder %v465, %v467
        %v469 = vld [vmem:[%s1] sm:$0x1]
        %v470 = vld [vmem:[%s2] sm:$0x1]
        %vm471 = vcmask 261120
        %v472 = vsel %vm471, %v463, 0.0
        %473 = vadd.xlane.f32.xlu0 %v472
        %v474 = vpop.xlane.xlu0 %473
        %v475 = vrcp.pop 32.0
        %v476 = vmul.f32 32.0, %v475
        %v477 = vsub.f32 1.0, %v476
        %v478 = vmul.f32 %v475, %v477
        %v479 = vadd.f32 %v475, %v478
        %vm480 = vweird.f32 %v475
        %v481 = vsel %vm480, %v475, %v479
        %v482 = vmul.f32 %v474, %v481
        %v483 = vsub.f32 %v463, %v482
        %v484 = vmul.f32 %v483, %v483
        %v485 = vsel %vm471, %v484, 0.0
        %486 = vadd.xlane.f32.xlu0 %v485
        %v487 = vpop.xlane.xlu0 %486
        %v488 = vmul.f32 %v487, %v481
        %v489 = vadd.f32 %v488, 1e-05
        %v490 = vrsqrt.pop %v489
        %v491 = vmul.f32 %v490, %v489
        %v492 = vmul.f32 %v491, %v490
        %v493 = vmul.f32 0.5, %v492
        %v494 = vsub.f32 1.5, %v493
        %v495 = vmul.f32 %v490, %v494
        %vm496 = vweird.f32 %v489
        %vm497 = vweird.f32 %v490
        %vm498 = vmor %vm496, %vm497
        %v499 = vsel %vm498, %v490, %v495
        %v500 = vmul.f32 %v483, %v499
        %v502 = vperm.slane %v469, 0
        %v504 = vmul.f32 %v500, %v502
        %v506 = vperm.slane %v470, 0
        %v508 = vadd.f32 %v504, %v506
        %v509 = vld [vmem:[%s5] sm:$0xff]
        %v510 = vld [vmem:[%s5 + $0x8] sm:$0xff]
        %v511 = vld [vmem:[%s5 + $0x10] sm:$0xff]
        %v512 = vld [vmem:[%s5 + $0x18] sm:$0xff]
        %v514 = vsel %vm471, %v508, 0
        %516 = vmatpush.msra.mxu0 0.0
        %517 = vmatpush.msra.mxu0 0.0
        %518 = vmatpush.msra.mxu0 0.0
        %519 = vmatpush.msra.mxu0 0.0
        %520 = vmatpush.msra.mxu0 0.0
        %521 = vmatpush.msra.mxu0 0.0
        %522 = vmatpush.msra.mxu0 0.0
        %523 = vmatpush.msra.mxu0 0.0
        %524 = vmatpush.msra.mxu0 0.0
        %525 = vmatpush.msra.mxu0 0.0
        %526 = vmatpush.msra.mxu0 0.0
        %527 = vmatpush.msra.mxu0 0.0
        %528 = vmatpush.msra.mxu0 %v512
        %529 = vmatpush.msra.mxu0 %v511
        %530 = vmatpush.msra.mxu0 %v510
        %531 = vmatpush.msra.mxu0 %v509
        %532 = vmatmul.f32.gmra.mxu0 %v514
        %v533 = vpop.f32.mrf.mxu0
        %v534 = vadd.f32 0.0, %v533
        %535 = vdwg.mxu0
        %v536 = vld [vmem:[%s6] sm:$0xff]
        %v537 = vld [vmem:[%s6 + $0x8] sm:$0xff]
        %v538 = vld [vmem:[%s6 + $0x10] sm:$0xff]
        %v539 = vld [vmem:[%s6 + $0x18] sm:$0xff]
        %540 = vmatpush.msra.mxu0 0.0
        %541 = vmatpush.msra.mxu0 0.0
        %542 = vmatpush.msra.mxu0 0.0
        %543 = vmatpush.msra.mxu0 0.0
        %544 = vmatpush.msra.mxu0 0.0
        %545 = vmatpush.msra.mxu0 0.0
        %546 = vmatpush.msra.mxu0 0.0
        %547 = vmatpush.msra.mxu0 0.0
        %548 = vmatpush.msra.mxu0 0.0
        %549 = vmatpush.msra.mxu0 0.0
        %550 = vmatpush.msra.mxu0 0.0
        %551 = vmatpush.msra.mxu0 0.0
        %552 = vmatpush.msra.mxu0 %v539
        %553 = vmatpush.msra.mxu0 %v538
        %554 = vmatpush.msra.mxu0 %v537
        %555 = vmatpush.msra.mxu0 %v536
        %556 = vmatmul.f32.gmra.mxu0 %v514
        %v557 = vpop.f32.mrf.mxu0
        %v558 = vadd.f32 0.0, %v557
        %559 = vdwg.mxu0
        %v560 = vld [vmem:[%s7] sm:$0xff]
        %v561 = vld [vmem:[%s7 + $0x8] sm:$0xff]
        %v562 = vld [vmem:[%s7 + $0x10] sm:$0xff]
        %v563 = vld [vmem:[%s7 + $0x18] sm:$0xff]
        %564 = vmatpush.msra.mxu0 0.0
        %565 = vmatpush.msra.mxu0 0.0
        %566 = vmatpush.msra.mxu0 0.0
        %567 = vmatpush.msra.mxu0 0.0
        %568 = vmatpush.msra.mxu0 0.0
        %569 = vmatpush.msra.mxu0 0.0
        %570 = vmatpush.msra.mxu0 0.0
        %571 = vmatpush.msra.mxu0 0.0
        %572 = vmatpush.msra.mxu0 0.0
        %573 = vmatpush.msra.mxu0 0.0
        %574 = vmatpush.msra.mxu0 0.0
        %575 = vmatpush.msra.mxu0 0.0
        %576 = vmatpush.msra.mxu0 %v563
        %577 = vmatpush.msra.mxu0 %v562
        %578 = vmatpush.msra.mxu0 %v561
        %579 = vmatpush.msra.mxu0 %v560
        %580 = vmatmul.f32.gmra.mxu0 %v514
        %v581 = vpop.f32.mrf.mxu0
        %v582 = vadd.f32 0.0, %v581
        %583 = vdwg.mxu0
        %vm584 = vcmask 64512
        %v586 = vsel %vm584, %v534, 0
        %v589 = vsel %vm584, %v558, 0
        %591 = vmatpush.xpose.msra.mxu0 0.0
        %592 = vmatpush.xpose.msra.mxu0 0.0
        %593 = vmatpush.xpose.msra.mxu0 0.0
        %594 = vmatpush.xpose.msra.mxu0 0.0
        %595 = vmatpush.xpose.msra.mxu0 0.0
        %596 = vmatpush.xpose.msra.mxu0 0.0
        %597 = vmatpush.xpose.msra.mxu0 0.0
        %598 = vmatpush.xpose.msra.mxu0 0.0
        %599 = vmatpush.xpose.msra.mxu0 0.0
        %600 = vmatpush.xpose.msra.mxu0 0.0
        %601 = vmatpush.xpose.msra.mxu0 0.0
        %602 = vmatpush.xpose.msra.mxu0 0.0
        %603 = vmatpush.xpose.msra.mxu0 0.0
        %604 = vmatpush.xpose.msra.mxu0 0.0
        %605 = vmatpush.xpose.msra.mxu0 0.0
        %606 = vmatpush.xpose.msra.mxu0 %v589
        %607 = vmatmul.f32.gmra.mxu0 %v586
        %v608 = vpop.f32.mrf.mxu0
        %v609 = vadd.f32 0.0, %v608
        %610 = vdwg.mxu0
        %v611 = vmul.f32 %v609, 0.17677669
        %v612 = vsel %vm468, %v611, -1e+30
        %v613 = vsel %vm584, %v612, -inf
        %614 = vmax.xlane.f32.xlu0 %v613
        %v615 = vpop.xlane.xlu0 %614
        %v616 = vsub.f32 %v612, %v615
        %v617 = vmul.f32 %v616, 1.442695
        %v618 = vpow.pop %v617
        %v619 = vsel %vm584, %v618, 0.0
        %620 = vadd.xlane.f32.xlu0 %v619
        %v621 = vpop.xlane.xlu0 %620
        %v622 = vrcp.pop %v621
        %v623 = vmul.f32 %v618, %v622
        %v625 = vsel %vm584, %v623, 0
        %627 = vmatpush.msra.mxu0 0.0
        %628 = vmatpush.msra.mxu0 0.0
        %629 = vmatpush.msra.mxu0 0.0
        %630 = vmatpush.msra.mxu0 0.0
        %631 = vmatpush.msra.mxu0 0.0
        %632 = vmatpush.msra.mxu0 0.0
        %633 = vmatpush.msra.mxu0 0.0
        %634 = vmatpush.msra.mxu0 0.0
        %635 = vmatpush.msra.mxu0 0.0
        %636 = vmatpush.msra.mxu0 0.0
        %637 = vmatpush.msra.mxu0 0.0
        %638 = vmatpush.msra.mxu0 0.0
        %639 = vmatpush.msra.mxu0 0.0
        %640 = vmatpush.msra.mxu0 0.0
        %641 = vmatpush.msra.mxu0 0.0
        %642 = vmatpush.msra.mxu0 %v582
        %643 = vmatmul.f32.gmra.mxu0 %v625
        %v644 = vpop.f32.mrf.mxu0
        %v645 = vadd.f32 0.0, %v644
        %646 = vdwg.mxu0
        %v647 = vld [vmem:[%s8] sm:$0xff]
        %s648 = scalar_lea.vmem %s5, 32
        %v649 = vld [vmem:[%s648] sm:$0xff]
        %v650 = vld [vmem:[%s648 + $0x8] sm:$0xff]
        %v651 = vld [vmem:[%s648 + $0x10] sm:$0xff]
        %v652 = vld [vmem:[%s648 + $0x18] sm:$0xff]
        %653 = vmatpush.msra.mxu0 0.0
        %654 = vmatpush.msra.mxu0 0.0
        %655 = vmatpush.msra.mxu0 0.0
        %656 = vmatpush.msra.mxu0 0.0
        %657 = vmatpush.msra.mxu0 0.0
        %658 = vmatpush.msra.mxu0 0.0
        %659 = vmatpush.msra.mxu0 0.0
        %660 = vmatpush.msra.mxu0 0.0
        %661 = vmatpush.msra.mxu0 0.0
        %662 = vmatpush.msra.mxu0 0.0
        %663 = vmatpush.msra.mxu0 0.0
        %664 = vmatpush.msra.mxu0 0.0
        %665 = vmatpush.msra.mxu0 %v652
        %666 = vmatpush.msra.mxu0 %v651
        %667 = vmatpush.msra.mxu0 %v650
        %668 = vmatpush.msra.mxu0 %v649
        %669 = vmatmul.f32.gmra.mxu0 %v514
        %v670 = vpop.f32.mrf.mxu0
        %v671 = vadd.f32 0.0, %v670
        %672 = vdwg.mxu0
        %s673 = scalar_lea.vmem %s6, 32
        %v674 = vld [vmem:[%s673] sm:$0xff]
        %v675 = vld [vmem:[%s673 + $0x8] sm:$0xff]
        %v676 = vld [vmem:[%s673 + $0x10] sm:$0xff]
        %v677 = vld [vmem:[%s673 + $0x18] sm:$0xff]
        %678 = vmatpush.msra.mxu0 0.0
        %679 = vmatpush.msra.mxu0 0.0
        %680 = vmatpush.msra.mxu0 0.0
        %681 = vmatpush.msra.mxu0 0.0
        %682 = vmatpush.msra.mxu0 0.0
        %683 = vmatpush.msra.mxu0 0.0
        %684 = vmatpush.msra.mxu0 0.0
        %685 = vmatpush.msra.mxu0 0.0
        %686 = vmatpush.msra.mxu0 0.0
        %687 = vmatpush.msra.mxu0 0.0
        %688 = vmatpush.msra.mxu0 0.0
        %689 = vmatpush.msra.mxu0 0.0
        %690 = vmatpush.msra.mxu0 %v677
        %691 = vmatpush.msra.mxu0 %v676
        %692 = vmatpush.msra.mxu0 %v675
        %693 = vmatpush.msra.mxu0 %v674
        %694 = vmatmul.f32.gmra.mxu0 %v514
        %v695 = vpop.f32.mrf.mxu0
        %v696 = vadd.f32 0.0, %v695
        %697 = vdwg.mxu0
        %s698 = scalar_lea.vmem %s7, 32
        %v699 = vld [vmem:[%s698] sm:$0xff]
        %v700 = vld [vmem:[%s698 + $0x8] sm:$0xff]
        %v701 = vld [vmem:[%s698 + $0x10] sm:$0xff]
        %v702 = vld [vmem:[%s698 + $0x18] sm:$0xff]
        %703 = vmatpush.msra.mxu0 0.0
        %704 = vmatpush.msra.mxu0 0.0
        %705 = vmatpush.msra.mxu0 0.0
        %706 = vmatpush.msra.mxu0 0.0
        %707 = vmatpush.msra.mxu0 0.0
        %708 = vmatpush.msra.mxu0 0.0
        %709 = vmatpush.msra.mxu0 0.0
        %710 = vmatpush.msra.mxu0 0.0
        %711 = vmatpush.msra.mxu0 0.0
        %712 = vmatpush.msra.mxu0 0.0
        %713 = vmatpush.msra.mxu0 0.0
        %714 = vmatpush.msra.mxu0 0.0
        %715 = vmatpush.msra.mxu0 %v702
        %716 = vmatpush.msra.mxu0 %v701
        %717 = vmatpush.msra.mxu0 %v700
        %718 = vmatpush.msra.mxu0 %v699
        %719 = vmatmul.f32.gmra.mxu0 %v514
        %v720 = vpop.f32.mrf.mxu0
        %v721 = vadd.f32 0.0, %v720
        %722 = vdwg.mxu0
        %v724 = vsel %vm584, %v671, 0
        %v727 = vsel %vm584, %v696, 0
        %729 = vmatpush.xpose.msra.mxu0 0.0
        %730 = vmatpush.xpose.msra.mxu0 0.0
        %731 = vmatpush.xpose.msra.mxu0 0.0
        %732 = vmatpush.xpose.msra.mxu0 0.0
        %733 = vmatpush.xpose.msra.mxu0 0.0
        %734 = vmatpush.xpose.msra.mxu0 0.0
        %735 = vmatpush.xpose.msra.mxu0 0.0
        %736 = vmatpush.xpose.msra.mxu0 0.0
        %737 = vmatpush.xpose.msra.mxu0 0.0
        %738 = vmatpush.xpose.msra.mxu0 0.0
        %739 = vmatpush.xpose.msra.mxu0 0.0
        %740 = vmatpush.xpose.msra.mxu0 0.0
        %741 = vmatpush.xpose.msra.mxu0 0.0
        %742 = vmatpush.xpose.msra.mxu0 0.0
        %743 = vmatpush.xpose.msra.mxu0 0.0
        %744 = vmatpush.xpose.msra.mxu0 %v727
        %745 = vmatmul.f32.gmra.mxu0 %v724
        %v746 = vpop.f32.mrf.mxu0
        %v747 = vadd.f32 0.0, %v746
        %748 = vdwg.mxu0
        %v749 = vmul.f32 %v747, 0.17677669
        %v750 = vsel %vm468, %v749, -1e+30
        %v751 = vsel %vm584, %v750, -inf
        %752 = vmax.xlane.f32.xlu0 %v751
        %v753 = vpop.xlane.xlu0 %752
        %v754 = vsub.f32 %v750, %v753
        %v755 = vmul.f32 %v754, 1.442695
        %v756 = vpow.pop %v755
        %v757 = vsel %vm584, %v756, 0.0
        %758 = vadd.xlane.f32.xlu0 %v757
        %v759 = vpop.xlane.xlu0 %758
        %v760 = vrcp.pop %v759
        %v761 = vmul.f32 %v756, %v760
        %v763 = vsel %vm584, %v761, 0
        %765 = vmatpush.msra.mxu0 0.0
        %766 = vmatpush.msra.mxu0 0.0
        %767 = vmatpush.msra.mxu0 0.0
        %768 = vmatpush.msra.mxu0 0.0
        %769 = vmatpush.msra.mxu0 0.0
        %770 = vmatpush.msra.mxu0 0.0
        %771 = vmatpush.msra.mxu0 0.0
        %772 = vmatpush.msra.mxu0 0.0
        %773 = vmatpush.msra.mxu0 0.0
        %774 = vmatpush.msra.mxu0 0.0
        %775 = vmatpush.msra.mxu0 0.0
        %776 = vmatpush.msra.mxu0 0.0
        %777 = vmatpush.msra.mxu0 0.0
        %778 = vmatpush.msra.mxu0 0.0
        %779 = vmatpush.msra.mxu0 0.0
        %780 = vmatpush.msra.mxu0 %v721
        %781 = vmatmul.f32.gmra.mxu0 %v763
        %v782 = vpop.f32.mrf.mxu0
        %v783 = vadd.f32 0.0, %v782
        %784 = vdwg.mxu0
        %s785 = scalar_lea.vmem %s8, 8
        %v786 = vld [vmem:[%s785] sm:$0xff]
        %v788 = vsel %vm584, %v783, 0
        %790 = vmatpush.msra.mxu0 0.0
        %791 = vmatpush.msra.mxu0 0.0
        %792 = vmatpush.msra.mxu0 0.0
        %793 = vmatpush.msra.mxu0 0.0
        %794 = vmatpush.msra.mxu0 0.0
        %795 = vmatpush.msra.mxu0 0.0
        %796 = vmatpush.msra.mxu0 0.0
        %797 = vmatpush.msra.mxu0 0.0
        %798 = vmatpush.msra.mxu0 0.0
        %799 = vmatpush.msra.mxu0 0.0
        %800 = vmatpush.msra.mxu0 0.0
        %801 = vmatpush.msra.mxu0 0.0
        %802 = vmatpush.msra.mxu0 0.0
        %803 = vmatpush.msra.mxu0 0.0
        %804 = vmatpush.msra.mxu0 0.0
        %805 = vmatpush.msra.mxu0 %v786
        %806 = vmatmul.f32.gmra.mxu0 %v788
        %v807 = vpop.f32.mrf.mxu0
        %v808 = vadd.f32 0.0, %v807
        %809 = vdwg.mxu0
        %v811 = vsel %vm584, %v645, 0
        %813 = vmatpush.msra.mxu0 0.0
        %814 = vmatpush.msra.mxu0 0.0
        %815 = vmatpush.msra.mxu0 0.0
        %816 = vmatpush.msra.mxu0 0.0
        %817 = vmatpush.msra.mxu0 0.0
        %818 = vmatpush.msra.mxu0 0.0
        %819 = vmatpush.msra.mxu0 0.0
        %820 = vmatpush.msra.mxu0 0.0
        %821 = vmatpush.msra.mxu0 0.0
        %822 = vmatpush.msra.mxu0 0.0
        %823 = vmatpush.msra.mxu0 0.0
        %824 = vmatpush.msra.mxu0 0.0
        %825 = vmatpush.msra.mxu0 0.0
        %826 = vmatpush.msra.mxu0 0.0
        %827 = vmatpush.msra.mxu0 0.0
        %828 = vmatpush.msra.mxu0 %v647
        %829 = vmatmul.f32.gmra.mxu0 %v811
        %v830 = vpop.f32.mrf.mxu0
        %v831 = vadd.f32 %v808, %v830
        %832 = vdwg.mxu0
        %s833 = scalar_lea.vmem %s5, 64
        %v834 = vld [vmem:[%s833] sm:$0xff]
        %v835 = vld [vmem:[%s833 + $0x8] sm:$0xff]
        %v836 = vld [vmem:[%s833 + $0x10] sm:$0xff]
        %v837 = vld [vmem:[%s833 + $0x18] sm:$0xff]
        %838 = vmatpush.msra.mxu0 0.0
        %839 = vmatpush.msra.mxu0 0.0
        %840 = vmatpush.msra.mxu0 0.0
        %841 = vmatpush.msra.mxu0 0.0
        %842 = vmatpush.msra.mxu0 0.0
        %843 = vmatpush.msra.mxu0 0.0
        %844 = vmatpush.msra.mxu0 0.0
        %845 = vmatpush.msra.mxu0 0.0
        %846 = vmatpush.msra.mxu0 0.0
        %847 = vmatpush.msra.mxu0 0.0
        %848 = vmatpush.msra.mxu0 0.0
        %849 = vmatpush.msra.mxu0 0.0
        %850 = vmatpush.msra.mxu0 %v837
        %851 = vmatpush.msra.mxu0 %v836
        %852 = vmatpush.msra.mxu0 %v835
        %853 = vmatpush.msra.mxu0 %v834
        %854 = vmatmul.f32.gmra.mxu0 %v514
        %v855 = vpop.f32.mrf.mxu0
        %v856 = vadd.f32 0.0, %v855
        %857 = vdwg.mxu0
        %s858 = scalar_lea.vmem %s6, 64
        %v859 = vld [vmem:[%s858] sm:$0xff]
        %v860 = vld [vmem:[%s858 + $0x8] sm:$0xff]
        %v861 = vld [vmem:[%s858 + $0x10] sm:$0xff]
        %v862 = vld [vmem:[%s858 + $0x18] sm:$0xff]
        %863 = vmatpush.msra.mxu0 0.0
        %864 = vmatpush.msra.mxu0 0.0
        %865 = vmatpush.msra.mxu0 0.0
        %866 = vmatpush.msra.mxu0 0.0
        %867 = vmatpush.msra.mxu0 0.0
        %868 = vmatpush.msra.mxu0 0.0
        %869 = vmatpush.msra.mxu0 0.0
        %870 = vmatpush.msra.mxu0 0.0
        %871 = vmatpush.msra.mxu0 0.0
        %872 = vmatpush.msra.mxu0 0.0
        %873 = vmatpush.msra.mxu0 0.0
        %874 = vmatpush.msra.mxu0 0.0
        %875 = vmatpush.msra.mxu0 %v862
        %876 = vmatpush.msra.mxu0 %v861
        %877 = vmatpush.msra.mxu0 %v860
        %878 = vmatpush.msra.mxu0 %v859
        %879 = vmatmul.f32.gmra.mxu0 %v514
        %v880 = vpop.f32.mrf.mxu0
        %v881 = vadd.f32 0.0, %v880
        %882 = vdwg.mxu0
        %s883 = scalar_lea.vmem %s7, 64
        %v884 = vld [vmem:[%s883] sm:$0xff]
        %v885 = vld [vmem:[%s883 + $0x8] sm:$0xff]
        %v886 = vld [vmem:[%s883 + $0x10] sm:$0xff]
        %v887 = vld [vmem:[%s883 + $0x18] sm:$0xff]
        %888 = vmatpush.msra.mxu0 0.0
        %889 = vmatpush.msra.mxu0 0.0
        %890 = vmatpush.msra.mxu0 0.0
        %891 = vmatpush.msra.mxu0 0.0
        %892 = vmatpush.msra.mxu0 0.0
        %893 = vmatpush.msra.mxu0 0.0
        %894 = vmatpush.msra.mxu0 0.0
        %895 = vmatpush.msra.mxu0 0.0
        %896 = vmatpush.msra.mxu0 0.0
        %897 = vmatpush.msra.mxu0 0.0
        %898 = vmatpush.msra.mxu0 0.0
        %899 = vmatpush.msra.mxu0 0.0
        %900 = vmatpush.msra.mxu0 %v887
        %901 = vmatpush.msra.mxu0 %v886
        %902 = vmatpush.msra.mxu0 %v885
        %903 = vmatpush.msra.mxu0 %v884
        %904 = vmatmul.f32.gmra.mxu0 %v514
        %v905 = vpop.f32.mrf.mxu0
        %v906 = vadd.f32 0.0, %v905
        %907 = vdwg.mxu0
        %v909 = vsel %vm584, %v856, 0
        %v912 = vsel %vm584, %v881, 0
        %914 = vmatpush.xpose.msra.mxu0 0.0
        %915 = vmatpush.xpose.msra.mxu0 0.0
        %916 = vmatpush.xpose.msra.mxu0 0.0
        %917 = vmatpush.xpose.msra.mxu0 0.0
        %918 = vmatpush.xpose.msra.mxu0 0.0
        %919 = vmatpush.xpose.msra.mxu0 0.0
        %920 = vmatpush.xpose.msra.mxu0 0.0
        %921 = vmatpush.xpose.msra.mxu0 0.0
        %922 = vmatpush.xpose.msra.mxu0 0.0
        %923 = vmatpush.xpose.msra.mxu0 0.0
        %924 = vmatpush.xpose.msra.mxu0 0.0
        %925 = vmatpush.xpose.msra.mxu0 0.0
        %926 = vmatpush.xpose.msra.mxu0 0.0
        %927 = vmatpush.xpose.msra.mxu0 0.0
        %928 = vmatpush.xpose.msra.mxu0 0.0
        %929 = vmatpush.xpose.msra.mxu0 %v912
        %930 = vmatmul.f32.gmra.mxu0 %v909
        %v931 = vpop.f32.mrf.mxu0
        %v932 = vadd.f32 0.0, %v931
        %933 = vdwg.mxu0
        %v934 = vmul.f32 %v932, 0.17677669
        %v935 = vsel %vm468, %v934, -1e+30
        %v936 = vsel %vm584, %v935, -inf
        %937 = vmax.xlane.f32.xlu0 %v936
        %v938 = vpop.xlane.xlu0 %937
        %v939 = vsub.f32 %v935, %v938
        %v940 = vmul.f32 %v939, 1.442695
        %v941 = vpow.pop %v940
        %v942 = vsel %vm584, %v941, 0.0
        %943 = vadd.xlane.f32.xlu0 %v942
        %v944 = vpop.xlane.xlu0 %943
        %v945 = vrcp.pop %v944
        %v946 = vmul.f32 %v941, %v945
        %v948 = vsel %vm584, %v946, 0
        %950 = vmatpush.msra.mxu0 0.0
        %951 = vmatpush.msra.mxu0 0.0
        %952 = vmatpush.msra.mxu0 0.0
        %953 = vmatpush.msra.mxu0 0.0
        %954 = vmatpush.msra.mxu0 0.0
        %955 = vmatpush.msra.mxu0 0.0
        %956 = vmatpush.msra.mxu0 0.0
        %957 = vmatpush.msra.mxu0 0.0
        %958 = vmatpush.msra.mxu0 0.0
        %959 = vmatpush.msra.mxu0 0.0
        %960 = vmatpush.msra.mxu0 0.0
        %961 = vmatpush.msra.mxu0 0.0
        %962 = vmatpush.msra.mxu0 0.0
        %963 = vmatpush.msra.mxu0 0.0
        %964 = vmatpush.msra.mxu0 0.0
        %965 = vmatpush.msra.mxu0 %v906
        %966 = vmatmul.f32.gmra.mxu0 %v948
        %v967 = vpop.f32.mrf.mxu0
        %v968 = vadd.f32 0.0, %v967
        %969 = vdwg.mxu0
        %s970 = scalar_lea.vmem %s8, 16
        %v971 = vld [vmem:[%s970] sm:$0xff]
        %v973 = vsel %vm584, %v968, 0
        %975 = vmatpush.msra.mxu0 0.0
        %976 = vmatpush.msra.mxu0 0.0
        %977 = vmatpush.msra.mxu0 0.0
        %978 = vmatpush.msra.mxu0 0.0
        %979 = vmatpush.msra.mxu0 0.0
        %980 = vmatpush.msra.mxu0 0.0
        %981 = vmatpush.msra.mxu0 0.0
        %982 = vmatpush.msra.mxu0 0.0
        %983 = vmatpush.msra.mxu0 0.0
        %984 = vmatpush.msra.mxu0 0.0
        %985 = vmatpush.msra.mxu0 0.0
        %986 = vmatpush.msra.mxu0 0.0
        %987 = vmatpush.msra.mxu0 0.0
        %988 = vmatpush.msra.mxu0 0.0
        %989 = vmatpush.msra.mxu0 0.0
        %990 = vmatpush.msra.mxu0 %v971
        %991 = vmatmul.f32.gmra.mxu0 %v973
        %v992 = vpop.f32.mrf.mxu0
        %v993 = vadd.f32 0.0, %v992
        %994 = vdwg.mxu0
        %v995 = vadd.f32 %v831, %v993
        %s996 = scalar_lea.vmem %s5, 96
        %v997 = vld [vmem:[%s996] sm:$0xff]
        %v998 = vld [vmem:[%s996 + $0x8] sm:$0xff]
        %v999 = vld [vmem:[%s996 + $0x10] sm:$0xff]
        %v1000 = vld [vmem:[%s996 + $0x18] sm:$0xff]
        %1001 = vmatpush.msra.mxu0 0.0
        %1002 = vmatpush.msra.mxu0 0.0
        %1003 = vmatpush.msra.mxu0 0.0
        %1004 = vmatpush.msra.mxu0 0.0
        %1005 = vmatpush.msra.mxu0 0.0
        %1006 = vmatpush.msra.mxu0 0.0
        %1007 = vmatpush.msra.mxu0 0.0
        %1008 = vmatpush.msra.mxu0 0.0
        %1009 = vmatpush.msra.mxu0 0.0
        %1010 = vmatpush.msra.mxu0 0.0
        %1011 = vmatpush.msra.mxu0 0.0
        %1012 = vmatpush.msra.mxu0 0.0
        %1013 = vmatpush.msra.mxu0 %v1000
        %1014 = vmatpush.msra.mxu0 %v999
        %1015 = vmatpush.msra.mxu0 %v998
        %1016 = vmatpush.msra.mxu0 %v997
        %1017 = vmatmul.f32.gmra.mxu0 %v514
        %v1018 = vpop.f32.mrf.mxu0
        %v1019 = vadd.f32 0.0, %v1018
        %1020 = vdwg.mxu0
        %s1021 = scalar_lea.vmem %s6, 96
        %v1022 = vld [vmem:[%s1021] sm:$0xff]
        %v1023 = vld [vmem:[%s1021 + $0x8] sm:$0xff]
        %v1024 = vld [vmem:[%s1021 + $0x10] sm:$0xff]
        %v1025 = vld [vmem:[%s1021 + $0x18] sm:$0xff]
        %1026 = vmatpush.msra.mxu0 0.0
        %1027 = vmatpush.msra.mxu0 0.0
        %1028 = vmatpush.msra.mxu0 0.0
        %1029 = vmatpush.msra.mxu0 0.0
        %1030 = vmatpush.msra.mxu0 0.0
        %1031 = vmatpush.msra.mxu0 0.0
        %1032 = vmatpush.msra.mxu0 0.0
        %1033 = vmatpush.msra.mxu0 0.0
        %1034 = vmatpush.msra.mxu0 0.0
        %1035 = vmatpush.msra.mxu0 0.0
        %1036 = vmatpush.msra.mxu0 0.0
        %1037 = vmatpush.msra.mxu0 0.0
        %1038 = vmatpush.msra.mxu0 %v1025
        %1039 = vmatpush.msra.mxu0 %v1024
        %1040 = vmatpush.msra.mxu0 %v1023
        %1041 = vmatpush.msra.mxu0 %v1022
        %1042 = vmatmul.f32.gmra.mxu0 %v514
        %v1043 = vpop.f32.mrf.mxu0
        %v1044 = vadd.f32 0.0, %v1043
        %1045 = vdwg.mxu0
        %s1046 = scalar_lea.vmem %s7, 96
        %v1047 = vld [vmem:[%s1046] sm:$0xff]
        %v1048 = vld [vmem:[%s1046 + $0x8] sm:$0xff]
        %v1049 = vld [vmem:[%s1046 + $0x10] sm:$0xff]
        %v1050 = vld [vmem:[%s1046 + $0x18] sm:$0xff]
        %1051 = vmatpush.msra.mxu0 0.0
        %1052 = vmatpush.msra.mxu0 0.0
        %1053 = vmatpush.msra.mxu0 0.0
        %1054 = vmatpush.msra.mxu0 0.0
        %1055 = vmatpush.msra.mxu0 0.0
        %1056 = vmatpush.msra.mxu0 0.0
        %1057 = vmatpush.msra.mxu0 0.0
        %1058 = vmatpush.msra.mxu0 0.0
        %1059 = vmatpush.msra.mxu0 0.0
        %1060 = vmatpush.msra.mxu0 0.0
        %1061 = vmatpush.msra.mxu0 0.0
        %1062 = vmatpush.msra.mxu0 0.0
        %1063 = vmatpush.msra.mxu0 %v1050
        %1064 = vmatpush.msra.mxu0 %v1049
        %1065 = vmatpush.msra.mxu0 %v1048
        %1066 = vmatpush.msra.mxu0 %v1047
        %1067 = vmatmul.f32.gmra.mxu0 %v514
        %v1068 = vpop.f32.mrf.mxu0
        %v1069 = vadd.f32 0.0, %v1068
        %1070 = vdwg.mxu0
        %v1072 = vsel %vm584, %v1019, 0
        %v1075 = vsel %vm584, %v1044, 0
        %1077 = vmatpush.xpose.msra.mxu0 0.0
        %1078 = vmatpush.xpose.msra.mxu0 0.0
        %1079 = vmatpush.xpose.msra.mxu0 0.0
        %1080 = vmatpush.xpose.msra.mxu0 0.0
        %1081 = vmatpush.xpose.msra.mxu0 0.0
        %1082 = vmatpush.xpose.msra.mxu0 0.0
        %1083 = vmatpush.xpose.msra.mxu0 0.0
        %1084 = vmatpush.xpose.msra.mxu0 0.0
        %1085 = vmatpush.xpose.msra.mxu0 0.0
        %1086 = vmatpush.xpose.msra.mxu0 0.0
        %1087 = vmatpush.xpose.msra.mxu0 0.0
        %1088 = vmatpush.xpose.msra.mxu0 0.0
        %1089 = vmatpush.xpose.msra.mxu0 0.0
        %1090 = vmatpush.xpose.msra.mxu0 0.0
        %1091 = vmatpush.xpose.msra.mxu0 0.0
        %1092 = vmatpush.xpose.msra.mxu0 %v1075
        %1093 = vmatmul.f32.gmra.mxu0 %v1072
        %v1094 = vpop.f32.mrf.mxu0
        %v1095 = vadd.f32 0.0, %v1094
        %1096 = vdwg.mxu0
        %v1097 = vmul.f32 %v1095, 0.17677669
        %v1098 = vsel %vm468, %v1097, -1e+30
        %v1099 = vsel %vm584, %v1098, -inf
        %1100 = vmax.xlane.f32.xlu0 %v1099
        %v1101 = vpop.xlane.xlu0 %1100
        %v1102 = vsub.f32 %v1098, %v1101
        %v1103 = vmul.f32 %v1102, 1.442695
        %v1104 = vpow.pop %v1103
        %v1105 = vsel %vm584, %v1104, 0.0
        %1106 = vadd.xlane.f32.xlu0 %v1105
        %v1107 = vpop.xlane.xlu0 %1106
        %v1108 = vrcp.pop %v1107
        %v1109 = vmul.f32 %v1104, %v1108
        %v1111 = vsel %vm584, %v1109, 0
        %1113 = vmatpush.msra.mxu0 0.0
        %1114 = vmatpush.msra.mxu0 0.0
        %1115 = vmatpush.msra.mxu0 0.0
        %1116 = vmatpush.msra.mxu0 0.0
        %1117 = vmatpush.msra.mxu0 0.0
        %1118 = vmatpush.msra.mxu0 0.0
        %1119 = vmatpush.msra.mxu0 0.0
        %1120 = vmatpush.msra.mxu0 0.0
        %1121 = vmatpush.msra.mxu0 0.0
        %1122 = vmatpush.msra.mxu0 0.0
        %1123 = vmatpush.msra.mxu0 0.0
        %1124 = vmatpush.msra.mxu0 0.0
        %1125 = vmatpush.msra.mxu0 0.0
        %1126 = vmatpush.msra.mxu0 0.0
        %1127 = vmatpush.msra.mxu0 0.0
        %1128 = vmatpush.msra.mxu0 %v1069
        %1129 = vmatmul.f32.gmra.mxu0 %v1111
        %v1130 = vpop.f32.mrf.mxu0
        %v1131 = vadd.f32 0.0, %v1130
        %1132 = vdwg.mxu0
        %s1133 = scalar_lea.vmem %s8, 24
        %v1134 = vld [vmem:[%s1133] sm:$0xff]
        %v1136 = vsel %vm584, %v1131, 0
        %1138 = vmatpush.msra.mxu0 0.0
        %1139 = vmatpush.msra.mxu0 0.0
        %1140 = vmatpush.msra.mxu0 0.0
        %1141 = vmatpush.msra.mxu0 0.0
        %1142 = vmatpush.msra.mxu0 0.0
        %1143 = vmatpush.msra.mxu0 0.0
        %1144 = vmatpush.msra.mxu0 0.0
        %1145 = vmatpush.msra.mxu0 0.0
        %1146 = vmatpush.msra.mxu0 0.0
        %1147 = vmatpush.msra.mxu0 0.0
        %1148 = vmatpush.msra.mxu0 0.0
        %1149 = vmatpush.msra.mxu0 0.0
        %1150 = vmatpush.msra.mxu0 0.0
        %1151 = vmatpush.msra.mxu0 0.0
        %1152 = vmatpush.msra.mxu0 0.0
        %1153 = vmatpush.msra.mxu0 %v1134
        %1154 = vmatmul.f32.gmra.mxu0 %v1136
        %v1155 = vpop.f32.mrf.mxu0
        %v1156 = vadd.f32 0.0, %v1155
        %1157 = vdwg.mxu0
        %v1158 = vadd.f32 %v995, %v1156
        %v1159 = vld [vmem:[%s9] sm:$0x1]
        %v1161 = vperm.slane %v1159, 0
        %v1163 = vadd.f32 %v1158, %v1161
        %s1164 = scalar_lea.vmem %s5, 128
        %v1165 = vld [vmem:[%s1164] sm:$0xff]
        %v1166 = vld [vmem:[%s1164 + $0x8] sm:$0xff]
        %v1167 = vld [vmem:[%s1164 + $0x10] sm:$0xff]
        %v1168 = vld [vmem:[%s1164 + $0x18] sm:$0xff]
        %1169 = vmatpush.msra.mxu0 0.0
        %1170 = vmatpush.msra.mxu0 0.0
        %1171 = vmatpush.msra.mxu0 0.0
        %1172 = vmatpush.msra.mxu0 0.0
        %1173 = vmatpush.msra.mxu0 0.0
        %1174 = vmatpush.msra.mxu0 0.0
        %1175 = vmatpush.msra.mxu0 0.0
        %1176 = vmatpush.msra.mxu0 0.0
        %1177 = vmatpush.msra.mxu0 0.0
        %1178 = vmatpush.msra.mxu0 0.0
        %1179 = vmatpush.msra.mxu0 0.0
        %1180 = vmatpush.msra.mxu0 0.0
        %1181 = vmatpush.msra.mxu0 %v1168
        %1182 = vmatpush.msra.mxu0 %v1167
        %1183 = vmatpush.msra.mxu0 %v1166
        %1184 = vmatpush.msra.mxu0 %v1165
        %1185 = vmatmul.f32.gmra.mxu0 %v514
        %v1186 = vpop.f32.mrf.mxu0
        %v1187 = vadd.f32 0.0, %v1186
        %1188 = vdwg.mxu0
        %s1189 = scalar_lea.vmem %s6, 128
        %v1190 = vld [vmem:[%s1189] sm:$0xff]
        %v1191 = vld [vmem:[%s1189 + $0x8] sm:$0xff]
        %v1192 = vld [vmem:[%s1189 + $0x10] sm:$0xff]
        %v1193 = vld [vmem:[%s1189 + $0x18] sm:$0xff]
        %1194 = vmatpush.msra.mxu0 0.0
        %1195 = vmatpush.msra.mxu0 0.0
        %1196 = vmatpush.msra.mxu0 0.0
        %1197 = vmatpush.msra.mxu0 0.0
        %1198 = vmatpush.msra.mxu0 0.0
        %1199 = vmatpush.msra.mxu0 0.0
        %1200 = vmatpush.msra.mxu0 0.0
        %1201 = vmatpush.msra.mxu0 0.0
        %1202 = vmatpush.msra.mxu0 0.0
        %1203 = vmatpush.msra.mxu0 0.0
        %1204 = vmatpush.msra.mxu0 0.0
        %1205 = vmatpush.msra.mxu0 0.0
        %1206 = vmatpush.msra.mxu0 %v1193
        %1207 = vmatpush.msra.mxu0 %v1192
        %1208 = vmatpush.msra.mxu0 %v1191
        %1209 = vmatpush.msra.mxu0 %v1190
        %1210 = vmatmul.f32.gmra.mxu0 %v514
        %v1211 = vpop.f32.mrf.mxu0
        %v1212 = vadd.f32 0.0, %v1211
        %1213 = vdwg.mxu0
        %s1214 = scalar_lea.vmem %s7, 128
        %v1215 = vld [vmem:[%s1214] sm:$0xff]
        %v1216 = vld [vmem:[%s1214 + $0x8] sm:$0xff]
        %v1217 = vld [vmem:[%s1214 + $0x10] sm:$0xff]
        %v1218 = vld [vmem:[%s1214 + $0x18] sm:$0xff]
        %1219 = vmatpush.msra.mxu0 0.0
        %1220 = vmatpush.msra.mxu0 0.0
        %1221 = vmatpush.msra.mxu0 0.0
        %1222 = vmatpush.msra.mxu0 0.0
        %1223 = vmatpush.msra.mxu0 0.0
        %1224 = vmatpush.msra.mxu0 0.0
        %1225 = vmatpush.msra.mxu0 0.0
        %1226 = vmatpush.msra.mxu0 0.0
        %1227 = vmatpush.msra.mxu0 0.0
        %1228 = vmatpush.msra.mxu0 0.0
        %1229 = vmatpush.msra.mxu0 0.0
        %1230 = vmatpush.msra.mxu0 0.0
        %1231 = vmatpush.msra.mxu0 %v1218
        %1232 = vmatpush.msra.mxu0 %v1217
        %1233 = vmatpush.msra.mxu0 %v1216
        %1234 = vmatpush.msra.mxu0 %v1215
        %1235 = vmatmul.f32.gmra.mxu0 %v514
        %v1236 = vpop.f32.mrf.mxu0
        %v1237 = vadd.f32 0.0, %v1236
        %1238 = vdwg.mxu0
        %v1240 = vsel %vm584, %v1187, 0
        %v1243 = vsel %vm584, %v1212, 0
        %1245 = vmatpush.xpose.msra.mxu0 0.0
        %1246 = vmatpush.xpose.msra.mxu0 0.0
        %1247 = vmatpush.xpose.msra.mxu0 0.0
        %1248 = vmatpush.xpose.msra.mxu0 0.0
        %1249 = vmatpush.xpose.msra.mxu0 0.0
        %1250 = vmatpush.xpose.msra.mxu0 0.0
        %1251 = vmatpush.xpose.msra.mxu0 0.0
        %1252 = vmatpush.xpose.msra.mxu0 0.0
        %1253 = vmatpush.xpose.msra.mxu0 0.0
        %1254 = vmatpush.xpose.msra.mxu0 0.0
        %1255 = vmatpush.xpose.msra.mxu0 0.0
        %1256 = vmatpush.xpose.msra.mxu0 0.0
        %1257 = vmatpush.xpose.msra.mxu0 0.0
        %1258 = vmatpush.xpose.msra.mxu0 0.0
        %1259 = vmatpush.xpose.msra.mxu0 0.0
        %1260 = vmatpush.xpose.msra.mxu0 %v1243
        %1261 = vmatmul.f32.gmra.mxu0 %v1240
        %v1262 = vpop.f32.mrf.mxu0
        %v1263 = vadd.f32 0.0, %v1262
        %1264 = vdwg.mxu0
        %v1265 = vmul.f32 %v1263, 0.17677669
        %v1266 = vsel %vm468, %v1265, -1e+30
        %v1267 = vsel %vm584, %v1266, -inf
        %1268 = vmax.xlane.f32.xlu0 %v1267
        %v1269 = vpop.xlane.xlu0 %1268
        %v1270 = vsub.f32 %v1266, %v1269
        %v1271 = vmul.f32 %v1270, 1.442695
        %v1272 = vpow.pop %v1271
        %v1273 = vsel %vm584, %v1272, 0.0
        %1274 = vadd.xlane.f32.xlu0 %v1273
        %v1275 = vpop.xlane.xlu0 %1274
        %v1276 = vrcp.pop %v1275
        %v1277 = vmul.f32 %v1272, %v1276
        %v1279 = vsel %vm584, %v1277, 0
        %1281 = vmatpush.msra.mxu0 0.0
        %1282 = vmatpush.msra.mxu0 0.0
        %1283 = vmatpush.msra.mxu0 0.0
        %1284 = vmatpush.msra.mxu0 0.0
        %1285 = vmatpush.msra.mxu0 0.0
        %1286 = vmatpush.msra.mxu0 0.0
        %1287 = vmatpush.msra.mxu0 0.0
        %1288 = vmatpush.msra.mxu0 0.0
        %1289 = vmatpush.msra.mxu0 0.0
        %1290 = vmatpush.msra.mxu0 0.0
        %1291 = vmatpush.msra.mxu0 0.0
        %1292 = vmatpush.msra.mxu0 0.0
        %1293 = vmatpush.msra.mxu0 0.0
        %1294 = vmatpush.msra.mxu0 0.0
        %1295 = vmatpush.msra.mxu0 0.0
        %1296 = vmatpush.msra.mxu0 %v1237
        %1297 = vmatmul.f32.gmra.mxu0 %v1279
        %v1298 = vpop.f32.mrf.mxu0
        %v1299 = vadd.f32 0.0, %v1298
        %1300 = vdwg.mxu0
        %s1301 = scalar_lea.vmem %s8, 32
        %v1302 = vld [vmem:[%s1301] sm:$0xff]
        %s1303 = scalar_lea.vmem %s5, 160
        %v1304 = vld [vmem:[%s1303] sm:$0xff]
        %v1305 = vld [vmem:[%s1303 + $0x8] sm:$0xff]
        %v1306 = vld [vmem:[%s1303 + $0x10] sm:$0xff]
        %v1307 = vld [vmem:[%s1303 + $0x18] sm:$0xff]
        %1308 = vmatpush.msra.mxu0 0.0
        %1309 = vmatpush.msra.mxu0 0.0
        %1310 = vmatpush.msra.mxu0 0.0
        %1311 = vmatpush.msra.mxu0 0.0
        %1312 = vmatpush.msra.mxu0 0.0
        %1313 = vmatpush.msra.mxu0 0.0
        %1314 = vmatpush.msra.mxu0 0.0
        %1315 = vmatpush.msra.mxu0 0.0
        %1316 = vmatpush.msra.mxu0 0.0
        %1317 = vmatpush.msra.mxu0 0.0
        %1318 = vmatpush.msra.mxu0 0.0
        %1319 = vmatpush.msra.mxu0 0.0
        %1320 = vmatpush.msra.mxu0 %v1307
        %1321 = vmatpush.msra.mxu0 %v1306
        %1322 = vmatpush.msra.mxu0 %v1305
        %1323 = vmatpush.msra.mxu0 %v1304
        %1324 = vmatmul.f32.gmra.mxu0 %v514
        %v1325 = vpop.f32.mrf.mxu0
        %v1326 = vadd.f32 0.0, %v1325
        %1327 = vdwg.mxu0
        %s1328 = scalar_lea.vmem %s6, 160
        %v1329 = vld [vmem:[%s1328] sm:$0xff]
        %v1330 = vld [vmem:[%s1328 + $0x8] sm:$0xff]
        %v1331 = vld [vmem:[%s1328 + $0x10] sm:$0xff]
        %v1332 = vld [vmem:[%s1328 + $0x18] sm:$0xff]
        %1333 = vmatpush.msra.mxu0 0.0
        %1334 = vmatpush.msra.mxu0 0.0
        %1335 = vmatpush.msra.mxu0 0.0
        %1336 = vmatpush.msra.mxu0 0.0
        %1337 = vmatpush.msra.mxu0 0.0
        %1338 = vmatpush.msra.mxu0 0.0
        %1339 = vmatpush.msra.mxu0 0.0
        %1340 = vmatpush.msra.mxu0 0.0
        %1341 = vmatpush.msra.mxu0 0.0
        %1342 = vmatpush.msra.mxu0 0.0
        %1343 = vmatpush.msra.mxu0 0.0
        %1344 = vmatpush.msra.mxu0 0.0
        %1345 = vmatpush.msra.mxu0 %v1332
        %1346 = vmatpush.msra.mxu0 %v1331
        %1347 = vmatpush.msra.mxu0 %v1330
        %1348 = vmatpush.msra.mxu0 %v1329
        %1349 = vmatmul.f32.gmra.mxu0 %v514
        %v1350 = vpop.f32.mrf.mxu0
        %v1351 = vadd.f32 0.0, %v1350
        %1352 = vdwg.mxu0
        %s1353 = scalar_lea.vmem %s7, 160
        %v1354 = vld [vmem:[%s1353] sm:$0xff]
        %v1355 = vld [vmem:[%s1353 + $0x8] sm:$0xff]
        %v1356 = vld [vmem:[%s1353 + $0x10] sm:$0xff]
        %v1357 = vld [vmem:[%s1353 + $0x18] sm:$0xff]
        %1358 = vmatpush.msra.mxu0 0.0
        %1359 = vmatpush.msra.mxu0 0.0
        %1360 = vmatpush.msra.mxu0 0.0
        %1361 = vmatpush.msra.mxu0 0.0
        %1362 = vmatpush.msra.mxu0 0.0
        %1363 = vmatpush.msra.mxu0 0.0
        %1364 = vmatpush.msra.mxu0 0.0
        %1365 = vmatpush.msra.mxu0 0.0
        %1366 = vmatpush.msra.mxu0 0.0
        %1367 = vmatpush.msra.mxu0 0.0
        %1368 = vmatpush.msra.mxu0 0.0
        %1369 = vmatpush.msra.mxu0 0.0
        %1370 = vmatpush.msra.mxu0 %v1357
        %1371 = vmatpush.msra.mxu0 %v1356
        %1372 = vmatpush.msra.mxu0 %v1355
        %1373 = vmatpush.msra.mxu0 %v1354
        %1374 = vmatmul.f32.gmra.mxu0 %v514
        %v1375 = vpop.f32.mrf.mxu0
        %v1376 = vadd.f32 0.0, %v1375
        %1377 = vdwg.mxu0
        %v1379 = vsel %vm584, %v1326, 0
        %v1382 = vsel %vm584, %v1351, 0
        %1384 = vmatpush.xpose.msra.mxu0 0.0
        %1385 = vmatpush.xpose.msra.mxu0 0.0
        %1386 = vmatpush.xpose.msra.mxu0 0.0
        %1387 = vmatpush.xpose.msra.mxu0 0.0
        %1388 = vmatpush.xpose.msra.mxu0 0.0
        %1389 = vmatpush.xpose.msra.mxu0 0.0
        %1390 = vmatpush.xpose.msra.mxu0 0.0
        %1391 = vmatpush.xpose.msra.mxu0 0.0
        %1392 = vmatpush.xpose.msra.mxu0 0.0
        %1393 = vmatpush.xpose.msra.mxu0 0.0
        %1394 = vmatpush.xpose.msra.mxu0 0.0
        %1395 = vmatpush.xpose.msra.mxu0 0.0
        %1396 = vmatpush.xpose.msra.mxu0 0.0
        %1397 = vmatpush.xpose.msra.mxu0 0.0
        %1398 = vmatpush.xpose.msra.mxu0 0.0
        %1399 = vmatpush.xpose.msra.mxu0 %v1382
        %1400 = vmatmul.f32.gmra.mxu0 %v1379
        %v1401 = vpop.f32.mrf.mxu0
        %v1402 = vadd.f32 0.0, %v1401
        %1403 = vdwg.mxu0
        %v1404 = vmul.f32 %v1402, 0.17677669
        %v1405 = vsel %vm468, %v1404, -1e+30
        %v1406 = vsel %vm584, %v1405, -inf
        %1407 = vmax.xlane.f32.xlu0 %v1406
        %v1408 = vpop.xlane.xlu0 %1407
        %v1409 = vsub.f32 %v1405, %v1408
        %v1410 = vmul.f32 %v1409, 1.442695
        %v1411 = vpow.pop %v1410
        %v1412 = vsel %vm584, %v1411, 0.0
        %1413 = vadd.xlane.f32.xlu0 %v1412
        %v1414 = vpop.xlane.xlu0 %1413
        %v1415 = vrcp.pop %v1414
        %v1416 = vmul.f32 %v1411, %v1415
        %v1418 = vsel %vm584, %v1416, 0
        %1420 = vmatpush.msra.mxu0 0.0
        %1421 = vmatpush.msra.mxu0 0.0
        %1422 = vmatpush.msra.mxu0 0.0
        %1423 = vmatpush.msra.mxu0 0.0
        %1424 = vmatpush.msra.mxu0 0.0
        %1425 = vmatpush.msra.mxu0 0.0
        %1426 = vmatpush.msra.mxu0 0.0
        %1427 = vmatpush.msra.mxu0 0.0
        %1428 = vmatpush.msra.mxu0 0.0
        %1429 = vmatpush.msra.mxu0 0.0
        %1430 = vmatpush.msra.mxu0 0.0
        %1431 = vmatpush.msra.mxu0 0.0
        %1432 = vmatpush.msra.mxu0 0.0
        %1433 = vmatpush.msra.mxu0 0.0
        %1434 = vmatpush.msra.mxu0 0.0
        %1435 = vmatpush.msra.mxu0 %v1376
        %1436 = vmatmul.f32.gmra.mxu0 %v1418
        %v1437 = vpop.f32.mrf.mxu0
        %v1438 = vadd.f32 0.0, %v1437
        %1439 = vdwg.mxu0
        %s1440 = scalar_lea.vmem %s8, 40
        %v1441 = vld [vmem:[%s1440] sm:$0xff]
        %v1443 = vsel %vm584, %v1438, 0
        %1445 = vmatpush.msra.mxu0 0.0
        %1446 = vmatpush.msra.mxu0 0.0
        %1447 = vmatpush.msra.mxu0 0.0
        %1448 = vmatpush.msra.mxu0 0.0
        %1449 = vmatpush.msra.mxu0 0.0
        %1450 = vmatpush.msra.mxu0 0.0
        %1451 = vmatpush.msra.mxu0 0.0
        %1452 = vmatpush.msra.mxu0 0.0
        %1453 = vmatpush.msra.mxu0 0.0
        %1454 = vmatpush.msra.mxu0 0.0
        %1455 = vmatpush.msra.mxu0 0.0
        %1456 = vmatpush.msra.mxu0 0.0
        %1457 = vmatpush.msra.mxu0 0.0
        %1458 = vmatpush.msra.mxu0 0.0
        %1459 = vmatpush.msra.mxu0 0.0
        %1460 = vmatpush.msra.mxu0 %v1441
        %1461 = vmatmul.f32.gmra.mxu0 %v1443
        %v1462 = vpop.f32.mrf.mxu0
        %v1463 = vadd.f32 0.0, %v1462
        %1464 = vdwg.mxu0
        %v1466 = vsel %vm584, %v1299, 0
        %1468 = vmatpush.msra.mxu0 0.0
        %1469 = vmatpush.msra.mxu0 0.0
        %1470 = vmatpush.msra.mxu0 0.0
        %1471 = vmatpush.msra.mxu0 0.0
        %1472 = vmatpush.msra.mxu0 0.0
        %1473 = vmatpush.msra.mxu0 0.0
        %1474 = vmatpush.msra.mxu0 0.0
        %1475 = vmatpush.msra.mxu0 0.0
        %1476 = vmatpush.msra.mxu0 0.0
        %1477 = vmatpush.msra.mxu0 0.0
        %1478 = vmatpush.msra.mxu0 0.0
        %1479 = vmatpush.msra.mxu0 0.0
        %1480 = vmatpush.msra.mxu0 0.0
        %1481 = vmatpush.msra.mxu0 0.0
        %1482 = vmatpush.msra.mxu0 0.0
        %1483 = vmatpush.msra.mxu0 %v1302
        %1484 = vmatmul.f32.gmra.mxu0 %v1466
        %v1485 = vpop.f32.mrf.mxu0
        %v1486 = vadd.f32 %v1463, %v1485
        %1487 = vdwg.mxu0
        %s1488 = scalar_lea.vmem %s5, 192
        %v1489 = vld [vmem:[%s1488] sm:$0xff]
        %v1490 = vld [vmem:[%s1488 + $0x8] sm:$0xff]
        %v1491 = vld [vmem:[%s1488 + $0x10] sm:$0xff]
        %v1492 = vld [vmem:[%s1488 + $0x18] sm:$0xff]
        %1493 = vmatpush.msra.mxu0 0.0
        %1494 = vmatpush.msra.mxu0 0.0
        %1495 = vmatpush.msra.mxu0 0.0
        %1496 = vmatpush.msra.mxu0 0.0
        %1497 = vmatpush.msra.mxu0 0.0
        %1498 = vmatpush.msra.mxu0 0.0
        %1499 = vmatpush.msra.mxu0 0.0
        %1500 = vmatpush.msra.mxu0 0.0
        %1501 = vmatpush.msra.mxu0 0.0
        %1502 = vmatpush.msra.mxu0 0.0
        %1503 = vmatpush.msra.mxu0 0.0
        %1504 = vmatpush.msra.mxu0 0.0
        %1505 = vmatpush.msra.mxu0 %v1492
        %1506 = vmatpush.msra.mxu0 %v1491
        %1507 = vmatpush.msra.mxu0 %v1490
        %1508 = vmatpush.msra.mxu0 %v1489
        %1509 = vmatmul.f32.gmra.mxu0 %v514
        %v1510 = vpop.f32.mrf.mxu0
        %v1511 = vadd.f32 0.0, %v1510
        %1512 = vdwg.mxu0
        %s1513 = scalar_lea.vmem %s6, 192
        %v1514 = vld [vmem:[%s1513] sm:$0xff]
        %v1515 = vld [vmem:[%s1513 + $0x8] sm:$0xff]
        %v1516 = vld [vmem:[%s1513 + $0x10] sm:$0xff]
        %v1517 = vld [vmem:[%s1513 + $0x18] sm:$0xff]
        %1518 = vmatpush.msra.mxu0 0.0
        %1519 = vmatpush.msra.mxu0 0.0
        %1520 = vmatpush.msra.mxu0 0.0
        %1521 = vmatpush.msra.mxu0 0.0
        %1522 = vmatpush.msra.mxu0 0.0
        %1523 = vmatpush.msra.mxu0 0.0
        %1524 = vmatpush.msra.mxu0 0.0
        %1525 = vmatpush.msra.mxu0 0.0
        %1526 = vmatpush.msra.mxu0 0.0
        %1527 = vmatpush.msra.mxu0 0.0
        %1528 = vmatpush.msra.mxu0 0.0
        %1529 = vmatpush.msra.mxu0 0.0
        %1530 = vmatpush.msra.mxu0 %v1517
        %1531 = vmatpush.msra.mxu0 %v1516
        %1532 = vmatpush.msra.mxu0 %v1515
        %1533 = vmatpush.msra.mxu0 %v1514
        %1534 = vmatmul.f32.gmra.mxu0 %v514
        %v1535 = vpop.f32.mrf.mxu0
        %v1536 = vadd.f32 0.0, %v1535
        %1537 = vdwg.mxu0
        %s1538 = scalar_lea.vmem %s7, 192
        %v1539 = vld [vmem:[%s1538] sm:$0xff]
        %v1540 = vld [vmem:[%s1538 + $0x8] sm:$0xff]
        %v1541 = vld [vmem:[%s1538 + $0x10] sm:$0xff]
        %v1542 = vld [vmem:[%s1538 + $0x18] sm:$0xff]
        %1543 = vmatpush.msra.mxu0 0.0
        %1544 = vmatpush.msra.mxu0 0.0
        %1545 = vmatpush.msra.mxu0 0.0
        %1546 = vmatpush.msra.mxu0 0.0
        %1547 = vmatpush.msra.mxu0 0.0
        %1548 = vmatpush.msra.mxu0 0.0
        %1549 = vmatpush.msra.mxu0 0.0
        %1550 = vmatpush.msra.mxu0 0.0
        %1551 = vmatpush.msra.mxu0 0.0
        %1552 = vmatpush.msra.mxu0 0.0
        %1553 = vmatpush.msra.mxu0 0.0
        %1554 = vmatpush.msra.mxu0 0.0
        %1555 = vmatpush.msra.mxu0 %v1542
        %1556 = vmatpush.msra.mxu0 %v1541
        %1557 = vmatpush.msra.mxu0 %v1540
        %1558 = vmatpush.msra.mxu0 %v1539
        %1559 = vmatmul.f32.gmra.mxu0 %v514
        %v1560 = vpop.f32.mrf.mxu0
        %v1561 = vadd.f32 0.0, %v1560
        %1562 = vdwg.mxu0
        %v1564 = vsel %vm584, %v1511, 0
        %v1567 = vsel %vm584, %v1536, 0
        %1569 = vmatpush.xpose.msra.mxu0 0.0
        %1570 = vmatpush.xpose.msra.mxu0 0.0
        %1571 = vmatpush.xpose.msra.mxu0 0.0
        %1572 = vmatpush.xpose.msra.mxu0 0.0
        %1573 = vmatpush.xpose.msra.mxu0 0.0
        %1574 = vmatpush.xpose.msra.mxu0 0.0
        %1575 = vmatpush.xpose.msra.mxu0 0.0
        %1576 = vmatpush.xpose.msra.mxu0 0.0
        %1577 = vmatpush.xpose.msra.mxu0 0.0
        %1578 = vmatpush.xpose.msra.mxu0 0.0
        %1579 = vmatpush.xpose.msra.mxu0 0.0
        %1580 = vmatpush.xpose.msra.mxu0 0.0
        %1581 = vmatpush.xpose.msra.mxu0 0.0
        %1582 = vmatpush.xpose.msra.mxu0 0.0
        %1583 = vmatpush.xpose.msra.mxu0 0.0
        %1584 = vmatpush.xpose.msra.mxu0 %v1567
        %1585 = vmatmul.f32.gmra.mxu0 %v1564
        %v1586 = vpop.f32.mrf.mxu0
        %v1587 = vadd.f32 0.0, %v1586
        %1588 = vdwg.mxu0
        %v1589 = vmul.f32 %v1587, 0.17677669
        %v1590 = vsel %vm468, %v1589, -1e+30
        %v1591 = vsel %vm584, %v1590, -inf
        %1592 = vmax.xlane.f32.xlu0 %v1591
        %v1593 = vpop.xlane.xlu0 %1592
        %v1594 = vsub.f32 %v1590, %v1593
        %v1595 = vmul.f32 %v1594, 1.442695
        %v1596 = vpow.pop %v1595
        %v1597 = vsel %vm584, %v1596, 0.0
        %1598 = vadd.xlane.f32.xlu0 %v1597
        %v1599 = vpop.xlane.xlu0 %1598
        %v1600 = vrcp.pop %v1599
        %v1601 = vmul.f32 %v1596, %v1600
        %v1603 = vsel %vm584, %v1601, 0
        %1605 = vmatpush.msra.mxu0 0.0
        %1606 = vmatpush.msra.mxu0 0.0
        %1607 = vmatpush.msra.mxu0 0.0
        %1608 = vmatpush.msra.mxu0 0.0
        %1609 = vmatpush.msra.mxu0 0.0
        %1610 = vmatpush.msra.mxu0 0.0
        %1611 = vmatpush.msra.mxu0 0.0
        %1612 = vmatpush.msra.mxu0 0.0
        %1613 = vmatpush.msra.mxu0 0.0
        %1614 = vmatpush.msra.mxu0 0.0
        %1615 = vmatpush.msra.mxu0 0.0
        %1616 = vmatpush.msra.mxu0 0.0
        %1617 = vmatpush.msra.mxu0 0.0
        %1618 = vmatpush.msra.mxu0 0.0
        %1619 = vmatpush.msra.mxu0 0.0
        %1620 = vmatpush.msra.mxu0 %v1561
        %1621 = vmatmul.f32.gmra.mxu0 %v1603
        %v1622 = vpop.f32.mrf.mxu0
        %v1623 = vadd.f32 0.0, %v1622
        %1624 = vdwg.mxu0
        %s1625 = scalar_lea.vmem %s8, 48
        %v1626 = vld [vmem:[%s1625] sm:$0xff]
        %v1628 = vsel %vm584, %v1623, 0
        %1630 = vmatpush.msra.mxu0 0.0
        %1631 = vmatpush.msra.mxu0 0.0
        %1632 = vmatpush.msra.mxu0 0.0
        %1633 = vmatpush.msra.mxu0 0.0
        %1634 = vmatpush.msra.mxu0 0.0
        %1635 = vmatpush.msra.mxu0 0.0
        %1636 = vmatpush.msra.mxu0 0.0
        %1637 = vmatpush.msra.mxu0 0.0
        %1638 = vmatpush.msra.mxu0 0.0
        %1639 = vmatpush.msra.mxu0 0.0
        %1640 = vmatpush.msra.mxu0 0.0
        %1641 = vmatpush.msra.mxu0 0.0
        %1642 = vmatpush.msra.mxu0 0.0
        %1643 = vmatpush.msra.mxu0 0.0
        %1644 = vmatpush.msra.mxu0 0.0
        %1645 = vmatpush.msra.mxu0 %v1626
        %1646 = vmatmul.f32.gmra.mxu0 %v1628
        %v1647 = vpop.f32.mrf.mxu0
        %v1648 = vadd.f32 0.0, %v1647
        %1649 = vdwg.mxu0
        %v1650 = vadd.f32 %v1486, %v1648
        %s1651 = scalar_lea.vmem %s5, 224
        %v1652 = vld [vmem:[%s1651] sm:$0xff]
        %v1653 = vld [vmem:[%s1651 + $0x8] sm:$0xff]
        %v1654 = vld [vmem:[%s1651 + $0x10] sm:$0xff]
        %v1655 = vld [vmem:[%s1651 + $0x18] sm:$0xff]
        %1656 = vmatpush.msra.mxu0 0.0
        %1657 = vmatpush.msra.mxu0 0.0
        %1658 = vmatpush.msra.mxu0 0.0
        %1659 = vmatpush.msra.mxu0 0.0
        %1660 = vmatpush.msra.mxu0 0.0
        %1661 = vmatpush.msra.mxu0 0.0
        %1662 = vmatpush.msra.mxu0 0.0
        %1663 = vmatpush.msra.mxu0 0.0
        %1664 = vmatpush.msra.mxu0 0.0
        %1665 = vmatpush.msra.mxu0 0.0
        %1666 = vmatpush.msra.mxu0 0.0
        %1667 = vmatpush.msra.mxu0 0.0
        %1668 = vmatpush.msra.mxu0 %v1655
        %1669 = vmatpush.msra.mxu0 %v1654
        %1670 = vmatpush.msra.mxu0 %v1653
        %1671 = vmatpush.msra.mxu0 %v1652
        %1672 = vmatmul.f32.gmra.mxu0 %v514
        %v1673 = vpop.f32.mrf.mxu0
        %v1674 = vadd.f32 0.0, %v1673
        %1675 = vdwg.mxu0
        %s1676 = scalar_lea.vmem %s6, 224
        %v1677 = vld [vmem:[%s1676] sm:$0xff]
        %v1678 = vld [vmem:[%s1676 + $0x8] sm:$0xff]
        %v1679 = vld [vmem:[%s1676 + $0x10] sm:$0xff]
        %v1680 = vld [vmem:[%s1676 + $0x18] sm:$0xff]
        %1681 = vmatpush.msra.mxu0 0.0
        %1682 = vmatpush.msra.mxu0 0.0
        %1683 = vmatpush.msra.mxu0 0.0
        %1684 = vmatpush.msra.mxu0 0.0
        %1685 = vmatpush.msra.mxu0 0.0
        %1686 = vmatpush.msra.mxu0 0.0
        %1687 = vmatpush.msra.mxu0 0.0
        %1688 = vmatpush.msra.mxu0 0.0
        %1689 = vmatpush.msra.mxu0 0.0
        %1690 = vmatpush.msra.mxu0 0.0
        %1691 = vmatpush.msra.mxu0 0.0
        %1692 = vmatpush.msra.mxu0 0.0
        %1693 = vmatpush.msra.mxu0 %v1680
        %1694 = vmatpush.msra.mxu0 %v1679
        %1695 = vmatpush.msra.mxu0 %v1678
        %1696 = vmatpush.msra.mxu0 %v1677
        %1697 = vmatmul.f32.gmra.mxu0 %v514
        %v1698 = vpop.f32.mrf.mxu0
        %v1699 = vadd.f32 0.0, %v1698
        %1700 = vdwg.mxu0
        %s1701 = scalar_lea.vmem %s7, 224
        %v1702 = vld [vmem:[%s1701] sm:$0xff]
        %v1703 = vld [vmem:[%s1701 + $0x8] sm:$0xff]
        %v1704 = vld [vmem:[%s1701 + $0x10] sm:$0xff]
        %v1705 = vld [vmem:[%s1701 + $0x18] sm:$0xff]
        %1706 = vmatpush.msra.mxu0 0.0
        %1707 = vmatpush.msra.mxu0 0.0
        %1708 = vmatpush.msra.mxu0 0.0
        %1709 = vmatpush.msra.mxu0 0.0
        %1710 = vmatpush.msra.mxu0 0.0
        %1711 = vmatpush.msra.mxu0 0.0
        %1712 = vmatpush.msra.mxu0 0.0
        %1713 = vmatpush.msra.mxu0 0.0
        %1714 = vmatpush.msra.mxu0 0.0
        %1715 = vmatpush.msra.mxu0 0.0
        %1716 = vmatpush.msra.mxu0 0.0
        %1717 = vmatpush.msra.mxu0 0.0
        %1718 = vmatpush.msra.mxu0 %v1705
        %1719 = vmatpush.msra.mxu0 %v1704
        %1720 = vmatpush.msra.mxu0 %v1703
        %1721 = vmatpush.msra.mxu0 %v1702
        %1722 = vmatmul.f32.gmra.mxu0 %v514
        %v1723 = vpop.f32.mrf.mxu0
        %v1724 = vadd.f32 0.0, %v1723
        %1725 = vdwg.mxu0
        %v1727 = vsel %vm584, %v1674, 0
        %v1730 = vsel %vm584, %v1699, 0
        %1732 = vmatpush.xpose.msra.mxu0 0.0
        %1733 = vmatpush.xpose.msra.mxu0 0.0
        %1734 = vmatpush.xpose.msra.mxu0 0.0
        %1735 = vmatpush.xpose.msra.mxu0 0.0
        %1736 = vmatpush.xpose.msra.mxu0 0.0
        %1737 = vmatpush.xpose.msra.mxu0 0.0
        %1738 = vmatpush.xpose.msra.mxu0 0.0
        %1739 = vmatpush.xpose.msra.mxu0 0.0
        %1740 = vmatpush.xpose.msra.mxu0 0.0
        %1741 = vmatpush.xpose.msra.mxu0 0.0
        %1742 = vmatpush.xpose.msra.mxu0 0.0
        %1743 = vmatpush.xpose.msra.mxu0 0.0
        %1744 = vmatpush.xpose.msra.mxu0 0.0
        %1745 = vmatpush.xpose.msra.mxu0 0.0
        %1746 = vmatpush.xpose.msra.mxu0 0.0
        %1747 = vmatpush.xpose.msra.mxu0 %v1730
        %1748 = vmatmul.f32.gmra.mxu0 %v1727
        %v1749 = vpop.f32.mrf.mxu0
        %v1750 = vadd.f32 0.0, %v1749
        %1751 = vdwg.mxu0
        %v1752 = vmul.f32 %v1750, 0.17677669
        %v1753 = vsel %vm468, %v1752, -1e+30
        %v1754 = vsel %vm584, %v1753, -inf
        %1755 = vmax.xlane.f32.xlu0 %v1754
        %v1756 = vpop.xlane.xlu0 %1755
        %v1757 = vsub.f32 %v1753, %v1756
        %v1758 = vmul.f32 %v1757, 1.442695
        %v1759 = vpow.pop %v1758
        %v1760 = vsel %vm584, %v1759, 0.0
        %1761 = vadd.xlane.f32.xlu0 %v1760
        %v1762 = vpop.xlane.xlu0 %1761
        %v1763 = vrcp.pop %v1762
        %v1764 = vmul.f32 %v1759, %v1763
        %v1766 = vsel %vm584, %v1764, 0
        %1768 = vmatpush.msra.mxu0 0.0
        %1769 = vmatpush.msra.mxu0 0.0
        %1770 = vmatpush.msra.mxu0 0.0
        %1771 = vmatpush.msra.mxu0 0.0
        %1772 = vmatpush.msra.mxu0 0.0
        %1773 = vmatpush.msra.mxu0 0.0
        %1774 = vmatpush.msra.mxu0 0.0
        %1775 = vmatpush.msra.mxu0 0.0
        %1776 = vmatpush.msra.mxu0 0.0
        %1777 = vmatpush.msra.mxu0 0.0
        %1778 = vmatpush.msra.mxu0 0.0
        %1779 = vmatpush.msra.mxu0 0.0
        %1780 = vmatpush.msra.mxu0 0.0
        %1781 = vmatpush.msra.mxu0 0.0
        %1782 = vmatpush.msra.mxu0 0.0
        %1783 = vmatpush.msra.mxu0 %v1724
        %1784 = vmatmul.f32.gmra.mxu0 %v1766
        %v1785 = vpop.f32.mrf.mxu0
        %v1786 = vadd.f32 0.0, %v1785
        %1787 = vdwg.mxu0
        %s1788 = scalar_lea.vmem %s8, 56
        %v1789 = vld [vmem:[%s1788] sm:$0xff]
        %v1791 = vsel %vm584, %v1786, 0
        %1793 = vmatpush.msra.mxu0 0.0
        %1794 = vmatpush.msra.mxu0 0.0
        %1795 = vmatpush.msra.mxu0 0.0
        %1796 = vmatpush.msra.mxu0 0.0
        %1797 = vmatpush.msra.mxu0 0.0
        %1798 = vmatpush.msra.mxu0 0.0
        %1799 = vmatpush.msra.mxu0 0.0
        %1800 = vmatpush.msra.mxu0 0.0
        %1801 = vmatpush.msra.mxu0 0.0
        %1802 = vmatpush.msra.mxu0 0.0
        %1803 = vmatpush.msra.mxu0 0.0
        %1804 = vmatpush.msra.mxu0 0.0
        %1805 = vmatpush.msra.mxu0 0.0
        %1806 = vmatpush.msra.mxu0 0.0
        %1807 = vmatpush.msra.mxu0 0.0
        %1808 = vmatpush.msra.mxu0 %v1789
        %1809 = vmatmul.f32.gmra.mxu0 %v1791
        %v1810 = vpop.f32.mrf.mxu0
        %v1811 = vadd.f32 0.0, %v1810
        %1812 = vdwg.mxu0
        %v1813 = vadd.f32 %v1650, %v1811
        %s1814 = scalar_lea.vmem %s9, 1
        %v1815 = vld [vmem:[%s1814] sm:$0x1]
        %v1817 = vperm.slane %v1815, 0
        %v1819 = vadd.f32 %v1813, %v1817
        %s1820 = scalar_lea.vmem %s5, 256
        %v1821 = vld [vmem:[%s1820] sm:$0xff]
        %v1822 = vld [vmem:[%s1820 + $0x8] sm:$0xff]
        %v1823 = vld [vmem:[%s1820 + $0x10] sm:$0xff]
        %v1824 = vld [vmem:[%s1820 + $0x18] sm:$0xff]
        %v1826 = vsel %vm471, %v1163, 0
        %1828 = vmatpush.msra.mxu0 0.0
        %1829 = vmatpush.msra.mxu0 0.0
        %1830 = vmatpush.msra.mxu0 0.0
        %1831 = vmatpush.msra.mxu0 0.0
        %1832 = vmatpush.msra.mxu0 0.0
        %1833 = vmatpush.msra.mxu0 0.0
        %1834 = vmatpush.msra.mxu0 0.0
        %1835 = vmatpush.msra.mxu0 0.0
        %1836 = vmatpush.msra.mxu0 0.0
        %1837 = vmatpush.msra.mxu0 0.0
        %1838 = vmatpush.msra.mxu0 0.0
        %1839 = vmatpush.msra.mxu0 0.0
        %1840 = vmatpush.msra.mxu0 %v1824
        %1841 = vmatpush.msra.mxu0 %v1823
        %1842 = vmatpush.msra.mxu0 %v1822
        %1843 = vmatpush.msra.mxu0 %v1821
        %1844 = vmatmul.f32.gmra.mxu0 %v1826
        %v1845 = vpop.f32.mrf.mxu0
        %v1846 = vadd.f32 0.0, %v1845
        %1847 = vdwg.mxu0
        %s1848 = scalar_lea.vmem %s6, 256
        %v1849 = vld [vmem:[%s1848] sm:$0xff]
        %v1850 = vld [vmem:[%s1848 + $0x8] sm:$0xff]
        %v1851 = vld [vmem:[%s1848 + $0x10] sm:$0xff]
        %v1852 = vld [vmem:[%s1848 + $0x18] sm:$0xff]
        %1853 = vmatpush.msra.mxu0 0.0
        %1854 = vmatpush.msra.mxu0 0.0
        %1855 = vmatpush.msra.mxu0 0.0
        %1856 = vmatpush.msra.mxu0 0.0
        %1857 = vmatpush.msra.mxu0 0.0
        %1858 = vmatpush.msra.mxu0 0.0
        %1859 = vmatpush.msra.mxu0 0.0
        %1860 = vmatpush.msra.mxu0 0.0
        %1861 = vmatpush.msra.mxu0 0.0
        %1862 = vmatpush.msra.mxu0 0.0
        %1863 = vmatpush.msra.mxu0 0.0
        %1864 = vmatpush.msra.mxu0 0.0
        %1865 = vmatpush.msra.mxu0 %v1852
        %1866 = vmatpush.msra.mxu0 %v1851
        %1867 = vmatpush.msra.mxu0 %v1850
        %1868 = vmatpush.msra.mxu0 %v1849
        %1869 = vmatmul.f32.gmra.mxu0 %v1826
        %v1870 = vpop.f32.mrf.mxu0
        %v1871 = vadd.f32 0.0, %v1870
        %1872 = vdwg.mxu0
        %s1873 = scalar_lea.vmem %s7, 256
        %v1874 = vld [vmem:[%s1873] sm:$0xff]
        %v1875 = vld [vmem:[%s1873 + $0x8] sm:$0xff]
        %v1876 = vld [vmem:[%s1873 + $0x10] sm:$0xff]
        %v1877 = vld [vmem:[%s1873 + $0x18] sm:$0xff]
        %1878 = vmatpush.msra.mxu0 0.0
        %1879 = vmatpush.msra.mxu0 0.0
        %1880 = vmatpush.msra.mxu0 0.0
        %1881 = vmatpush.msra.mxu0 0.0
        %1882 = vmatpush.msra.mxu0 0.0
        %1883 = vmatpush.msra.mxu0 0.0
        %1884 = vmatpush.msra.mxu0 0.0
        %1885 = vmatpush.msra.mxu0 0.0
        %1886 = vmatpush.msra.mxu0 0.0
        %1887 = vmatpush.msra.mxu0 0.0
        %1888 = vmatpush.msra.mxu0 0.0
        %1889 = vmatpush.msra.mxu0 0.0
        %1890 = vmatpush.msra.mxu0 %v1877
        %1891 = vmatpush.msra.mxu0 %v1876
        %1892 = vmatpush.msra.mxu0 %v1875
        %1893 = vmatpush.msra.mxu0 %v1874
        %1894 = vmatmul.f32.gmra.mxu0 %v1826
        %v1895 = vpop.f32.mrf.mxu0
        %v1896 = vadd.f32 0.0, %v1895
        %1897 = vdwg.mxu0
        %v1899 = vsel %vm584, %v1846, 0
        %v1902 = vsel %vm584, %v1871, 0
        %1904 = vmatpush.xpose.msra.mxu0 0.0
        %1905 = vmatpush.xpose.msra.mxu0 0.0
        %1906 = vmatpush.xpose.msra.mxu0 0.0
        %1907 = vmatpush.xpose.msra.mxu0 0.0
        %1908 = vmatpush.xpose.msra.mxu0 0.0
        %1909 = vmatpush.xpose.msra.mxu0 0.0
        %1910 = vmatpush.xpose.msra.mxu0 0.0
        %1911 = vmatpush.xpose.msra.mxu0 0.0
        %1912 = vmatpush.xpose.msra.mxu0 0.0
        %1913 = vmatpush.xpose.msra.mxu0 0.0
        %1914 = vmatpush.xpose.msra.mxu0 0.0
        %1915 = vmatpush.xpose.msra.mxu0 0.0
        %1916 = vmatpush.xpose.msra.mxu0 0.0
        %1917 = vmatpush.xpose.msra.mxu0 0.0
        %1918 = vmatpush.xpose.msra.mxu0 0.0
        %1919 = vmatpush.xpose.msra.mxu0 %v1902
        %1920 = vmatmul.f32.gmra.mxu0 %v1899
        %v1921 = vpop.f32.mrf.mxu0
        %v1922 = vadd.f32 0.0, %v1921
        %1923 = vdwg.mxu0
        %v1924 = vmul.f32 %v1922, 0.17677669
        %v1925 = vsel %vm468, %v1924, -1e+30
        %v1926 = vsel %vm584, %v1925, -inf
        %1927 = vmax.xlane.f32.xlu0 %v1926
        %v1928 = vpop.xlane.xlu0 %1927
        %v1929 = vsub.f32 %v1925, %v1928
        %v1930 = vmul.f32 %v1929, 1.442695
        %v1931 = vpow.pop %v1930
        %v1932 = vsel %vm584, %v1931, 0.0
        %1933 = vadd.xlane.f32.xlu0 %v1932
        %v1934 = vpop.xlane.xlu0 %1933
        %v1935 = vrcp.pop %v1934
        %v1936 = vmul.f32 %v1931, %v1935
        %v1938 = vsel %vm584, %v1936, 0
        %1940 = vmatpush.msra.mxu0 0.0
        %1941 = vmatpush.msra.mxu0 0.0
        %1942 = vmatpush.msra.mxu0 0.0
        %1943 = vmatpush.msra.mxu0 0.0
        %1944 = vmatpush.msra.mxu0 0.0
        %1945 = vmatpush.msra.mxu0 0.0
        %1946 = vmatpush.msra.mxu0 0.0
        %1947 = vmatpush.msra.mxu0 0.0
        %1948 = vmatpush.msra.mxu0 0.0
        %1949 = vmatpush.msra.mxu0 0.0
        %1950 = vmatpush.msra.mxu0 0.0
        %1951 = vmatpush.msra.mxu0 0.0
        %1952 = vmatpush.msra.mxu0 0.0
        %1953 = vmatpush.msra.mxu0 0.0
        %1954 = vmatpush.msra.mxu0 0.0
        %1955 = vmatpush.msra.mxu0 %v1896
        %1956 = vmatmul.f32.gmra.mxu0 %v1938
        %v1957 = vpop.f32.mrf.mxu0
        %v1958 = vadd.f32 0.0, %v1957
        %1959 = vdwg.mxu0
        %s1960 = scalar_lea.vmem %s8, 64
        %v1961 = vld [vmem:[%s1960] sm:$0xff]
        %s1962 = scalar_lea.vmem %s5, 288
        %v1963 = vld [vmem:[%s1962] sm:$0xff]
        %v1964 = vld [vmem:[%s1962 + $0x8] sm:$0xff]
        %v1965 = vld [vmem:[%s1962 + $0x10] sm:$0xff]
        %v1966 = vld [vmem:[%s1962 + $0x18] sm:$0xff]
        %1967 = vmatpush.msra.mxu0 0.0
        %1968 = vmatpush.msra.mxu0 0.0
        %1969 = vmatpush.msra.mxu0 0.0
        %1970 = vmatpush.msra.mxu0 0.0
        %1971 = vmatpush.msra.mxu0 0.0
        %1972 = vmatpush.msra.mxu0 0.0
        %1973 = vmatpush.msra.mxu0 0.0
        %1974 = vmatpush.msra.mxu0 0.0
        %1975 = vmatpush.msra.mxu0 0.0
        %1976 = vmatpush.msra.mxu0 0.0
        %1977 = vmatpush.msra.mxu0 0.0
        %1978 = vmatpush.msra.mxu0 0.0
        %1979 = vmatpush.msra.mxu0 %v1966
        %1980 = vmatpush.msra.mxu0 %v1965
        %1981 = vmatpush.msra.mxu0 %v1964
        %1982 = vmatpush.msra.mxu0 %v1963
        %1983 = vmatmul.f32.gmra.mxu0 %v1826
        %v1984 = vpop.f32.mrf.mxu0
        %v1985 = vadd.f32 0.0, %v1984
        %1986 = vdwg.mxu0
        %s1987 = scalar_lea.vmem %s6, 288
        %v1988 = vld [vmem:[%s1987] sm:$0xff]
        %v1989 = vld [vmem:[%s1987 + $0x8] sm:$0xff]
        %v1990 = vld [vmem:[%s1987 + $0x10] sm:$0xff]
        %v1991 = vld [vmem:[%s1987 + $0x18] sm:$0xff]
        %1992 = vmatpush.msra.mxu0 0.0
        %1993 = vmatpush.msra.mxu0 0.0
        %1994 = vmatpush.msra.mxu0 0.0
        %1995 = vmatpush.msra.mxu0 0.0
        %1996 = vmatpush.msra.mxu0 0.0
        %1997 = vmatpush.msra.mxu0 0.0
        %1998 = vmatpush.msra.mxu0 0.0
        %1999 = vmatpush.msra.mxu0 0.0
        %2000 = vmatpush.msra.mxu0 0.0
        %2001 = vmatpush.msra.mxu0 0.0
        %2002 = vmatpush.msra.mxu0 0.0
        %2003 = vmatpush.msra.mxu0 0.0
        %2004 = vmatpush.msra.mxu0 %v1991
        %2005 = vmatpush.msra.mxu0 %v1990
        %2006 = vmatpush.msra.mxu0 %v1989
        %2007 = vmatpush.msra.mxu0 %v1988
        %2008 = vmatmul.f32.gmra.mxu0 %v1826
        %v2009 = vpop.f32.mrf.mxu0
        %v2010 = vadd.f32 0.0, %v2009
        %2011 = vdwg.mxu0
        %s2012 = scalar_lea.vmem %s7, 288
        %v2013 = vld [vmem:[%s2012] sm:$0xff]
        %v2014 = vld [vmem:[%s2012 + $0x8] sm:$0xff]
        %v2015 = vld [vmem:[%s2012 + $0x10] sm:$0xff]
        %v2016 = vld [vmem:[%s2012 + $0x18] sm:$0xff]
        %2017 = vmatpush.msra.mxu0 0.0
        %2018 = vmatpush.msra.mxu0 0.0
        %2019 = vmatpush.msra.mxu0 0.0
        %2020 = vmatpush.msra.mxu0 0.0
        %2021 = vmatpush.msra.mxu0 0.0
        %2022 = vmatpush.msra.mxu0 0.0
        %2023 = vmatpush.msra.mxu0 0.0
        %2024 = vmatpush.msra.mxu0 0.0
        %2025 = vmatpush.msra.mxu0 0.0
        %2026 = vmatpush.msra.mxu0 0.0
        %2027 = vmatpush.msra.mxu0 0.0
        %2028 = vmatpush.msra.mxu0 0.0
        %2029 = vmatpush.msra.mxu0 %v2016
        %2030 = vmatpush.msra.mxu0 %v2015
        %2031 = vmatpush.msra.mxu0 %v2014
        %2032 = vmatpush.msra.mxu0 %v2013
        %2033 = vmatmul.f32.gmra.mxu0 %v1826
        %v2034 = vpop.f32.mrf.mxu0
        %v2035 = vadd.f32 0.0, %v2034
        %2036 = vdwg.mxu0
        %v2038 = vsel %vm584, %v1985, 0
        %v2041 = vsel %vm584, %v2010, 0
        %2043 = vmatpush.xpose.msra.mxu0 0.0
        %2044 = vmatpush.xpose.msra.mxu0 0.0
        %2045 = vmatpush.xpose.msra.mxu0 0.0
        %2046 = vmatpush.xpose.msra.mxu0 0.0
        %2047 = vmatpush.xpose.msra.mxu0 0.0
        %2048 = vmatpush.xpose.msra.mxu0 0.0
        %2049 = vmatpush.xpose.msra.mxu0 0.0
        %2050 = vmatpush.xpose.msra.mxu0 0.0
        %2051 = vmatpush.xpose.msra.mxu0 0.0
        %2052 = vmatpush.xpose.msra.mxu0 0.0
        %2053 = vmatpush.xpose.msra.mxu0 0.0
        %2054 = vmatpush.xpose.msra.mxu0 0.0
        %2055 = vmatpush.xpose.msra.mxu0 0.0
        %2056 = vmatpush.xpose.msra.mxu0 0.0
        %2057 = vmatpush.xpose.msra.mxu0 0.0
        %2058 = vmatpush.xpose.msra.mxu0 %v2041
        %2059 = vmatmul.f32.gmra.mxu0 %v2038
        %v2060 = vpop.f32.mrf.mxu0
        %v2061 = vadd.f32 0.0, %v2060
        %2062 = vdwg.mxu0
        %v2063 = vmul.f32 %v2061, 0.17677669
        %v2064 = vsel %vm468, %v2063, -1e+30
        %v2065 = vsel %vm584, %v2064, -inf
        %2066 = vmax.xlane.f32.xlu0 %v2065
        %v2067 = vpop.xlane.xlu0 %2066
        %v2068 = vsub.f32 %v2064, %v2067
        %v2069 = vmul.f32 %v2068, 1.442695
        %v2070 = vpow.pop %v2069
        %v2071 = vsel %vm584, %v2070, 0.0
        %2072 = vadd.xlane.f32.xlu0 %v2071
        %v2073 = vpop.xlane.xlu0 %2072
        %v2074 = vrcp.pop %v2073
        %v2075 = vmul.f32 %v2070, %v2074
        %v2077 = vsel %vm584, %v2075, 0
        %2079 = vmatpush.msra.mxu0 0.0
        %2080 = vmatpush.msra.mxu0 0.0
        %2081 = vmatpush.msra.mxu0 0.0
        %2082 = vmatpush.msra.mxu0 0.0
        %2083 = vmatpush.msra.mxu0 0.0
        %2084 = vmatpush.msra.mxu0 0.0
        %2085 = vmatpush.msra.mxu0 0.0
        %2086 = vmatpush.msra.mxu0 0.0
        %2087 = vmatpush.msra.mxu0 0.0
        %2088 = vmatpush.msra.mxu0 0.0
        %2089 = vmatpush.msra.mxu0 0.0
        %2090 = vmatpush.msra.mxu0 0.0
        %2091 = vmatpush.msra.mxu0 0.0
        %2092 = vmatpush.msra.mxu0 0.0
        %2093 = vmatpush.msra.mxu0 0.0
        %2094 = vmatpush.msra.mxu0 %v2035
        %2095 = vmatmul.f32.gmra.mxu0 %v2077
        %v2096 = vpop.f32.mrf.mxu0
        %v2097 = vadd.f32 0.0, %v2096
        %2098 = vdwg.mxu0
        %s2099 = scalar_lea.vmem %s8, 72
        %v2100 = vld [vmem:[%s2099] sm:$0xff]
        %v2102 = vsel %vm584, %v2097, 0
        %2104 = vmatpush.msra.mxu0 0.0
        %2105 = vmatpush.msra.mxu0 0.0
        %2106 = vmatpush.msra.mxu0 0.0
        %2107 = vmatpush.msra.mxu0 0.0
        %2108 = vmatpush.msra.mxu0 0.0
        %2109 = vmatpush.msra.mxu0 0.0
        %2110 = vmatpush.msra.mxu0 0.0
        %2111 = vmatpush.msra.mxu0 0.0
        %2112 = vmatpush.msra.mxu0 0.0
        %2113 = vmatpush.msra.mxu0 0.0
        %2114 = vmatpush.msra.mxu0 0.0
        %2115 = vmatpush.msra.mxu0 0.0
        %2116 = vmatpush.msra.mxu0 0.0
        %2117 = vmatpush.msra.mxu0 0.0
        %2118 = vmatpush.msra.mxu0 0.0
        %2119 = vmatpush.msra.mxu0 %v2100
        %2120 = vmatmul.f32.gmra.mxu0 %v2102
        %v2121 = vpop.f32.mrf.mxu0
        %v2122 = vadd.f32 0.0, %v2121
        %2123 = vdwg.mxu0
        %v2125 = vsel %vm584, %v1958, 0
        %2127 = vmatpush.msra.mxu0 0.0
        %2128 = vmatpush.msra.mxu0 0.0
        %2129 = vmatpush.msra.mxu0 0.0
        %2130 = vmatpush.msra.mxu0 0.0
        %2131 = vmatpush.msra.mxu0 0.0
        %2132 = vmatpush.msra.mxu0 0.0
        %2133 = vmatpush.msra.mxu0 0.0
        %2134 = vmatpush.msra.mxu0 0.0
        %2135 = vmatpush.msra.mxu0 0.0
        %2136 = vmatpush.msra.mxu0 0.0
        %2137 = vmatpush.msra.mxu0 0.0
        %2138 = vmatpush.msra.mxu0 0.0
        %2139 = vmatpush.msra.mxu0 0.0
        %2140 = vmatpush.msra.mxu0 0.0
        %2141 = vmatpush.msra.mxu0 0.0
        %2142 = vmatpush.msra.mxu0 %v1961
        %2143 = vmatmul.f32.gmra.mxu0 %v2125
        %v2144 = vpop.f32.mrf.mxu0
        %v2145 = vadd.f32 %v2122, %v2144
        %2146 = vdwg.mxu0
        %s2147 = scalar_lea.vmem %s5, 320
        %v2148 = vld [vmem:[%s2147] sm:$0xff]
        %v2149 = vld [vmem:[%s2147 + $0x8] sm:$0xff]
        %v2150 = vld [vmem:[%s2147 + $0x10] sm:$0xff]
        %v2151 = vld [vmem:[%s2147 + $0x18] sm:$0xff]
        %2152 = vmatpush.msra.mxu0 0.0
        %2153 = vmatpush.msra.mxu0 0.0
        %2154 = vmatpush.msra.mxu0 0.0
        %2155 = vmatpush.msra.mxu0 0.0
        %2156 = vmatpush.msra.mxu0 0.0
        %2157 = vmatpush.msra.mxu0 0.0
        %2158 = vmatpush.msra.mxu0 0.0
        %2159 = vmatpush.msra.mxu0 0.0
        %2160 = vmatpush.msra.mxu0 0.0
        %2161 = vmatpush.msra.mxu0 0.0
        %2162 = vmatpush.msra.mxu0 0.0
        %2163 = vmatpush.msra.mxu0 0.0
        %2164 = vmatpush.msra.mxu0 %v2151
        %2165 = vmatpush.msra.mxu0 %v2150
        %2166 = vmatpush.msra.mxu0 %v2149
        %2167 = vmatpush.msra.mxu0 %v2148
        %2168 = vmatmul.f32.gmra.mxu0 %v1826
        %v2169 = vpop.f32.mrf.mxu0
        %v2170 = vadd.f32 0.0, %v2169
        %2171 = vdwg.mxu0
        %s2172 = scalar_lea.vmem %s6, 320
        %v2173 = vld [vmem:[%s2172] sm:$0xff]
        %v2174 = vld [vmem:[%s2172 + $0x8] sm:$0xff]
        %v2175 = vld [vmem:[%s2172 + $0x10] sm:$0xff]
        %v2176 = vld [vmem:[%s2172 + $0x18] sm:$0xff]
        %2177 = vmatpush.msra.mxu0 0.0
        %2178 = vmatpush.msra.mxu0 0.0
        %2179 = vmatpush.msra.mxu0 0.0
        %2180 = vmatpush.msra.mxu0 0.0
        %2181 = vmatpush.msra.mxu0 0.0
        %2182 = vmatpush.msra.mxu0 0.0
        %2183 = vmatpush.msra.mxu0 0.0
        %2184 = vmatpush.msra.mxu0 0.0
        %2185 = vmatpush.msra.mxu0 0.0
        %2186 = vmatpush.msra.mxu0 0.0
        %2187 = vmatpush.msra.mxu0 0.0
        %2188 = vmatpush.msra.mxu0 0.0
        %2189 = vmatpush.msra.mxu0 %v2176
        %2190 = vmatpush.msra.mxu0 %v2175
        %2191 = vmatpush.msra.mxu0 %v2174
        %2192 = vmatpush.msra.mxu0 %v2173
        %2193 = vmatmul.f32.gmra.mxu0 %v1826
        %v2194 = vpop.f32.mrf.mxu0
        %v2195 = vadd.f32 0.0, %v2194
        %2196 = vdwg.mxu0
        %s2197 = scalar_lea.vmem %s7, 320
        %v2198 = vld [vmem:[%s2197] sm:$0xff]
        %v2199 = vld [vmem:[%s2197 + $0x8] sm:$0xff]
        %v2200 = vld [vmem:[%s2197 + $0x10] sm:$0xff]
        %v2201 = vld [vmem:[%s2197 + $0x18] sm:$0xff]
        %2202 = vmatpush.msra.mxu0 0.0
        %2203 = vmatpush.msra.mxu0 0.0
        %2204 = vmatpush.msra.mxu0 0.0
        %2205 = vmatpush.msra.mxu0 0.0
        %2206 = vmatpush.msra.mxu0 0.0
        %2207 = vmatpush.msra.mxu0 0.0
        %2208 = vmatpush.msra.mxu0 0.0
        %2209 = vmatpush.msra.mxu0 0.0
        %2210 = vmatpush.msra.mxu0 0.0
        %2211 = vmatpush.msra.mxu0 0.0
        %2212 = vmatpush.msra.mxu0 0.0
        %2213 = vmatpush.msra.mxu0 0.0
        %2214 = vmatpush.msra.mxu0 %v2201
        %2215 = vmatpush.msra.mxu0 %v2200
        %2216 = vmatpush.msra.mxu0 %v2199
        %2217 = vmatpush.msra.mxu0 %v2198
        %2218 = vmatmul.f32.gmra.mxu0 %v1826
        %v2219 = vpop.f32.mrf.mxu0
        %v2220 = vadd.f32 0.0, %v2219
        %2221 = vdwg.mxu0
        %v2223 = vsel %vm584, %v2170, 0
        %v2226 = vsel %vm584, %v2195, 0
        %2228 = vmatpush.xpose.msra.mxu0 0.0
        %2229 = vmatpush.xpose.msra.mxu0 0.0
        %2230 = vmatpush.xpose.msra.mxu0 0.0
        %2231 = vmatpush.xpose.msra.mxu0 0.0
        %2232 = vmatpush.xpose.msra.mxu0 0.0
        %2233 = vmatpush.xpose.msra.mxu0 0.0
        %2234 = vmatpush.xpose.msra.mxu0 0.0
        %2235 = vmatpush.xpose.msra.mxu0 0.0
        %2236 = vmatpush.xpose.msra.mxu0 0.0
        %2237 = vmatpush.xpose.msra.mxu0 0.0
        %2238 = vmatpush.xpose.msra.mxu0 0.0
        %2239 = vmatpush.xpose.msra.mxu0 0.0
        %2240 = vmatpush.xpose.msra.mxu0 0.0
        %2241 = vmatpush.xpose.msra.mxu0 0.0
        %2242 = vmatpush.xpose.msra.mxu0 0.0
        %2243 = vmatpush.xpose.msra.mxu0 %v2226
        %2244 = vmatmul.f32.gmra.mxu0 %v2223
        %v2245 = vpop.f32.mrf.mxu0
        %v2246 = vadd.f32 0.0, %v2245
        %2247 = vdwg.mxu0
        %v2248 = vmul.f32 %v2246, 0.17677669
        %v2249 = vsel %vm468, %v2248, -1e+30
        %v2250 = vsel %vm584, %v2249, -inf
        %2251 = vmax.xlane.f32.xlu0 %v2250
        %v2252 = vpop.xlane.xlu0 %2251
        %v2253 = vsub.f32 %v2249, %v2252
        %v2254 = vmul.f32 %v2253, 1.442695
        %v2255 = vpow.pop %v2254
        %v2256 = vsel %vm584, %v2255, 0.0
        %2257 = vadd.xlane.f32.xlu0 %v2256
        %v2258 = vpop.xlane.xlu0 %2257
        %v2259 = vrcp.pop %v2258
        %v2260 = vmul.f32 %v2255, %v2259
        %v2262 = vsel %vm584, %v2260, 0
        %2264 = vmatpush.msra.mxu0 0.0
        %2265 = vmatpush.msra.mxu0 0.0
        %2266 = vmatpush.msra.mxu0 0.0
        %2267 = vmatpush.msra.mxu0 0.0
        %2268 = vmatpush.msra.mxu0 0.0
        %2269 = vmatpush.msra.mxu0 0.0
        %2270 = vmatpush.msra.mxu0 0.0
        %2271 = vmatpush.msra.mxu0 0.0
        %2272 = vmatpush.msra.mxu0 0.0
        %2273 = vmatpush.msra.mxu0 0.0
        %2274 = vmatpush.msra.mxu0 0.0
        %2275 = vmatpush.msra.mxu0 0.0
        %2276 = vmatpush.msra.mxu0 0.0
        %2277 = vmatpush.msra.mxu0 0.0
        %2278 = vmatpush.msra.mxu0 0.0
        %2279 = vmatpush.msra.mxu0 %v2220
        %2280 = vmatmul.f32.gmra.mxu0 %v2262
        %v2281 = vpop.f32.mrf.mxu0
        %v2282 = vadd.f32 0.0, %v2281
        %2283 = vdwg.mxu0
        %s2284 = scalar_lea.vmem %s8, 80
        %v2285 = vld [vmem:[%s2284] sm:$0xff]
        %v2287 = vsel %vm584, %v2282, 0
        %2289 = vmatpush.msra.mxu0 0.0
        %2290 = vmatpush.msra.mxu0 0.0
        %2291 = vmatpush.msra.mxu0 0.0
        %2292 = vmatpush.msra.mxu0 0.0
        %2293 = vmatpush.msra.mxu0 0.0
        %2294 = vmatpush.msra.mxu0 0.0
        %2295 = vmatpush.msra.mxu0 0.0
        %2296 = vmatpush.msra.mxu0 0.0
        %2297 = vmatpush.msra.mxu0 0.0
        %2298 = vmatpush.msra.mxu0 0.0
        %2299 = vmatpush.msra.mxu0 0.0
        %2300 = vmatpush.msra.mxu0 0.0
        %2301 = vmatpush.msra.mxu0 0.0
        %2302 = vmatpush.msra.mxu0 0.0
        %2303 = vmatpush.msra.mxu0 0.0
        %2304 = vmatpush.msra.mxu0 %v2285
        %2305 = vmatmul.f32.gmra.mxu0 %v2287
        %v2306 = vpop.f32.mrf.mxu0
        %v2307 = vadd.f32 0.0, %v2306
        %2308 = vdwg.mxu0
        %v2309 = vadd.f32 %v2145, %v2307
        %s2310 = scalar_lea.vmem %s5, 352
        %v2311 = vld [vmem:[%s2310] sm:$0xff]
        %v2312 = vld [vmem:[%s2310 + $0x8] sm:$0xff]
        %v2313 = vld [vmem:[%s2310 + $0x10] sm:$0xff]
        %v2314 = vld [vmem:[%s2310 + $0x18] sm:$0xff]
        %2315 = vmatpush.msra.mxu0 0.0
        %2316 = vmatpush.msra.mxu0 0.0
        %2317 = vmatpush.msra.mxu0 0.0
        %2318 = vmatpush.msra.mxu0 0.0
        %2319 = vmatpush.msra.mxu0 0.0
        %2320 = vmatpush.msra.mxu0 0.0
        %2321 = vmatpush.msra.mxu0 0.0
        %2322 = vmatpush.msra.mxu0 0.0
        %2323 = vmatpush.msra.mxu0 0.0
        %2324 = vmatpush.msra.mxu0 0.0
        %2325 = vmatpush.msra.mxu0 0.0
        %2326 = vmatpush.msra.mxu0 0.0
        %2327 = vmatpush.msra.mxu0 %v2314
        %2328 = vmatpush.msra.mxu0 %v2313
        %2329 = vmatpush.msra.mxu0 %v2312
        %2330 = vmatpush.msra.mxu0 %v2311
        %2331 = vmatmul.f32.gmra.mxu0 %v1826
        %v2332 = vpop.f32.mrf.mxu0
        %v2333 = vadd.f32 0.0, %v2332
        %2334 = vdwg.mxu0
        %s2335 = scalar_lea.vmem %s6, 352
        %v2336 = vld [vmem:[%s2335] sm:$0xff]
        %v2337 = vld [vmem:[%s2335 + $0x8] sm:$0xff]
        %v2338 = vld [vmem:[%s2335 + $0x10] sm:$0xff]
        %v2339 = vld [vmem:[%s2335 + $0x18] sm:$0xff]
        %2340 = vmatpush.msra.mxu0 0.0
        %2341 = vmatpush.msra.mxu0 0.0
        %2342 = vmatpush.msra.mxu0 0.0
        %2343 = vmatpush.msra.mxu0 0.0
        %2344 = vmatpush.msra.mxu0 0.0
        %2345 = vmatpush.msra.mxu0 0.0
        %2346 = vmatpush.msra.mxu0 0.0
        %2347 = vmatpush.msra.mxu0 0.0
        %2348 = vmatpush.msra.mxu0 0.0
        %2349 = vmatpush.msra.mxu0 0.0
        %2350 = vmatpush.msra.mxu0 0.0
        %2351 = vmatpush.msra.mxu0 0.0
        %2352 = vmatpush.msra.mxu0 %v2339
        %2353 = vmatpush.msra.mxu0 %v2338
        %2354 = vmatpush.msra.mxu0 %v2337
        %2355 = vmatpush.msra.mxu0 %v2336
        %2356 = vmatmul.f32.gmra.mxu0 %v1826
        %v2357 = vpop.f32.mrf.mxu0
        %v2358 = vadd.f32 0.0, %v2357
        %2359 = vdwg.mxu0
        %s2360 = scalar_lea.vmem %s7, 352
        %v2361 = vld [vmem:[%s2360] sm:$0xff]
        %v2362 = vld [vmem:[%s2360 + $0x8] sm:$0xff]
        %v2363 = vld [vmem:[%s2360 + $0x10] sm:$0xff]
        %v2364 = vld [vmem:[%s2360 + $0x18] sm:$0xff]
        %2365 = vmatpush.msra.mxu0 0.0
        %2366 = vmatpush.msra.mxu0 0.0
        %2367 = vmatpush.msra.mxu0 0.0
        %2368 = vmatpush.msra.mxu0 0.0
        %2369 = vmatpush.msra.mxu0 0.0
        %2370 = vmatpush.msra.mxu0 0.0
        %2371 = vmatpush.msra.mxu0 0.0
        %2372 = vmatpush.msra.mxu0 0.0
        %2373 = vmatpush.msra.mxu0 0.0
        %2374 = vmatpush.msra.mxu0 0.0
        %2375 = vmatpush.msra.mxu0 0.0
        %2376 = vmatpush.msra.mxu0 0.0
        %2377 = vmatpush.msra.mxu0 %v2364
        %2378 = vmatpush.msra.mxu0 %v2363
        %2379 = vmatpush.msra.mxu0 %v2362
        %2380 = vmatpush.msra.mxu0 %v2361
        %2381 = vmatmul.f32.gmra.mxu0 %v1826
        %v2382 = vpop.f32.mrf.mxu0
        %v2383 = vadd.f32 0.0, %v2382
        %2384 = vdwg.mxu0
        %v2386 = vsel %vm584, %v2333, 0
        %v2389 = vsel %vm584, %v2358, 0
        %2391 = vmatpush.xpose.msra.mxu0 0.0
        %2392 = vmatpush.xpose.msra.mxu0 0.0
        %2393 = vmatpush.xpose.msra.mxu0 0.0
        %2394 = vmatpush.xpose.msra.mxu0 0.0
        %2395 = vmatpush.xpose.msra.mxu0 0.0
        %2396 = vmatpush.xpose.msra.mxu0 0.0
        %2397 = vmatpush.xpose.msra.mxu0 0.0
        %2398 = vmatpush.xpose.msra.mxu0 0.0
        %2399 = vmatpush.xpose.msra.mxu0 0.0
        %2400 = vmatpush.xpose.msra.mxu0 0.0
        %2401 = vmatpush.xpose.msra.mxu0 0.0
        %2402 = vmatpush.xpose.msra.mxu0 0.0
        %2403 = vmatpush.xpose.msra.mxu0 0.0
        %2404 = vmatpush.xpose.msra.mxu0 0.0
        %2405 = vmatpush.xpose.msra.mxu0 0.0
        %2406 = vmatpush.xpose.msra.mxu0 %v2389
        %2407 = vmatmul.f32.gmra.mxu0 %v2386
        %v2408 = vpop.f32.mrf.mxu0
        %v2409 = vadd.f32 0.0, %v2408
        %2410 = vdwg.mxu0
        %v2411 = vmul.f32 %v2409, 0.17677669
        %v2412 = vsel %vm468, %v2411, -1e+30
        %v2413 = vsel %vm584, %v2412, -inf
        %2414 = vmax.xlane.f32.xlu0 %v2413
        %v2415 = vpop.xlane.xlu0 %2414
        %v2416 = vsub.f32 %v2412, %v2415
        %v2417 = vmul.f32 %v2416, 1.442695
        %v2418 = vpow.pop %v2417
        %v2419 = vsel %vm584, %v2418, 0.0
        %2420 = vadd.xlane.f32.xlu0 %v2419
        %v2421 = vpop.xlane.xlu0 %2420
        %v2422 = vrcp.pop %v2421
        %v2423 = vmul.f32 %v2418, %v2422
        %v2425 = vsel %vm584, %v2423, 0
        %2427 = vmatpush.msra.mxu0 0.0
        %2428 = vmatpush.msra.mxu0 0.0
        %2429 = vmatpush.msra.mxu0 0.0
        %2430 = vmatpush.msra.mxu0 0.0
        %2431 = vmatpush.msra.mxu0 0.0
        %2432 = vmatpush.msra.mxu0 0.0
        %2433 = vmatpush.msra.mxu0 0.0
        %2434 = vmatpush.msra.mxu0 0.0
        %2435 = vmatpush.msra.mxu0 0.0
        %2436 = vmatpush.msra.mxu0 0.0
        %2437 = vmatpush.msra.mxu0 0.0
        %2438 = vmatpush.msra.mxu0 0.0
        %2439 = vmatpush.msra.mxu0 0.0
        %2440 = vmatpush.msra.mxu0 0.0
        %2441 = vmatpush.msra.mxu0 0.0
        %2442 = vmatpush.msra.mxu0 %v2383
        %2443 = vmatmul.f32.gmra.mxu0 %v2425
        %v2444 = vpop.f32.mrf.mxu0
        %v2445 = vadd.f32 0.0, %v2444
        %2446 = vdwg.mxu0
        %s2447 = scalar_lea.vmem %s8, 88
        %v2448 = vld [vmem:[%s2447] sm:$0xff]
        %v2450 = vsel %vm584, %v2445, 0
        %2452 = vmatpush.msra.mxu0 0.0
        %2453 = vmatpush.msra.mxu0 0.0
        %2454 = vmatpush.msra.mxu0 0.0
        %2455 = vmatpush.msra.mxu0 0.0
        %2456 = vmatpush.msra.mxu0 0.0
        %2457 = vmatpush.msra.mxu0 0.0
        %2458 = vmatpush.msra.mxu0 0.0
        %2459 = vmatpush.msra.mxu0 0.0
        %2460 = vmatpush.msra.mxu0 0.0
        %2461 = vmatpush.msra.mxu0 0.0
        %2462 = vmatpush.msra.mxu0 0.0
        %2463 = vmatpush.msra.mxu0 0.0
        %2464 = vmatpush.msra.mxu0 0.0
        %2465 = vmatpush.msra.mxu0 0.0
        %2466 = vmatpush.msra.mxu0 0.0
        %2467 = vmatpush.msra.mxu0 %v2448
        %2468 = vmatmul.f32.gmra.mxu0 %v2450
        %v2469 = vpop.f32.mrf.mxu0
        %v2470 = vadd.f32 0.0, %v2469
        %2471 = vdwg.mxu0
        %v2472 = vadd.f32 %v2309, %v2470
        %s2473 = scalar_lea.vmem %s9, 2
        %v2474 = vld [vmem:[%s2473] sm:$0x1]
        %v2476 = vperm.slane %v2474, 0
        %v2478 = vadd.f32 %v2472, %v2476
        %v2479 = vadd.f32 %v1819, %v2478
        %v2480 = vmul.f32 %v2479, 0.5
        %s2481 = scalar_lea.vmem %s5, 384
        %v2482 = vld [vmem:[%s2481] sm:$0xff]
        %v2483 = vld [vmem:[%s2481 + $0x8] sm:$0xff]
        %v2484 = vld [vmem:[%s2481 + $0x10] sm:$0xff]
        %v2485 = vld [vmem:[%s2481 + $0x18] sm:$0xff]
        %v2487 = vsel %vm471, %v2480, 0
        %2489 = vmatpush.msra.mxu0 0.0
        %2490 = vmatpush.msra.mxu0 0.0
        %2491 = vmatpush.msra.mxu0 0.0
        %2492 = vmatpush.msra.mxu0 0.0
        %2493 = vmatpush.msra.mxu0 0.0
        %2494 = vmatpush.msra.mxu0 0.0
        %2495 = vmatpush.msra.mxu0 0.0
        %2496 = vmatpush.msra.mxu0 0.0
        %2497 = vmatpush.msra.mxu0 0.0
        %2498 = vmatpush.msra.mxu0 0.0
        %2499 = vmatpush.msra.mxu0 0.0
        %2500 = vmatpush.msra.mxu0 0.0
        %2501 = vmatpush.msra.mxu0 %v2485
        %2502 = vmatpush.msra.mxu0 %v2484
        %2503 = vmatpush.msra.mxu0 %v2483
        %2504 = vmatpush.msra.mxu0 %v2482
        %2505 = vmatmul.f32.gmra.mxu0 %v2487
        %v2506 = vpop.f32.mrf.mxu0
        %v2507 = vadd.f32 0.0, %v2506
        %2508 = vdwg.mxu0
        %s2509 = scalar_lea.vmem %s6, 384
        %v2510 = vld [vmem:[%s2509] sm:$0xff]
        %v2511 = vld [vmem:[%s2509 + $0x8] sm:$0xff]
        %v2512 = vld [vmem:[%s2509 + $0x10] sm:$0xff]
        %v2513 = vld [vmem:[%s2509 + $0x18] sm:$0xff]
        %2514 = vmatpush.msra.mxu0 0.0
        %2515 = vmatpush.msra.mxu0 0.0
        %2516 = vmatpush.msra.mxu0 0.0
        %2517 = vmatpush.msra.mxu0 0.0
        %2518 = vmatpush.msra.mxu0 0.0
        %2519 = vmatpush.msra.mxu0 0.0
        %2520 = vmatpush.msra.mxu0 0.0
        %2521 = vmatpush.msra.mxu0 0.0
        %2522 = vmatpush.msra.mxu0 0.0
        %2523 = vmatpush.msra.mxu0 0.0
        %2524 = vmatpush.msra.mxu0 0.0
        %2525 = vmatpush.msra.mxu0 0.0
        %2526 = vmatpush.msra.mxu0 %v2513
        %2527 = vmatpush.msra.mxu0 %v2512
        %2528 = vmatpush.msra.mxu0 %v2511
        %2529 = vmatpush.msra.mxu0 %v2510
        %2530 = vmatmul.f32.gmra.mxu0 %v2487
        %v2531 = vpop.f32.mrf.mxu0
        %v2532 = vadd.f32 0.0, %v2531
        %2533 = vdwg.mxu0
        %s2534 = scalar_lea.vmem %s7, 384
        %v2535 = vld [vmem:[%s2534] sm:$0xff]
        %v2536 = vld [vmem:[%s2534 + $0x8] sm:$0xff]
        %v2537 = vld [vmem:[%s2534 + $0x10] sm:$0xff]
        %v2538 = vld [vmem:[%s2534 + $0x18] sm:$0xff]
        %2539 = vmatpush.msra.mxu0 0.0
        %2540 = vmatpush.msra.mxu0 0.0
        %2541 = vmatpush.msra.mxu0 0.0
        %2542 = vmatpush.msra.mxu0 0.0
        %2543 = vmatpush.msra.mxu0 0.0
        %2544 = vmatpush.msra.mxu0 0.0
        %2545 = vmatpush.msra.mxu0 0.0
        %2546 = vmatpush.msra.mxu0 0.0
        %2547 = vmatpush.msra.mxu0 0.0
        %2548 = vmatpush.msra.mxu0 0.0
        %2549 = vmatpush.msra.mxu0 0.0
        %2550 = vmatpush.msra.mxu0 0.0
        %2551 = vmatpush.msra.mxu0 %v2538
        %2552 = vmatpush.msra.mxu0 %v2537
        %2553 = vmatpush.msra.mxu0 %v2536
        %2554 = vmatpush.msra.mxu0 %v2535
        %2555 = vmatmul.f32.gmra.mxu0 %v2487
        %v2556 = vpop.f32.mrf.mxu0
        %v2557 = vadd.f32 0.0, %v2556
        %2558 = vdwg.mxu0
        %v2560 = vsel %vm584, %v2507, 0
        %v2563 = vsel %vm584, %v2532, 0
        %2565 = vmatpush.xpose.msra.mxu0 0.0
        %2566 = vmatpush.xpose.msra.mxu0 0.0
        %2567 = vmatpush.xpose.msra.mxu0 0.0
        %2568 = vmatpush.xpose.msra.mxu0 0.0
        %2569 = vmatpush.xpose.msra.mxu0 0.0
        %2570 = vmatpush.xpose.msra.mxu0 0.0
        %2571 = vmatpush.xpose.msra.mxu0 0.0
        %2572 = vmatpush.xpose.msra.mxu0 0.0
        %2573 = vmatpush.xpose.msra.mxu0 0.0
        %2574 = vmatpush.xpose.msra.mxu0 0.0
        %2575 = vmatpush.xpose.msra.mxu0 0.0
        %2576 = vmatpush.xpose.msra.mxu0 0.0
        %2577 = vmatpush.xpose.msra.mxu0 0.0
        %2578 = vmatpush.xpose.msra.mxu0 0.0
        %2579 = vmatpush.xpose.msra.mxu0 0.0
        %2580 = vmatpush.xpose.msra.mxu0 %v2563
        %2581 = vmatmul.f32.gmra.mxu0 %v2560
        %v2582 = vpop.f32.mrf.mxu0
        %v2583 = vadd.f32 0.0, %v2582
        %2584 = vdwg.mxu0
        %v2585 = vmul.f32 %v2583, 0.17677669
        %v2586 = vsel %vm468, %v2585, -1e+30
        %v2587 = vsel %vm584, %v2586, -inf
        %2588 = vmax.xlane.f32.xlu0 %v2587
        %v2589 = vpop.xlane.xlu0 %2588
        %v2590 = vsub.f32 %v2586, %v2589
        %v2591 = vmul.f32 %v2590, 1.442695
        %v2592 = vpow.pop %v2591
        %v2593 = vsel %vm584, %v2592, 0.0
        %2594 = vadd.xlane.f32.xlu0 %v2593
        %v2595 = vpop.xlane.xlu0 %2594
        %v2596 = vrcp.pop %v2595
        %v2597 = vmul.f32 %v2592, %v2596
        %v2599 = vsel %vm584, %v2597, 0
        %2601 = vmatpush.msra.mxu0 0.0
        %2602 = vmatpush.msra.mxu0 0.0
        %2603 = vmatpush.msra.mxu0 0.0
        %2604 = vmatpush.msra.mxu0 0.0
        %2605 = vmatpush.msra.mxu0 0.0
        %2606 = vmatpush.msra.mxu0 0.0
        %2607 = vmatpush.msra.mxu0 0.0
        %2608 = vmatpush.msra.mxu0 0.0
        %2609 = vmatpush.msra.mxu0 0.0
        %2610 = vmatpush.msra.mxu0 0.0
        %2611 = vmatpush.msra.mxu0 0.0
        %2612 = vmatpush.msra.mxu0 0.0
        %2613 = vmatpush.msra.mxu0 0.0
        %2614 = vmatpush.msra.mxu0 0.0
        %2615 = vmatpush.msra.mxu0 0.0
        %2616 = vmatpush.msra.mxu0 %v2557
        %2617 = vmatmul.f32.gmra.mxu0 %v2599
        %v2618 = vpop.f32.mrf.mxu0
        %v2619 = vadd.f32 0.0, %v2618
        %2620 = vdwg.mxu0
        %s2621 = scalar_lea.vmem %s8, 96
        %v2622 = vld [vmem:[%s2621] sm:$0xff]
        %s2623 = scalar_lea.vmem %s5, 416
        %v2624 = vld [vmem:[%s2623] sm:$0xff]
        %v2625 = vld [vmem:[%s2623 + $0x8] sm:$0xff]
        %v2626 = vld [vmem:[%s2623 + $0x10] sm:$0xff]
        %v2627 = vld [vmem:[%s2623 + $0x18] sm:$0xff]
        %2628 = vmatpush.msra.mxu0 0.0
        %2629 = vmatpush.msra.mxu0 0.0
        %2630 = vmatpush.msra.mxu0 0.0
        %2631 = vmatpush.msra.mxu0 0.0
        %2632 = vmatpush.msra.mxu0 0.0
        %2633 = vmatpush.msra.mxu0 0.0
        %2634 = vmatpush.msra.mxu0 0.0
        %2635 = vmatpush.msra.mxu0 0.0
        %2636 = vmatpush.msra.mxu0 0.0
        %2637 = vmatpush.msra.mxu0 0.0
        %2638 = vmatpush.msra.mxu0 0.0
        %2639 = vmatpush.msra.mxu0 0.0
        %2640 = vmatpush.msra.mxu0 %v2627
        %2641 = vmatpush.msra.mxu0 %v2626
        %2642 = vmatpush.msra.mxu0 %v2625
        %2643 = vmatpush.msra.mxu0 %v2624
        %2644 = vmatmul.f32.gmra.mxu0 %v2487
        %v2645 = vpop.f32.mrf.mxu0
        %v2646 = vadd.f32 0.0, %v2645
        %2647 = vdwg.mxu0
        %s2648 = scalar_lea.vmem %s6, 416
        %v2649 = vld [vmem:[%s2648] sm:$0xff]
        %v2650 = vld [vmem:[%s2648 + $0x8] sm:$0xff]
        %v2651 = vld [vmem:[%s2648 + $0x10] sm:$0xff]
        %v2652 = vld [vmem:[%s2648 + $0x18] sm:$0xff]
        %2653 = vmatpush.msra.mxu0 0.0
        %2654 = vmatpush.msra.mxu0 0.0
        %2655 = vmatpush.msra.mxu0 0.0
        %2656 = vmatpush.msra.mxu0 0.0
        %2657 = vmatpush.msra.mxu0 0.0
        %2658 = vmatpush.msra.mxu0 0.0
        %2659 = vmatpush.msra.mxu0 0.0
        %2660 = vmatpush.msra.mxu0 0.0
        %2661 = vmatpush.msra.mxu0 0.0
        %2662 = vmatpush.msra.mxu0 0.0
        %2663 = vmatpush.msra.mxu0 0.0
        %2664 = vmatpush.msra.mxu0 0.0
        %2665 = vmatpush.msra.mxu0 %v2652
        %2666 = vmatpush.msra.mxu0 %v2651
        %2667 = vmatpush.msra.mxu0 %v2650
        %2668 = vmatpush.msra.mxu0 %v2649
        %2669 = vmatmul.f32.gmra.mxu0 %v2487
        %v2670 = vpop.f32.mrf.mxu0
        %v2671 = vadd.f32 0.0, %v2670
        %2672 = vdwg.mxu0
        %s2673 = scalar_lea.vmem %s7, 416
        %v2674 = vld [vmem:[%s2673] sm:$0xff]
        %v2675 = vld [vmem:[%s2673 + $0x8] sm:$0xff]
        %v2676 = vld [vmem:[%s2673 + $0x10] sm:$0xff]
        %v2677 = vld [vmem:[%s2673 + $0x18] sm:$0xff]
        %2678 = vmatpush.msra.mxu0 0.0
        %2679 = vmatpush.msra.mxu0 0.0
        %2680 = vmatpush.msra.mxu0 0.0
        %2681 = vmatpush.msra.mxu0 0.0
        %2682 = vmatpush.msra.mxu0 0.0
        %2683 = vmatpush.msra.mxu0 0.0
        %2684 = vmatpush.msra.mxu0 0.0
        %2685 = vmatpush.msra.mxu0 0.0
        %2686 = vmatpush.msra.mxu0 0.0
        %2687 = vmatpush.msra.mxu0 0.0
        %2688 = vmatpush.msra.mxu0 0.0
        %2689 = vmatpush.msra.mxu0 0.0
        %2690 = vmatpush.msra.mxu0 %v2677
        %2691 = vmatpush.msra.mxu0 %v2676
        %2692 = vmatpush.msra.mxu0 %v2675
        %2693 = vmatpush.msra.mxu0 %v2674
        %2694 = vmatmul.f32.gmra.mxu0 %v2487
        %v2695 = vpop.f32.mrf.mxu0
        %v2696 = vadd.f32 0.0, %v2695
        %2697 = vdwg.mxu0
        %v2699 = vsel %vm584, %v2646, 0
        %v2702 = vsel %vm584, %v2671, 0
        %2704 = vmatpush.xpose.msra.mxu0 0.0
        %2705 = vmatpush.xpose.msra.mxu0 0.0
        %2706 = vmatpush.xpose.msra.mxu0 0.0
        %2707 = vmatpush.xpose.msra.mxu0 0.0
        %2708 = vmatpush.xpose.msra.mxu0 0.0
        %2709 = vmatpush.xpose.msra.mxu0 0.0
        %2710 = vmatpush.xpose.msra.mxu0 0.0
        %2711 = vmatpush.xpose.msra.mxu0 0.0
        %2712 = vmatpush.xpose.msra.mxu0 0.0
        %2713 = vmatpush.xpose.msra.mxu0 0.0
        %2714 = vmatpush.xpose.msra.mxu0 0.0
        %2715 = vmatpush.xpose.msra.mxu0 0.0
        %2716 = vmatpush.xpose.msra.mxu0 0.0
        %2717 = vmatpush.xpose.msra.mxu0 0.0
        %2718 = vmatpush.xpose.msra.mxu0 0.0
        %2719 = vmatpush.xpose.msra.mxu0 %v2702
        %2720 = vmatmul.f32.gmra.mxu0 %v2699
        %v2721 = vpop.f32.mrf.mxu0
        %v2722 = vadd.f32 0.0, %v2721
        %2723 = vdwg.mxu0
        %v2724 = vmul.f32 %v2722, 0.17677669
        %v2725 = vsel %vm468, %v2724, -1e+30
        %v2726 = vsel %vm584, %v2725, -inf
        %2727 = vmax.xlane.f32.xlu0 %v2726
        %v2728 = vpop.xlane.xlu0 %2727
        %v2729 = vsub.f32 %v2725, %v2728
        %v2730 = vmul.f32 %v2729, 1.442695
        %v2731 = vpow.pop %v2730
        %v2732 = vsel %vm584, %v2731, 0.0
        %2733 = vadd.xlane.f32.xlu0 %v2732
        %v2734 = vpop.xlane.xlu0 %2733
        %v2735 = vrcp.pop %v2734
        %v2736 = vmul.f32 %v2731, %v2735
        %v2738 = vsel %vm584, %v2736, 0
        %2740 = vmatpush.msra.mxu0 0.0
        %2741 = vmatpush.msra.mxu0 0.0
        %2742 = vmatpush.msra.mxu0 0.0
        %2743 = vmatpush.msra.mxu0 0.0
        %2744 = vmatpush.msra.mxu0 0.0
        %2745 = vmatpush.msra.mxu0 0.0
        %2746 = vmatpush.msra.mxu0 0.0
        %2747 = vmatpush.msra.mxu0 0.0
        %2748 = vmatpush.msra.mxu0 0.0
        %2749 = vmatpush.msra.mxu0 0.0
        %2750 = vmatpush.msra.mxu0 0.0
        %2751 = vmatpush.msra.mxu0 0.0
        %2752 = vmatpush.msra.mxu0 0.0
        %2753 = vmatpush.msra.mxu0 0.0
        %2754 = vmatpush.msra.mxu0 0.0
        %2755 = vmatpush.msra.mxu0 %v2696
        %2756 = vmatmul.f32.gmra.mxu0 %v2738
        %v2757 = vpop.f32.mrf.mxu0
        %v2758 = vadd.f32 0.0, %v2757
        %2759 = vdwg.mxu0
        %s2760 = scalar_lea.vmem %s8, 104
        %v2761 = vld [vmem:[%s2760] sm:$0xff]
        %v2763 = vsel %vm584, %v2758, 0
        %2765 = vmatpush.msra.mxu0 0.0
        %2766 = vmatpush.msra.mxu0 0.0
        %2767 = vmatpush.msra.mxu0 0.0
        %2768 = vmatpush.msra.mxu0 0.0
        %2769 = vmatpush.msra.mxu0 0.0
        %2770 = vmatpush.msra.mxu0 0.0
        %2771 = vmatpush.msra.mxu0 0.0
        %2772 = vmatpush.msra.mxu0 0.0
        %2773 = vmatpush.msra.mxu0 0.0
        %2774 = vmatpush.msra.mxu0 0.0
        %2775 = vmatpush.msra.mxu0 0.0
        %2776 = vmatpush.msra.mxu0 0.0
        %2777 = vmatpush.msra.mxu0 0.0
        %2778 = vmatpush.msra.mxu0 0.0
        %2779 = vmatpush.msra.mxu0 0.0
        %2780 = vmatpush.msra.mxu0 %v2761
        %2781 = vmatmul.f32.gmra.mxu0 %v2763
        %v2782 = vpop.f32.mrf.mxu0
        %v2783 = vadd.f32 0.0, %v2782
        %2784 = vdwg.mxu0
        %v2786 = vsel %vm584, %v2619, 0
        %2788 = vmatpush.msra.mxu0 0.0
        %2789 = vmatpush.msra.mxu0 0.0
        %2790 = vmatpush.msra.mxu0 0.0
        %2791 = vmatpush.msra.mxu0 0.0
        %2792 = vmatpush.msra.mxu0 0.0
        %2793 = vmatpush.msra.mxu0 0.0
        %2794 = vmatpush.msra.mxu0 0.0
        %2795 = vmatpush.msra.mxu0 0.0
        %2796 = vmatpush.msra.mxu0 0.0
        %2797 = vmatpush.msra.mxu0 0.0
        %2798 = vmatpush.msra.mxu0 0.0
        %2799 = vmatpush.msra.mxu0 0.0
        %2800 = vmatpush.msra.mxu0 0.0
        %2801 = vmatpush.msra.mxu0 0.0
        %2802 = vmatpush.msra.mxu0 0.0
        %2803 = vmatpush.msra.mxu0 %v2622
        %2804 = vmatmul.f32.gmra.mxu0 %v2786
        %v2805 = vpop.f32.mrf.mxu0
        %v2806 = vadd.f32 %v2783, %v2805
        %2807 = vdwg.mxu0
        %s2808 = scalar_lea.vmem %s5, 448
        %v2809 = vld [vmem:[%s2808] sm:$0xff]
        %v2810 = vld [vmem:[%s2808 + $0x8] sm:$0xff]
        %v2811 = vld [vmem:[%s2808 + $0x10] sm:$0xff]
        %v2812 = vld [vmem:[%s2808 + $0x18] sm:$0xff]
        %2813 = vmatpush.msra.mxu0 0.0
        %2814 = vmatpush.msra.mxu0 0.0
        %2815 = vmatpush.msra.mxu0 0.0
        %2816 = vmatpush.msra.mxu0 0.0
        %2817 = vmatpush.msra.mxu0 0.0
        %2818 = vmatpush.msra.mxu0 0.0
        %2819 = vmatpush.msra.mxu0 0.0
        %2820 = vmatpush.msra.mxu0 0.0
        %2821 = vmatpush.msra.mxu0 0.0
        %2822 = vmatpush.msra.mxu0 0.0
        %2823 = vmatpush.msra.mxu0 0.0
        %2824 = vmatpush.msra.mxu0 0.0
        %2825 = vmatpush.msra.mxu0 %v2812
        %2826 = vmatpush.msra.mxu0 %v2811
        %2827 = vmatpush.msra.mxu0 %v2810
        %2828 = vmatpush.msra.mxu0 %v2809
        %2829 = vmatmul.f32.gmra.mxu0 %v2487
        %v2830 = vpop.f32.mrf.mxu0
        %v2831 = vadd.f32 0.0, %v2830
        %2832 = vdwg.mxu0
        %s2833 = scalar_lea.vmem %s6, 448
        %v2834 = vld [vmem:[%s2833] sm:$0xff]
        %v2835 = vld [vmem:[%s2833 + $0x8] sm:$0xff]
        %v2836 = vld [vmem:[%s2833 + $0x10] sm:$0xff]
        %v2837 = vld [vmem:[%s2833 + $0x18] sm:$0xff]
        %2838 = vmatpush.msra.mxu0 0.0
        %2839 = vmatpush.msra.mxu0 0.0
        %2840 = vmatpush.msra.mxu0 0.0
        %2841 = vmatpush.msra.mxu0 0.0
        %2842 = vmatpush.msra.mxu0 0.0
        %2843 = vmatpush.msra.mxu0 0.0
        %2844 = vmatpush.msra.mxu0 0.0
        %2845 = vmatpush.msra.mxu0 0.0
        %2846 = vmatpush.msra.mxu0 0.0
        %2847 = vmatpush.msra.mxu0 0.0
        %2848 = vmatpush.msra.mxu0 0.0
        %2849 = vmatpush.msra.mxu0 0.0
        %2850 = vmatpush.msra.mxu0 %v2837
        %2851 = vmatpush.msra.mxu0 %v2836
        %2852 = vmatpush.msra.mxu0 %v2835
        %2853 = vmatpush.msra.mxu0 %v2834
        %2854 = vmatmul.f32.gmra.mxu0 %v2487
        %v2855 = vpop.f32.mrf.mxu0
        %v2856 = vadd.f32 0.0, %v2855
        %2857 = vdwg.mxu0
        %s2858 = scalar_lea.vmem %s7, 448
        %v2859 = vld [vmem:[%s2858] sm:$0xff]
        %v2860 = vld [vmem:[%s2858 + $0x8] sm:$0xff]
        %v2861 = vld [vmem:[%s2858 + $0x10] sm:$0xff]
        %v2862 = vld [vmem:[%s2858 + $0x18] sm:$0xff]
        %2863 = vmatpush.msra.mxu0 0.0
        %2864 = vmatpush.msra.mxu0 0.0
        %2865 = vmatpush.msra.mxu0 0.0
        %2866 = vmatpush.msra.mxu0 0.0
        %2867 = vmatpush.msra.mxu0 0.0
        %2868 = vmatpush.msra.mxu0 0.0
        %2869 = vmatpush.msra.mxu0 0.0
        %2870 = vmatpush.msra.mxu0 0.0
        %2871 = vmatpush.msra.mxu0 0.0
        %2872 = vmatpush.msra.mxu0 0.0
        %2873 = vmatpush.msra.mxu0 0.0
        %2874 = vmatpush.msra.mxu0 0.0
        %2875 = vmatpush.msra.mxu0 %v2862
        %2876 = vmatpush.msra.mxu0 %v2861
        %2877 = vmatpush.msra.mxu0 %v2860
        %2878 = vmatpush.msra.mxu0 %v2859
        %2879 = vmatmul.f32.gmra.mxu0 %v2487
        %v2880 = vpop.f32.mrf.mxu0
        %v2881 = vadd.f32 0.0, %v2880
        %2882 = vdwg.mxu0
        %v2884 = vsel %vm584, %v2831, 0
        %v2887 = vsel %vm584, %v2856, 0
        %2889 = vmatpush.xpose.msra.mxu0 0.0
        %2890 = vmatpush.xpose.msra.mxu0 0.0
        %2891 = vmatpush.xpose.msra.mxu0 0.0
        %2892 = vmatpush.xpose.msra.mxu0 0.0
        %2893 = vmatpush.xpose.msra.mxu0 0.0
        %2894 = vmatpush.xpose.msra.mxu0 0.0
        %2895 = vmatpush.xpose.msra.mxu0 0.0
        %2896 = vmatpush.xpose.msra.mxu0 0.0
        %2897 = vmatpush.xpose.msra.mxu0 0.0
        %2898 = vmatpush.xpose.msra.mxu0 0.0
        %2899 = vmatpush.xpose.msra.mxu0 0.0
        %2900 = vmatpush.xpose.msra.mxu0 0.0
        %2901 = vmatpush.xpose.msra.mxu0 0.0
        %2902 = vmatpush.xpose.msra.mxu0 0.0
        %2903 = vmatpush.xpose.msra.mxu0 0.0
        %2904 = vmatpush.xpose.msra.mxu0 %v2887
        %2905 = vmatmul.f32.gmra.mxu0 %v2884
        %v2906 = vpop.f32.mrf.mxu0
        %v2907 = vadd.f32 0.0, %v2906
        %2908 = vdwg.mxu0
        %v2909 = vmul.f32 %v2907, 0.17677669
        %v2910 = vsel %vm468, %v2909, -1e+30
        %v2911 = vsel %vm584, %v2910, -inf
        %2912 = vmax.xlane.f32.xlu0 %v2911
        %v2913 = vpop.xlane.xlu0 %2912
        %v2914 = vsub.f32 %v2910, %v2913
        %v2915 = vmul.f32 %v2914, 1.442695
        %v2916 = vpow.pop %v2915
        %v2917 = vsel %vm584, %v2916, 0.0
        %2918 = vadd.xlane.f32.xlu0 %v2917
        %v2919 = vpop.xlane.xlu0 %2918
        %v2920 = vrcp.pop %v2919
        %v2921 = vmul.f32 %v2916, %v2920
        %v2923 = vsel %vm584, %v2921, 0
        %2925 = vmatpush.msra.mxu0 0.0
        %2926 = vmatpush.msra.mxu0 0.0
        %2927 = vmatpush.msra.mxu0 0.0
        %2928 = vmatpush.msra.mxu0 0.0
        %2929 = vmatpush.msra.mxu0 0.0
        %2930 = vmatpush.msra.mxu0 0.0
        %2931 = vmatpush.msra.mxu0 0.0
        %2932 = vmatpush.msra.mxu0 0.0
        %2933 = vmatpush.msra.mxu0 0.0
        %2934 = vmatpush.msra.mxu0 0.0
        %2935 = vmatpush.msra.mxu0 0.0
        %2936 = vmatpush.msra.mxu0 0.0
        %2937 = vmatpush.msra.mxu0 0.0
        %2938 = vmatpush.msra.mxu0 0.0
        %2939 = vmatpush.msra.mxu0 0.0
        %2940 = vmatpush.msra.mxu0 %v2881
        %2941 = vmatmul.f32.gmra.mxu0 %v2923
        %v2942 = vpop.f32.mrf.mxu0
        %v2943 = vadd.f32 0.0, %v2942
        %2944 = vdwg.mxu0
        %s2945 = scalar_lea.vmem %s8, 112
        %v2946 = vld [vmem:[%s2945] sm:$0xff]
        %v2948 = vsel %vm584, %v2943, 0
        %2950 = vmatpush.msra.mxu0 0.0
        %2951 = vmatpush.msra.mxu0 0.0
        %2952 = vmatpush.msra.mxu0 0.0
        %2953 = vmatpush.msra.mxu0 0.0
        %2954 = vmatpush.msra.mxu0 0.0
        %2955 = vmatpush.msra.mxu0 0.0
        %2956 = vmatpush.msra.mxu0 0.0
        %2957 = vmatpush.msra.mxu0 0.0
        %2958 = vmatpush.msra.mxu0 0.0
        %2959 = vmatpush.msra.mxu0 0.0
        %2960 = vmatpush.msra.mxu0 0.0
        %2961 = vmatpush.msra.mxu0 0.0
        %2962 = vmatpush.msra.mxu0 0.0
        %2963 = vmatpush.msra.mxu0 0.0
        %2964 = vmatpush.msra.mxu0 0.0
        %2965 = vmatpush.msra.mxu0 %v2946
        %2966 = vmatmul.f32.gmra.mxu0 %v2948
        %v2967 = vpop.f32.mrf.mxu0
        %v2968 = vadd.f32 0.0, %v2967
        %2969 = vdwg.mxu0
        %v2970 = vadd.f32 %v2806, %v2968
        %s2971 = scalar_lea.vmem %s5, 480
        %v2972 = vld [vmem:[%s2971] sm:$0xff]
        %v2973 = vld [vmem:[%s2971 + $0x8] sm:$0xff]
        %v2974 = vld [vmem:[%s2971 + $0x10] sm:$0xff]
        %v2975 = vld [vmem:[%s2971 + $0x18] sm:$0xff]
        %2976 = vmatpush.msra.mxu0 0.0
        %2977 = vmatpush.msra.mxu0 0.0
        %2978 = vmatpush.msra.mxu0 0.0
        %2979 = vmatpush.msra.mxu0 0.0
        %2980 = vmatpush.msra.mxu0 0.0
        %2981 = vmatpush.msra.mxu0 0.0
        %2982 = vmatpush.msra.mxu0 0.0
        %2983 = vmatpush.msra.mxu0 0.0
        %2984 = vmatpush.msra.mxu0 0.0
        %2985 = vmatpush.msra.mxu0 0.0
        %2986 = vmatpush.msra.mxu0 0.0
        %2987 = vmatpush.msra.mxu0 0.0
        %2988 = vmatpush.msra.mxu0 %v2975
        %2989 = vmatpush.msra.mxu0 %v2974
        %2990 = vmatpush.msra.mxu0 %v2973
        %2991 = vmatpush.msra.mxu0 %v2972
        %2992 = vmatmul.f32.gmra.mxu0 %v2487
        %v2993 = vpop.f32.mrf.mxu0
        %v2994 = vadd.f32 0.0, %v2993
        %2995 = vdwg.mxu0
        %s2996 = scalar_lea.vmem %s6, 480
        %v2997 = vld [vmem:[%s2996] sm:$0xff]
        %v2998 = vld [vmem:[%s2996 + $0x8] sm:$0xff]
        %v2999 = vld [vmem:[%s2996 + $0x10] sm:$0xff]
        %v3000 = vld [vmem:[%s2996 + $0x18] sm:$0xff]
        %3001 = vmatpush.msra.mxu0 0.0
        %3002 = vmatpush.msra.mxu0 0.0
        %3003 = vmatpush.msra.mxu0 0.0
        %3004 = vmatpush.msra.mxu0 0.0
        %3005 = vmatpush.msra.mxu0 0.0
        %3006 = vmatpush.msra.mxu0 0.0
        %3007 = vmatpush.msra.mxu0 0.0
        %3008 = vmatpush.msra.mxu0 0.0
        %3009 = vmatpush.msra.mxu0 0.0
        %3010 = vmatpush.msra.mxu0 0.0
        %3011 = vmatpush.msra.mxu0 0.0
        %3012 = vmatpush.msra.mxu0 0.0
        %3013 = vmatpush.msra.mxu0 %v3000
        %3014 = vmatpush.msra.mxu0 %v2999
        %3015 = vmatpush.msra.mxu0 %v2998
        %3016 = vmatpush.msra.mxu0 %v2997
        %3017 = vmatmul.f32.gmra.mxu0 %v2487
        %v3018 = vpop.f32.mrf.mxu0
        %v3019 = vadd.f32 0.0, %v3018
        %3020 = vdwg.mxu0
        %s3021 = scalar_lea.vmem %s7, 480
        %v3022 = vld [vmem:[%s3021] sm:$0xff]
        %v3023 = vld [vmem:[%s3021 + $0x8] sm:$0xff]
        %v3024 = vld [vmem:[%s3021 + $0x10] sm:$0xff]
        %v3025 = vld [vmem:[%s3021 + $0x18] sm:$0xff]
        %3026 = vmatpush.msra.mxu0 0.0
        %3027 = vmatpush.msra.mxu0 0.0
        %3028 = vmatpush.msra.mxu0 0.0
        %3029 = vmatpush.msra.mxu0 0.0
        %3030 = vmatpush.msra.mxu0 0.0
        %3031 = vmatpush.msra.mxu0 0.0
        %3032 = vmatpush.msra.mxu0 0.0
        %3033 = vmatpush.msra.mxu0 0.0
        %3034 = vmatpush.msra.mxu0 0.0
        %3035 = vmatpush.msra.mxu0 0.0
        %3036 = vmatpush.msra.mxu0 0.0
        %3037 = vmatpush.msra.mxu0 0.0
        %3038 = vmatpush.msra.mxu0 %v3025
        %3039 = vmatpush.msra.mxu0 %v3024
        %3040 = vmatpush.msra.mxu0 %v3023
        %3041 = vmatpush.msra.mxu0 %v3022
        %3042 = vmatmul.f32.gmra.mxu0 %v2487
        %v3043 = vpop.f32.mrf.mxu0
        %v3044 = vadd.f32 0.0, %v3043
        %3045 = vdwg.mxu0
        %v3047 = vsel %vm584, %v2994, 0
        %v3050 = vsel %vm584, %v3019, 0
        %3052 = vmatpush.xpose.msra.mxu0 0.0
        %3053 = vmatpush.xpose.msra.mxu0 0.0
        %3054 = vmatpush.xpose.msra.mxu0 0.0
        %3055 = vmatpush.xpose.msra.mxu0 0.0
        %3056 = vmatpush.xpose.msra.mxu0 0.0
        %3057 = vmatpush.xpose.msra.mxu0 0.0
        %3058 = vmatpush.xpose.msra.mxu0 0.0
        %3059 = vmatpush.xpose.msra.mxu0 0.0
        %3060 = vmatpush.xpose.msra.mxu0 0.0
        %3061 = vmatpush.xpose.msra.mxu0 0.0
        %3062 = vmatpush.xpose.msra.mxu0 0.0
        %3063 = vmatpush.xpose.msra.mxu0 0.0
        %3064 = vmatpush.xpose.msra.mxu0 0.0
        %3065 = vmatpush.xpose.msra.mxu0 0.0
        %3066 = vmatpush.xpose.msra.mxu0 0.0
        %3067 = vmatpush.xpose.msra.mxu0 %v3050
        %3068 = vmatmul.f32.gmra.mxu0 %v3047
        %v3069 = vpop.f32.mrf.mxu0
        %v3070 = vadd.f32 0.0, %v3069
        %3071 = vdwg.mxu0
        %v3072 = vmul.f32 %v3070, 0.17677669
        %v3073 = vsel %vm468, %v3072, -1e+30
        %v3074 = vsel %vm584, %v3073, -inf
        %3075 = vmax.xlane.f32.xlu0 %v3074
        %v3076 = vpop.xlane.xlu0 %3075
        %v3077 = vsub.f32 %v3073, %v3076
        %v3078 = vmul.f32 %v3077, 1.442695
        %v3079 = vpow.pop %v3078
        %v3080 = vsel %vm584, %v3079, 0.0
        %3081 = vadd.xlane.f32.xlu0 %v3080
        %v3082 = vpop.xlane.xlu0 %3081
        %v3083 = vrcp.pop %v3082
        %v3084 = vmul.f32 %v3079, %v3083
        %v3086 = vsel %vm584, %v3084, 0
        %3088 = vmatpush.msra.mxu0 0.0
        %3089 = vmatpush.msra.mxu0 0.0
        %3090 = vmatpush.msra.mxu0 0.0
        %3091 = vmatpush.msra.mxu0 0.0
        %3092 = vmatpush.msra.mxu0 0.0
        %3093 = vmatpush.msra.mxu0 0.0
        %3094 = vmatpush.msra.mxu0 0.0
        %3095 = vmatpush.msra.mxu0 0.0
        %3096 = vmatpush.msra.mxu0 0.0
        %3097 = vmatpush.msra.mxu0 0.0
        %3098 = vmatpush.msra.mxu0 0.0
        %3099 = vmatpush.msra.mxu0 0.0
        %3100 = vmatpush.msra.mxu0 0.0
        %3101 = vmatpush.msra.mxu0 0.0
        %3102 = vmatpush.msra.mxu0 0.0
        %3103 = vmatpush.msra.mxu0 %v3044
        %3104 = vmatmul.f32.gmra.mxu0 %v3086
        %v3105 = vpop.f32.mrf.mxu0
        %v3106 = vadd.f32 0.0, %v3105
        %3107 = vdwg.mxu0
        %s3108 = scalar_lea.vmem %s8, 120
        %v3109 = vld [vmem:[%s3108] sm:$0xff]
        %v3111 = vsel %vm584, %v3106, 0
        %3113 = vmatpush.msra.mxu0 0.0
        %3114 = vmatpush.msra.mxu0 0.0
        %3115 = vmatpush.msra.mxu0 0.0
        %3116 = vmatpush.msra.mxu0 0.0
        %3117 = vmatpush.msra.mxu0 0.0
        %3118 = vmatpush.msra.mxu0 0.0
        %3119 = vmatpush.msra.mxu0 0.0
        %3120 = vmatpush.msra.mxu0 0.0
        %3121 = vmatpush.msra.mxu0 0.0
        %3122 = vmatpush.msra.mxu0 0.0
        %3123 = vmatpush.msra.mxu0 0.0
        %3124 = vmatpush.msra.mxu0 0.0
        %3125 = vmatpush.msra.mxu0 0.0
        %3126 = vmatpush.msra.mxu0 0.0
        %3127 = vmatpush.msra.mxu0 0.0
        %3128 = vmatpush.msra.mxu0 %v3109
        %3129 = vmatmul.f32.gmra.mxu0 %v3111
        %v3130 = vpop.f32.mrf.mxu0
        %v3131 = vadd.f32 0.0, %v3130
        %3132 = vdwg.mxu0
        %v3133 = vadd.f32 %v2970, %v3131
        %s3134 = scalar_lea.vmem %s9, 3
        %v3135 = vld [vmem:[%s3134] sm:$0x1]
        %v3137 = vperm.slane %v3135, 0
        %v3139 = vadd.f32 %v3133, %v3137
        %s3140 = scalar_lea.vmem %s5, 512
        %v3141 = vld [vmem:[%s3140] sm:$0xff]
        %v3142 = vld [vmem:[%s3140 + $0x8] sm:$0xff]
        %v3143 = vld [vmem:[%s3140 + $0x10] sm:$0xff]
        %v3144 = vld [vmem:[%s3140 + $0x18] sm:$0xff]
        %3145 = vmatpush.msra.mxu0 0.0
        %3146 = vmatpush.msra.mxu0 0.0
        %3147 = vmatpush.msra.mxu0 0.0
        %3148 = vmatpush.msra.mxu0 0.0
        %3149 = vmatpush.msra.mxu0 0.0
        %3150 = vmatpush.msra.mxu0 0.0
        %3151 = vmatpush.msra.mxu0 0.0
        %3152 = vmatpush.msra.mxu0 0.0
        %3153 = vmatpush.msra.mxu0 0.0
        %3154 = vmatpush.msra.mxu0 0.0
        %3155 = vmatpush.msra.mxu0 0.0
        %3156 = vmatpush.msra.mxu0 0.0
        %3157 = vmatpush.msra.mxu0 %v3144
        %3158 = vmatpush.msra.mxu0 %v3143
        %3159 = vmatpush.msra.mxu0 %v3142
        %3160 = vmatpush.msra.mxu0 %v3141
        %3161 = vmatmul.f32.gmra.mxu0 %v514
        %v3162 = vpop.f32.mrf.mxu0
        %v3163 = vadd.f32 0.0, %v3162
        %3164 = vdwg.mxu0
        %s3165 = scalar_lea.vmem %s6, 512
        %v3166 = vld [vmem:[%s3165] sm:$0xff]
        %v3167 = vld [vmem:[%s3165 + $0x8] sm:$0xff]
        %v3168 = vld [vmem:[%s3165 + $0x10] sm:$0xff]
        %v3169 = vld [vmem:[%s3165 + $0x18] sm:$0xff]
        %3170 = vmatpush.msra.mxu0 0.0
        %3171 = vmatpush.msra.mxu0 0.0
        %3172 = vmatpush.msra.mxu0 0.0
        %3173 = vmatpush.msra.mxu0 0.0
        %3174 = vmatpush.msra.mxu0 0.0
        %3175 = vmatpush.msra.mxu0 0.0
        %3176 = vmatpush.msra.mxu0 0.0
        %3177 = vmatpush.msra.mxu0 0.0
        %3178 = vmatpush.msra.mxu0 0.0
        %3179 = vmatpush.msra.mxu0 0.0
        %3180 = vmatpush.msra.mxu0 0.0
        %3181 = vmatpush.msra.mxu0 0.0
        %3182 = vmatpush.msra.mxu0 %v3169
        %3183 = vmatpush.msra.mxu0 %v3168
        %3184 = vmatpush.msra.mxu0 %v3167
        %3185 = vmatpush.msra.mxu0 %v3166
        %3186 = vmatmul.f32.gmra.mxu0 %v514
        %v3187 = vpop.f32.mrf.mxu0
        %v3188 = vadd.f32 0.0, %v3187
        %3189 = vdwg.mxu0
        %s3190 = scalar_lea.vmem %s7, 512
        %v3191 = vld [vmem:[%s3190] sm:$0xff]
        %v3192 = vld [vmem:[%s3190 + $0x8] sm:$0xff]
        %v3193 = vld [vmem:[%s3190 + $0x10] sm:$0xff]
        %v3194 = vld [vmem:[%s3190 + $0x18] sm:$0xff]
        %3195 = vmatpush.msra.mxu0 0.0
        %3196 = vmatpush.msra.mxu0 0.0
        %3197 = vmatpush.msra.mxu0 0.0
        %3198 = vmatpush.msra.mxu0 0.0
        %3199 = vmatpush.msra.mxu0 0.0
        %3200 = vmatpush.msra.mxu0 0.0
        %3201 = vmatpush.msra.mxu0 0.0
        %3202 = vmatpush.msra.mxu0 0.0
        %3203 = vmatpush.msra.mxu0 0.0
        %3204 = vmatpush.msra.mxu0 0.0
        %3205 = vmatpush.msra.mxu0 0.0
        %3206 = vmatpush.msra.mxu0 0.0
        %3207 = vmatpush.msra.mxu0 %v3194
        %3208 = vmatpush.msra.mxu0 %v3193
        %3209 = vmatpush.msra.mxu0 %v3192
        %3210 = vmatpush.msra.mxu0 %v3191
        %3211 = vmatmul.f32.gmra.mxu0 %v514
        %v3212 = vpop.f32.mrf.mxu0
        %v3213 = vadd.f32 0.0, %v3212
        %3214 = vdwg.mxu0
        %v3216 = vsel %vm584, %v3163, 0
        %v3219 = vsel %vm584, %v3188, 0
        %3221 = vmatpush.xpose.msra.mxu0 0.0
        %3222 = vmatpush.xpose.msra.mxu0 0.0
        %3223 = vmatpush.xpose.msra.mxu0 0.0
        %3224 = vmatpush.xpose.msra.mxu0 0.0
        %3225 = vmatpush.xpose.msra.mxu0 0.0
        %3226 = vmatpush.xpose.msra.mxu0 0.0
        %3227 = vmatpush.xpose.msra.mxu0 0.0
        %3228 = vmatpush.xpose.msra.mxu0 0.0
        %3229 = vmatpush.xpose.msra.mxu0 0.0
        %3230 = vmatpush.xpose.msra.mxu0 0.0
        %3231 = vmatpush.xpose.msra.mxu0 0.0
        %3232 = vmatpush.xpose.msra.mxu0 0.0
        %3233 = vmatpush.xpose.msra.mxu0 0.0
        %3234 = vmatpush.xpose.msra.mxu0 0.0
        %3235 = vmatpush.xpose.msra.mxu0 0.0
        %3236 = vmatpush.xpose.msra.mxu0 %v3219
        %3237 = vmatmul.f32.gmra.mxu0 %v3216
        %v3238 = vpop.f32.mrf.mxu0
        %v3239 = vadd.f32 0.0, %v3238
        %3240 = vdwg.mxu0
        %v3241 = vmul.f32 %v3239, 0.17677669
        %v3242 = vsel %vm468, %v3241, -1e+30
        %v3243 = vsel %vm584, %v3242, -inf
        %3244 = vmax.xlane.f32.xlu0 %v3243
        %v3245 = vpop.xlane.xlu0 %3244
        %v3246 = vsub.f32 %v3242, %v3245
        %v3247 = vmul.f32 %v3246, 1.442695
        %v3248 = vpow.pop %v3247
        %v3249 = vsel %vm584, %v3248, 0.0
        %3250 = vadd.xlane.f32.xlu0 %v3249
        %v3251 = vpop.xlane.xlu0 %3250
        %v3252 = vrcp.pop %v3251
        %v3253 = vmul.f32 %v3248, %v3252
        %v3255 = vsel %vm584, %v3253, 0
        %3257 = vmatpush.msra.mxu0 0.0
        %3258 = vmatpush.msra.mxu0 0.0
        %3259 = vmatpush.msra.mxu0 0.0
        %3260 = vmatpush.msra.mxu0 0.0
        %3261 = vmatpush.msra.mxu0 0.0
        %3262 = vmatpush.msra.mxu0 0.0
        %3263 = vmatpush.msra.mxu0 0.0
        %3264 = vmatpush.msra.mxu0 0.0
        %3265 = vmatpush.msra.mxu0 0.0
        %3266 = vmatpush.msra.mxu0 0.0
        %3267 = vmatpush.msra.mxu0 0.0
        %3268 = vmatpush.msra.mxu0 0.0
        %3269 = vmatpush.msra.mxu0 0.0
        %3270 = vmatpush.msra.mxu0 0.0
        %3271 = vmatpush.msra.mxu0 0.0
        %3272 = vmatpush.msra.mxu0 %v3213
        %3273 = vmatmul.f32.gmra.mxu0 %v3255
        %v3274 = vpop.f32.mrf.mxu0
        %v3275 = vadd.f32 0.0, %v3274
        %3276 = vdwg.mxu0
        %s3277 = scalar_lea.vmem %s8, 128
        %v3278 = vld [vmem:[%s3277] sm:$0xff]
        %s3279 = scalar_lea.vmem %s5, 544
        %v3280 = vld [vmem:[%s3279] sm:$0xff]
        %v3281 = vld [vmem:[%s3279 + $0x8] sm:$0xff]
        %v3282 = vld [vmem:[%s3279 + $0x10] sm:$0xff]
        %v3283 = vld [vmem:[%s3279 + $0x18] sm:$0xff]
        %3284 = vmatpush.msra.mxu0 0.0
        %3285 = vmatpush.msra.mxu0 0.0
        %3286 = vmatpush.msra.mxu0 0.0
        %3287 = vmatpush.msra.mxu0 0.0
        %3288 = vmatpush.msra.mxu0 0.0
        %3289 = vmatpush.msra.mxu0 0.0
        %3290 = vmatpush.msra.mxu0 0.0
        %3291 = vmatpush.msra.mxu0 0.0
        %3292 = vmatpush.msra.mxu0 0.0
        %3293 = vmatpush.msra.mxu0 0.0
        %3294 = vmatpush.msra.mxu0 0.0
        %3295 = vmatpush.msra.mxu0 0.0
        %3296 = vmatpush.msra.mxu0 %v3283
        %3297 = vmatpush.msra.mxu0 %v3282
        %3298 = vmatpush.msra.mxu0 %v3281
        %3299 = vmatpush.msra.mxu0 %v3280
        %3300 = vmatmul.f32.gmra.mxu0 %v514
        %v3301 = vpop.f32.mrf.mxu0
        %v3302 = vadd.f32 0.0, %v3301
        %3303 = vdwg.mxu0
        %s3304 = scalar_lea.vmem %s6, 544
        %v3305 = vld [vmem:[%s3304] sm:$0xff]
        %v3306 = vld [vmem:[%s3304 + $0x8] sm:$0xff]
        %v3307 = vld [vmem:[%s3304 + $0x10] sm:$0xff]
        %v3308 = vld [vmem:[%s3304 + $0x18] sm:$0xff]
        %3309 = vmatpush.msra.mxu0 0.0
        %3310 = vmatpush.msra.mxu0 0.0
        %3311 = vmatpush.msra.mxu0 0.0
        %3312 = vmatpush.msra.mxu0 0.0
        %3313 = vmatpush.msra.mxu0 0.0
        %3314 = vmatpush.msra.mxu0 0.0
        %3315 = vmatpush.msra.mxu0 0.0
        %3316 = vmatpush.msra.mxu0 0.0
        %3317 = vmatpush.msra.mxu0 0.0
        %3318 = vmatpush.msra.mxu0 0.0
        %3319 = vmatpush.msra.mxu0 0.0
        %3320 = vmatpush.msra.mxu0 0.0
        %3321 = vmatpush.msra.mxu0 %v3308
        %3322 = vmatpush.msra.mxu0 %v3307
        %3323 = vmatpush.msra.mxu0 %v3306
        %3324 = vmatpush.msra.mxu0 %v3305
        %3325 = vmatmul.f32.gmra.mxu0 %v514
        %v3326 = vpop.f32.mrf.mxu0
        %v3327 = vadd.f32 0.0, %v3326
        %3328 = vdwg.mxu0
        %s3329 = scalar_lea.vmem %s7, 544
        %v3330 = vld [vmem:[%s3329] sm:$0xff]
        %v3331 = vld [vmem:[%s3329 + $0x8] sm:$0xff]
        %v3332 = vld [vmem:[%s3329 + $0x10] sm:$0xff]
        %v3333 = vld [vmem:[%s3329 + $0x18] sm:$0xff]
        %3334 = vmatpush.msra.mxu0 0.0
        %3335 = vmatpush.msra.mxu0 0.0
        %3336 = vmatpush.msra.mxu0 0.0
        %3337 = vmatpush.msra.mxu0 0.0
        %3338 = vmatpush.msra.mxu0 0.0
        %3339 = vmatpush.msra.mxu0 0.0
        %3340 = vmatpush.msra.mxu0 0.0
        %3341 = vmatpush.msra.mxu0 0.0
        %3342 = vmatpush.msra.mxu0 0.0
        %3343 = vmatpush.msra.mxu0 0.0
        %3344 = vmatpush.msra.mxu0 0.0
        %3345 = vmatpush.msra.mxu0 0.0
        %3346 = vmatpush.msra.mxu0 %v3333
        %3347 = vmatpush.msra.mxu0 %v3332
        %3348 = vmatpush.msra.mxu0 %v3331
        %3349 = vmatpush.msra.mxu0 %v3330
        %3350 = vmatmul.f32.gmra.mxu0 %v514
        %v3351 = vpop.f32.mrf.mxu0
        %v3352 = vadd.f32 0.0, %v3351
        %3353 = vdwg.mxu0
        %v3355 = vsel %vm584, %v3302, 0
        %v3358 = vsel %vm584, %v3327, 0
        %3360 = vmatpush.xpose.msra.mxu0 0.0
        %3361 = vmatpush.xpose.msra.mxu0 0.0
        %3362 = vmatpush.xpose.msra.mxu0 0.0
        %3363 = vmatpush.xpose.msra.mxu0 0.0
        %3364 = vmatpush.xpose.msra.mxu0 0.0
        %3365 = vmatpush.xpose.msra.mxu0 0.0
        %3366 = vmatpush.xpose.msra.mxu0 0.0
        %3367 = vmatpush.xpose.msra.mxu0 0.0
        %3368 = vmatpush.xpose.msra.mxu0 0.0
        %3369 = vmatpush.xpose.msra.mxu0 0.0
        %3370 = vmatpush.xpose.msra.mxu0 0.0
        %3371 = vmatpush.xpose.msra.mxu0 0.0
        %3372 = vmatpush.xpose.msra.mxu0 0.0
        %3373 = vmatpush.xpose.msra.mxu0 0.0
        %3374 = vmatpush.xpose.msra.mxu0 0.0
        %3375 = vmatpush.xpose.msra.mxu0 %v3358
        %3376 = vmatmul.f32.gmra.mxu0 %v3355
        %v3377 = vpop.f32.mrf.mxu0
        %v3378 = vadd.f32 0.0, %v3377
        %3379 = vdwg.mxu0
        %v3380 = vmul.f32 %v3378, 0.17677669
        %v3381 = vsel %vm468, %v3380, -1e+30
        %v3382 = vsel %vm584, %v3381, -inf
        %3383 = vmax.xlane.f32.xlu0 %v3382
        %v3384 = vpop.xlane.xlu0 %3383
        %v3385 = vsub.f32 %v3381, %v3384
        %v3386 = vmul.f32 %v3385, 1.442695
        %v3387 = vpow.pop %v3386
        %v3388 = vsel %vm584, %v3387, 0.0
        %3389 = vadd.xlane.f32.xlu0 %v3388
        %v3390 = vpop.xlane.xlu0 %3389
        %v3391 = vrcp.pop %v3390
        %v3392 = vmul.f32 %v3387, %v3391
        %v3394 = vsel %vm584, %v3392, 0
        %3396 = vmatpush.msra.mxu0 0.0
        %3397 = vmatpush.msra.mxu0 0.0
        %3398 = vmatpush.msra.mxu0 0.0
        %3399 = vmatpush.msra.mxu0 0.0
        %3400 = vmatpush.msra.mxu0 0.0
        %3401 = vmatpush.msra.mxu0 0.0
        %3402 = vmatpush.msra.mxu0 0.0
        %3403 = vmatpush.msra.mxu0 0.0
        %3404 = vmatpush.msra.mxu0 0.0
        %3405 = vmatpush.msra.mxu0 0.0
        %3406 = vmatpush.msra.mxu0 0.0
        %3407 = vmatpush.msra.mxu0 0.0
        %3408 = vmatpush.msra.mxu0 0.0
        %3409 = vmatpush.msra.mxu0 0.0
        %3410 = vmatpush.msra.mxu0 0.0
        %3411 = vmatpush.msra.mxu0 %v3352
        %3412 = vmatmul.f32.gmra.mxu0 %v3394
        %v3413 = vpop.f32.mrf.mxu0
        %v3414 = vadd.f32 0.0, %v3413
        %3415 = vdwg.mxu0
        %s3416 = scalar_lea.vmem %s8, 136
        %v3417 = vld [vmem:[%s3416] sm:$0xff]
        %v3419 = vsel %vm584, %v3414, 0
        %3421 = vmatpush.msra.mxu0 0.0
        %3422 = vmatpush.msra.mxu0 0.0
        %3423 = vmatpush.msra.mxu0 0.0
        %3424 = vmatpush.msra.mxu0 0.0
        %3425 = vmatpush.msra.mxu0 0.0
        %3426 = vmatpush.msra.mxu0 0.0
        %3427 = vmatpush.msra.mxu0 0.0
        %3428 = vmatpush.msra.mxu0 0.0
        %3429 = vmatpush.msra.mxu0 0.0
        %3430 = vmatpush.msra.mxu0 0.0
        %3431 = vmatpush.msra.mxu0 0.0
        %3432 = vmatpush.msra.mxu0 0.0
        %3433 = vmatpush.msra.mxu0 0.0
        %3434 = vmatpush.msra.mxu0 0.0
        %3435 = vmatpush.msra.mxu0 0.0
        %3436 = vmatpush.msra.mxu0 %v3417
        %3437 = vmatmul.f32.gmra.mxu0 %v3419
        %v3438 = vpop.f32.mrf.mxu0
        %v3439 = vadd.f32 0.0, %v3438
        %3440 = vdwg.mxu0
        %v3442 = vsel %vm584, %v3275, 0
        %3444 = vmatpush.msra.mxu0 0.0
        %3445 = vmatpush.msra.mxu0 0.0
        %3446 = vmatpush.msra.mxu0 0.0
        %3447 = vmatpush.msra.mxu0 0.0
        %3448 = vmatpush.msra.mxu0 0.0
        %3449 = vmatpush.msra.mxu0 0.0
        %3450 = vmatpush.msra.mxu0 0.0
        %3451 = vmatpush.msra.mxu0 0.0
        %3452 = vmatpush.msra.mxu0 0.0
        %3453 = vmatpush.msra.mxu0 0.0
        %3454 = vmatpush.msra.mxu0 0.0
        %3455 = vmatpush.msra.mxu0 0.0
        %3456 = vmatpush.msra.mxu0 0.0
        %3457 = vmatpush.msra.mxu0 0.0
        %3458 = vmatpush.msra.mxu0 0.0
        %3459 = vmatpush.msra.mxu0 %v3278
        %3460 = vmatmul.f32.gmra.mxu0 %v3442
        %v3461 = vpop.f32.mrf.mxu0
        %v3462 = vadd.f32 %v3439, %v3461
        %3463 = vdwg.mxu0
        %s3464 = scalar_lea.vmem %s5, 576
        %v3465 = vld [vmem:[%s3464] sm:$0xff]
        %v3466 = vld [vmem:[%s3464 + $0x8] sm:$0xff]
        %v3467 = vld [vmem:[%s3464 + $0x10] sm:$0xff]
        %v3468 = vld [vmem:[%s3464 + $0x18] sm:$0xff]
        %3469 = vmatpush.msra.mxu0 0.0
        %3470 = vmatpush.msra.mxu0 0.0
        %3471 = vmatpush.msra.mxu0 0.0
        %3472 = vmatpush.msra.mxu0 0.0
        %3473 = vmatpush.msra.mxu0 0.0
        %3474 = vmatpush.msra.mxu0 0.0
        %3475 = vmatpush.msra.mxu0 0.0
        %3476 = vmatpush.msra.mxu0 0.0
        %3477 = vmatpush.msra.mxu0 0.0
        %3478 = vmatpush.msra.mxu0 0.0
        %3479 = vmatpush.msra.mxu0 0.0
        %3480 = vmatpush.msra.mxu0 0.0
        %3481 = vmatpush.msra.mxu0 %v3468
        %3482 = vmatpush.msra.mxu0 %v3467
        %3483 = vmatpush.msra.mxu0 %v3466
        %3484 = vmatpush.msra.mxu0 %v3465
        %3485 = vmatmul.f32.gmra.mxu0 %v514
        %v3486 = vpop.f32.mrf.mxu0
        %v3487 = vadd.f32 0.0, %v3486
        %3488 = vdwg.mxu0
        %s3489 = scalar_lea.vmem %s6, 576
        %v3490 = vld [vmem:[%s3489] sm:$0xff]
        %v3491 = vld [vmem:[%s3489 + $0x8] sm:$0xff]
        %v3492 = vld [vmem:[%s3489 + $0x10] sm:$0xff]
        %v3493 = vld [vmem:[%s3489 + $0x18] sm:$0xff]
        %3494 = vmatpush.msra.mxu0 0.0
        %3495 = vmatpush.msra.mxu0 0.0
        %3496 = vmatpush.msra.mxu0 0.0
        %3497 = vmatpush.msra.mxu0 0.0
        %3498 = vmatpush.msra.mxu0 0.0
        %3499 = vmatpush.msra.mxu0 0.0
        %3500 = vmatpush.msra.mxu0 0.0
        %3501 = vmatpush.msra.mxu0 0.0
        %3502 = vmatpush.msra.mxu0 0.0
        %3503 = vmatpush.msra.mxu0 0.0
        %3504 = vmatpush.msra.mxu0 0.0
        %3505 = vmatpush.msra.mxu0 0.0
        %3506 = vmatpush.msra.mxu0 %v3493
        %3507 = vmatpush.msra.mxu0 %v3492
        %3508 = vmatpush.msra.mxu0 %v3491
        %3509 = vmatpush.msra.mxu0 %v3490
        %3510 = vmatmul.f32.gmra.mxu0 %v514
        %v3511 = vpop.f32.mrf.mxu0
        %v3512 = vadd.f32 0.0, %v3511
        %3513 = vdwg.mxu0
        %s3514 = scalar_lea.vmem %s7, 576
        %v3515 = vld [vmem:[%s3514] sm:$0xff]
        %v3516 = vld [vmem:[%s3514 + $0x8] sm:$0xff]
        %v3517 = vld [vmem:[%s3514 + $0x10] sm:$0xff]
        %v3518 = vld [vmem:[%s3514 + $0x18] sm:$0xff]
        %3519 = vmatpush.msra.mxu0 0.0
        %3520 = vmatpush.msra.mxu0 0.0
        %3521 = vmatpush.msra.mxu0 0.0
        %3522 = vmatpush.msra.mxu0 0.0
        %3523 = vmatpush.msra.mxu0 0.0
        %3524 = vmatpush.msra.mxu0 0.0
        %3525 = vmatpush.msra.mxu0 0.0
        %3526 = vmatpush.msra.mxu0 0.0
        %3527 = vmatpush.msra.mxu0 0.0
        %3528 = vmatpush.msra.mxu0 0.0
        %3529 = vmatpush.msra.mxu0 0.0
        %3530 = vmatpush.msra.mxu0 0.0
        %3531 = vmatpush.msra.mxu0 %v3518
        %3532 = vmatpush.msra.mxu0 %v3517
        %3533 = vmatpush.msra.mxu0 %v3516
        %3534 = vmatpush.msra.mxu0 %v3515
        %3535 = vmatmul.f32.gmra.mxu0 %v514
        %v3536 = vpop.f32.mrf.mxu0
        %v3537 = vadd.f32 0.0, %v3536
        %3538 = vdwg.mxu0
        %v3540 = vsel %vm584, %v3487, 0
        %v3543 = vsel %vm584, %v3512, 0
        %3545 = vmatpush.xpose.msra.mxu0 0.0
        %3546 = vmatpush.xpose.msra.mxu0 0.0
        %3547 = vmatpush.xpose.msra.mxu0 0.0
        %3548 = vmatpush.xpose.msra.mxu0 0.0
        %3549 = vmatpush.xpose.msra.mxu0 0.0
        %3550 = vmatpush.xpose.msra.mxu0 0.0
        %3551 = vmatpush.xpose.msra.mxu0 0.0
        %3552 = vmatpush.xpose.msra.mxu0 0.0
        %3553 = vmatpush.xpose.msra.mxu0 0.0
        %3554 = vmatpush.xpose.msra.mxu0 0.0
        %3555 = vmatpush.xpose.msra.mxu0 0.0
        %3556 = vmatpush.xpose.msra.mxu0 0.0
        %3557 = vmatpush.xpose.msra.mxu0 0.0
        %3558 = vmatpush.xpose.msra.mxu0 0.0
        %3559 = vmatpush.xpose.msra.mxu0 0.0
        %3560 = vmatpush.xpose.msra.mxu0 %v3543
        %3561 = vmatmul.f32.gmra.mxu0 %v3540
        %v3562 = vpop.f32.mrf.mxu0
        %v3563 = vadd.f32 0.0, %v3562
        %3564 = vdwg.mxu0
        %v3565 = vmul.f32 %v3563, 0.17677669
        %v3566 = vsel %vm468, %v3565, -1e+30
        %v3567 = vsel %vm584, %v3566, -inf
        %3568 = vmax.xlane.f32.xlu0 %v3567
        %v3569 = vpop.xlane.xlu0 %3568
        %v3570 = vsub.f32 %v3566, %v3569
        %v3571 = vmul.f32 %v3570, 1.442695
        %v3572 = vpow.pop %v3571
        %v3573 = vsel %vm584, %v3572, 0.0
        %3574 = vadd.xlane.f32.xlu0 %v3573
        %v3575 = vpop.xlane.xlu0 %3574
        %v3576 = vrcp.pop %v3575
        %v3577 = vmul.f32 %v3572, %v3576
        %v3579 = vsel %vm584, %v3577, 0
        %3581 = vmatpush.msra.mxu0 0.0
        %3582 = vmatpush.msra.mxu0 0.0
        %3583 = vmatpush.msra.mxu0 0.0
        %3584 = vmatpush.msra.mxu0 0.0
        %3585 = vmatpush.msra.mxu0 0.0
        %3586 = vmatpush.msra.mxu0 0.0
        %3587 = vmatpush.msra.mxu0 0.0
        %3588 = vmatpush.msra.mxu0 0.0
        %3589 = vmatpush.msra.mxu0 0.0
        %3590 = vmatpush.msra.mxu0 0.0
        %3591 = vmatpush.msra.mxu0 0.0
        %3592 = vmatpush.msra.mxu0 0.0
        %3593 = vmatpush.msra.mxu0 0.0
        %3594 = vmatpush.msra.mxu0 0.0
        %3595 = vmatpush.msra.mxu0 0.0
        %3596 = vmatpush.msra.mxu0 %v3537
        %3597 = vmatmul.f32.gmra.mxu0 %v3579
        %v3598 = vpop.f32.mrf.mxu0
        %v3599 = vadd.f32 0.0, %v3598
        %3600 = vdwg.mxu0
        %s3601 = scalar_lea.vmem %s8, 144
        %v3602 = vld [vmem:[%s3601] sm:$0xff]
        %v3604 = vsel %vm584, %v3599, 0
        %3606 = vmatpush.msra.mxu0 0.0
        %3607 = vmatpush.msra.mxu0 0.0
        %3608 = vmatpush.msra.mxu0 0.0
        %3609 = vmatpush.msra.mxu0 0.0
        %3610 = vmatpush.msra.mxu0 0.0
        %3611 = vmatpush.msra.mxu0 0.0
        %3612 = vmatpush.msra.mxu0 0.0
        %3613 = vmatpush.msra.mxu0 0.0
        %3614 = vmatpush.msra.mxu0 0.0
        %3615 = vmatpush.msra.mxu0 0.0
        %3616 = vmatpush.msra.mxu0 0.0
        %3617 = vmatpush.msra.mxu0 0.0
        %3618 = vmatpush.msra.mxu0 0.0
        %3619 = vmatpush.msra.mxu0 0.0
        %3620 = vmatpush.msra.mxu0 0.0
        %3621 = vmatpush.msra.mxu0 %v3602
        %3622 = vmatmul.f32.gmra.mxu0 %v3604
        %v3623 = vpop.f32.mrf.mxu0
        %v3624 = vadd.f32 0.0, %v3623
        %3625 = vdwg.mxu0
        %v3626 = vadd.f32 %v3462, %v3624
        %s3627 = scalar_lea.vmem %s5, 608
        %v3628 = vld [vmem:[%s3627] sm:$0xff]
        %v3629 = vld [vmem:[%s3627 + $0x8] sm:$0xff]
        %v3630 = vld [vmem:[%s3627 + $0x10] sm:$0xff]
        %v3631 = vld [vmem:[%s3627 + $0x18] sm:$0xff]
        %3632 = vmatpush.msra.mxu0 0.0
        %3633 = vmatpush.msra.mxu0 0.0
        %3634 = vmatpush.msra.mxu0 0.0
        %3635 = vmatpush.msra.mxu0 0.0
        %3636 = vmatpush.msra.mxu0 0.0
        %3637 = vmatpush.msra.mxu0 0.0
        %3638 = vmatpush.msra.mxu0 0.0
        %3639 = vmatpush.msra.mxu0 0.0
        %3640 = vmatpush.msra.mxu0 0.0
        %3641 = vmatpush.msra.mxu0 0.0
        %3642 = vmatpush.msra.mxu0 0.0
        %3643 = vmatpush.msra.mxu0 0.0
        %3644 = vmatpush.msra.mxu0 %v3631
        %3645 = vmatpush.msra.mxu0 %v3630
        %3646 = vmatpush.msra.mxu0 %v3629
        %3647 = vmatpush.msra.mxu0 %v3628
        %3648 = vmatmul.f32.gmra.mxu0 %v514
        %v3649 = vpop.f32.mrf.mxu0
        %v3650 = vadd.f32 0.0, %v3649
        %3651 = vdwg.mxu0
        %s3652 = scalar_lea.vmem %s6, 608
        %v3653 = vld [vmem:[%s3652] sm:$0xff]
        %v3654 = vld [vmem:[%s3652 + $0x8] sm:$0xff]
        %v3655 = vld [vmem:[%s3652 + $0x10] sm:$0xff]
        %v3656 = vld [vmem:[%s3652 + $0x18] sm:$0xff]
        %3657 = vmatpush.msra.mxu0 0.0
        %3658 = vmatpush.msra.mxu0 0.0
        %3659 = vmatpush.msra.mxu0 0.0
        %3660 = vmatpush.msra.mxu0 0.0
        %3661 = vmatpush.msra.mxu0 0.0
        %3662 = vmatpush.msra.mxu0 0.0
        %3663 = vmatpush.msra.mxu0 0.0
        %3664 = vmatpush.msra.mxu0 0.0
        %3665 = vmatpush.msra.mxu0 0.0
        %3666 = vmatpush.msra.mxu0 0.0
        %3667 = vmatpush.msra.mxu0 0.0
        %3668 = vmatpush.msra.mxu0 0.0
        %3669 = vmatpush.msra.mxu0 %v3656
        %3670 = vmatpush.msra.mxu0 %v3655
        %3671 = vmatpush.msra.mxu0 %v3654
        %3672 = vmatpush.msra.mxu0 %v3653
        %3673 = vmatmul.f32.gmra.mxu0 %v514
        %v3674 = vpop.f32.mrf.mxu0
        %v3675 = vadd.f32 0.0, %v3674
        %3676 = vdwg.mxu0
        %s3677 = scalar_lea.vmem %s7, 608
        %v3678 = vld [vmem:[%s3677] sm:$0xff]
        %v3679 = vld [vmem:[%s3677 + $0x8] sm:$0xff]
        %v3680 = vld [vmem:[%s3677 + $0x10] sm:$0xff]
        %v3681 = vld [vmem:[%s3677 + $0x18] sm:$0xff]
        %3682 = vmatpush.msra.mxu0 0.0
        %3683 = vmatpush.msra.mxu0 0.0
        %3684 = vmatpush.msra.mxu0 0.0
        %3685 = vmatpush.msra.mxu0 0.0
        %3686 = vmatpush.msra.mxu0 0.0
        %3687 = vmatpush.msra.mxu0 0.0
        %3688 = vmatpush.msra.mxu0 0.0
        %3689 = vmatpush.msra.mxu0 0.0
        %3690 = vmatpush.msra.mxu0 0.0
        %3691 = vmatpush.msra.mxu0 0.0
        %3692 = vmatpush.msra.mxu0 0.0
        %3693 = vmatpush.msra.mxu0 0.0
        %3694 = vmatpush.msra.mxu0 %v3681
        %3695 = vmatpush.msra.mxu0 %v3680
        %3696 = vmatpush.msra.mxu0 %v3679
        %3697 = vmatpush.msra.mxu0 %v3678
        %3698 = vmatmul.f32.gmra.mxu0 %v514
        %v3699 = vpop.f32.mrf.mxu0
        %v3700 = vadd.f32 0.0, %v3699
        %3701 = vdwg.mxu0
        %v3703 = vsel %vm584, %v3650, 0
        %v3706 = vsel %vm584, %v3675, 0
        %3708 = vmatpush.xpose.msra.mxu0 0.0
        %3709 = vmatpush.xpose.msra.mxu0 0.0
        %3710 = vmatpush.xpose.msra.mxu0 0.0
        %3711 = vmatpush.xpose.msra.mxu0 0.0
        %3712 = vmatpush.xpose.msra.mxu0 0.0
        %3713 = vmatpush.xpose.msra.mxu0 0.0
        %3714 = vmatpush.xpose.msra.mxu0 0.0
        %3715 = vmatpush.xpose.msra.mxu0 0.0
        %3716 = vmatpush.xpose.msra.mxu0 0.0
        %3717 = vmatpush.xpose.msra.mxu0 0.0
        %3718 = vmatpush.xpose.msra.mxu0 0.0
        %3719 = vmatpush.xpose.msra.mxu0 0.0
        %3720 = vmatpush.xpose.msra.mxu0 0.0
        %3721 = vmatpush.xpose.msra.mxu0 0.0
        %3722 = vmatpush.xpose.msra.mxu0 0.0
        %3723 = vmatpush.xpose.msra.mxu0 %v3706
        %3724 = vmatmul.f32.gmra.mxu0 %v3703
        %v3725 = vpop.f32.mrf.mxu0
        %v3726 = vadd.f32 0.0, %v3725
        %3727 = vdwg.mxu0
        %v3728 = vmul.f32 %v3726, 0.17677669
        %v3729 = vsel %vm468, %v3728, -1e+30
        %v3730 = vsel %vm584, %v3729, -inf
        %3731 = vmax.xlane.f32.xlu0 %v3730
        %v3732 = vpop.xlane.xlu0 %3731
        %v3733 = vsub.f32 %v3729, %v3732
        %v3734 = vmul.f32 %v3733, 1.442695
        %v3735 = vpow.pop %v3734
        %v3736 = vsel %vm584, %v3735, 0.0
        %3737 = vadd.xlane.f32.xlu0 %v3736
        %v3738 = vpop.xlane.xlu0 %3737
        %v3739 = vrcp.pop %v3738
        %v3740 = vmul.f32 %v3735, %v3739
        %v3742 = vsel %vm584, %v3740, 0
        %3744 = vmatpush.msra.mxu0 0.0
        %3745 = vmatpush.msra.mxu0 0.0
        %3746 = vmatpush.msra.mxu0 0.0
        %3747 = vmatpush.msra.mxu0 0.0
        %3748 = vmatpush.msra.mxu0 0.0
        %3749 = vmatpush.msra.mxu0 0.0
        %3750 = vmatpush.msra.mxu0 0.0
        %3751 = vmatpush.msra.mxu0 0.0
        %3752 = vmatpush.msra.mxu0 0.0
        %3753 = vmatpush.msra.mxu0 0.0
        %3754 = vmatpush.msra.mxu0 0.0
        %3755 = vmatpush.msra.mxu0 0.0
        %3756 = vmatpush.msra.mxu0 0.0
        %3757 = vmatpush.msra.mxu0 0.0
        %3758 = vmatpush.msra.mxu0 0.0
        %3759 = vmatpush.msra.mxu0 %v3700
        %3760 = vmatmul.f32.gmra.mxu0 %v3742
        %v3761 = vpop.f32.mrf.mxu0
        %v3762 = vadd.f32 0.0, %v3761
        %3763 = vdwg.mxu0
        %s3764 = scalar_lea.vmem %s8, 152
        %v3765 = vld [vmem:[%s3764] sm:$0xff]
        %v3767 = vsel %vm584, %v3762, 0
        %3769 = vmatpush.msra.mxu0 0.0
        %3770 = vmatpush.msra.mxu0 0.0
        %3771 = vmatpush.msra.mxu0 0.0
        %3772 = vmatpush.msra.mxu0 0.0
        %3773 = vmatpush.msra.mxu0 0.0
        %3774 = vmatpush.msra.mxu0 0.0
        %3775 = vmatpush.msra.mxu0 0.0
        %3776 = vmatpush.msra.mxu0 0.0
        %3777 = vmatpush.msra.mxu0 0.0
        %3778 = vmatpush.msra.mxu0 0.0
        %3779 = vmatpush.msra.mxu0 0.0
        %3780 = vmatpush.msra.mxu0 0.0
        %3781 = vmatpush.msra.mxu0 0.0
        %3782 = vmatpush.msra.mxu0 0.0
        %3783 = vmatpush.msra.mxu0 0.0
        %3784 = vmatpush.msra.mxu0 %v3765
        %3785 = vmatmul.f32.gmra.mxu0 %v3767
        %v3786 = vpop.f32.mrf.mxu0
        %v3787 = vadd.f32 0.0, %v3786
        %3788 = vdwg.mxu0
        %v3789 = vadd.f32 %v3626, %v3787
        %s3790 = scalar_lea.vmem %s9, 4
        %v3791 = vld [vmem:[%s3790] sm:$0x1]
        %v3793 = vperm.slane %v3791, 0
        %v3795 = vadd.f32 %v3789, %v3793
        %s3796 = scalar_lea.vmem %s5, 640
        %v3797 = vld [vmem:[%s3796] sm:$0xff]
        %v3798 = vld [vmem:[%s3796 + $0x8] sm:$0xff]
        %v3799 = vld [vmem:[%s3796 + $0x10] sm:$0xff]
        %v3800 = vld [vmem:[%s3796 + $0x18] sm:$0xff]
        %3801 = vmatpush.msra.mxu0 0.0
        %3802 = vmatpush.msra.mxu0 0.0
        %3803 = vmatpush.msra.mxu0 0.0
        %3804 = vmatpush.msra.mxu0 0.0
        %3805 = vmatpush.msra.mxu0 0.0
        %3806 = vmatpush.msra.mxu0 0.0
        %3807 = vmatpush.msra.mxu0 0.0
        %3808 = vmatpush.msra.mxu0 0.0
        %3809 = vmatpush.msra.mxu0 0.0
        %3810 = vmatpush.msra.mxu0 0.0
        %3811 = vmatpush.msra.mxu0 0.0
        %3812 = vmatpush.msra.mxu0 0.0
        %3813 = vmatpush.msra.mxu0 %v3800
        %3814 = vmatpush.msra.mxu0 %v3799
        %3815 = vmatpush.msra.mxu0 %v3798
        %3816 = vmatpush.msra.mxu0 %v3797
        %3817 = vmatmul.f32.gmra.mxu0 %v2487
        %v3818 = vpop.f32.mrf.mxu0
        %v3819 = vadd.f32 0.0, %v3818
        %3820 = vdwg.mxu0
        %s3821 = scalar_lea.vmem %s6, 640
        %v3822 = vld [vmem:[%s3821] sm:$0xff]
        %v3823 = vld [vmem:[%s3821 + $0x8] sm:$0xff]
        %v3824 = vld [vmem:[%s3821 + $0x10] sm:$0xff]
        %v3825 = vld [vmem:[%s3821 + $0x18] sm:$0xff]
        %3826 = vmatpush.msra.mxu0 0.0
        %3827 = vmatpush.msra.mxu0 0.0
        %3828 = vmatpush.msra.mxu0 0.0
        %3829 = vmatpush.msra.mxu0 0.0
        %3830 = vmatpush.msra.mxu0 0.0
        %3831 = vmatpush.msra.mxu0 0.0
        %3832 = vmatpush.msra.mxu0 0.0
        %3833 = vmatpush.msra.mxu0 0.0
        %3834 = vmatpush.msra.mxu0 0.0
        %3835 = vmatpush.msra.mxu0 0.0
        %3836 = vmatpush.msra.mxu0 0.0
        %3837 = vmatpush.msra.mxu0 0.0
        %3838 = vmatpush.msra.mxu0 %v3825
        %3839 = vmatpush.msra.mxu0 %v3824
        %3840 = vmatpush.msra.mxu0 %v3823
        %3841 = vmatpush.msra.mxu0 %v3822
        %3842 = vmatmul.f32.gmra.mxu0 %v2487
        %v3843 = vpop.f32.mrf.mxu0
        %v3844 = vadd.f32 0.0, %v3843
        %3845 = vdwg.mxu0
        %s3846 = scalar_lea.vmem %s7, 640
        %v3847 = vld [vmem:[%s3846] sm:$0xff]
        %v3848 = vld [vmem:[%s3846 + $0x8] sm:$0xff]
        %v3849 = vld [vmem:[%s3846 + $0x10] sm:$0xff]
        %v3850 = vld [vmem:[%s3846 + $0x18] sm:$0xff]
        %3851 = vmatpush.msra.mxu0 0.0
        %3852 = vmatpush.msra.mxu0 0.0
        %3853 = vmatpush.msra.mxu0 0.0
        %3854 = vmatpush.msra.mxu0 0.0
        %3855 = vmatpush.msra.mxu0 0.0
        %3856 = vmatpush.msra.mxu0 0.0
        %3857 = vmatpush.msra.mxu0 0.0
        %3858 = vmatpush.msra.mxu0 0.0
        %3859 = vmatpush.msra.mxu0 0.0
        %3860 = vmatpush.msra.mxu0 0.0
        %3861 = vmatpush.msra.mxu0 0.0
        %3862 = vmatpush.msra.mxu0 0.0
        %3863 = vmatpush.msra.mxu0 %v3850
        %3864 = vmatpush.msra.mxu0 %v3849
        %3865 = vmatpush.msra.mxu0 %v3848
        %3866 = vmatpush.msra.mxu0 %v3847
        %3867 = vmatmul.f32.gmra.mxu0 %v2487
        %v3868 = vpop.f32.mrf.mxu0
        %v3869 = vadd.f32 0.0, %v3868
        %3870 = vdwg.mxu0
        %v3872 = vsel %vm584, %v3819, 0
        %v3875 = vsel %vm584, %v3844, 0
        %3877 = vmatpush.xpose.msra.mxu0 0.0
        %3878 = vmatpush.xpose.msra.mxu0 0.0
        %3879 = vmatpush.xpose.msra.mxu0 0.0
        %3880 = vmatpush.xpose.msra.mxu0 0.0
        %3881 = vmatpush.xpose.msra.mxu0 0.0
        %3882 = vmatpush.xpose.msra.mxu0 0.0
        %3883 = vmatpush.xpose.msra.mxu0 0.0
        %3884 = vmatpush.xpose.msra.mxu0 0.0
        %3885 = vmatpush.xpose.msra.mxu0 0.0
        %3886 = vmatpush.xpose.msra.mxu0 0.0
        %3887 = vmatpush.xpose.msra.mxu0 0.0
        %3888 = vmatpush.xpose.msra.mxu0 0.0
        %3889 = vmatpush.xpose.msra.mxu0 0.0
        %3890 = vmatpush.xpose.msra.mxu0 0.0
        %3891 = vmatpush.xpose.msra.mxu0 0.0
        %3892 = vmatpush.xpose.msra.mxu0 %v3875
        %3893 = vmatmul.f32.gmra.mxu0 %v3872
        %v3894 = vpop.f32.mrf.mxu0
        %v3895 = vadd.f32 0.0, %v3894
        %3896 = vdwg.mxu0
        %v3897 = vmul.f32 %v3895, 0.17677669
        %v3898 = vsel %vm468, %v3897, -1e+30
        %v3899 = vsel %vm584, %v3898, -inf
        %3900 = vmax.xlane.f32.xlu0 %v3899
        %v3901 = vpop.xlane.xlu0 %3900
        %v3902 = vsub.f32 %v3898, %v3901
        %v3903 = vmul.f32 %v3902, 1.442695
        %v3904 = vpow.pop %v3903
        %v3905 = vsel %vm584, %v3904, 0.0
        %3906 = vadd.xlane.f32.xlu0 %v3905
        %v3907 = vpop.xlane.xlu0 %3906
        %v3908 = vrcp.pop %v3907
        %v3909 = vmul.f32 %v3904, %v3908
        %v3911 = vsel %vm584, %v3909, 0
        %3913 = vmatpush.msra.mxu0 0.0
        %3914 = vmatpush.msra.mxu0 0.0
        %3915 = vmatpush.msra.mxu0 0.0
        %3916 = vmatpush.msra.mxu0 0.0
        %3917 = vmatpush.msra.mxu0 0.0
        %3918 = vmatpush.msra.mxu0 0.0
        %3919 = vmatpush.msra.mxu0 0.0
        %3920 = vmatpush.msra.mxu0 0.0
        %3921 = vmatpush.msra.mxu0 0.0
        %3922 = vmatpush.msra.mxu0 0.0
        %3923 = vmatpush.msra.mxu0 0.0
        %3924 = vmatpush.msra.mxu0 0.0
        %3925 = vmatpush.msra.mxu0 0.0
        %3926 = vmatpush.msra.mxu0 0.0
        %3927 = vmatpush.msra.mxu0 0.0
        %3928 = vmatpush.msra.mxu0 %v3869
        %3929 = vmatmul.f32.gmra.mxu0 %v3911
        %v3930 = vpop.f32.mrf.mxu0
        %v3931 = vadd.f32 0.0, %v3930
        %3932 = vdwg.mxu0
        %s3933 = scalar_lea.vmem %s8, 160
        %v3934 = vld [vmem:[%s3933] sm:$0xff]
        %s3935 = scalar_lea.vmem %s5, 672
        %v3936 = vld [vmem:[%s3935] sm:$0xff]
        %v3937 = vld [vmem:[%s3935 + $0x8] sm:$0xff]
        %v3938 = vld [vmem:[%s3935 + $0x10] sm:$0xff]
        %v3939 = vld [vmem:[%s3935 + $0x18] sm:$0xff]
        %3940 = vmatpush.msra.mxu0 0.0
        %3941 = vmatpush.msra.mxu0 0.0
        %3942 = vmatpush.msra.mxu0 0.0
        %3943 = vmatpush.msra.mxu0 0.0
        %3944 = vmatpush.msra.mxu0 0.0
        %3945 = vmatpush.msra.mxu0 0.0
        %3946 = vmatpush.msra.mxu0 0.0
        %3947 = vmatpush.msra.mxu0 0.0
        %3948 = vmatpush.msra.mxu0 0.0
        %3949 = vmatpush.msra.mxu0 0.0
        %3950 = vmatpush.msra.mxu0 0.0
        %3951 = vmatpush.msra.mxu0 0.0
        %3952 = vmatpush.msra.mxu0 %v3939
        %3953 = vmatpush.msra.mxu0 %v3938
        %3954 = vmatpush.msra.mxu0 %v3937
        %3955 = vmatpush.msra.mxu0 %v3936
        %3956 = vmatmul.f32.gmra.mxu0 %v2487
        %v3957 = vpop.f32.mrf.mxu0
        %v3958 = vadd.f32 0.0, %v3957
        %3959 = vdwg.mxu0
        %s3960 = scalar_lea.vmem %s6, 672
        %v3961 = vld [vmem:[%s3960] sm:$0xff]
        %v3962 = vld [vmem:[%s3960 + $0x8] sm:$0xff]
        %v3963 = vld [vmem:[%s3960 + $0x10] sm:$0xff]
        %v3964 = vld [vmem:[%s3960 + $0x18] sm:$0xff]
        %3965 = vmatpush.msra.mxu0 0.0
        %3966 = vmatpush.msra.mxu0 0.0
        %3967 = vmatpush.msra.mxu0 0.0
        %3968 = vmatpush.msra.mxu0 0.0
        %3969 = vmatpush.msra.mxu0 0.0
        %3970 = vmatpush.msra.mxu0 0.0
        %3971 = vmatpush.msra.mxu0 0.0
        %3972 = vmatpush.msra.mxu0 0.0
        %3973 = vmatpush.msra.mxu0 0.0
        %3974 = vmatpush.msra.mxu0 0.0
        %3975 = vmatpush.msra.mxu0 0.0
        %3976 = vmatpush.msra.mxu0 0.0
        %3977 = vmatpush.msra.mxu0 %v3964
        %3978 = vmatpush.msra.mxu0 %v3963
        %3979 = vmatpush.msra.mxu0 %v3962
        %3980 = vmatpush.msra.mxu0 %v3961
        %3981 = vmatmul.f32.gmra.mxu0 %v2487
        %v3982 = vpop.f32.mrf.mxu0
        %v3983 = vadd.f32 0.0, %v3982
        %3984 = vdwg.mxu0
        %s3985 = scalar_lea.vmem %s7, 672
        %v3986 = vld [vmem:[%s3985] sm:$0xff]
        %v3987 = vld [vmem:[%s3985 + $0x8] sm:$0xff]
        %v3988 = vld [vmem:[%s3985 + $0x10] sm:$0xff]
        %v3989 = vld [vmem:[%s3985 + $0x18] sm:$0xff]
        %3990 = vmatpush.msra.mxu0 0.0
        %3991 = vmatpush.msra.mxu0 0.0
        %3992 = vmatpush.msra.mxu0 0.0
        %3993 = vmatpush.msra.mxu0 0.0
        %3994 = vmatpush.msra.mxu0 0.0
        %3995 = vmatpush.msra.mxu0 0.0
        %3996 = vmatpush.msra.mxu0 0.0
        %3997 = vmatpush.msra.mxu0 0.0
        %3998 = vmatpush.msra.mxu0 0.0
        %3999 = vmatpush.msra.mxu0 0.0
        %4000 = vmatpush.msra.mxu0 0.0
        %4001 = vmatpush.msra.mxu0 0.0
        %4002 = vmatpush.msra.mxu0 %v3989
        %4003 = vmatpush.msra.mxu0 %v3988
        %4004 = vmatpush.msra.mxu0 %v3987
        %4005 = vmatpush.msra.mxu0 %v3986
        %4006 = vmatmul.f32.gmra.mxu0 %v2487
        %v4007 = vpop.f32.mrf.mxu0
        %v4008 = vadd.f32 0.0, %v4007
        %4009 = vdwg.mxu0
        %v4011 = vsel %vm584, %v3958, 0
        %v4014 = vsel %vm584, %v3983, 0
        %4016 = vmatpush.xpose.msra.mxu0 0.0
        %4017 = vmatpush.xpose.msra.mxu0 0.0
        %4018 = vmatpush.xpose.msra.mxu0 0.0
        %4019 = vmatpush.xpose.msra.mxu0 0.0
        %4020 = vmatpush.xpose.msra.mxu0 0.0
        %4021 = vmatpush.xpose.msra.mxu0 0.0
        %4022 = vmatpush.xpose.msra.mxu0 0.0
        %4023 = vmatpush.xpose.msra.mxu0 0.0
        %4024 = vmatpush.xpose.msra.mxu0 0.0
        %4025 = vmatpush.xpose.msra.mxu0 0.0
        %4026 = vmatpush.xpose.msra.mxu0 0.0
        %4027 = vmatpush.xpose.msra.mxu0 0.0
        %4028 = vmatpush.xpose.msra.mxu0 0.0
        %4029 = vmatpush.xpose.msra.mxu0 0.0
        %4030 = vmatpush.xpose.msra.mxu0 0.0
        %4031 = vmatpush.xpose.msra.mxu0 %v4014
        %4032 = vmatmul.f32.gmra.mxu0 %v4011
        %v4033 = vpop.f32.mrf.mxu0
        %v4034 = vadd.f32 0.0, %v4033
        %4035 = vdwg.mxu0
        %v4036 = vmul.f32 %v4034, 0.17677669
        %v4037 = vsel %vm468, %v4036, -1e+30
        %v4038 = vsel %vm584, %v4037, -inf
        %4039 = vmax.xlane.f32.xlu0 %v4038
        %v4040 = vpop.xlane.xlu0 %4039
        %v4041 = vsub.f32 %v4037, %v4040
        %v4042 = vmul.f32 %v4041, 1.442695
        %v4043 = vpow.pop %v4042
        %v4044 = vsel %vm584, %v4043, 0.0
        %4045 = vadd.xlane.f32.xlu0 %v4044
        %v4046 = vpop.xlane.xlu0 %4045
        %v4047 = vrcp.pop %v4046
        %v4048 = vmul.f32 %v4043, %v4047
        %v4050 = vsel %vm584, %v4048, 0
        %4052 = vmatpush.msra.mxu0 0.0
        %4053 = vmatpush.msra.mxu0 0.0
        %4054 = vmatpush.msra.mxu0 0.0
        %4055 = vmatpush.msra.mxu0 0.0
        %4056 = vmatpush.msra.mxu0 0.0
        %4057 = vmatpush.msra.mxu0 0.0
        %4058 = vmatpush.msra.mxu0 0.0
        %4059 = vmatpush.msra.mxu0 0.0
        %4060 = vmatpush.msra.mxu0 0.0
        %4061 = vmatpush.msra.mxu0 0.0
        %4062 = vmatpush.msra.mxu0 0.0
        %4063 = vmatpush.msra.mxu0 0.0
        %4064 = vmatpush.msra.mxu0 0.0
        %4065 = vmatpush.msra.mxu0 0.0
        %4066 = vmatpush.msra.mxu0 0.0
        %4067 = vmatpush.msra.mxu0 %v4008
        %4068 = vmatmul.f32.gmra.mxu0 %v4050
        %v4069 = vpop.f32.mrf.mxu0
        %v4070 = vadd.f32 0.0, %v4069
        %4071 = vdwg.mxu0
        %s4072 = scalar_lea.vmem %s8, 168
        %v4073 = vld [vmem:[%s4072] sm:$0xff]
        %v4075 = vsel %vm584, %v4070, 0
        %4077 = vmatpush.msra.mxu0 0.0
        %4078 = vmatpush.msra.mxu0 0.0
        %4079 = vmatpush.msra.mxu0 0.0
        %4080 = vmatpush.msra.mxu0 0.0
        %4081 = vmatpush.msra.mxu0 0.0
        %4082 = vmatpush.msra.mxu0 0.0
        %4083 = vmatpush.msra.mxu0 0.0
        %4084 = vmatpush.msra.mxu0 0.0
        %4085 = vmatpush.msra.mxu0 0.0
        %4086 = vmatpush.msra.mxu0 0.0
        %4087 = vmatpush.msra.mxu0 0.0
        %4088 = vmatpush.msra.mxu0 0.0
        %4089 = vmatpush.msra.mxu0 0.0
        %4090 = vmatpush.msra.mxu0 0.0
        %4091 = vmatpush.msra.mxu0 0.0
        %4092 = vmatpush.msra.mxu0 %v4073
        %4093 = vmatmul.f32.gmra.mxu0 %v4075
        %v4094 = vpop.f32.mrf.mxu0
        %v4095 = vadd.f32 0.0, %v4094
        %4096 = vdwg.mxu0
        %v4098 = vsel %vm584, %v3931, 0
        %4100 = vmatpush.msra.mxu0 0.0
        %4101 = vmatpush.msra.mxu0 0.0
        %4102 = vmatpush.msra.mxu0 0.0
        %4103 = vmatpush.msra.mxu0 0.0
        %4104 = vmatpush.msra.mxu0 0.0
        %4105 = vmatpush.msra.mxu0 0.0
        %4106 = vmatpush.msra.mxu0 0.0
        %4107 = vmatpush.msra.mxu0 0.0
        %4108 = vmatpush.msra.mxu0 0.0
        %4109 = vmatpush.msra.mxu0 0.0
        %4110 = vmatpush.msra.mxu0 0.0
        %4111 = vmatpush.msra.mxu0 0.0
        %4112 = vmatpush.msra.mxu0 0.0
        %4113 = vmatpush.msra.mxu0 0.0
        %4114 = vmatpush.msra.mxu0 0.0
        %4115 = vmatpush.msra.mxu0 %v3934
        %4116 = vmatmul.f32.gmra.mxu0 %v4098
        %v4117 = vpop.f32.mrf.mxu0
        %v4118 = vadd.f32 %v4095, %v4117
        %4119 = vdwg.mxu0
        %s4120 = scalar_lea.vmem %s5, 704
        %v4121 = vld [vmem:[%s4120] sm:$0xff]
        %v4122 = vld [vmem:[%s4120 + $0x8] sm:$0xff]
        %v4123 = vld [vmem:[%s4120 + $0x10] sm:$0xff]
        %v4124 = vld [vmem:[%s4120 + $0x18] sm:$0xff]
        %4125 = vmatpush.msra.mxu0 0.0
        %4126 = vmatpush.msra.mxu0 0.0
        %4127 = vmatpush.msra.mxu0 0.0
        %4128 = vmatpush.msra.mxu0 0.0
        %4129 = vmatpush.msra.mxu0 0.0
        %4130 = vmatpush.msra.mxu0 0.0
        %4131 = vmatpush.msra.mxu0 0.0
        %4132 = vmatpush.msra.mxu0 0.0
        %4133 = vmatpush.msra.mxu0 0.0
        %4134 = vmatpush.msra.mxu0 0.0
        %4135 = vmatpush.msra.mxu0 0.0
        %4136 = vmatpush.msra.mxu0 0.0
        %4137 = vmatpush.msra.mxu0 %v4124
        %4138 = vmatpush.msra.mxu0 %v4123
        %4139 = vmatpush.msra.mxu0 %v4122
        %4140 = vmatpush.msra.mxu0 %v4121
        %4141 = vmatmul.f32.gmra.mxu0 %v2487
        %v4142 = vpop.f32.mrf.mxu0
        %v4143 = vadd.f32 0.0, %v4142
        %4144 = vdwg.mxu0
        %s4145 = scalar_lea.vmem %s6, 704
        %v4146 = vld [vmem:[%s4145] sm:$0xff]
        %v4147 = vld [vmem:[%s4145 + $0x8] sm:$0xff]
        %v4148 = vld [vmem:[%s4145 + $0x10] sm:$0xff]
        %v4149 = vld [vmem:[%s4145 + $0x18] sm:$0xff]
        %4150 = vmatpush.msra.mxu0 0.0
        %4151 = vmatpush.msra.mxu0 0.0
        %4152 = vmatpush.msra.mxu0 0.0
        %4153 = vmatpush.msra.mxu0 0.0
        %4154 = vmatpush.msra.mxu0 0.0
        %4155 = vmatpush.msra.mxu0 0.0
        %4156 = vmatpush.msra.mxu0 0.0
        %4157 = vmatpush.msra.mxu0 0.0
        %4158 = vmatpush.msra.mxu0 0.0
        %4159 = vmatpush.msra.mxu0 0.0
        %4160 = vmatpush.msra.mxu0 0.0
        %4161 = vmatpush.msra.mxu0 0.0
        %4162 = vmatpush.msra.mxu0 %v4149
        %4163 = vmatpush.msra.mxu0 %v4148
        %4164 = vmatpush.msra.mxu0 %v4147
        %4165 = vmatpush.msra.mxu0 %v4146
        %4166 = vmatmul.f32.gmra.mxu0 %v2487
        %v4167 = vpop.f32.mrf.mxu0
        %v4168 = vadd.f32 0.0, %v4167
        %4169 = vdwg.mxu0
        %s4170 = scalar_lea.vmem %s7, 704
        %v4171 = vld [vmem:[%s4170] sm:$0xff]
        %v4172 = vld [vmem:[%s4170 + $0x8] sm:$0xff]
        %v4173 = vld [vmem:[%s4170 + $0x10] sm:$0xff]
        %v4174 = vld [vmem:[%s4170 + $0x18] sm:$0xff]
        %4175 = vmatpush.msra.mxu0 0.0
        %4176 = vmatpush.msra.mxu0 0.0
        %4177 = vmatpush.msra.mxu0 0.0
        %4178 = vmatpush.msra.mxu0 0.0
        %4179 = vmatpush.msra.mxu0 0.0
        %4180 = vmatpush.msra.mxu0 0.0
        %4181 = vmatpush.msra.mxu0 0.0
        %4182 = vmatpush.msra.mxu0 0.0
        %4183 = vmatpush.msra.mxu0 0.0
        %4184 = vmatpush.msra.mxu0 0.0
        %4185 = vmatpush.msra.mxu0 0.0
        %4186 = vmatpush.msra.mxu0 0.0
        %4187 = vmatpush.msra.mxu0 %v4174
        %4188 = vmatpush.msra.mxu0 %v4173
        %4189 = vmatpush.msra.mxu0 %v4172
        %4190 = vmatpush.msra.mxu0 %v4171
        %4191 = vmatmul.f32.gmra.mxu0 %v2487
        %v4192 = vpop.f32.mrf.mxu0
        %v4193 = vadd.f32 0.0, %v4192
        %4194 = vdwg.mxu0
        %v4196 = vsel %vm584, %v4143, 0
        %v4199 = vsel %vm584, %v4168, 0
        %4201 = vmatpush.xpose.msra.mxu0 0.0
        %4202 = vmatpush.xpose.msra.mxu0 0.0
        %4203 = vmatpush.xpose.msra.mxu0 0.0
        %4204 = vmatpush.xpose.msra.mxu0 0.0
        %4205 = vmatpush.xpose.msra.mxu0 0.0
        %4206 = vmatpush.xpose.msra.mxu0 0.0
        %4207 = vmatpush.xpose.msra.mxu0 0.0
        %4208 = vmatpush.xpose.msra.mxu0 0.0
        %4209 = vmatpush.xpose.msra.mxu0 0.0
        %4210 = vmatpush.xpose.msra.mxu0 0.0
        %4211 = vmatpush.xpose.msra.mxu0 0.0
        %4212 = vmatpush.xpose.msra.mxu0 0.0
        %4213 = vmatpush.xpose.msra.mxu0 0.0
        %4214 = vmatpush.xpose.msra.mxu0 0.0
        %4215 = vmatpush.xpose.msra.mxu0 0.0
        %4216 = vmatpush.xpose.msra.mxu0 %v4199
        %4217 = vmatmul.f32.gmra.mxu0 %v4196
        %v4218 = vpop.f32.mrf.mxu0
        %v4219 = vadd.f32 0.0, %v4218
        %4220 = vdwg.mxu0
        %v4221 = vmul.f32 %v4219, 0.17677669
        %v4222 = vsel %vm468, %v4221, -1e+30
        %v4223 = vsel %vm584, %v4222, -inf
        %4224 = vmax.xlane.f32.xlu0 %v4223
        %v4225 = vpop.xlane.xlu0 %4224
        %v4226 = vsub.f32 %v4222, %v4225
        %v4227 = vmul.f32 %v4226, 1.442695
        %v4228 = vpow.pop %v4227
        %v4229 = vsel %vm584, %v4228, 0.0
        %4230 = vadd.xlane.f32.xlu0 %v4229
        %v4231 = vpop.xlane.xlu0 %4230
        %v4232 = vrcp.pop %v4231
        %v4233 = vmul.f32 %v4228, %v4232
        %v4235 = vsel %vm584, %v4233, 0
        %4237 = vmatpush.msra.mxu0 0.0
        %4238 = vmatpush.msra.mxu0 0.0
        %4239 = vmatpush.msra.mxu0 0.0
        %4240 = vmatpush.msra.mxu0 0.0
        %4241 = vmatpush.msra.mxu0 0.0
        %4242 = vmatpush.msra.mxu0 0.0
        %4243 = vmatpush.msra.mxu0 0.0
        %4244 = vmatpush.msra.mxu0 0.0
        %4245 = vmatpush.msra.mxu0 0.0
        %4246 = vmatpush.msra.mxu0 0.0
        %4247 = vmatpush.msra.mxu0 0.0
        %4248 = vmatpush.msra.mxu0 0.0
        %4249 = vmatpush.msra.mxu0 0.0
        %4250 = vmatpush.msra.mxu0 0.0
        %4251 = vmatpush.msra.mxu0 0.0
        %4252 = vmatpush.msra.mxu0 %v4193
        %4253 = vmatmul.f32.gmra.mxu0 %v4235
        %v4254 = vpop.f32.mrf.mxu0
        %v4255 = vadd.f32 0.0, %v4254
        %4256 = vdwg.mxu0
        %s4257 = scalar_lea.vmem %s8, 176
        %v4258 = vld [vmem:[%s4257] sm:$0xff]
        %v4260 = vsel %vm584, %v4255, 0
        %4262 = vmatpush.msra.mxu0 0.0
        %4263 = vmatpush.msra.mxu0 0.0
        %4264 = vmatpush.msra.mxu0 0.0
        %4265 = vmatpush.msra.mxu0 0.0
        %4266 = vmatpush.msra.mxu0 0.0
        %4267 = vmatpush.msra.mxu0 0.0
        %4268 = vmatpush.msra.mxu0 0.0
        %4269 = vmatpush.msra.mxu0 0.0
        %4270 = vmatpush.msra.mxu0 0.0
        %4271 = vmatpush.msra.mxu0 0.0
        %4272 = vmatpush.msra.mxu0 0.0
        %4273 = vmatpush.msra.mxu0 0.0
        %4274 = vmatpush.msra.mxu0 0.0
        %4275 = vmatpush.msra.mxu0 0.0
        %4276 = vmatpush.msra.mxu0 0.0
        %4277 = vmatpush.msra.mxu0 %v4258
        %4278 = vmatmul.f32.gmra.mxu0 %v4260
        %v4279 = vpop.f32.mrf.mxu0
        %v4280 = vadd.f32 0.0, %v4279
        %4281 = vdwg.mxu0
        %v4282 = vadd.f32 %v4118, %v4280
        %s4283 = scalar_lea.vmem %s5, 736
        %v4284 = vld [vmem:[%s4283] sm:$0xff]
        %v4285 = vld [vmem:[%s4283 + $0x8] sm:$0xff]
        %v4286 = vld [vmem:[%s4283 + $0x10] sm:$0xff]
        %v4287 = vld [vmem:[%s4283 + $0x18] sm:$0xff]
        %4288 = vmatpush.msra.mxu0 0.0
        %4289 = vmatpush.msra.mxu0 0.0
        %4290 = vmatpush.msra.mxu0 0.0
        %4291 = vmatpush.msra.mxu0 0.0
        %4292 = vmatpush.msra.mxu0 0.0
        %4293 = vmatpush.msra.mxu0 0.0
        %4294 = vmatpush.msra.mxu0 0.0
        %4295 = vmatpush.msra.mxu0 0.0
        %4296 = vmatpush.msra.mxu0 0.0
        %4297 = vmatpush.msra.mxu0 0.0
        %4298 = vmatpush.msra.mxu0 0.0
        %4299 = vmatpush.msra.mxu0 0.0
        %4300 = vmatpush.msra.mxu0 %v4287
        %4301 = vmatpush.msra.mxu0 %v4286
        %4302 = vmatpush.msra.mxu0 %v4285
        %4303 = vmatpush.msra.mxu0 %v4284
        %4304 = vmatmul.f32.gmra.mxu0 %v2487
        %v4305 = vpop.f32.mrf.mxu0
        %v4306 = vadd.f32 0.0, %v4305
        %4307 = vdwg.mxu0
        %s4308 = scalar_lea.vmem %s6, 736
        %v4309 = vld [vmem:[%s4308] sm:$0xff]
        %v4310 = vld [vmem:[%s4308 + $0x8] sm:$0xff]
        %v4311 = vld [vmem:[%s4308 + $0x10] sm:$0xff]
        %v4312 = vld [vmem:[%s4308 + $0x18] sm:$0xff]
        %4313 = vmatpush.msra.mxu0 0.0
        %4314 = vmatpush.msra.mxu0 0.0
        %4315 = vmatpush.msra.mxu0 0.0
        %4316 = vmatpush.msra.mxu0 0.0
        %4317 = vmatpush.msra.mxu0 0.0
        %4318 = vmatpush.msra.mxu0 0.0
        %4319 = vmatpush.msra.mxu0 0.0
        %4320 = vmatpush.msra.mxu0 0.0
        %4321 = vmatpush.msra.mxu0 0.0
        %4322 = vmatpush.msra.mxu0 0.0
        %4323 = vmatpush.msra.mxu0 0.0
        %4324 = vmatpush.msra.mxu0 0.0
        %4325 = vmatpush.msra.mxu0 %v4312
        %4326 = vmatpush.msra.mxu0 %v4311
        %4327 = vmatpush.msra.mxu0 %v4310
        %4328 = vmatpush.msra.mxu0 %v4309
        %4329 = vmatmul.f32.gmra.mxu0 %v2487
        %v4330 = vpop.f32.mrf.mxu0
        %v4331 = vadd.f32 0.0, %v4330
        %4332 = vdwg.mxu0
        %s4333 = scalar_lea.vmem %s7, 736
        %v4334 = vld [vmem:[%s4333] sm:$0xff]
        %v4335 = vld [vmem:[%s4333 + $0x8] sm:$0xff]
        %v4336 = vld [vmem:[%s4333 + $0x10] sm:$0xff]
        %v4337 = vld [vmem:[%s4333 + $0x18] sm:$0xff]
        %4338 = vmatpush.msra.mxu0 0.0
        %4339 = vmatpush.msra.mxu0 0.0
        %4340 = vmatpush.msra.mxu0 0.0
        %4341 = vmatpush.msra.mxu0 0.0
        %4342 = vmatpush.msra.mxu0 0.0
        %4343 = vmatpush.msra.mxu0 0.0
        %4344 = vmatpush.msra.mxu0 0.0
        %4345 = vmatpush.msra.mxu0 0.0
        %4346 = vmatpush.msra.mxu0 0.0
        %4347 = vmatpush.msra.mxu0 0.0
        %4348 = vmatpush.msra.mxu0 0.0
        %4349 = vmatpush.msra.mxu0 0.0
        %4350 = vmatpush.msra.mxu0 %v4337
        %4351 = vmatpush.msra.mxu0 %v4336
        %4352 = vmatpush.msra.mxu0 %v4335
        %4353 = vmatpush.msra.mxu0 %v4334
        %4354 = vmatmul.f32.gmra.mxu0 %v2487
        %v4355 = vpop.f32.mrf.mxu0
        %v4356 = vadd.f32 0.0, %v4355
        %4357 = vdwg.mxu0
        %v4359 = vsel %vm584, %v4306, 0
        %v4362 = vsel %vm584, %v4331, 0
        %4364 = vmatpush.xpose.msra.mxu0 0.0
        %4365 = vmatpush.xpose.msra.mxu0 0.0
        %4366 = vmatpush.xpose.msra.mxu0 0.0
        %4367 = vmatpush.xpose.msra.mxu0 0.0
        %4368 = vmatpush.xpose.msra.mxu0 0.0
        %4369 = vmatpush.xpose.msra.mxu0 0.0
        %4370 = vmatpush.xpose.msra.mxu0 0.0
        %4371 = vmatpush.xpose.msra.mxu0 0.0
        %4372 = vmatpush.xpose.msra.mxu0 0.0
        %4373 = vmatpush.xpose.msra.mxu0 0.0
        %4374 = vmatpush.xpose.msra.mxu0 0.0
        %4375 = vmatpush.xpose.msra.mxu0 0.0
        %4376 = vmatpush.xpose.msra.mxu0 0.0
        %4377 = vmatpush.xpose.msra.mxu0 0.0
        %4378 = vmatpush.xpose.msra.mxu0 0.0
        %4379 = vmatpush.xpose.msra.mxu0 %v4362
        %4380 = vmatmul.f32.gmra.mxu0 %v4359
        %v4381 = vpop.f32.mrf.mxu0
        %v4382 = vadd.f32 0.0, %v4381
        %4383 = vdwg.mxu0
        %v4384 = vmul.f32 %v4382, 0.17677669
        %v4385 = vsel %vm468, %v4384, -1e+30
        %v4386 = vsel %vm584, %v4385, -inf
        %4387 = vmax.xlane.f32.xlu0 %v4386
        %v4388 = vpop.xlane.xlu0 %4387
        %v4389 = vsub.f32 %v4385, %v4388
        %v4390 = vmul.f32 %v4389, 1.442695
        %v4391 = vpow.pop %v4390
        %v4392 = vsel %vm584, %v4391, 0.0
        %4393 = vadd.xlane.f32.xlu0 %v4392
        %v4394 = vpop.xlane.xlu0 %4393
        %v4395 = vrcp.pop %v4394
        %v4396 = vmul.f32 %v4391, %v4395
        %v4398 = vsel %vm584, %v4396, 0
        %4400 = vmatpush.msra.mxu0 0.0
        %4401 = vmatpush.msra.mxu0 0.0
        %4402 = vmatpush.msra.mxu0 0.0
        %4403 = vmatpush.msra.mxu0 0.0
        %4404 = vmatpush.msra.mxu0 0.0
        %4405 = vmatpush.msra.mxu0 0.0
        %4406 = vmatpush.msra.mxu0 0.0
        %4407 = vmatpush.msra.mxu0 0.0
        %4408 = vmatpush.msra.mxu0 0.0
        %4409 = vmatpush.msra.mxu0 0.0
        %4410 = vmatpush.msra.mxu0 0.0
        %4411 = vmatpush.msra.mxu0 0.0
        %4412 = vmatpush.msra.mxu0 0.0
        %4413 = vmatpush.msra.mxu0 0.0
        %4414 = vmatpush.msra.mxu0 0.0
        %4415 = vmatpush.msra.mxu0 %v4356
        %4416 = vmatmul.f32.gmra.mxu0 %v4398
        %v4417 = vpop.f32.mrf.mxu0
        %v4418 = vadd.f32 0.0, %v4417
        %4419 = vdwg.mxu0
        %s4420 = scalar_lea.vmem %s8, 184
        %v4421 = vld [vmem:[%s4420] sm:$0xff]
        %v4423 = vsel %vm584, %v4418, 0
        %4425 = vmatpush.msra.mxu0 0.0
        %4426 = vmatpush.msra.mxu0 0.0
        %4427 = vmatpush.msra.mxu0 0.0
        %4428 = vmatpush.msra.mxu0 0.0
        %4429 = vmatpush.msra.mxu0 0.0
        %4430 = vmatpush.msra.mxu0 0.0
        %4431 = vmatpush.msra.mxu0 0.0
        %4432 = vmatpush.msra.mxu0 0.0
        %4433 = vmatpush.msra.mxu0 0.0
        %4434 = vmatpush.msra.mxu0 0.0
        %4435 = vmatpush.msra.mxu0 0.0
        %4436 = vmatpush.msra.mxu0 0.0
        %4437 = vmatpush.msra.mxu0 0.0
        %4438 = vmatpush.msra.mxu0 0.0
        %4439 = vmatpush.msra.mxu0 0.0
        %4440 = vmatpush.msra.mxu0 %v4421
        %4441 = vmatmul.f32.gmra.mxu0 %v4423
        %v4442 = vpop.f32.mrf.mxu0
        %v4443 = vadd.f32 0.0, %v4442
        %4444 = vdwg.mxu0
        %v4445 = vadd.f32 %v4282, %v4443
        %s4446 = scalar_lea.vmem %s9, 5
        %v4447 = vld [vmem:[%s4446] sm:$0x1]
        %v4449 = vperm.slane %v4447, 0
        %v4451 = vadd.f32 %v4445, %v4449
        %s4452 = scalar_lea.vmem %s5, 768
        %v4453 = vld [vmem:[%s4452] sm:$0xff]
        %v4454 = vld [vmem:[%s4452 + $0x8] sm:$0xff]
        %v4455 = vld [vmem:[%s4452 + $0x10] sm:$0xff]
        %v4456 = vld [vmem:[%s4452 + $0x18] sm:$0xff]
        %v4458 = vsel %vm471, %v3139, 0
        %4460 = vmatpush.msra.mxu0 0.0
        %4461 = vmatpush.msra.mxu0 0.0
        %4462 = vmatpush.msra.mxu0 0.0
        %4463 = vmatpush.msra.mxu0 0.0
        %4464 = vmatpush.msra.mxu0 0.0
        %4465 = vmatpush.msra.mxu0 0.0
        %4466 = vmatpush.msra.mxu0 0.0
        %4467 = vmatpush.msra.mxu0 0.0
        %4468 = vmatpush.msra.mxu0 0.0
        %4469 = vmatpush.msra.mxu0 0.0
        %4470 = vmatpush.msra.mxu0 0.0
        %4471 = vmatpush.msra.mxu0 0.0
        %4472 = vmatpush.msra.mxu0 %v4456
        %4473 = vmatpush.msra.mxu0 %v4455
        %4474 = vmatpush.msra.mxu0 %v4454
        %4475 = vmatpush.msra.mxu0 %v4453
        %4476 = vmatmul.f32.gmra.mxu0 %v4458
        %v4477 = vpop.f32.mrf.mxu0
        %v4478 = vadd.f32 0.0, %v4477
        %4479 = vdwg.mxu0
        %s4480 = scalar_lea.vmem %s6, 768
        %v4481 = vld [vmem:[%s4480] sm:$0xff]
        %v4482 = vld [vmem:[%s4480 + $0x8] sm:$0xff]
        %v4483 = vld [vmem:[%s4480 + $0x10] sm:$0xff]
        %v4484 = vld [vmem:[%s4480 + $0x18] sm:$0xff]
        %4485 = vmatpush.msra.mxu0 0.0
        %4486 = vmatpush.msra.mxu0 0.0
        %4487 = vmatpush.msra.mxu0 0.0
        %4488 = vmatpush.msra.mxu0 0.0
        %4489 = vmatpush.msra.mxu0 0.0
        %4490 = vmatpush.msra.mxu0 0.0
        %4491 = vmatpush.msra.mxu0 0.0
        %4492 = vmatpush.msra.mxu0 0.0
        %4493 = vmatpush.msra.mxu0 0.0
        %4494 = vmatpush.msra.mxu0 0.0
        %4495 = vmatpush.msra.mxu0 0.0
        %4496 = vmatpush.msra.mxu0 0.0
        %4497 = vmatpush.msra.mxu0 %v4484
        %4498 = vmatpush.msra.mxu0 %v4483
        %4499 = vmatpush.msra.mxu0 %v4482
        %4500 = vmatpush.msra.mxu0 %v4481
        %4501 = vmatmul.f32.gmra.mxu0 %v4458
        %v4502 = vpop.f32.mrf.mxu0
        %v4503 = vadd.f32 0.0, %v4502
        %4504 = vdwg.mxu0
        %s4505 = scalar_lea.vmem %s7, 768
        %v4506 = vld [vmem:[%s4505] sm:$0xff]
        %v4507 = vld [vmem:[%s4505 + $0x8] sm:$0xff]
        %v4508 = vld [vmem:[%s4505 + $0x10] sm:$0xff]
        %v4509 = vld [vmem:[%s4505 + $0x18] sm:$0xff]
        %4510 = vmatpush.msra.mxu0 0.0
        %4511 = vmatpush.msra.mxu0 0.0
        %4512 = vmatpush.msra.mxu0 0.0
        %4513 = vmatpush.msra.mxu0 0.0
        %4514 = vmatpush.msra.mxu0 0.0
        %4515 = vmatpush.msra.mxu0 0.0
        %4516 = vmatpush.msra.mxu0 0.0
        %4517 = vmatpush.msra.mxu0 0.0
        %4518 = vmatpush.msra.mxu0 0.0
        %4519 = vmatpush.msra.mxu0 0.0
        %4520 = vmatpush.msra.mxu0 0.0
        %4521 = vmatpush.msra.mxu0 0.0
        %4522 = vmatpush.msra.mxu0 %v4509
        %4523 = vmatpush.msra.mxu0 %v4508
        %4524 = vmatpush.msra.mxu0 %v4507
        %4525 = vmatpush.msra.mxu0 %v4506
        %4526 = vmatmul.f32.gmra.mxu0 %v4458
        %v4527 = vpop.f32.mrf.mxu0
        %v4528 = vadd.f32 0.0, %v4527
        %4529 = vdwg.mxu0
        %v4531 = vsel %vm584, %v4478, 0
        %v4534 = vsel %vm584, %v4503, 0
        %4536 = vmatpush.xpose.msra.mxu0 0.0
        %4537 = vmatpush.xpose.msra.mxu0 0.0
        %4538 = vmatpush.xpose.msra.mxu0 0.0
        %4539 = vmatpush.xpose.msra.mxu0 0.0
        %4540 = vmatpush.xpose.msra.mxu0 0.0
        %4541 = vmatpush.xpose.msra.mxu0 0.0
        %4542 = vmatpush.xpose.msra.mxu0 0.0
        %4543 = vmatpush.xpose.msra.mxu0 0.0
        %4544 = vmatpush.xpose.msra.mxu0 0.0
        %4545 = vmatpush.xpose.msra.mxu0 0.0
        %4546 = vmatpush.xpose.msra.mxu0 0.0
        %4547 = vmatpush.xpose.msra.mxu0 0.0
        %4548 = vmatpush.xpose.msra.mxu0 0.0
        %4549 = vmatpush.xpose.msra.mxu0 0.0
        %4550 = vmatpush.xpose.msra.mxu0 0.0
        %4551 = vmatpush.xpose.msra.mxu0 %v4534
        %4552 = vmatmul.f32.gmra.mxu0 %v4531
        %v4553 = vpop.f32.mrf.mxu0
        %v4554 = vadd.f32 0.0, %v4553
        %4555 = vdwg.mxu0
        %v4556 = vmul.f32 %v4554, 0.17677669
        %v4557 = vsel %vm468, %v4556, -1e+30
        %v4558 = vsel %vm584, %v4557, -inf
        %4559 = vmax.xlane.f32.xlu0 %v4558
        %v4560 = vpop.xlane.xlu0 %4559
        %v4561 = vsub.f32 %v4557, %v4560
        %v4562 = vmul.f32 %v4561, 1.442695
        %v4563 = vpow.pop %v4562
        %v4564 = vsel %vm584, %v4563, 0.0
        %4565 = vadd.xlane.f32.xlu0 %v4564
        %v4566 = vpop.xlane.xlu0 %4565
        %v4567 = vrcp.pop %v4566
        %v4568 = vmul.f32 %v4563, %v4567
        %v4570 = vsel %vm584, %v4568, 0
        %4572 = vmatpush.msra.mxu0 0.0
        %4573 = vmatpush.msra.mxu0 0.0
        %4574 = vmatpush.msra.mxu0 0.0
        %4575 = vmatpush.msra.mxu0 0.0
        %4576 = vmatpush.msra.mxu0 0.0
        %4577 = vmatpush.msra.mxu0 0.0
        %4578 = vmatpush.msra.mxu0 0.0
        %4579 = vmatpush.msra.mxu0 0.0
        %4580 = vmatpush.msra.mxu0 0.0
        %4581 = vmatpush.msra.mxu0 0.0
        %4582 = vmatpush.msra.mxu0 0.0
        %4583 = vmatpush.msra.mxu0 0.0
        %4584 = vmatpush.msra.mxu0 0.0
        %4585 = vmatpush.msra.mxu0 0.0
        %4586 = vmatpush.msra.mxu0 0.0
        %4587 = vmatpush.msra.mxu0 %v4528
        %4588 = vmatmul.f32.gmra.mxu0 %v4570
        %v4589 = vpop.f32.mrf.mxu0
        %v4590 = vadd.f32 0.0, %v4589
        %4591 = vdwg.mxu0
        %s4592 = scalar_lea.vmem %s8, 192
        %v4593 = vld [vmem:[%s4592] sm:$0xff]
        %s4594 = scalar_lea.vmem %s5, 800
        %v4595 = vld [vmem:[%s4594] sm:$0xff]
        %v4596 = vld [vmem:[%s4594 + $0x8] sm:$0xff]
        %v4597 = vld [vmem:[%s4594 + $0x10] sm:$0xff]
        %v4598 = vld [vmem:[%s4594 + $0x18] sm:$0xff]
        %4599 = vmatpush.msra.mxu0 0.0
        %4600 = vmatpush.msra.mxu0 0.0
        %4601 = vmatpush.msra.mxu0 0.0
        %4602 = vmatpush.msra.mxu0 0.0
        %4603 = vmatpush.msra.mxu0 0.0
        %4604 = vmatpush.msra.mxu0 0.0
        %4605 = vmatpush.msra.mxu0 0.0
        %4606 = vmatpush.msra.mxu0 0.0
        %4607 = vmatpush.msra.mxu0 0.0
        %4608 = vmatpush.msra.mxu0 0.0
        %4609 = vmatpush.msra.mxu0 0.0
        %4610 = vmatpush.msra.mxu0 0.0
        %4611 = vmatpush.msra.mxu0 %v4598
        %4612 = vmatpush.msra.mxu0 %v4597
        %4613 = vmatpush.msra.mxu0 %v4596
        %4614 = vmatpush.msra.mxu0 %v4595
        %4615 = vmatmul.f32.gmra.mxu0 %v4458
        %v4616 = vpop.f32.mrf.mxu0
        %v4617 = vadd.f32 0.0, %v4616
        %4618 = vdwg.mxu0
        %s4619 = scalar_lea.vmem %s6, 800
        %v4620 = vld [vmem:[%s4619] sm:$0xff]
        %v4621 = vld [vmem:[%s4619 + $0x8] sm:$0xff]
        %v4622 = vld [vmem:[%s4619 + $0x10] sm:$0xff]
        %v4623 = vld [vmem:[%s4619 + $0x18] sm:$0xff]
        %4624 = vmatpush.msra.mxu0 0.0
        %4625 = vmatpush.msra.mxu0 0.0
        %4626 = vmatpush.msra.mxu0 0.0
        %4627 = vmatpush.msra.mxu0 0.0
        %4628 = vmatpush.msra.mxu0 0.0
        %4629 = vmatpush.msra.mxu0 0.0
        %4630 = vmatpush.msra.mxu0 0.0
        %4631 = vmatpush.msra.mxu0 0.0
        %4632 = vmatpush.msra.mxu0 0.0
        %4633 = vmatpush.msra.mxu0 0.0
        %4634 = vmatpush.msra.mxu0 0.0
        %4635 = vmatpush.msra.mxu0 0.0
        %4636 = vmatpush.msra.mxu0 %v4623
        %4637 = vmatpush.msra.mxu0 %v4622
        %4638 = vmatpush.msra.mxu0 %v4621
        %4639 = vmatpush.msra.mxu0 %v4620
        %4640 = vmatmul.f32.gmra.mxu0 %v4458
        %v4641 = vpop.f32.mrf.mxu0
        %v4642 = vadd.f32 0.0, %v4641
        %4643 = vdwg.mxu0
        %s4644 = scalar_lea.vmem %s7, 800
        %v4645 = vld [vmem:[%s4644] sm:$0xff]
        %v4646 = vld [vmem:[%s4644 + $0x8] sm:$0xff]
        %v4647 = vld [vmem:[%s4644 + $0x10] sm:$0xff]
        %v4648 = vld [vmem:[%s4644 + $0x18] sm:$0xff]
        %4649 = vmatpush.msra.mxu0 0.0
        %4650 = vmatpush.msra.mxu0 0.0
        %4651 = vmatpush.msra.mxu0 0.0
        %4652 = vmatpush.msra.mxu0 0.0
        %4653 = vmatpush.msra.mxu0 0.0
        %4654 = vmatpush.msra.mxu0 0.0
        %4655 = vmatpush.msra.mxu0 0.0
        %4656 = vmatpush.msra.mxu0 0.0
        %4657 = vmatpush.msra.mxu0 0.0
        %4658 = vmatpush.msra.mxu0 0.0
        %4659 = vmatpush.msra.mxu0 0.0
        %4660 = vmatpush.msra.mxu0 0.0
        %4661 = vmatpush.msra.mxu0 %v4648
        %4662 = vmatpush.msra.mxu0 %v4647
        %4663 = vmatpush.msra.mxu0 %v4646
        %4664 = vmatpush.msra.mxu0 %v4645
        %4665 = vmatmul.f32.gmra.mxu0 %v4458
        %v4666 = vpop.f32.mrf.mxu0
        %v4667 = vadd.f32 0.0, %v4666
        %4668 = vdwg.mxu0
        %v4670 = vsel %vm584, %v4617, 0
        %v4673 = vsel %vm584, %v4642, 0
        %4675 = vmatpush.xpose.msra.mxu0 0.0
        %4676 = vmatpush.xpose.msra.mxu0 0.0
        %4677 = vmatpush.xpose.msra.mxu0 0.0
        %4678 = vmatpush.xpose.msra.mxu0 0.0
        %4679 = vmatpush.xpose.msra.mxu0 0.0
        %4680 = vmatpush.xpose.msra.mxu0 0.0
        %4681 = vmatpush.xpose.msra.mxu0 0.0
        %4682 = vmatpush.xpose.msra.mxu0 0.0
        %4683 = vmatpush.xpose.msra.mxu0 0.0
        %4684 = vmatpush.xpose.msra.mxu0 0.0
        %4685 = vmatpush.xpose.msra.mxu0 0.0
        %4686 = vmatpush.xpose.msra.mxu0 0.0
        %4687 = vmatpush.xpose.msra.mxu0 0.0
        %4688 = vmatpush.xpose.msra.mxu0 0.0
        %4689 = vmatpush.xpose.msra.mxu0 0.0
        %4690 = vmatpush.xpose.msra.mxu0 %v4673
        %4691 = vmatmul.f32.gmra.mxu0 %v4670
        %v4692 = vpop.f32.mrf.mxu0
        %v4693 = vadd.f32 0.0, %v4692
        %4694 = vdwg.mxu0
        %v4695 = vmul.f32 %v4693, 0.17677669
        %v4696 = vsel %vm468, %v4695, -1e+30
        %v4697 = vsel %vm584, %v4696, -inf
        %4698 = vmax.xlane.f32.xlu0 %v4697
        %v4699 = vpop.xlane.xlu0 %4698
        %v4700 = vsub.f32 %v4696, %v4699
        %v4701 = vmul.f32 %v4700, 1.442695
        %v4702 = vpow.pop %v4701
        %v4703 = vsel %vm584, %v4702, 0.0
        %4704 = vadd.xlane.f32.xlu0 %v4703
        %v4705 = vpop.xlane.xlu0 %4704
        %v4706 = vrcp.pop %v4705
        %v4707 = vmul.f32 %v4702, %v4706
        %v4709 = vsel %vm584, %v4707, 0
        %4711 = vmatpush.msra.mxu0 0.0
        %4712 = vmatpush.msra.mxu0 0.0
        %4713 = vmatpush.msra.mxu0 0.0
        %4714 = vmatpush.msra.mxu0 0.0
        %4715 = vmatpush.msra.mxu0 0.0
        %4716 = vmatpush.msra.mxu0 0.0
        %4717 = vmatpush.msra.mxu0 0.0
        %4718 = vmatpush.msra.mxu0 0.0
        %4719 = vmatpush.msra.mxu0 0.0
        %4720 = vmatpush.msra.mxu0 0.0
        %4721 = vmatpush.msra.mxu0 0.0
        %4722 = vmatpush.msra.mxu0 0.0
        %4723 = vmatpush.msra.mxu0 0.0
        %4724 = vmatpush.msra.mxu0 0.0
        %4725 = vmatpush.msra.mxu0 0.0
        %4726 = vmatpush.msra.mxu0 %v4667
        %4727 = vmatmul.f32.gmra.mxu0 %v4709
        %v4728 = vpop.f32.mrf.mxu0
        %v4729 = vadd.f32 0.0, %v4728
        %4730 = vdwg.mxu0
        %s4731 = scalar_lea.vmem %s8, 200
        %v4732 = vld [vmem:[%s4731] sm:$0xff]
        %v4734 = vsel %vm584, %v4729, 0
        %4736 = vmatpush.msra.mxu0 0.0
        %4737 = vmatpush.msra.mxu0 0.0
        %4738 = vmatpush.msra.mxu0 0.0
        %4739 = vmatpush.msra.mxu0 0.0
        %4740 = vmatpush.msra.mxu0 0.0
        %4741 = vmatpush.msra.mxu0 0.0
        %4742 = vmatpush.msra.mxu0 0.0
        %4743 = vmatpush.msra.mxu0 0.0
        %4744 = vmatpush.msra.mxu0 0.0
        %4745 = vmatpush.msra.mxu0 0.0
        %4746 = vmatpush.msra.mxu0 0.0
        %4747 = vmatpush.msra.mxu0 0.0
        %4748 = vmatpush.msra.mxu0 0.0
        %4749 = vmatpush.msra.mxu0 0.0
        %4750 = vmatpush.msra.mxu0 0.0
        %4751 = vmatpush.msra.mxu0 %v4732
        %4752 = vmatmul.f32.gmra.mxu0 %v4734
        %v4753 = vpop.f32.mrf.mxu0
        %v4754 = vadd.f32 0.0, %v4753
        %4755 = vdwg.mxu0
        %v4757 = vsel %vm584, %v4590, 0
        %4759 = vmatpush.msra.mxu0 0.0
        %4760 = vmatpush.msra.mxu0 0.0
        %4761 = vmatpush.msra.mxu0 0.0
        %4762 = vmatpush.msra.mxu0 0.0
        %4763 = vmatpush.msra.mxu0 0.0
        %4764 = vmatpush.msra.mxu0 0.0
        %4765 = vmatpush.msra.mxu0 0.0
        %4766 = vmatpush.msra.mxu0 0.0
        %4767 = vmatpush.msra.mxu0 0.0
        %4768 = vmatpush.msra.mxu0 0.0
        %4769 = vmatpush.msra.mxu0 0.0
        %4770 = vmatpush.msra.mxu0 0.0
        %4771 = vmatpush.msra.mxu0 0.0
        %4772 = vmatpush.msra.mxu0 0.0
        %4773 = vmatpush.msra.mxu0 0.0
        %4774 = vmatpush.msra.mxu0 %v4593
        %4775 = vmatmul.f32.gmra.mxu0 %v4757
        %v4776 = vpop.f32.mrf.mxu0
        %v4777 = vadd.f32 %v4754, %v4776
        %4778 = vdwg.mxu0
        %s4779 = scalar_lea.vmem %s5, 832
        %v4780 = vld [vmem:[%s4779] sm:$0xff]
        %v4781 = vld [vmem:[%s4779 + $0x8] sm:$0xff]
        %v4782 = vld [vmem:[%s4779 + $0x10] sm:$0xff]
        %v4783 = vld [vmem:[%s4779 + $0x18] sm:$0xff]
        %4784 = vmatpush.msra.mxu0 0.0
        %4785 = vmatpush.msra.mxu0 0.0
        %4786 = vmatpush.msra.mxu0 0.0
        %4787 = vmatpush.msra.mxu0 0.0
        %4788 = vmatpush.msra.mxu0 0.0
        %4789 = vmatpush.msra.mxu0 0.0
        %4790 = vmatpush.msra.mxu0 0.0
        %4791 = vmatpush.msra.mxu0 0.0
        %4792 = vmatpush.msra.mxu0 0.0
        %4793 = vmatpush.msra.mxu0 0.0
        %4794 = vmatpush.msra.mxu0 0.0
        %4795 = vmatpush.msra.mxu0 0.0
        %4796 = vmatpush.msra.mxu0 %v4783
        %4797 = vmatpush.msra.mxu0 %v4782
        %4798 = vmatpush.msra.mxu0 %v4781
        %4799 = vmatpush.msra.mxu0 %v4780
        %4800 = vmatmul.f32.gmra.mxu0 %v4458
        %v4801 = vpop.f32.mrf.mxu0
        %v4802 = vadd.f32 0.0, %v4801
        %4803 = vdwg.mxu0
        %s4804 = scalar_lea.vmem %s6, 832
        %v4805 = vld [vmem:[%s4804] sm:$0xff]
        %v4806 = vld [vmem:[%s4804 + $0x8] sm:$0xff]
        %v4807 = vld [vmem:[%s4804 + $0x10] sm:$0xff]
        %v4808 = vld [vmem:[%s4804 + $0x18] sm:$0xff]
        %4809 = vmatpush.msra.mxu0 0.0
        %4810 = vmatpush.msra.mxu0 0.0
        %4811 = vmatpush.msra.mxu0 0.0
        %4812 = vmatpush.msra.mxu0 0.0
        %4813 = vmatpush.msra.mxu0 0.0
        %4814 = vmatpush.msra.mxu0 0.0
        %4815 = vmatpush.msra.mxu0 0.0
        %4816 = vmatpush.msra.mxu0 0.0
        %4817 = vmatpush.msra.mxu0 0.0
        %4818 = vmatpush.msra.mxu0 0.0
        %4819 = vmatpush.msra.mxu0 0.0
        %4820 = vmatpush.msra.mxu0 0.0
        %4821 = vmatpush.msra.mxu0 %v4808
        %4822 = vmatpush.msra.mxu0 %v4807
        %4823 = vmatpush.msra.mxu0 %v4806
        %4824 = vmatpush.msra.mxu0 %v4805
        %4825 = vmatmul.f32.gmra.mxu0 %v4458
        %v4826 = vpop.f32.mrf.mxu0
        %v4827 = vadd.f32 0.0, %v4826
        %4828 = vdwg.mxu0
        %s4829 = scalar_lea.vmem %s7, 832
        %v4830 = vld [vmem:[%s4829] sm:$0xff]
        %v4831 = vld [vmem:[%s4829 + $0x8] sm:$0xff]
        %v4832 = vld [vmem:[%s4829 + $0x10] sm:$0xff]
        %v4833 = vld [vmem:[%s4829 + $0x18] sm:$0xff]
        %4834 = vmatpush.msra.mxu0 0.0
        %4835 = vmatpush.msra.mxu0 0.0
        %4836 = vmatpush.msra.mxu0 0.0
        %4837 = vmatpush.msra.mxu0 0.0
        %4838 = vmatpush.msra.mxu0 0.0
        %4839 = vmatpush.msra.mxu0 0.0
        %4840 = vmatpush.msra.mxu0 0.0
        %4841 = vmatpush.msra.mxu0 0.0
        %4842 = vmatpush.msra.mxu0 0.0
        %4843 = vmatpush.msra.mxu0 0.0
        %4844 = vmatpush.msra.mxu0 0.0
        %4845 = vmatpush.msra.mxu0 0.0
        %4846 = vmatpush.msra.mxu0 %v4833
        %4847 = vmatpush.msra.mxu0 %v4832
        %4848 = vmatpush.msra.mxu0 %v4831
        %4849 = vmatpush.msra.mxu0 %v4830
        %4850 = vmatmul.f32.gmra.mxu0 %v4458
        %v4851 = vpop.f32.mrf.mxu0
        %v4852 = vadd.f32 0.0, %v4851
        %4853 = vdwg.mxu0
        %v4855 = vsel %vm584, %v4802, 0
        %v4858 = vsel %vm584, %v4827, 0
        %4860 = vmatpush.xpose.msra.mxu0 0.0
        %4861 = vmatpush.xpose.msra.mxu0 0.0
        %4862 = vmatpush.xpose.msra.mxu0 0.0
        %4863 = vmatpush.xpose.msra.mxu0 0.0
        %4864 = vmatpush.xpose.msra.mxu0 0.0
        %4865 = vmatpush.xpose.msra.mxu0 0.0
        %4866 = vmatpush.xpose.msra.mxu0 0.0
        %4867 = vmatpush.xpose.msra.mxu0 0.0
        %4868 = vmatpush.xpose.msra.mxu0 0.0
        %4869 = vmatpush.xpose.msra.mxu0 0.0
        %4870 = vmatpush.xpose.msra.mxu0 0.0
        %4871 = vmatpush.xpose.msra.mxu0 0.0
        %4872 = vmatpush.xpose.msra.mxu0 0.0
        %4873 = vmatpush.xpose.msra.mxu0 0.0
        %4874 = vmatpush.xpose.msra.mxu0 0.0
        %4875 = vmatpush.xpose.msra.mxu0 %v4858
        %4876 = vmatmul.f32.gmra.mxu0 %v4855
        %v4877 = vpop.f32.mrf.mxu0
        %v4878 = vadd.f32 0.0, %v4877
        %4879 = vdwg.mxu0
        %v4880 = vmul.f32 %v4878, 0.17677669
        %v4881 = vsel %vm468, %v4880, -1e+30
        %v4882 = vsel %vm584, %v4881, -inf
        %4883 = vmax.xlane.f32.xlu0 %v4882
        %v4884 = vpop.xlane.xlu0 %4883
        %v4885 = vsub.f32 %v4881, %v4884
        %v4886 = vmul.f32 %v4885, 1.442695
        %v4887 = vpow.pop %v4886
        %v4888 = vsel %vm584, %v4887, 0.0
        %4889 = vadd.xlane.f32.xlu0 %v4888
        %v4890 = vpop.xlane.xlu0 %4889
        %v4891 = vrcp.pop %v4890
        %v4892 = vmul.f32 %v4887, %v4891
        %v4894 = vsel %vm584, %v4892, 0
        %4896 = vmatpush.msra.mxu0 0.0
        %4897 = vmatpush.msra.mxu0 0.0
        %4898 = vmatpush.msra.mxu0 0.0
        %4899 = vmatpush.msra.mxu0 0.0
        %4900 = vmatpush.msra.mxu0 0.0
        %4901 = vmatpush.msra.mxu0 0.0
        %4902 = vmatpush.msra.mxu0 0.0
        %4903 = vmatpush.msra.mxu0 0.0
        %4904 = vmatpush.msra.mxu0 0.0
        %4905 = vmatpush.msra.mxu0 0.0
        %4906 = vmatpush.msra.mxu0 0.0
        %4907 = vmatpush.msra.mxu0 0.0
        %4908 = vmatpush.msra.mxu0 0.0
        %4909 = vmatpush.msra.mxu0 0.0
        %4910 = vmatpush.msra.mxu0 0.0
        %4911 = vmatpush.msra.mxu0 %v4852
        %4912 = vmatmul.f32.gmra.mxu0 %v4894
        %v4913 = vpop.f32.mrf.mxu0
        %v4914 = vadd.f32 0.0, %v4913
        %4915 = vdwg.mxu0
        %s4916 = scalar_lea.vmem %s8, 208
        %v4917 = vld [vmem:[%s4916] sm:$0xff]
        %v4919 = vsel %vm584, %v4914, 0
        %4921 = vmatpush.msra.mxu0 0.0
        %4922 = vmatpush.msra.mxu0 0.0
        %4923 = vmatpush.msra.mxu0 0.0
        %4924 = vmatpush.msra.mxu0 0.0
        %4925 = vmatpush.msra.mxu0 0.0
        %4926 = vmatpush.msra.mxu0 0.0
        %4927 = vmatpush.msra.mxu0 0.0
        %4928 = vmatpush.msra.mxu0 0.0
        %4929 = vmatpush.msra.mxu0 0.0
        %4930 = vmatpush.msra.mxu0 0.0
        %4931 = vmatpush.msra.mxu0 0.0
        %4932 = vmatpush.msra.mxu0 0.0
        %4933 = vmatpush.msra.mxu0 0.0
        %4934 = vmatpush.msra.mxu0 0.0
        %4935 = vmatpush.msra.mxu0 0.0
        %4936 = vmatpush.msra.mxu0 %v4917
        %4937 = vmatmul.f32.gmra.mxu0 %v4919
        %v4938 = vpop.f32.mrf.mxu0
        %v4939 = vadd.f32 0.0, %v4938
        %4940 = vdwg.mxu0
        %v4941 = vadd.f32 %v4777, %v4939
        %s4942 = scalar_lea.vmem %s5, 864
        %v4943 = vld [vmem:[%s4942] sm:$0xff]
        %v4944 = vld [vmem:[%s4942 + $0x8] sm:$0xff]
        %v4945 = vld [vmem:[%s4942 + $0x10] sm:$0xff]
        %v4946 = vld [vmem:[%s4942 + $0x18] sm:$0xff]
        %4947 = vmatpush.msra.mxu0 0.0
        %4948 = vmatpush.msra.mxu0 0.0
        %4949 = vmatpush.msra.mxu0 0.0
        %4950 = vmatpush.msra.mxu0 0.0
        %4951 = vmatpush.msra.mxu0 0.0
        %4952 = vmatpush.msra.mxu0 0.0
        %4953 = vmatpush.msra.mxu0 0.0
        %4954 = vmatpush.msra.mxu0 0.0
        %4955 = vmatpush.msra.mxu0 0.0
        %4956 = vmatpush.msra.mxu0 0.0
        %4957 = vmatpush.msra.mxu0 0.0
        %4958 = vmatpush.msra.mxu0 0.0
        %4959 = vmatpush.msra.mxu0 %v4946
        %4960 = vmatpush.msra.mxu0 %v4945
        %4961 = vmatpush.msra.mxu0 %v4944
        %4962 = vmatpush.msra.mxu0 %v4943
        %4963 = vmatmul.f32.gmra.mxu0 %v4458
        %v4964 = vpop.f32.mrf.mxu0
        %v4965 = vadd.f32 0.0, %v4964
        %4966 = vdwg.mxu0
        %s4967 = scalar_lea.vmem %s6, 864
        %v4968 = vld [vmem:[%s4967] sm:$0xff]
        %v4969 = vld [vmem:[%s4967 + $0x8] sm:$0xff]
        %v4970 = vld [vmem:[%s4967 + $0x10] sm:$0xff]
        %v4971 = vld [vmem:[%s4967 + $0x18] sm:$0xff]
        %4972 = vmatpush.msra.mxu0 0.0
        %4973 = vmatpush.msra.mxu0 0.0
        %4974 = vmatpush.msra.mxu0 0.0
        %4975 = vmatpush.msra.mxu0 0.0
        %4976 = vmatpush.msra.mxu0 0.0
        %4977 = vmatpush.msra.mxu0 0.0
        %4978 = vmatpush.msra.mxu0 0.0
        %4979 = vmatpush.msra.mxu0 0.0
        %4980 = vmatpush.msra.mxu0 0.0
        %4981 = vmatpush.msra.mxu0 0.0
        %4982 = vmatpush.msra.mxu0 0.0
        %4983 = vmatpush.msra.mxu0 0.0
        %4984 = vmatpush.msra.mxu0 %v4971
        %4985 = vmatpush.msra.mxu0 %v4970
        %4986 = vmatpush.msra.mxu0 %v4969
        %4987 = vmatpush.msra.mxu0 %v4968
        %4988 = vmatmul.f32.gmra.mxu0 %v4458
        %v4989 = vpop.f32.mrf.mxu0
        %v4990 = vadd.f32 0.0, %v4989
        %4991 = vdwg.mxu0
        %s4992 = scalar_lea.vmem %s7, 864
        %v4993 = vld [vmem:[%s4992] sm:$0xff]
        %v4994 = vld [vmem:[%s4992 + $0x8] sm:$0xff]
        %v4995 = vld [vmem:[%s4992 + $0x10] sm:$0xff]
        %v4996 = vld [vmem:[%s4992 + $0x18] sm:$0xff]
        %4997 = vmatpush.msra.mxu0 0.0
        %4998 = vmatpush.msra.mxu0 0.0
        %4999 = vmatpush.msra.mxu0 0.0
        %5000 = vmatpush.msra.mxu0 0.0
        %5001 = vmatpush.msra.mxu0 0.0
        %5002 = vmatpush.msra.mxu0 0.0
        %5003 = vmatpush.msra.mxu0 0.0
        %5004 = vmatpush.msra.mxu0 0.0
        %5005 = vmatpush.msra.mxu0 0.0
        %5006 = vmatpush.msra.mxu0 0.0
        %5007 = vmatpush.msra.mxu0 0.0
        %5008 = vmatpush.msra.mxu0 0.0
        %5009 = vmatpush.msra.mxu0 %v4996
        %5010 = vmatpush.msra.mxu0 %v4995
        %5011 = vmatpush.msra.mxu0 %v4994
        %5012 = vmatpush.msra.mxu0 %v4993
        %5013 = vmatmul.f32.gmra.mxu0 %v4458
        %v5014 = vpop.f32.mrf.mxu0
        %v5015 = vadd.f32 0.0, %v5014
        %5016 = vdwg.mxu0
        %v5018 = vsel %vm584, %v4965, 0
        %v5021 = vsel %vm584, %v4990, 0
        %5023 = vmatpush.xpose.msra.mxu0 0.0
        %5024 = vmatpush.xpose.msra.mxu0 0.0
        %5025 = vmatpush.xpose.msra.mxu0 0.0
        %5026 = vmatpush.xpose.msra.mxu0 0.0
        %5027 = vmatpush.xpose.msra.mxu0 0.0
        %5028 = vmatpush.xpose.msra.mxu0 0.0
        %5029 = vmatpush.xpose.msra.mxu0 0.0
        %5030 = vmatpush.xpose.msra.mxu0 0.0
        %5031 = vmatpush.xpose.msra.mxu0 0.0
        %5032 = vmatpush.xpose.msra.mxu0 0.0
        %5033 = vmatpush.xpose.msra.mxu0 0.0
        %5034 = vmatpush.xpose.msra.mxu0 0.0
        %5035 = vmatpush.xpose.msra.mxu0 0.0
        %5036 = vmatpush.xpose.msra.mxu0 0.0
        %5037 = vmatpush.xpose.msra.mxu0 0.0
        %5038 = vmatpush.xpose.msra.mxu0 %v5021
        %5039 = vmatmul.f32.gmra.mxu0 %v5018
        %v5040 = vpop.f32.mrf.mxu0
        %v5041 = vadd.f32 0.0, %v5040
        %5042 = vdwg.mxu0
        %v5043 = vmul.f32 %v5041, 0.17677669
        %v5044 = vsel %vm468, %v5043, -1e+30
        %v5045 = vsel %vm584, %v5044, -inf
        %5046 = vmax.xlane.f32.xlu0 %v5045
        %v5047 = vpop.xlane.xlu0 %5046
        %v5048 = vsub.f32 %v5044, %v5047
        %v5049 = vmul.f32 %v5048, 1.442695
        %v5050 = vpow.pop %v5049
        %v5051 = vsel %vm584, %v5050, 0.0
        %5052 = vadd.xlane.f32.xlu0 %v5051
        %v5053 = vpop.xlane.xlu0 %5052
        %v5054 = vrcp.pop %v5053
        %v5055 = vmul.f32 %v5050, %v5054
        %v5057 = vsel %vm584, %v5055, 0
        %5059 = vmatpush.msra.mxu0 0.0
        %5060 = vmatpush.msra.mxu0 0.0
        %5061 = vmatpush.msra.mxu0 0.0
        %5062 = vmatpush.msra.mxu0 0.0
        %5063 = vmatpush.msra.mxu0 0.0
        %5064 = vmatpush.msra.mxu0 0.0
        %5065 = vmatpush.msra.mxu0 0.0
        %5066 = vmatpush.msra.mxu0 0.0
        %5067 = vmatpush.msra.mxu0 0.0
        %5068 = vmatpush.msra.mxu0 0.0
        %5069 = vmatpush.msra.mxu0 0.0
        %5070 = vmatpush.msra.mxu0 0.0
        %5071 = vmatpush.msra.mxu0 0.0
        %5072 = vmatpush.msra.mxu0 0.0
        %5073 = vmatpush.msra.mxu0 0.0
        %5074 = vmatpush.msra.mxu0 %v5015
        %5075 = vmatmul.f32.gmra.mxu0 %v5057
        %v5076 = vpop.f32.mrf.mxu0
        %v5077 = vadd.f32 0.0, %v5076
        %5078 = vdwg.mxu0
        %s5079 = scalar_lea.vmem %s8, 216
        %v5080 = vld [vmem:[%s5079] sm:$0xff]
        %v5082 = vsel %vm584, %v5077, 0
        %5084 = vmatpush.msra.mxu0 0.0
        %5085 = vmatpush.msra.mxu0 0.0
        %5086 = vmatpush.msra.mxu0 0.0
        %5087 = vmatpush.msra.mxu0 0.0
        %5088 = vmatpush.msra.mxu0 0.0
        %5089 = vmatpush.msra.mxu0 0.0
        %5090 = vmatpush.msra.mxu0 0.0
        %5091 = vmatpush.msra.mxu0 0.0
        %5092 = vmatpush.msra.mxu0 0.0
        %5093 = vmatpush.msra.mxu0 0.0
        %5094 = vmatpush.msra.mxu0 0.0
        %5095 = vmatpush.msra.mxu0 0.0
        %5096 = vmatpush.msra.mxu0 0.0
        %5097 = vmatpush.msra.mxu0 0.0
        %5098 = vmatpush.msra.mxu0 0.0
        %5099 = vmatpush.msra.mxu0 %v5080
        %5100 = vmatmul.f32.gmra.mxu0 %v5082
        %v5101 = vpop.f32.mrf.mxu0
        %v5102 = vadd.f32 0.0, %v5101
        %5103 = vdwg.mxu0
        %v5104 = vadd.f32 %v4941, %v5102
        %s5105 = scalar_lea.vmem %s9, 6
        %v5106 = vld [vmem:[%s5105] sm:$0x1]
        %v5108 = vperm.slane %v5106, 0
        %v5110 = vadd.f32 %v5104, %v5108
        %v5111 = vadd.f32 %v3795, %v4451
        %v5112 = vadd.f32 %v5111, %v5110
        %v5113 = vmul.f32 %v5112, 0.33333334
        %v5114 = vadd.f32 %v463, %v5113
        %v5115 = vld [vmem:[%s3] sm:$0x1]
        %v5116 = vld [vmem:[%s4] sm:$0x1]
        %v5117 = vsel %vm471, %v5114, 0.0
        %5118 = vadd.xlane.f32.xlu0 %v5117
        %v5119 = vpop.xlane.xlu0 %5118
        %v5120 = vmul.f32 %v5119, %v481
        %v5121 = vsub.f32 %v5114, %v5120
        %v5122 = vmul.f32 %v5121, %v5121
        %v5123 = vsel %vm471, %v5122, 0.0
        %5124 = vadd.xlane.f32.xlu0 %v5123
        %v5125 = vpop.xlane.xlu0 %5124
        %v5126 = vmul.f32 %v5125, %v481
        %v5127 = vadd.f32 %v5126, 1e-05
        %v5128 = vrsqrt.pop %v5127
        %v5129 = vmul.f32 %v5128, %v5127
        %v5130 = vmul.f32 %v5129, %v5128
        %v5131 = vmul.f32 0.5, %v5130
        %v5132 = vsub.f32 1.5, %v5131
        %v5133 = vmul.f32 %v5128, %v5132
        %vm5134 = vweird.f32 %v5127
        %vm5135 = vweird.f32 %v5128
        %vm5136 = vmor %vm5134, %vm5135
        %v5137 = vsel %vm5136, %v5128, %v5133
        %v5138 = vmul.f32 %v5121, %v5137
        %v5140 = vperm.slane %v5115, 0
        %v5142 = vmul.f32 %v5138, %v5140
        %v5144 = vperm.slane %v5116, 0
        %v5146 = vadd.f32 %v5142, %v5144
        %v5147 = vld [vmem:[%s10] sm:$0xff]
        %v5148 = vld [vmem:[%s10 + $0x8] sm:$0xff]
        %v5149 = vld [vmem:[%s10 + $0x10] sm:$0xff]
        %v5150 = vld [vmem:[%s10 + $0x18] sm:$0xff]
        %v5151 = vld [vmem:[%s11] sm:$0x1]
        %v5153 = vperm.slane %v5151, 0
        %v5156 = vsel %vm471, %v5146, 0
        %5158 = vmatpush.msra.mxu0 0.0
        %5159 = vmatpush.msra.mxu0 0.0
        %5160 = vmatpush.msra.mxu0 0.0
        %5161 = vmatpush.msra.mxu0 0.0
        %5162 = vmatpush.msra.mxu0 0.0
        %5163 = vmatpush.msra.mxu0 0.0
        %5164 = vmatpush.msra.mxu0 0.0
        %5165 = vmatpush.msra.mxu0 0.0
        %5166 = vmatpush.msra.mxu0 0.0
        %5167 = vmatpush.msra.mxu0 0.0
        %5168 = vmatpush.msra.mxu0 0.0
        %5169 = vmatpush.msra.mxu0 0.0
        %5170 = vmatpush.msra.mxu0 %v5150
        %5171 = vmatpush.msra.mxu0 %v5149
        %5172 = vmatpush.msra.mxu0 %v5148
        %5173 = vmatpush.msra.mxu0 %v5147
        %5174 = vmatmul.f32.gmra.mxu0 %v5156
        %v5175 = vpop.f32.mrf.mxu0
        %v5176 = vadd.f32 %v5153, %v5175
        %5177 = vdwg.mxu0
        %v5178 = vmax.f32 %v5176, 0.0
        %v5179 = vld [vmem:[%s12] sm:$0xff]
        %v5180 = vld [vmem:[%s12 + $0x8] sm:$0xff]
        %v5181 = vld [vmem:[%s12 + $0x10] sm:$0xff]
        %v5182 = vld [vmem:[%s12 + $0x18] sm:$0xff]
        %v5183 = vld [vmem:[%s12 + $0x20] sm:$0xff]
        %v5184 = vld [vmem:[%s12 + $0x28] sm:$0xff]
        %v5185 = vld [vmem:[%s12 + $0x30] sm:$0xff]
        %v5186 = vld [vmem:[%s12 + $0x38] sm:$0xff]
        %v5187 = vld [vmem:[%s12 + $0x40] sm:$0xff]
        %v5188 = vld [vmem:[%s12 + $0x48] sm:$0xff]
        %v5189 = vld [vmem:[%s12 + $0x50] sm:$0xff]
        %v5190 = vld [vmem:[%s12 + $0x58] sm:$0xff]
        %v5191 = vld [vmem:[%s12 + $0x60] sm:$0xff]
        %v5192 = vld [vmem:[%s12 + $0x68] sm:$0xff]
        %v5193 = vld [vmem:[%s12 + $0x70] sm:$0xff]
        %v5194 = vld [vmem:[%s12 + $0x78] sm:$0xff]
        %5195 = vmatpush.msra.mxu0 %v5194
        %5196 = vmatpush.msra.mxu0 %v5193
        %5197 = vmatpush.msra.mxu0 %v5192
        %5198 = vmatpush.msra.mxu0 %v5191
        %5199 = vmatpush.msra.mxu0 %v5190
        %5200 = vmatpush.msra.mxu0 %v5189
        %5201 = vmatpush.msra.mxu0 %v5188
        %5202 = vmatpush.msra.mxu0 %v5187
        %5203 = vmatpush.msra.mxu0 %v5186
        %5204 = vmatpush.msra.mxu0 %v5185
        %5205 = vmatpush.msra.mxu0 %v5184
        %5206 = vmatpush.msra.mxu0 %v5183
        %5207 = vmatpush.msra.mxu0 %v5182
        %5208 = vmatpush.msra.mxu0 %v5181
        %5209 = vmatpush.msra.mxu0 %v5180
        %5210 = vmatpush.msra.mxu0 %v5179
        %5211 = vmatmul.f32.gmra.mxu0 %v5178
        %v5212 = vpop.f32.mrf.mxu0
        %v5213 = vadd.f32 0.0, %v5212
        %5214 = vdwg.mxu0
        %v5215 = vadd.f32 %v5114, %v5213
        %v5216 = vld [vmem:[%s13] sm:$0x1]
        %v5218 = vperm.slane %v5216, 0
        %v5220 = vadd.f32 %v5215, %v5218
        %5221 = vst.msk [vmem:[%s458] sm:$0xff] %vm471, %v5220
        %s5222 = sand.u32 %s335, 1
        %s5223 = scalar_lea.sflag [#allocation3], %s5222
        %s5224 = sand.u32 %s335, 1
        %s5225 = smul.addr %s5224, 8
        %s5226 = scalar_lea.vmem [#allocation2], %s5225
        // Predicated region
        $region77: #{block_forward.1} parent=75 // pred_check
          %p5227 = pneg %p345
        $region78: #{block_forward.1} parent=75 // pred_check_branch
          %5229 = sbr.rel (%p5227) target = $region80
        $region79: #{block_forward.1} parent=75 // pred_region
          %5231 = vsyncadd %s5223, 0
          %s5232 = smul.addr %s28, 8
          %s5233 = scalar_lea.hbm %s14, %s5232
          %s5235 = sshll.u32 %s5226, 4
          %s5236 = int_to_ptr.vmem [resolvable:$true] %s5235
          %s5237 = sshll.u32 %s5233, 4
          %s5238 = int_to_ptr.hbm [resolvable:$true] %s5237
          %5240 = dma.vmem_to_hbm [thread:$0]  %s5236, 128, %s5238, %s5223
        $region80: #{block_forward.1} parent=75 // pred_fallthru
          _
      $region76: #{block_forward.1} parent=5 // pred_fallthru
        _
      %p5241 = scmp.le.s32.totalorder 2, %s23
      // Predicated region
      $region81: #{block_forward.1} parent=5 // pred_check
        %p5242 = pneg %p5241
      $region82: #{block_forward.1} parent=5 // pred_check_branch
        %5244 = sbr.rel (%p5242) target = $region84
      $region83: #{block_forward.1} parent=5 // pred_region
        %s5245 = ssub.s32 %s23, 2
        // Predicated region
        $region85: #{block_forward.1} parent=83 // pred_check
          %p5246 = pneg %p351
        $region86: #{block_forward.1} parent=83 // pred_check_branch
          %5248 = sbr.rel (%p5246) target = $region88
        $region87: #{block_forward.1} parent=83 // pred_region
          %s5249 = sand.u32 %s336, 1
          %s5250 = scalar_lea.sflag [#allocation3], %s5249
          %s5251 = sand.u32 %s336, 1
          %s5252 = smul.addr %s5251, 8
          %s5253 = scalar_lea.vmem [#allocation2], %s5252
          %5255 = dma.done %s5250, 128
        $region88: #{block_forward.1} parent=83 // pred_fallthru
          _
      $region84: #{block_forward.1} parent=5 // pred_fallthru
        _
    $region6: #{block_forward.1} parent=1 // loop_footer
      %s27 = sadd.s32 1, %s23
    $region7: #{block_forward.1} parent=1 // loop_footer_branch
      %22 = sbr.rel target = $region3
    $region8: #{block_forward.1} parent=1 // loop_exit
      _
    %5256 = vsyncpa [#allocation3], 1
    %s5257 = scalar_lea.sflag [#allocation3], 1
    %5258 = vsyncpa %s5257, 1

</llo_original>
